<compile_context>
chip_gen: v6e
topology: v6e:2x2x1
jax: 0.10.0
libtpu: 0.0.40
codegen_flags: <defaults>
</compile_context>

<pallas_src>
import functools

import jax
import jax.numpy as jnp
from jax.experimental import pallas as pl
from jax.experimental.pallas import tpu as pltpu

_EPS = 1e-5           # PyTorch BatchNorm default eps
_KH, _KW = 3, 5       # conv kernel (3, 5), stride (1, 2), padding (1, 2)


# ---------------------------------------------------------------------------
# Fused whole-encoder kernel
# ---------------------------------------------------------------------------
def _encoder_kernel(patch1_ref, y_ref,
                    w1_ref, b1_ref, w2_ref, b2_ref, w3_ref, b3_ref,
                    wfc_ref, bfc_ref, whx_ref, why_ref, bh_ref,
                    out_ref, *, N, H, W):
    f32 = jnp.float32
    bf16 = jnp.bfloat16
    Wo1, Wo2, Wo3 = W // 2, W // 4, W // 8

    def mm_bn_relu(a, w_ref, b_ref):
        z = jnp.dot(a.astype(bf16), w_ref[...], preferred_element_type=f32)
        return jnp.maximum(z + b_ref[...], 0.0)

    # ---- conv1: aud+sei merged (block-diag weight), one im2col matmul (K=30)
    h1 = mm_bn_relu(patch1_ref[...], w1_ref, b1_ref)        # (Wo1*N*H, 64)

    # ---- build the next conv's zero-padded, parity-split, W-leading input --
    def split_pad(h_prev, Wo, C):
        a = h_prev.reshape(Wo, N, H, C)                     # rows were (wo,n,h)
        zrow = jnp.zeros((Wo, N, 1, C), f32)
        a = jnp.concatenate([zrow, a, zrow], axis=2)        # pad H -> H+2
        zcol = jnp.zeros((2, N, H + 2, C), f32)
        a = jnp.concatenate([zcol, a, zcol], axis=0)        # pad W -> Wo+4
        a = a.reshape(Wo // 2 + 2, 2, N, H + 2, C)          # leading-dim split
        return a[:, 0], a[:, 1]                             # even / odd padded cols

    # ---- strided (1,2) conv as ONE im2col matmul ---------------------------
    def conv(even, odd, w_ref, b_ref, Wo_out, Cin):
        cols = []
        for kh in range(_KH):
            for kw in range(_KW):
                src = even if kw % 2 == 0 else odd
                off = kw // 2
                cols.append(src[off:off + Wo_out, :, kh:kh + H, :])
        p = jnp.concatenate(cols, axis=-1)                  # (Wo_out, N, H, 15*Cin)
        p = p.reshape(Wo_out * N * H, _KH * _KW * Cin)
        return mm_bn_relu(p, w_ref, b_ref)

    e2, o2 = split_pad(h1, Wo1, 64)
    h2 = conv(e2, o2, w2_ref, b2_ref, Wo2, 64)              # (Wo2*N*H, 128)

    e3, o3 = split_pad(h2, Wo2, 128)
    h3 = conv(e3, o3, w3_ref, b3_ref, Wo3, 64 and 128)      # (Wo3*N*H, 64)

    # ---- flatten to (N, Wo3*H*64); feature order (w, h, c), fc rows permuted
    h3r = h3.reshape(Wo3, N, H, 64)
    feats = [h3r[w, :, h, :] for w in range(Wo3) for h in range(H)]
    fc_in = jnp.concatenate(feats, axis=-1)                 # (N, Wo3*H*64)

    hfc = mm_bn_relu(fc_in, wfc_ref, bfc_ref)               # (N, 1024)

    # ---- fused mean|logvar heads: lane-dense (N, 2*nhid) output ------------
    z = (jnp.dot(hfc.astype(bf16), whx_ref[...], preferred_element_type=f32)
         + jnp.dot(y_ref[...].astype(bf16), why_ref[...], preferred_element_type=f32)
         + bh_ref[...])
    out_ref[...] = jnp.maximum(z, 0.0)


# ---------------------------------------------------------------------------
# Wrapper
# ---------------------------------------------------------------------------
def _conv1_im2col(x):
    """x: (N, 2, H, W) NCHW -> im2col patch (W//2*N*H, 30), rows (wo, n, h)."""
    N, S, H, W = x.shape
    Wo = W // 2
    xp = jnp.pad(x, ((0, 0), (0, 0), (1, 1), (2, 2)))       # (N, 2, H+2, W+4)
    xt = jnp.transpose(xp, (3, 0, 2, 1))                    # (W+4, N, H+2, 2)
    cols = []
    for kh in range(_KH):
        for kw in range(_KW):
            cols.append(xt[kw:kw + 2 * Wo:2, :, kh:kh + H, :])
    patch = jnp.concatenate(cols, axis=-1)                  # (Wo, N, H, 30)
    return patch.reshape(Wo * N * H, _KH * _KW * S)


def encoder_forward(params, x, y):
    N, S, H, W = x.shape
    assert S == 2 and W % 8 == 0
    nhid2 = params["bh"].shape[-1]                          # 2 * nhid

    patch1 = _conv1_im2col(x)                               # tiny fused XLA prep

    operands = (patch1, y,
                params["w1"], params["b1"], params["w2"], params["b2"],
                params["w3"], params["b3"], params["wfc"], params["bfc"],
                params["whx"], params["why"], params["bh"])

    def _spec(a):
        return pl.BlockSpec(a.shape, lambda i, nd=a.ndim: (0,) * nd)

    out = pl.pallas_call(
        functools.partial(_encoder_kernel, N=N, H=H, W=W),
        out_shape=jax.ShapeDtypeStruct((N, nhid2), jnp.float32),
        grid=(1,),
        in_specs=[_spec(a) for a in operands],
        out_specs=pl.BlockSpec((N, nhid2), lambda i: (0, 0)),
        compiler_params=pltpu.CompilerParams(
            dimension_semantics=("arbitrary",),
            vmem_limit_bytes=32 * 1024 * 1024),
    )(*operands)

    nhid = nhid2 // 2
    return out[:, :nhid], out[:, nhid:]


# ---------------------------------------------------------------------------
# Deterministic parameters (shapes follow Encoder.__init__), BN folded + fused
# ---------------------------------------------------------------------------
def _bn_stats(key, c):
    kg, kb, km, kv = jax.random.split(key, 4)
    gamma = jax.random.uniform(kg, (c,), jnp.float32, 0.5, 1.5)
    beta = 0.1 * jax.random.normal(kb, (c,), jnp.float32)
    rmean = 0.1 * jax.random.normal(km, (c,), jnp.float32)
    rvar = jax.random.uniform(kv, (c,), jnp.float32, 0.5, 1.5)
    scale = gamma / jnp.sqrt(rvar + _EPS)
    shift = beta - rmean * scale
    return scale, shift


def _conv_weight(key, cin, cout):
    return (jax.random.normal(key, (_KH, _KW, cin, cout), jnp.float32)
            / jnp.sqrt(_KH * _KW * cin))


def init_encoder_params(key, spect_shape=(16, 16), nhid=128, ncond=15):
    H, W = spect_shape
    ks = jax.random.split(key, 16)
    flat = 64 * H * W // 8

    # raw (torch-equivalent) parameters
    w_a1 = _conv_weight(ks[0], 1, 32);   sc_a1, sh_a1 = _bn_stats(ks[1], 32)
    w_a2 = _conv_weight(ks[2], 32, 64);  sc_a2, sh_a2 = _bn_stats(ks[3], 64)
    w_s1 = _conv_weight(ks[4], 1, 32);   sc_s1, sh_s1 = _bn_stats(ks[5], 32)
    w_s2 = _conv_weight(ks[6], 32, 64);  sc_s2, sh_s2 = _bn_stats(ks[7], 64)
    w_e = _conv_weight(ks[8], 128, 64);  sc_e, sh_e = _bn_stats(ks[9], 64)

    wfc_t = jax.random.normal(ks[10], (flat, 1024), jnp.float32) / jnp.sqrt(flat)
    sc_fc, sh_fc = _bn_stats(ks[11], 1024)

    def _head(kw_, kb_, kbn_):
        wm = (jax.random.normal(kw_, (1024 + ncond, nhid), jnp.float32)
              / jnp.sqrt(1024 + ncond))
        bm = 0.01 * jax.random.normal(kb_, (nhid,), jnp.float32)
        sc, sh = _bn_stats(kbn_, nhid)
        return wm, bm, sc, sh

    wm, bm, sc_m, sh_m = _head(ks[12], ks[13], ks[14])
    kl = jax.random.split(ks[15], 3)
    wl, bl, sc_l, sh_l = _head(kl[0], kl[1], kl[2])

    bf16 = jnp.bfloat16

    # conv1: block-diagonal over the two streams (aud -> cols 0..31, sei -> 32..63)
    w1 = jnp.zeros((_KH, _KW, 2, 64), jnp.float32)
    w1 = w1.at[:, :, 0, :32].set(w_a1[:, :, 0, :] * sc_a1)
    w1 = w1.at[:, :, 1, 32:].set(w_s1[:, :, 0, :] * sc_s1)
    b1 = jnp.concatenate([sh_a1, sh_s1])

    # conv2: block-diagonal (aud ch 0..31 -> out 0..63, sei ch 32..63 -> out 64..127)
    w2 = jnp.zeros((_KH, _KW, 64, 128), jnp.float32)
    w2 = w2.at[:, :, :32, :64].set(w_a2 * sc_a2)
    w2 = w2.at[:, :, 32:, 64:].set(w_s2 * sc_s2)
    b2 = jnp.concatenate([sh_a2, sh_s2])

    # conv3 ("encode"): dense; input channel order already [aud 0..63 | sei 64..127]
    w3 = w_e * sc_e
    b3 = sh_e

    # fc: permute rows from torch's NCHW (c, h, w) flatten order to the kernel's
    # (w, h, c) order; fold BN scale (Linear has bias=False).
    Wo3 = W // 8
    f = jnp.arange(flat)
    wi, hi, ci = f // (H * 64), (f // 64) % H, f % 64
    perm = ci * (H * Wo3) + hi * Wo3 + wi
    wfc = wfc_t[perm, :] * sc_fc
    bfc = sh_fc

    # heads: fold BN scale + linear bias, fuse mean|logvar along the output dim
    wm_f = wm * sc_m
    wl_f = wl * sc_l
    whx = jnp.concatenate([wm_f[:1024], wl_f[:1024]], axis=1)     # (1024, 2*nhid)
    why = jnp.concatenate([wm_f[1024:], wl_f[1024:]], axis=1)     # (ncond, 2*nhid)
    bh = jnp.concatenate([bm * sc_m + sh_m, bl * sc_l + sh_l])

    return dict(
        w1=w1.reshape(_KH * _KW * 2, 64).astype(bf16), b1=b1.reshape(1, -1),
        w2=w2.reshape(_KH * _KW * 64, 128).astype(bf16), b2=b2.reshape(1, -1),
        w3=w3.reshape(_KH * _KW * 128, 64).astype(bf16), b3=b3.reshape(1, -1),
        wfc=wfc.astype(bf16), bfc=bfc.reshape(1, -1),
        whx=whx.astype(bf16), why=why.astype(bf16), bh=bh.reshape(1, -1),
    )


if __name__ == "__main__":
    N, H, W, ncond, nhid = 2, 16, 16, 15, 128
    root = jax.random.PRNGKey(0)
    kx, ky, kp = jax.random.split(root, 3)
    x = jax.random.normal(kx, (N, 2, H, W), jnp.float32)    # 2 channels: aud, sei
    y = jax.random.normal(ky, (N, ncond), jnp.float32)
    params = init_encoder_params(kp, (H, W), nhid=nhid, ncond=ncond)

    mean, logvar = jax.jit(encoder_forward)(params, x, y)
    jax.block_until_ready((mean, logvar))
    assert mean.shape == (N, nhid) and logvar.shape == (N, nhid)
    assert mean.dtype == jnp.float32 and logvar.dtype == jnp.float32
    assert bool(jnp.all(jnp.isfinite(mean))) and bool(jnp.all(jnp.isfinite(logvar)))
    print("KERNEL_OK")
</pallas_src>

<mosaic_0001>
module attributes {stable_mosaic.version = 11 : i64} {
  func.func @_encoder_kernel(%arg0: i32, %arg1: memref<256x30xf32, #tpu.memory_space<vmem>>, %arg2: memref<2x15xf32, #tpu.memory_space<vmem>>, %arg3: memref<30x64xbf16, #tpu.memory_space<vmem>>, %arg4: memref<1x64xf32, #tpu.memory_space<vmem>>, %arg5: memref<960x128xbf16, #tpu.memory_space<vmem>>, %arg6: memref<1x128xf32, #tpu.memory_space<vmem>>, %arg7: memref<1920x64xbf16, #tpu.memory_space<vmem>>, %arg8: memref<1x64xf32, #tpu.memory_space<vmem>>, %arg9: memref<2048x1024xbf16, #tpu.memory_space<vmem>>, %arg10: memref<1x1024xf32, #tpu.memory_space<vmem>>, %arg11: memref<1024x256xbf16, #tpu.memory_space<vmem>>, %arg12: memref<15x256xbf16, #tpu.memory_space<vmem>>, %arg13: memref<1x256xf32, #tpu.memory_space<vmem>>, %arg14: memref<2x256xf32, #tpu.memory_space<vmem>>) attributes {dimension_semantics = [#tpu.dimension_semantics<arbitrary>], iteration_bounds = array<i64: 1>, scalar_prefetch = 0 : i64, scratch_operands = 0 : i64, tpu.core_type = #tpu.core_type<tc>, window_params = [{pipeline_mode = #tpu.pipeline_mode<synchronous>, transform_indices = @transform_0, window_bounds = array<i64: 256, 30>}, {pipeline_mode = #tpu.pipeline_mode<synchronous>, transform_indices = @transform_1, window_bounds = array<i64: 2, 15>}, {pipeline_mode = #tpu.pipeline_mode<synchronous>, transform_indices = @transform_2, window_bounds = array<i64: 30, 64>}, {pipeline_mode = #tpu.pipeline_mode<synchronous>, transform_indices = @transform_3, window_bounds = array<i64: 1, 64>}, {pipeline_mode = #tpu.pipeline_mode<synchronous>, transform_indices = @transform_4, window_bounds = array<i64: 960, 128>}, {pipeline_mode = #tpu.pipeline_mode<synchronous>, transform_indices = @transform_5, window_bounds = array<i64: 1, 128>}, {pipeline_mode = #tpu.pipeline_mode<synchronous>, transform_indices = @transform_6, window_bounds = array<i64: 1920, 64>}, {pipeline_mode = #tpu.pipeline_mode<synchronous>, transform_indices = @transform_7, window_bounds = array<i64: 1, 64>}, {pipeline_mode = #tpu.pipeline_mode<synchronous>, transform_indices = @transform_8, window_bounds = array<i64: 2048, 1024>}, {pipeline_mode = #tpu.pipeline_mode<synchronous>, transform_indices = @transform_9, window_bounds = array<i64: 1, 1024>}, {pipeline_mode = #tpu.pipeline_mode<synchronous>, transform_indices = @transform_10, window_bounds = array<i64: 1024, 256>}, {pipeline_mode = #tpu.pipeline_mode<synchronous>, transform_indices = @transform_11, window_bounds = array<i64: 15, 256>}, {pipeline_mode = #tpu.pipeline_mode<synchronous>, transform_indices = @transform_12, window_bounds = array<i64: 1, 256>}, {pipeline_mode = #tpu.pipeline_mode<synchronous>, transform_indices = @transform_13, window_bounds = array<i64: 2, 256>}]} {
    %c0 = arith.constant 0 : index
    %c0_0 = arith.constant 0 : index
    %0 = vector.load %arg1[%c0, %c0_0] : memref<256x30xf32, #tpu.memory_space<vmem>>, vector<256x30xf32>
    %1 = arith.truncf %0 : vector<256x30xf32> to vector<256x30xbf16>
    %c0_1 = arith.constant 0 : index
    %c0_2 = arith.constant 0 : index
    %2 = vector.load %arg3[%c0_1, %c0_2] : memref<30x64xbf16, #tpu.memory_space<vmem>>, vector<30x64xbf16>
    %cst = arith.constant dense<0.000000e+00> : vector<256x64xf32>
    %3 = tpu.matmul %1, %2, %cst {dimension_numbers = #tpu.dot_dimension_numbers<[1], [0], [0], [1], [0, 0, 1, 1], [], []>} : vector<256x30xbf16>, vector<30x64xbf16>, vector<256x64xf32> -> vector<256x64xf32>
    %c0_3 = arith.constant 0 : index
    %c0_4 = arith.constant 0 : index
    %4 = vector.load %arg4[%c0_3, %c0_4] : memref<1x64xf32, #tpu.memory_space<vmem>>, vector<1x64xf32>
    %5 = vector.broadcast %4 : vector<1x64xf32> to vector<256x64xf32>
    %6 = arith.addf %3, %5 : vector<256x64xf32>
    %cst_5 = arith.constant 0.000000e+00 : f32
    %7 = vector.broadcast %cst_5 : f32 to vector<256x64xf32>
    %8 = arith.maximumf %6, %7 : vector<256x64xf32>
    %9 = vector.shape_cast %8 : vector<256x64xf32> to vector<8x2x16x64xf32>
    %cst_6 = arith.constant 0.000000e+00 : f32
    %10 = vector.broadcast %cst_6 : f32 to vector<8x2x1x64xf32>
    %11 = tpu.concatenate %10, %9, %10 in 2 : vector<8x2x1x64xf32>, vector<8x2x16x64xf32>, vector<8x2x1x64xf32> -> vector<8x2x18x64xf32>
    %cst_7 = arith.constant 0.000000e+00 : f32
    %12 = vector.broadcast %cst_7 : f32 to vector<2x2x18x64xf32>
    %13 = tpu.concatenate %12, %11, %12 in 0 : vector<2x2x18x64xf32>, vector<8x2x18x64xf32>, vector<2x2x18x64xf32> -> vector<12x2x18x64xf32>
    %14 = vector.shape_cast %13 : vector<12x2x18x64xf32> to vector<6x2x2x18x64xf32>
    %15 = vector.extract_strided_slice %14 {offsets = [0, 0, 0, 0, 0], sizes = [6, 1, 2, 18, 64], strides = [1, 1, 1, 1, 1]} : vector<6x2x2x18x64xf32> to vector<6x1x2x18x64xf32>
    %16 = vector.shape_cast %15 : vector<6x1x2x18x64xf32> to vector<6x2x18x64xf32>
    %17 = vector.extract_strided_slice %14 {offsets = [0, 1, 0, 0, 0], sizes = [6, 1, 2, 18, 64], strides = [1, 1, 1, 1, 1]} : vector<6x2x2x18x64xf32> to vector<6x1x2x18x64xf32>
    %18 = vector.shape_cast %17 : vector<6x1x2x18x64xf32> to vector<6x2x18x64xf32>
    %19 = vector.extract_strided_slice %16 {offsets = [0, 0, 0, 0], sizes = [4, 2, 16, 64], strides = [1, 1, 1, 1]} : vector<6x2x18x64xf32> to vector<4x2x16x64xf32>
    %20 = vector.extract_strided_slice %18 {offsets = [0, 0, 0, 0], sizes = [4, 2, 16, 64], strides = [1, 1, 1, 1]} : vector<6x2x18x64xf32> to vector<4x2x16x64xf32>
    %21 = vector.extract_strided_slice %16 {offsets = [1, 0, 0, 0], sizes = [4, 2, 16, 64], strides = [1, 1, 1, 1]} : vector<6x2x18x64xf32> to vector<4x2x16x64xf32>
    %22 = vector.extract_strided_slice %18 {offsets = [1, 0, 0, 0], sizes = [4, 2, 16, 64], strides = [1, 1, 1, 1]} : vector<6x2x18x64xf32> to vector<4x2x16x64xf32>
    %23 = vector.extract_strided_slice %16 {offsets = [2, 0, 0, 0], sizes = [4, 2, 16, 64], strides = [1, 1, 1, 1]} : vector<6x2x18x64xf32> to vector<4x2x16x64xf32>
    %24 = vector.extract_strided_slice %16 {offsets = [0, 0, 1, 0], sizes = [4, 2, 16, 64], strides = [1, 1, 1, 1]} : vector<6x2x18x64xf32> to vector<4x2x16x64xf32>
    %25 = vector.extract_strided_slice %18 {offsets = [0, 0, 1, 0], sizes = [4, 2, 16, 64], strides = [1, 1, 1, 1]} : vector<6x2x18x64xf32> to vector<4x2x16x64xf32>
    %26 = vector.extract_strided_slice %16 {offsets = [1, 0, 1, 0], sizes = [4, 2, 16, 64], strides = [1, 1, 1, 1]} : vector<6x2x18x64xf32> to vector<4x2x16x64xf32>
    %27 = vector.extract_strided_slice %18 {offsets = [1, 0, 1, 0], sizes = [4, 2, 16, 64], strides = [1, 1, 1, 1]} : vector<6x2x18x64xf32> to vector<4x2x16x64xf32>
    %28 = vector.extract_strided_slice %16 {offsets = [2, 0, 1, 0], sizes = [4, 2, 16, 64], strides = [1, 1, 1, 1]} : vector<6x2x18x64xf32> to vector<4x2x16x64xf32>
    %29 = vector.extract_strided_slice %16 {offsets = [0, 0, 2, 0], sizes = [4, 2, 16, 64], strides = [1, 1, 1, 1]} : vector<6x2x18x64xf32> to vector<4x2x16x64xf32>
    %30 = vector.extract_strided_slice %18 {offsets = [0, 0, 2, 0], sizes = [4, 2, 16, 64], strides = [1, 1, 1, 1]} : vector<6x2x18x64xf32> to vector<4x2x16x64xf32>
    %31 = vector.extract_strided_slice %16 {offsets = [1, 0, 2, 0], sizes = [4, 2, 16, 64], strides = [1, 1, 1, 1]} : vector<6x2x18x64xf32> to vector<4x2x16x64xf32>
    %32 = vector.extract_strided_slice %18 {offsets = [1, 0, 2, 0], sizes = [4, 2, 16, 64], strides = [1, 1, 1, 1]} : vector<6x2x18x64xf32> to vector<4x2x16x64xf32>
    %33 = vector.extract_strided_slice %16 {offsets = [2, 0, 2, 0], sizes = [4, 2, 16, 64], strides = [1, 1, 1, 1]} : vector<6x2x18x64xf32> to vector<4x2x16x64xf32>
    %34 = tpu.concatenate %19, %20, %21, %22, %23, %24, %25, %26, %27, %28, %29, %30, %31, %32, %33 in 3 : vector<4x2x16x64xf32>, vector<4x2x16x64xf32>, vector<4x2x16x64xf32>, vector<4x2x16x64xf32>, vector<4x2x16x64xf32>, vector<4x2x16x64xf32>, vector<4x2x16x64xf32>, vector<4x2x16x64xf32>, vector<4x2x16x64xf32>, vector<4x2x16x64xf32>, vector<4x2x16x64xf32>, vector<4x2x16x64xf32>, vector<4x2x16x64xf32>, vector<4x2x16x64xf32>, vector<4x2x16x64xf32> -> vector<4x2x16x960xf32>
    %35 = vector.shape_cast %34 : vector<4x2x16x960xf32> to vector<128x960xf32>
    %36 = arith.truncf %35 : vector<128x960xf32> to vector<128x960xbf16>
    %c0_8 = arith.constant 0 : index
    %c0_9 = arith.constant 0 : index
    %37 = vector.load %arg5[%c0_8, %c0_9] : memref<960x128xbf16, #tpu.memory_space<vmem>>, vector<960x128xbf16>
    %cst_10 = arith.constant dense<0.000000e+00> : vector<128x128xf32>
    %38 = tpu.matmul %36, %37, %cst_10 {dimension_numbers = #tpu.dot_dimension_numbers<[1], [0], [0], [1], [0, 0, 1, 1], [], []>} : vector<128x960xbf16>, vector<960x128xbf16>, vector<128x128xf32> -> vector<128x128xf32>
    %c0_11 = arith.constant 0 : index
    %c0_12 = arith.constant 0 : index
    %39 = vector.load %arg6[%c0_11, %c0_12] : memref<1x128xf32, #tpu.memory_space<vmem>>, vector<1x128xf32>
    %40 = vector.broadcast %39 : vector<1x128xf32> to vector<128x128xf32>
    %41 = arith.addf %38, %40 : vector<128x128xf32>
    %cst_13 = arith.constant 0.000000e+00 : f32
    %42 = vector.broadcast %cst_13 : f32 to vector<128x128xf32>
    %43 = arith.maximumf %41, %42 : vector<128x128xf32>
    %44 = vector.shape_cast %43 : vector<128x128xf32> to vector<4x2x16x128xf32>
    %cst_14 = arith.constant 0.000000e+00 : f32
    %45 = vector.broadcast %cst_14 : f32 to vector<4x2x1x128xf32>
    %46 = tpu.concatenate %45, %44, %45 in 2 : vector<4x2x1x128xf32>, vector<4x2x16x128xf32>, vector<4x2x1x128xf32> -> vector<4x2x18x128xf32>
    %cst_15 = arith.constant 0.000000e+00 : f32
    %47 = vector.broadcast %cst_15 : f32 to vector<2x2x18x128xf32>
    %48 = tpu.concatenate %47, %46, %47 in 0 : vector<2x2x18x128xf32>, vector<4x2x18x128xf32>, vector<2x2x18x128xf32> -> vector<8x2x18x128xf32>
    %49 = vector.shape_cast %48 : vector<8x2x18x128xf32> to vector<4x2x2x18x128xf32>
    %50 = vector.extract_strided_slice %49 {offsets = [0, 0, 0, 0, 0], sizes = [4, 1, 2, 18, 128], strides = [1, 1, 1, 1, 1]} : vector<4x2x2x18x128xf32> to vector<4x1x2x18x128xf32>
    %51 = vector.shape_cast %50 : vector<4x1x2x18x128xf32> to vector<4x2x18x128xf32>
    %52 = vector.extract_strided_slice %49 {offsets = [0, 1, 0, 0, 0], sizes = [4, 1, 2, 18, 128], strides = [1, 1, 1, 1, 1]} : vector<4x2x2x18x128xf32> to vector<4x1x2x18x128xf32>
    %53 = vector.shape_cast %52 : vector<4x1x2x18x128xf32> to vector<4x2x18x128xf32>
    %54 = vector.extract_strided_slice %51 {offsets = [0, 0, 0, 0], sizes = [2, 2, 16, 128], strides = [1, 1, 1, 1]} : vector<4x2x18x128xf32> to vector<2x2x16x128xf32>
    %55 = vector.extract_strided_slice %53 {offsets = [0, 0, 0, 0], sizes = [2, 2, 16, 128], strides = [1, 1, 1, 1]} : vector<4x2x18x128xf32> to vector<2x2x16x128xf32>
    %56 = vector.extract_strided_slice %51 {offsets = [1, 0, 0, 0], sizes = [2, 2, 16, 128], strides = [1, 1, 1, 1]} : vector<4x2x18x128xf32> to vector<2x2x16x128xf32>
    %57 = vector.extract_strided_slice %53 {offsets = [1, 0, 0, 0], sizes = [2, 2, 16, 128], strides = [1, 1, 1, 1]} : vector<4x2x18x128xf32> to vector<2x2x16x128xf32>
    %58 = vector.extract_strided_slice %51 {offsets = [2, 0, 0, 0], sizes = [2, 2, 16, 128], strides = [1, 1, 1, 1]} : vector<4x2x18x128xf32> to vector<2x2x16x128xf32>
    %59 = vector.extract_strided_slice %51 {offsets = [0, 0, 1, 0], sizes = [2, 2, 16, 128], strides = [1, 1, 1, 1]} : vector<4x2x18x128xf32> to vector<2x2x16x128xf32>
    %60 = vector.extract_strided_slice %53 {offsets = [0, 0, 1, 0], sizes = [2, 2, 16, 128], strides = [1, 1, 1, 1]} : vector<4x2x18x128xf32> to vector<2x2x16x128xf32>
    %61 = vector.extract_strided_slice %51 {offsets = [1, 0, 1, 0], sizes = [2, 2, 16, 128], strides = [1, 1, 1, 1]} : vector<4x2x18x128xf32> to vector<2x2x16x128xf32>
    %62 = vector.extract_strided_slice %53 {offsets = [1, 0, 1, 0], sizes = [2, 2, 16, 128], strides = [1, 1, 1, 1]} : vector<4x2x18x128xf32> to vector<2x2x16x128xf32>
    %63 = vector.extract_strided_slice %51 {offsets = [2, 0, 1, 0], sizes = [2, 2, 16, 128], strides = [1, 1, 1, 1]} : vector<4x2x18x128xf32> to vector<2x2x16x128xf32>
    %64 = vector.extract_strided_slice %51 {offsets = [0, 0, 2, 0], sizes = [2, 2, 16, 128], strides = [1, 1, 1, 1]} : vector<4x2x18x128xf32> to vector<2x2x16x128xf32>
    %65 = vector.extract_strided_slice %53 {offsets = [0, 0, 2, 0], sizes = [2, 2, 16, 128], strides = [1, 1, 1, 1]} : vector<4x2x18x128xf32> to vector<2x2x16x128xf32>
    %66 = vector.extract_strided_slice %51 {offsets = [1, 0, 2, 0], sizes = [2, 2, 16, 128], strides = [1, 1, 1, 1]} : vector<4x2x18x128xf32> to vector<2x2x16x128xf32>
    %67 = vector.extract_strided_slice %53 {offsets = [1, 0, 2, 0], sizes = [2, 2, 16, 128], strides = [1, 1, 1, 1]} : vector<4x2x18x128xf32> to vector<2x2x16x128xf32>
    %68 = vector.extract_strided_slice %51 {offsets = [2, 0, 2, 0], sizes = [2, 2, 16, 128], strides = [1, 1, 1, 1]} : vector<4x2x18x128xf32> to vector<2x2x16x128xf32>
    %69 = tpu.concatenate %54, %55, %56, %57, %58, %59, %60, %61, %62, %63, %64, %65, %66, %67, %68 in 3 : vector<2x2x16x128xf32>, vector<2x2x16x128xf32>, vector<2x2x16x128xf32>, vector<2x2x16x128xf32>, vector<2x2x16x128xf32>, vector<2x2x16x128xf32>, vector<2x2x16x128xf32>, vector<2x2x16x128xf32>, vector<2x2x16x128xf32>, vector<2x2x16x128xf32>, vector<2x2x16x128xf32>, vector<2x2x16x128xf32>, vector<2x2x16x128xf32>, vector<2x2x16x128xf32>, vector<2x2x16x128xf32> -> vector<2x2x16x1920xf32>
    %70 = vector.shape_cast %69 : vector<2x2x16x1920xf32> to vector<64x1920xf32>
    %71 = arith.truncf %70 : vector<64x1920xf32> to vector<64x1920xbf16>
    %c0_16 = arith.constant 0 : index
    %c0_17 = arith.constant 0 : index
    %72 = vector.load %arg7[%c0_16, %c0_17] : memref<1920x64xbf16, #tpu.memory_space<vmem>>, vector<1920x64xbf16>
    %cst_18 = arith.constant dense<0.000000e+00> : vector<64x64xf32>
    %73 = tpu.matmul %71, %72, %cst_18 {dimension_numbers = #tpu.dot_dimension_numbers<[1], [0], [0], [1], [0, 0, 1, 1], [], []>} : vector<64x1920xbf16>, vector<1920x64xbf16>, vector<64x64xf32> -> vector<64x64xf32>
    %c0_19 = arith.constant 0 : index
    %c0_20 = arith.constant 0 : index
    %74 = vector.load %arg8[%c0_19, %c0_20] : memref<1x64xf32, #tpu.memory_space<vmem>>, vector<1x64xf32>
    %75 = vector.broadcast %74 : vector<1x64xf32> to vector<64x64xf32>
    %76 = arith.addf %73, %75 : vector<64x64xf32>
    %cst_21 = arith.constant 0.000000e+00 : f32
    %77 = vector.broadcast %cst_21 : f32 to vector<64x64xf32>
    %78 = arith.maximumf %76, %77 : vector<64x64xf32>
    %79 = vector.shape_cast %78 : vector<64x64xf32> to vector<2x2x16x64xf32>
    %80 = vector.extract_strided_slice %79 {offsets = [0, 0, 0, 0], sizes = [1, 2, 1, 64], strides = [1, 1, 1, 1]} : vector<2x2x16x64xf32> to vector<1x2x1x64xf32>
    %81 = vector.shape_cast %80 : vector<1x2x1x64xf32> to vector<2x64xf32>
    %82 = vector.extract_strided_slice %79 {offsets = [0, 0, 1, 0], sizes = [1, 2, 1, 64], strides = [1, 1, 1, 1]} : vector<2x2x16x64xf32> to vector<1x2x1x64xf32>
    %83 = vector.shape_cast %82 : vector<1x2x1x64xf32> to vector<2x64xf32>
    %84 = vector.extract_strided_slice %79 {offsets = [0, 0, 2, 0], sizes = [1, 2, 1, 64], strides = [1, 1, 1, 1]} : vector<2x2x16x64xf32> to vector<1x2x1x64xf32>
    %85 = vector.shape_cast %84 : vector<1x2x1x64xf32> to vector<2x64xf32>
    %86 = vector.extract_strided_slice %79 {offsets = [0, 0, 3, 0], sizes = [1, 2, 1, 64], strides = [1, 1, 1, 1]} : vector<2x2x16x64xf32> to vector<1x2x1x64xf32>
    %87 = vector.shape_cast %86 : vector<1x2x1x64xf32> to vector<2x64xf32>
    %88 = vector.extract_strided_slice %79 {offsets = [0, 0, 4, 0], sizes = [1, 2, 1, 64], strides = [1, 1, 1, 1]} : vector<2x2x16x64xf32> to vector<1x2x1x64xf32>
    %89 = vector.shape_cast %88 : vector<1x2x1x64xf32> to vector<2x64xf32>
    %90 = vector.extract_strided_slice %79 {offsets = [0, 0, 5, 0], sizes = [1, 2, 1, 64], strides = [1, 1, 1, 1]} : vector<2x2x16x64xf32> to vector<1x2x1x64xf32>
    %91 = vector.shape_cast %90 : vector<1x2x1x64xf32> to vector<2x64xf32>
    %92 = vector.extract_strided_slice %79 {offsets = [0, 0, 6, 0], sizes = [1, 2, 1, 64], strides = [1, 1, 1, 1]} : vector<2x2x16x64xf32> to vector<1x2x1x64xf32>
    %93 = vector.shape_cast %92 : vector<1x2x1x64xf32> to vector<2x64xf32>
    %94 = vector.extract_strided_slice %79 {offsets = [0, 0, 7, 0], sizes = [1, 2, 1, 64], strides = [1, 1, 1, 1]} : vector<2x2x16x64xf32> to vector<1x2x1x64xf32>
    %95 = vector.shape_cast %94 : vector<1x2x1x64xf32> to vector<2x64xf32>
    %96 = vector.extract_strided_slice %79 {offsets = [0, 0, 8, 0], sizes = [1, 2, 1, 64], strides = [1, 1, 1, 1]} : vector<2x2x16x64xf32> to vector<1x2x1x64xf32>
    %97 = vector.shape_cast %96 : vector<1x2x1x64xf32> to vector<2x64xf32>
    %98 = vector.extract_strided_slice %79 {offsets = [0, 0, 9, 0], sizes = [1, 2, 1, 64], strides = [1, 1, 1, 1]} : vector<2x2x16x64xf32> to vector<1x2x1x64xf32>
    %99 = vector.shape_cast %98 : vector<1x2x1x64xf32> to vector<2x64xf32>
    %100 = vector.extract_strided_slice %79 {offsets = [0, 0, 10, 0], sizes = [1, 2, 1, 64], strides = [1, 1, 1, 1]} : vector<2x2x16x64xf32> to vector<1x2x1x64xf32>
    %101 = vector.shape_cast %100 : vector<1x2x1x64xf32> to vector<2x64xf32>
    %102 = vector.extract_strided_slice %79 {offsets = [0, 0, 11, 0], sizes = [1, 2, 1, 64], strides = [1, 1, 1, 1]} : vector<2x2x16x64xf32> to vector<1x2x1x64xf32>
    %103 = vector.shape_cast %102 : vector<1x2x1x64xf32> to vector<2x64xf32>
    %104 = vector.extract_strided_slice %79 {offsets = [0, 0, 12, 0], sizes = [1, 2, 1, 64], strides = [1, 1, 1, 1]} : vector<2x2x16x64xf32> to vector<1x2x1x64xf32>
    %105 = vector.shape_cast %104 : vector<1x2x1x64xf32> to vector<2x64xf32>
    %106 = vector.extract_strided_slice %79 {offsets = [0, 0, 13, 0], sizes = [1, 2, 1, 64], strides = [1, 1, 1, 1]} : vector<2x2x16x64xf32> to vector<1x2x1x64xf32>
    %107 = vector.shape_cast %106 : vector<1x2x1x64xf32> to vector<2x64xf32>
    %108 = vector.extract_strided_slice %79 {offsets = [0, 0, 14, 0], sizes = [1, 2, 1, 64], strides = [1, 1, 1, 1]} : vector<2x2x16x64xf32> to vector<1x2x1x64xf32>
    %109 = vector.shape_cast %108 : vector<1x2x1x64xf32> to vector<2x64xf32>
    %110 = vector.extract_strided_slice %79 {offsets = [0, 0, 15, 0], sizes = [1, 2, 1, 64], strides = [1, 1, 1, 1]} : vector<2x2x16x64xf32> to vector<1x2x1x64xf32>
    %111 = vector.shape_cast %110 : vector<1x2x1x64xf32> to vector<2x64xf32>
    %112 = vector.extract_strided_slice %79 {offsets = [1, 0, 0, 0], sizes = [1, 2, 1, 64], strides = [1, 1, 1, 1]} : vector<2x2x16x64xf32> to vector<1x2x1x64xf32>
    %113 = vector.shape_cast %112 : vector<1x2x1x64xf32> to vector<2x64xf32>
    %114 = vector.extract_strided_slice %79 {offsets = [1, 0, 1, 0], sizes = [1, 2, 1, 64], strides = [1, 1, 1, 1]} : vector<2x2x16x64xf32> to vector<1x2x1x64xf32>
    %115 = vector.shape_cast %114 : vector<1x2x1x64xf32> to vector<2x64xf32>
    %116 = vector.extract_strided_slice %79 {offsets = [1, 0, 2, 0], sizes = [1, 2, 1, 64], strides = [1, 1, 1, 1]} : vector<2x2x16x64xf32> to vector<1x2x1x64xf32>
    %117 = vector.shape_cast %116 : vector<1x2x1x64xf32> to vector<2x64xf32>
    %118 = vector.extract_strided_slice %79 {offsets = [1, 0, 3, 0], sizes = [1, 2, 1, 64], strides = [1, 1, 1, 1]} : vector<2x2x16x64xf32> to vector<1x2x1x64xf32>
    %119 = vector.shape_cast %118 : vector<1x2x1x64xf32> to vector<2x64xf32>
    %120 = vector.extract_strided_slice %79 {offsets = [1, 0, 4, 0], sizes = [1, 2, 1, 64], strides = [1, 1, 1, 1]} : vector<2x2x16x64xf32> to vector<1x2x1x64xf32>
    %121 = vector.shape_cast %120 : vector<1x2x1x64xf32> to vector<2x64xf32>
    %122 = vector.extract_strided_slice %79 {offsets = [1, 0, 5, 0], sizes = [1, 2, 1, 64], strides = [1, 1, 1, 1]} : vector<2x2x16x64xf32> to vector<1x2x1x64xf32>
    %123 = vector.shape_cast %122 : vector<1x2x1x64xf32> to vector<2x64xf32>
    %124 = vector.extract_strided_slice %79 {offsets = [1, 0, 6, 0], sizes = [1, 2, 1, 64], strides = [1, 1, 1, 1]} : vector<2x2x16x64xf32> to vector<1x2x1x64xf32>
    %125 = vector.shape_cast %124 : vector<1x2x1x64xf32> to vector<2x64xf32>
    %126 = vector.extract_strided_slice %79 {offsets = [1, 0, 7, 0], sizes = [1, 2, 1, 64], strides = [1, 1, 1, 1]} : vector<2x2x16x64xf32> to vector<1x2x1x64xf32>
    %127 = vector.shape_cast %126 : vector<1x2x1x64xf32> to vector<2x64xf32>
    %128 = vector.extract_strided_slice %79 {offsets = [1, 0, 8, 0], sizes = [1, 2, 1, 64], strides = [1, 1, 1, 1]} : vector<2x2x16x64xf32> to vector<1x2x1x64xf32>
    %129 = vector.shape_cast %128 : vector<1x2x1x64xf32> to vector<2x64xf32>
    %130 = vector.extract_strided_slice %79 {offsets = [1, 0, 9, 0], sizes = [1, 2, 1, 64], strides = [1, 1, 1, 1]} : vector<2x2x16x64xf32> to vector<1x2x1x64xf32>
    %131 = vector.shape_cast %130 : vector<1x2x1x64xf32> to vector<2x64xf32>
    %132 = vector.extract_strided_slice %79 {offsets = [1, 0, 10, 0], sizes = [1, 2, 1, 64], strides = [1, 1, 1, 1]} : vector<2x2x16x64xf32> to vector<1x2x1x64xf32>
    %133 = vector.shape_cast %132 : vector<1x2x1x64xf32> to vector<2x64xf32>
    %134 = vector.extract_strided_slice %79 {offsets = [1, 0, 11, 0], sizes = [1, 2, 1, 64], strides = [1, 1, 1, 1]} : vector<2x2x16x64xf32> to vector<1x2x1x64xf32>
    %135 = vector.shape_cast %134 : vector<1x2x1x64xf32> to vector<2x64xf32>
    %136 = vector.extract_strided_slice %79 {offsets = [1, 0, 12, 0], sizes = [1, 2, 1, 64], strides = [1, 1, 1, 1]} : vector<2x2x16x64xf32> to vector<1x2x1x64xf32>
    %137 = vector.shape_cast %136 : vector<1x2x1x64xf32> to vector<2x64xf32>
    %138 = vector.extract_strided_slice %79 {offsets = [1, 0, 13, 0], sizes = [1, 2, 1, 64], strides = [1, 1, 1, 1]} : vector<2x2x16x64xf32> to vector<1x2x1x64xf32>
    %139 = vector.shape_cast %138 : vector<1x2x1x64xf32> to vector<2x64xf32>
    %140 = vector.extract_strided_slice %79 {offsets = [1, 0, 14, 0], sizes = [1, 2, 1, 64], strides = [1, 1, 1, 1]} : vector<2x2x16x64xf32> to vector<1x2x1x64xf32>
    %141 = vector.shape_cast %140 : vector<1x2x1x64xf32> to vector<2x64xf32>
    %142 = vector.extract_strided_slice %79 {offsets = [1, 0, 15, 0], sizes = [1, 2, 1, 64], strides = [1, 1, 1, 1]} : vector<2x2x16x64xf32> to vector<1x2x1x64xf32>
    %143 = vector.shape_cast %142 : vector<1x2x1x64xf32> to vector<2x64xf32>
    %144 = tpu.concatenate %81, %83, %85, %87, %89, %91, %93, %95, %97, %99, %101, %103, %105, %107, %109, %111 in 1 : vector<2x64xf32>, vector<2x64xf32>, vector<2x64xf32>, vector<2x64xf32>, vector<2x64xf32>, vector<2x64xf32>, vector<2x64xf32>, vector<2x64xf32>, vector<2x64xf32>, vector<2x64xf32>, vector<2x64xf32>, vector<2x64xf32>, vector<2x64xf32>, vector<2x64xf32>, vector<2x64xf32>, vector<2x64xf32> -> vector<2x1024xf32>
    %145 = tpu.concatenate %113, %115, %117, %119, %121, %123, %125, %127, %129, %131, %133, %135, %137, %139, %141, %143 in 1 : vector<2x64xf32>, vector<2x64xf32>, vector<2x64xf32>, vector<2x64xf32>, vector<2x64xf32>, vector<2x64xf32>, vector<2x64xf32>, vector<2x64xf32>, vector<2x64xf32>, vector<2x64xf32>, vector<2x64xf32>, vector<2x64xf32>, vector<2x64xf32>, vector<2x64xf32>, vector<2x64xf32>, vector<2x64xf32> -> vector<2x1024xf32>
    %146 = tpu.concatenate %144, %145 in 1 : vector<2x1024xf32>, vector<2x1024xf32> -> vector<2x2048xf32>
    %147 = arith.truncf %146 : vector<2x2048xf32> to vector<2x2048xbf16>
    %c0_22 = arith.constant 0 : index
    %c0_23 = arith.constant 0 : index
    %148 = vector.load %arg9[%c0_22, %c0_23] : memref<2048x1024xbf16, #tpu.memory_space<vmem>>, vector<2048x1024xbf16>
    %cst_24 = arith.constant dense<0.000000e+00> : vector<2x1024xf32>
    %149 = tpu.matmul %147, %148, %cst_24 {dimension_numbers = #tpu.dot_dimension_numbers<[1], [0], [0], [1], [0, 0, 1, 1], [], []>} : vector<2x2048xbf16>, vector<2048x1024xbf16>, vector<2x1024xf32> -> vector<2x1024xf32>
    %c0_25 = arith.constant 0 : index
    %c0_26 = arith.constant 0 : index
    %150 = vector.load %arg10[%c0_25, %c0_26] : memref<1x1024xf32, #tpu.memory_space<vmem>>, vector<1x1024xf32>
    %151 = vector.broadcast %150 : vector<1x1024xf32> to vector<2x1024xf32>
    %152 = arith.addf %149, %151 : vector<2x1024xf32>
    %cst_27 = arith.constant 0.000000e+00 : f32
    %153 = vector.broadcast %cst_27 : f32 to vector<2x1024xf32>
    %154 = arith.maximumf %152, %153 : vector<2x1024xf32>
    %155 = arith.truncf %154 : vector<2x1024xf32> to vector<2x1024xbf16>
    %c0_28 = arith.constant 0 : index
    %c0_29 = arith.constant 0 : index
    %156 = vector.load %arg11[%c0_28, %c0_29] : memref<1024x256xbf16, #tpu.memory_space<vmem>>, vector<1024x256xbf16>
    %cst_30 = arith.constant dense<0.000000e+00> : vector<2x256xf32>
    %157 = tpu.matmul %155, %156, %cst_30 {dimension_numbers = #tpu.dot_dimension_numbers<[1], [0], [0], [1], [0, 0, 1, 1], [], []>} : vector<2x1024xbf16>, vector<1024x256xbf16>, vector<2x256xf32> -> vector<2x256xf32>
    %c0_31 = arith.constant 0 : index
    %c0_32 = arith.constant 0 : index
    %158 = vector.load %arg2[%c0_31, %c0_32] : memref<2x15xf32, #tpu.memory_space<vmem>>, vector<2x15xf32>
    %159 = arith.truncf %158 : vector<2x15xf32> to vector<2x15xbf16>
    %c0_33 = arith.constant 0 : index
    %c0_34 = arith.constant 0 : index
    %160 = vector.load %arg12[%c0_33, %c0_34] : memref<15x256xbf16, #tpu.memory_space<vmem>>, vector<15x256xbf16>
    %cst_35 = arith.constant dense<0.000000e+00> : vector<2x256xf32>
    %161 = tpu.matmul %159, %160, %cst_35 {dimension_numbers = #tpu.dot_dimension_numbers<[1], [0], [0], [1], [0, 0, 1, 1], [], []>} : vector<2x15xbf16>, vector<15x256xbf16>, vector<2x256xf32> -> vector<2x256xf32>
    %162 = arith.addf %157, %161 : vector<2x256xf32>
    %c0_36 = arith.constant 0 : index
    %c0_37 = arith.constant 0 : index
    %163 = vector.load %arg13[%c0_36, %c0_37] : memref<1x256xf32, #tpu.memory_space<vmem>>, vector<1x256xf32>
    %164 = vector.broadcast %163 : vector<1x256xf32> to vector<2x256xf32>
    %165 = arith.addf %162, %164 : vector<2x256xf32>
    %cst_38 = arith.constant 0.000000e+00 : f32
    %166 = vector.broadcast %cst_38 : f32 to vector<2x256xf32>
    %167 = arith.maximumf %165, %166 : vector<2x256xf32>
    %c0_39 = arith.constant 0 : index
    %c0_40 = arith.constant 0 : index
    %168 = vector.load %arg14[%c0_39, %c0_40] : memref<2x256xf32, #tpu.memory_space<vmem>>, vector<2x256xf32>
    tpu.vector_store %arg14[%c0_39, %c0_40], %167 {strides = array<i32>} : memref<2x256xf32, #tpu.memory_space<vmem>>, vector<2x256xf32>,
    return
  }
  func.func @transform_0(%arg0: i32) -> (i32, i32) {
    %c0_i32 = arith.constant 0 : i32
    %c0_i32_0 = arith.constant 0 : i32
    %c0_i32_1 = arith.constant 0 : i32
    return %c0_i32, %c0_i32_0 : i32, i32
  }
  func.func @transform_1(%arg0: i32) -> (i32, i32) {
    %c0_i32 = arith.constant 0 : i32
    %c0_i32_0 = arith.constant 0 : i32
    %c0_i32_1 = arith.constant 0 : i32
    return %c0_i32, %c0_i32_0 : i32, i32
  }
  func.func @transform_2(%arg0: i32) -> (i32, i32) {
    %c0_i32 = arith.constant 0 : i32
    %c0_i32_0 = arith.constant 0 : i32
    %c0_i32_1 = arith.constant 0 : i32
    return %c0_i32, %c0_i32_0 : i32, i32
  }
  func.func @transform_3(%arg0: i32) -> (i32, i32) {
    %c0_i32 = arith.constant 0 : i32
    %c0_i32_0 = arith.constant 0 : i32
    %c0_i32_1 = arith.constant 0 : i32
    return %c0_i32, %c0_i32_0 : i32, i32
  }
  func.func @transform_4(%arg0: i32) -> (i32, i32) {
    %c0_i32 = arith.constant 0 : i32
    %c0_i32_0 = arith.constant 0 : i32
    %c0_i32_1 = arith.constant 0 : i32
    return %c0_i32, %c0_i32_0 : i32, i32
  }
  func.func @transform_5(%arg0: i32) -> (i32, i32) {
    %c0_i32 = arith.constant 0 : i32
    %c0_i32_0 = arith.constant 0 : i32
    %c0_i32_1 = arith.constant 0 : i32
    return %c0_i32, %c0_i32_0 : i32, i32
  }
  func.func @transform_6(%arg0: i32) -> (i32, i32) {
    %c0_i32 = arith.constant 0 : i32
    %c0_i32_0 = arith.constant 0 : i32
    %c0_i32_1 = arith.constant 0 : i32
    return %c0_i32, %c0_i32_0 : i32, i32
  }
  func.func @transform_7(%arg0: i32) -> (i32, i32) {
    %c0_i32 = arith.constant 0 : i32
    %c0_i32_0 = arith.constant 0 : i32
    %c0_i32_1 = arith.constant 0 : i32
    return %c0_i32, %c0_i32_0 : i32, i32
  }
  func.func @transform_8(%arg0: i32) -> (i32, i32) {
    %c0_i32 = arith.constant 0 : i32
    %c0_i32_0 = arith.constant 0 : i32
    %c0_i32_1 = arith.constant 0 : i32
    return %c0_i32, %c0_i32_0 : i32, i32
  }
  func.func @transform_9(%arg0: i32) -> (i32, i32) {
    %c0_i32 = arith.constant 0 : i32
    %c0_i32_0 = arith.constant 0 : i32
    %c0_i32_1 = arith.constant 0 : i32
    return %c0_i32, %c0_i32_0 : i32, i32
  }
  func.func @transform_10(%arg0: i32) -> (i32, i32) {
    %c0_i32 = arith.constant 0 : i32
    %c0_i32_0 = arith.constant 0 : i32
    %c0_i32_1 = arith.constant 0 : i32
    return %c0_i32, %c0_i32_0 : i32, i32
  }
  func.func @transform_11(%arg0: i32) -> (i32, i32) {
    %c0_i32 = arith.constant 0 : i32
    %c0_i32_0 = arith.constant 0 : i32
    %c0_i32_1 = arith.constant 0 : i32
    return %c0_i32, %c0_i32_0 : i32, i32
  }
  func.func @transform_12(%arg0: i32) -> (i32, i32) {
    %c0_i32 = arith.constant 0 : i32
    %c0_i32_0 = arith.constant 0 : i32
    %c0_i32_1 = arith.constant 0 : i32
    return %c0_i32, %c0_i32_0 : i32, i32
  }
  func.func @transform_13(%arg0: i32) -> (i32, i32) {
    %c0_i32 = arith.constant 0 : i32
    %c0_i32_0 = arith.constant 0 : i32
    %c0_i32_1 = arith.constant 0 : i32
    return %c0_i32, %c0_i32_0 : i32, i32
  }
}

</mosaic_0001>

<llo_original>
// kernel: encoder_forward.1
$region0: #{encoder_forward.1}
  #allocation0 [shape = 'u32[]', space=smem, size = 0x4, offset = 0x4, fixed_abs, tag = 'smem constant byte address 0x4 - core index']
  #allocation1 [shape = 'u32[144,128]{1,0:T(1,128)}', space=vmem, size = 0x12000, scoped, tag = 'internal scratch']
  %s0 = inlined_call_operand.vmem [shape: f32[256,30], index: 0, kind: input, shape index: {}]
  %s1 = inlined_call_operand.vmem [shape: f32[2,15], index: 1, kind: input, shape index: {}]
  %s2 = inlined_call_operand.vmem [shape: bf16[30,64], index: 2, kind: input, shape index: {}]
  %s3 = inlined_call_operand.vmem [shape: f32[1,64], index: 3, kind: input, shape index: {}]
  %s4 = inlined_call_operand.vmem [shape: bf16[960,128], index: 4, kind: input, shape index: {}]
  %s5 = inlined_call_operand.vmem [shape: f32[1,128], index: 5, kind: input, shape index: {}]
  %s6 = inlined_call_operand.vmem [shape: bf16[1920,64], index: 6, kind: input, shape index: {}]
  %s7 = inlined_call_operand.vmem [shape: f32[1,64], index: 7, kind: input, shape index: {}]
  %s8 = inlined_call_operand.vmem [shape: bf16[2048,1024], index: 8, kind: input, shape index: {}]
  %s9 = inlined_call_operand.vmem [shape: f32[1,1024], index: 9, kind: input, shape index: {}]
  %s10 = inlined_call_operand.vmem [shape: bf16[1024,256], index: 10, kind: input, shape index: {}]
  %s11 = inlined_call_operand.vmem [shape: bf16[15,256], index: 11, kind: input, shape index: {}]
  %s12 = inlined_call_operand.vmem [shape: f32[1,256], index: 12, kind: input, shape index: {}]
  %s13 = inlined_call_operand.vmem [shape: f32[2,256], index: 13, kind: output, shape index: {}]
  %s14 = sld [smem:[#allocation0]]
  $region62: #{encoder_forward.1} parent=0
    _
  %s16 = ssub.s32 1, %s14
  %s17 = scalar_select 0, %s16, %s14
  // Predicated region
  $region2: #{encoder_forward.1} parent=0 // pred_check
    _
  $region3: #{encoder_forward.1} parent=0 // pred_check_branch
    %19 = sbr.rel (0) target = $region5
  $region4: #{encoder_forward.1} parent=0 // pred_region
    _
  $region5: #{encoder_forward.1} parent=0 // pred_fallthru
    _
  // Predicated region
  $region6: #{encoder_forward.1} parent=0 // pred_check
    _
  $region7: #{encoder_forward.1} parent=0 // pred_check_branch
    %21 = sbr.rel (0) target = $region9
  $region8: #{encoder_forward.1} parent=0 // pred_region
    _
  $region9: #{encoder_forward.1} parent=0 // pred_fallthru
    _
  // Predicated region
  $region10: #{encoder_forward.1} parent=0 // pred_check
    _
  $region11: #{encoder_forward.1} parent=0 // pred_check_branch
    %23 = sbr.rel (0) target = $region13
  $region12: #{encoder_forward.1} parent=0 // pred_region
    _
  $region13: #{encoder_forward.1} parent=0 // pred_fallthru
    _
  // Predicated region
  $region14: #{encoder_forward.1} parent=0 // pred_check
    _
  $region15: #{encoder_forward.1} parent=0 // pred_check_branch
    %25 = sbr.rel (0) target = $region17
  $region16: #{encoder_forward.1} parent=0 // pred_region
    _
  $region17: #{encoder_forward.1} parent=0 // pred_fallthru
    _
  // Predicated region
  $region18: #{encoder_forward.1} parent=0 // pred_check
    _
  $region19: #{encoder_forward.1} parent=0 // pred_check_branch
    %27 = sbr.rel (0) target = $region21
  $region20: #{encoder_forward.1} parent=0 // pred_region
    _
  $region21: #{encoder_forward.1} parent=0 // pred_fallthru
    _
  // Predicated region
  $region22: #{encoder_forward.1} parent=0 // pred_check
    _
  $region23: #{encoder_forward.1} parent=0 // pred_check_branch
    %29 = sbr.rel (0) target = $region25
  $region24: #{encoder_forward.1} parent=0 // pred_region
    _
  $region25: #{encoder_forward.1} parent=0 // pred_fallthru
    _
  // Predicated region
  $region26: #{encoder_forward.1} parent=0 // pred_check
    _
  $region27: #{encoder_forward.1} parent=0 // pred_check_branch
    %31 = sbr.rel (0) target = $region29
  $region28: #{encoder_forward.1} parent=0 // pred_region
    _
  $region29: #{encoder_forward.1} parent=0 // pred_fallthru
    _
  // Predicated region
  $region30: #{encoder_forward.1} parent=0 // pred_check
    _
  $region31: #{encoder_forward.1} parent=0 // pred_check_branch
    %33 = sbr.rel (0) target = $region33
  $region32: #{encoder_forward.1} parent=0 // pred_region
    _
  $region33: #{encoder_forward.1} parent=0 // pred_fallthru
    _
  // Predicated region
  $region34: #{encoder_forward.1} parent=0 // pred_check
    _
  $region35: #{encoder_forward.1} parent=0 // pred_check_branch
    %35 = sbr.rel (0) target = $region37
  $region36: #{encoder_forward.1} parent=0 // pred_region
    _
  $region37: #{encoder_forward.1} parent=0 // pred_fallthru
    _
  // Predicated region
  $region38: #{encoder_forward.1} parent=0 // pred_check
    _
  $region39: #{encoder_forward.1} parent=0 // pred_check_branch
    %37 = sbr.rel (0) target = $region41
  $region40: #{encoder_forward.1} parent=0 // pred_region
    _
  $region41: #{encoder_forward.1} parent=0 // pred_fallthru
    _
  // Predicated region
  $region42: #{encoder_forward.1} parent=0 // pred_check
    _
  $region43: #{encoder_forward.1} parent=0 // pred_check_branch
    %39 = sbr.rel (0) target = $region45
  $region44: #{encoder_forward.1} parent=0 // pred_region
    _
  $region45: #{encoder_forward.1} parent=0 // pred_fallthru
    _
  // Predicated region
  $region46: #{encoder_forward.1} parent=0 // pred_check
    _
  $region47: #{encoder_forward.1} parent=0 // pred_check_branch
    %41 = sbr.rel (0) target = $region49
  $region48: #{encoder_forward.1} parent=0 // pred_region
    _
  $region49: #{encoder_forward.1} parent=0 // pred_fallthru
    _
  // Predicated region
  $region50: #{encoder_forward.1} parent=0 // pred_check
    _
  $region51: #{encoder_forward.1} parent=0 // pred_check_branch
    %43 = sbr.rel (0) target = $region53
  $region52: #{encoder_forward.1} parent=0 // pred_region
    _
  $region53: #{encoder_forward.1} parent=0 // pred_fallthru
    _
  %v45 = vld [vmem:[%s0] sm:$0xff]
  %v46 = vld [vmem:[%s0 + $0x8] sm:$0xff]
  %v47 = vld [vmem:[%s0 + $0x10] sm:$0xff]
  %v48 = vld [vmem:[%s0 + $0x18] sm:$0xff]
  %v49 = vld [vmem:[%s0 + $0x20] sm:$0xff]
  %v50 = vld [vmem:[%s0 + $0x28] sm:$0xff]
  %v51 = vld [vmem:[%s0 + $0x30] sm:$0xff]
  %v52 = vld [vmem:[%s0 + $0x38] sm:$0xff]
  %v53 = vld [vmem:[%s0 + $0x40] sm:$0xff]
  %v54 = vld [vmem:[%s0 + $0x48] sm:$0xff]
  %v55 = vld [vmem:[%s0 + $0x50] sm:$0xff]
  %v56 = vld [vmem:[%s0 + $0x58] sm:$0xff]
  %v57 = vld [vmem:[%s0 + $0x60] sm:$0xff]
  %v58 = vld [vmem:[%s0 + $0x68] sm:$0xff]
  %v59 = vld [vmem:[%s0 + $0x70] sm:$0xff]
  %v60 = vld [vmem:[%s0 + $0x78] sm:$0xff]
  %v61 = vld [vmem:[%s0 + $0x80] sm:$0xff]
  %v62 = vld [vmem:[%s0 + $0x88] sm:$0xff]
  %v63 = vld [vmem:[%s0 + $0x90] sm:$0xff]
  %v64 = vld [vmem:[%s0 + $0x98] sm:$0xff]
  %v65 = vld [vmem:[%s0 + $0xa0] sm:$0xff]
  %v66 = vld [vmem:[%s0 + $0xa8] sm:$0xff]
  %v67 = vld [vmem:[%s0 + $0xb0] sm:$0xff]
  %v68 = vld [vmem:[%s0 + $0xb8] sm:$0xff]
  %v69 = vld [vmem:[%s0 + $0xc0] sm:$0xff]
  %v70 = vld [vmem:[%s0 + $0xc8] sm:$0xff]
  %v71 = vld [vmem:[%s0 + $0xd0] sm:$0xff]
  %v72 = vld [vmem:[%s0 + $0xd8] sm:$0xff]
  %v73 = vld [vmem:[%s0 + $0xe0] sm:$0xff]
  %v74 = vld [vmem:[%s0 + $0xe8] sm:$0xff]
  %v75 = vld [vmem:[%s0 + $0xf0] sm:$0xff]
  %v76 = vld [vmem:[%s0 + $0xf8] sm:$0xff]
  %v77 = vpack.c.bf16 %v46, %v45
  %v78 = vpack.c.bf16 %v48, %v47
  %v79 = vpack.c.bf16 %v50, %v49
  %v80 = vpack.c.bf16 %v52, %v51
  %v81 = vpack.c.bf16 %v54, %v53
  %v82 = vpack.c.bf16 %v56, %v55
  %v83 = vpack.c.bf16 %v58, %v57
  %v84 = vpack.c.bf16 %v60, %v59
  %v85 = vpack.c.bf16 %v62, %v61
  %v86 = vpack.c.bf16 %v64, %v63
  %v87 = vpack.c.bf16 %v66, %v65
  %v88 = vpack.c.bf16 %v68, %v67
  %v89 = vpack.c.bf16 %v70, %v69
  %v90 = vpack.c.bf16 %v72, %v71
  %v91 = vpack.c.bf16 %v74, %v73
  %v92 = vpack.c.bf16 %v76, %v75
  %v93 = vld [vmem:[%s2] sm:$0xf]
  %v94 = vld [vmem:[%s2 + $0x4] sm:$0xf]
  %v95 = vld [vmem:[%s2 + $0x8] sm:$0xf]
  %v96 = vld [vmem:[%s2 + $0xc] sm:$0x7]
  %v97 = vld [vmem:[%s3] sm:$0x1]
  %v99 = vlaneseq
  %v100 = vshrl.u32 %v99, 7
  %v101 = vsub.s32 0, %v100
  %v102 = vrot.slane %v97, %v101
  %v108 = vunpack.c.l.b16 %v93
  %v109 = vunpack.c.l.b16 %v94
  %v110 = vunpack.c.l.b16 %v95
  %v111 = vunpack.c.l.b16 %v96
  %v112 = vpack.c.b16 %v109, %v108
  %v113 = vpack.c.b16 %v111, %v110
  %vm115 = vcmask 244736
  %v117 = vsel %vm115, %v77, 0
  %v120 = vsel %vm115, %v78, 0
  %v123 = vsel %vm115, %v79, 0
  %v126 = vsel %vm115, %v80, 0
  %v129 = vsel %vm115, %v81, 0
  %v132 = vsel %vm115, %v82, 0
  %v135 = vsel %vm115, %v83, 0
  %v138 = vsel %vm115, %v84, 0
  %v141 = vsel %vm115, %v85, 0
  %v144 = vsel %vm115, %v86, 0
  %v147 = vsel %vm115, %v87, 0
  %v150 = vsel %vm115, %v88, 0
  %v153 = vsel %vm115, %v89, 0
  %v156 = vsel %vm115, %v90, 0
  %v159 = vsel %vm115, %v91, 0
  %v162 = vsel %vm115, %v92, 0
  %vm164 = vcmask 1046528
  %v166 = vsel %vm164, %v113, 0
  %168 = vmatprep.subr.bf16.mxu0 0
  %169 = vmatpush1.bf16.msra.mxu0 0
  %170 = vmatprep.subr.bf16.mxu0 0
  %171 = vmatpush1.bf16.msra.mxu0 0
  %172 = vmatprep.subr.bf16.mxu0 0
  %173 = vmatpush1.bf16.msra.mxu0 0
  %174 = vmatprep.subr.bf16.mxu0 0
  %175 = vmatpush1.bf16.msra.mxu0 0
  %176 = vmatprep.subr.bf16.mxu0 0
  %177 = vmatpush1.bf16.msra.mxu0 0
  %178 = vmatprep.subr.bf16.mxu0 0
  %179 = vmatpush1.bf16.msra.mxu0 0
  %180 = vmatprep.subr.bf16.mxu0 0
  %181 = vmatpush1.bf16.msra.mxu0 %v166
  %182 = vmatprep.subr.bf16.mxu0 0
  %183 = vmatpush1.bf16.msra.mxu0 %v112
  %184 = vmatprep.subr.bf16.mxu0 0
  %185 = vmatpush2.bf16.msra.mxu0 0
  %186 = vmatprep.subr.bf16.mxu0 0
  %187 = vmatpush2.bf16.msra.mxu0 0
  %188 = vmatprep.subr.bf16.mxu0 0
  %189 = vmatpush2.bf16.msra.mxu0 0
  %190 = vmatprep.subr.bf16.mxu0 0
  %191 = vmatpush2.bf16.msra.mxu0 0
  %192 = vmatprep.subr.bf16.mxu0 0
  %193 = vmatpush2.bf16.msra.mxu0 0
  %194 = vmatprep.subr.bf16.mxu0 0
  %195 = vmatpush2.bf16.msra.mxu0 0
  %196 = vmatprep.subr.bf16.mxu0 0
  %197 = vmatpush2.bf16.msra.mxu0 0
  %198 = vmatprep.subr.bf16.mxu0 0
  %199 = vmatpush2.bf16.msra.mxu0 0
  %200 = vmatprep.mubr.bf16.mxu0 0
  %201 = vmatmul.mubr.bf16.gmra.mxu0 %v117
  %v202 = vpop.f32.mrf.mxu0
  %v203 = vadd.f32 %v102, %v202
  %v204 = vpop.f32.mrf.mxu0
  %v205 = vpop.f32.mrf.mxu0
  %v206 = vadd.f32 %v102, %v205
  %v207 = vpop.f32.mrf.mxu0
  %208 = vmatprep.mubr.bf16.mxu0 0
  %209 = vmatmul.mubr.bf16.gmra.mxu0 %v120
  %v210 = vpop.f32.mrf.mxu0
  %v211 = vadd.f32 %v102, %v210
  %v212 = vpop.f32.mrf.mxu0
  %v213 = vpop.f32.mrf.mxu0
  %v214 = vadd.f32 %v102, %v213
  %v215 = vpop.f32.mrf.mxu0
  %216 = vmatprep.mubr.bf16.mxu0 0
  %217 = vmatmul.mubr.bf16.gmra.mxu0 %v123
  %v218 = vpop.f32.mrf.mxu0
  %v219 = vadd.f32 %v102, %v218
  %v220 = vpop.f32.mrf.mxu0
  %v221 = vpop.f32.mrf.mxu0
  %v222 = vadd.f32 %v102, %v221
  %v223 = vpop.f32.mrf.mxu0
  %224 = vmatprep.mubr.bf16.mxu0 0
  %225 = vmatmul.mubr.bf16.gmra.mxu0 %v126
  %v226 = vpop.f32.mrf.mxu0
  %v227 = vadd.f32 %v102, %v226
  %v228 = vpop.f32.mrf.mxu0
  %v229 = vpop.f32.mrf.mxu0
  %v230 = vadd.f32 %v102, %v229
  %v231 = vpop.f32.mrf.mxu0
  %232 = vmatprep.mubr.bf16.mxu0 0
  %233 = vmatmul.mubr.bf16.gmra.mxu0 %v129
  %v234 = vpop.f32.mrf.mxu0
  %v235 = vadd.f32 %v102, %v234
  %v236 = vpop.f32.mrf.mxu0
  %v237 = vpop.f32.mrf.mxu0
  %v238 = vadd.f32 %v102, %v237
  %v239 = vpop.f32.mrf.mxu0
  %240 = vmatprep.mubr.bf16.mxu0 0
  %241 = vmatmul.mubr.bf16.gmra.mxu0 %v132
  %v242 = vpop.f32.mrf.mxu0
  %v243 = vadd.f32 %v102, %v242
  %v244 = vpop.f32.mrf.mxu0
  %v245 = vpop.f32.mrf.mxu0
  %v246 = vadd.f32 %v102, %v245
  %v247 = vpop.f32.mrf.mxu0
  %248 = vmatprep.mubr.bf16.mxu0 0
  %249 = vmatmul.mubr.bf16.gmra.mxu0 %v135
  %v250 = vpop.f32.mrf.mxu0
  %v251 = vadd.f32 %v102, %v250
  %v252 = vpop.f32.mrf.mxu0
  %v253 = vpop.f32.mrf.mxu0
  %v254 = vadd.f32 %v102, %v253
  %v255 = vpop.f32.mrf.mxu0
  %256 = vmatprep.mubr.bf16.mxu0 0
  %257 = vmatmul.mubr.bf16.gmra.mxu0 %v138
  %v258 = vpop.f32.mrf.mxu0
  %v259 = vadd.f32 %v102, %v258
  %v260 = vpop.f32.mrf.mxu0
  %v261 = vpop.f32.mrf.mxu0
  %v262 = vadd.f32 %v102, %v261
  %v263 = vpop.f32.mrf.mxu0
  %264 = vmatprep.mubr.bf16.mxu0 0
  %265 = vmatmul.mubr.bf16.gmra.mxu0 %v141
  %v266 = vpop.f32.mrf.mxu0
  %v267 = vadd.f32 %v102, %v266
  %v268 = vpop.f32.mrf.mxu0
  %v269 = vpop.f32.mrf.mxu0
  %v270 = vadd.f32 %v102, %v269
  %v271 = vpop.f32.mrf.mxu0
  %272 = vmatprep.mubr.bf16.mxu0 0
  %273 = vmatmul.mubr.bf16.gmra.mxu0 %v144
  %v274 = vpop.f32.mrf.mxu0
  %v275 = vadd.f32 %v102, %v274
  %v276 = vpop.f32.mrf.mxu0
  %v277 = vpop.f32.mrf.mxu0
  %v278 = vadd.f32 %v102, %v277
  %v279 = vpop.f32.mrf.mxu0
  %280 = vmatprep.mubr.bf16.mxu0 0
  %281 = vmatmul.mubr.bf16.gmra.mxu0 %v147
  %v282 = vpop.f32.mrf.mxu0
  %v283 = vadd.f32 %v102, %v282
  %v284 = vpop.f32.mrf.mxu0
  %v285 = vpop.f32.mrf.mxu0
  %v286 = vadd.f32 %v102, %v285
  %v287 = vpop.f32.mrf.mxu0
  %288 = vmatprep.mubr.bf16.mxu0 0
  %289 = vmatmul.mubr.bf16.gmra.mxu0 %v150
  %v290 = vpop.f32.mrf.mxu0
  %v291 = vadd.f32 %v102, %v290
  %v292 = vpop.f32.mrf.mxu0
  %v293 = vpop.f32.mrf.mxu0
  %v294 = vadd.f32 %v102, %v293
  %v295 = vpop.f32.mrf.mxu0
  %296 = vmatprep.mubr.bf16.mxu0 0
  %297 = vmatmul.mubr.bf16.gmra.mxu0 %v153
  %v298 = vpop.f32.mrf.mxu0
  %v299 = vadd.f32 %v102, %v298
  %v300 = vpop.f32.mrf.mxu0
  %v301 = vpop.f32.mrf.mxu0
  %v302 = vadd.f32 %v102, %v301
  %v303 = vpop.f32.mrf.mxu0
  %304 = vmatprep.mubr.bf16.mxu0 0
  %305 = vmatmul.mubr.bf16.gmra.mxu0 %v156
  %v306 = vpop.f32.mrf.mxu0
  %v307 = vadd.f32 %v102, %v306
  %v308 = vpop.f32.mrf.mxu0
  %v309 = vpop.f32.mrf.mxu0
  %v310 = vadd.f32 %v102, %v309
  %v311 = vpop.f32.mrf.mxu0
  %312 = vmatprep.mubr.bf16.mxu0 0
  %313 = vmatmul.mubr.bf16.gmra.mxu0 %v159
  %v314 = vpop.f32.mrf.mxu0
  %v315 = vadd.f32 %v102, %v314
  %v316 = vpop.f32.mrf.mxu0
  %v317 = vpop.f32.mrf.mxu0
  %v318 = vadd.f32 %v102, %v317
  %v319 = vpop.f32.mrf.mxu0
  %320 = vmatprep.mubr.bf16.mxu0 0
  %321 = vmatmul.mubr.bf16.gmra.mxu0 %v162
  %v322 = vpop.f32.mrf.mxu0
  %v323 = vadd.f32 %v102, %v322
  %v324 = vpop.f32.mrf.mxu0
  %v325 = vpop.f32.mrf.mxu0
  %v326 = vadd.f32 %v102, %v325
  %v327 = vpop.f32.mrf.mxu0
  %328 = vdwg.mxu0
  %v329 = vmax.f32 %v203, 0.0
  %v330 = vmax.f32 %v206, 0.0
  %v331 = vmax.f32 %v211, 0.0
  %v332 = vmax.f32 %v214, 0.0
  %v333 = vmax.f32 %v219, 0.0
  %v334 = vmax.f32 %v222, 0.0
  %v335 = vmax.f32 %v227, 0.0
  %v336 = vmax.f32 %v230, 0.0
  %v337 = vmax.f32 %v235, 0.0
  %v338 = vmax.f32 %v238, 0.0
  %v339 = vmax.f32 %v243, 0.0
  %v340 = vmax.f32 %v246, 0.0
  %v341 = vmax.f32 %v251, 0.0
  %v342 = vmax.f32 %v254, 0.0
  %v343 = vmax.f32 %v259, 0.0
  %v344 = vmax.f32 %v262, 0.0
  %v345 = vmax.f32 %v267, 0.0
  %v346 = vmax.f32 %v270, 0.0
  %v347 = vmax.f32 %v275, 0.0
  %v348 = vmax.f32 %v278, 0.0
  %v349 = vmax.f32 %v283, 0.0
  %v350 = vmax.f32 %v286, 0.0
  %v351 = vmax.f32 %v291, 0.0
  %v352 = vmax.f32 %v294, 0.0
  %v353 = vmax.f32 %v299, 0.0
  %v354 = vmax.f32 %v302, 0.0
  %v355 = vmax.f32 %v307, 0.0
  %v356 = vmax.f32 %v310, 0.0
  %v357 = vmax.f32 %v315, 0.0
  %v358 = vmax.f32 %v318, 0.0
  %v359 = vmax.f32 %v323, 0.0
  %v360 = vmax.f32 %v326, 0.0
  %vm393 = vcmask 1040384
  %v394 = vrot.slane %v329, 7
  %v395 = vrot.slane %v330, 7
  %v396 = vsel %vm393, %v394, %v395
  %v397 = vrot.slane %v331, 7
  %v398 = vrot.slane %v332, 7
  %v399 = vsel %vm393, %v397, %v398
  %v400 = vrot.slane %v333, 7
  %v401 = vrot.slane %v334, 7
  %v402 = vsel %vm393, %v400, %v401
  %v403 = vrot.slane %v335, 7
  %v404 = vrot.slane %v336, 7
  %v405 = vsel %vm393, %v403, %v404
  %v406 = vrot.slane %v337, 7
  %v407 = vrot.slane %v338, 7
  %v408 = vsel %vm393, %v406, %v407
  %v409 = vrot.slane %v339, 7
  %v410 = vrot.slane %v340, 7
  %v411 = vsel %vm393, %v409, %v410
  %v412 = vrot.slane %v341, 7
  %v413 = vrot.slane %v342, 7
  %v414 = vsel %vm393, %v412, %v413
  %v415 = vrot.slane %v343, 7
  %v416 = vrot.slane %v344, 7
  %v417 = vsel %vm393, %v415, %v416
  %v418 = vrot.slane %v345, 7
  %v419 = vrot.slane %v346, 7
  %v420 = vsel %vm393, %v418, %v419
  %v421 = vrot.slane %v347, 7
  %v422 = vrot.slane %v348, 7
  %v423 = vsel %vm393, %v421, %v422
  %v424 = vrot.slane %v349, 7
  %v425 = vrot.slane %v350, 7
  %v426 = vsel %vm393, %v424, %v425
  %v427 = vrot.slane %v351, 7
  %v428 = vrot.slane %v352, 7
  %v429 = vsel %vm393, %v427, %v428
  %v430 = vrot.slane %v353, 7
  %v431 = vrot.slane %v354, 7
  %v432 = vsel %vm393, %v430, %v431
  %v433 = vrot.slane %v355, 7
  %v434 = vrot.slane %v356, 7
  %v435 = vsel %vm393, %v433, %v434
  %v436 = vrot.slane %v357, 7
  %v437 = vrot.slane %v358, 7
  %v438 = vsel %vm393, %v436, %v437
  %v439 = vrot.slane %v359, 7
  %v440 = vrot.slane %v360, 7
  %v441 = vsel %vm393, %v439, %v440
  %v482 = vsel %vm393, 0.0, %v394
  %v483 = vsel %vm393, 0.0, %v397
  %v484 = vsel %vm393, 0.0, %v400
  %v485 = vsel %vm393, 0.0, %v403
  %v486 = vsel %vm393, 0.0, %v406
  %v487 = vsel %vm393, 0.0, %v409
  %v488 = vsel %vm393, 0.0, %v412
  %v489 = vsel %vm393, 0.0, %v415
  %v490 = vsel %vm393, 0.0, %v418
  %v491 = vsel %vm393, 0.0, %v421
  %v492 = vsel %vm393, 0.0, %v424
  %v493 = vsel %vm393, 0.0, %v427
  %v494 = vsel %vm393, 0.0, %v430
  %v495 = vsel %vm393, 0.0, %v433
  %v496 = vsel %vm393, 0.0, %v436
  %v497 = vsel %vm393, 0.0, %v439
  %v498 = vsel %vm393, %v395, 0.0
  %v499 = vsel %vm393, %v398, 0.0
  %v500 = vsel %vm393, %v401, 0.0
  %v501 = vsel %vm393, %v404, 0.0
  %v502 = vsel %vm393, %v407, 0.0
  %v503 = vsel %vm393, %v410, 0.0
  %v504 = vsel %vm393, %v413, 0.0
  %v505 = vsel %vm393, %v416, 0.0
  %v506 = vsel %vm393, %v419, 0.0
  %v507 = vsel %vm393, %v422, 0.0
  %v508 = vsel %vm393, %v425, 0.0
  %v509 = vsel %vm393, %v428, 0.0
  %v510 = vsel %vm393, %v431, 0.0
  %v511 = vsel %vm393, %v434, 0.0
  %v512 = vsel %vm393, %v437, 0.0
  %v513 = vsel %vm393, %v440, 0.0
  %521 = vrot.lane.b32.xlu0 0.0, 64
  %v522 = vpop.permute.xlu0 %521
  %523 = vrot.lane.b32.xlu0 %v484, 64
  %v524 = vpop.permute.xlu0 %523
  %525 = vrot.lane.b32.xlu0 %v402, 64
  %v526 = vpop.permute.xlu0 %525
  %527 = vrot.lane.b32.xlu0 %v485, 64
  %v528 = vpop.permute.xlu0 %527
  %529 = vrot.lane.b32.xlu0 %v405, 64
  %v530 = vpop.permute.xlu0 %529
  %531 = vrot.lane.b32.xlu0 %v488, 64
  %v532 = vpop.permute.xlu0 %531
  %533 = vrot.lane.b32.xlu0 %v414, 64
  %v534 = vpop.permute.xlu0 %533
  %535 = vrot.lane.b32.xlu0 %v489, 64
  %v536 = vpop.permute.xlu0 %535
  %537 = vrot.lane.b32.xlu0 %v417, 64
  %v538 = vpop.permute.xlu0 %537
  %539 = vrot.lane.b32.xlu0 %v492, 64
  %v540 = vpop.permute.xlu0 %539
  %541 = vrot.lane.b32.xlu0 %v426, 64
  %v542 = vpop.permute.xlu0 %541
  %543 = vrot.lane.b32.xlu0 %v493, 64
  %v544 = vpop.permute.xlu0 %543
  %545 = vrot.lane.b32.xlu0 %v429, 64
  %v546 = vpop.permute.xlu0 %545
  %562 = vrot.lane.b32.xlu0 %v496, 64
  %v563 = vpop.permute.xlu0 %562
  %564 = vrot.lane.b32.xlu0 %v438, 64
  %v565 = vpop.permute.xlu0 %564
  %566 = vrot.lane.b32.xlu0 %v497, 64
  %v567 = vpop.permute.xlu0 %566
  %568 = vrot.lane.b32.xlu0 %v441, 64
  %v569 = vpop.permute.xlu0 %568
  %v586 = vrot.slane 0.0, 1
  %v587 = vsel %vm164, %v586, %v586
  %v588 = vrot.slane %v482, 1
  %v589 = vrot.slane %v396, 1
  %v590 = vsel %vm164, %v588, %v589
  %v591 = vrot.slane %v498, 1
  %v592 = vsel %vm164, %v589, %v591
  %v593 = vrot.slane %v483, 1
  %v594 = vrot.slane %v399, 1
  %v595 = vsel %vm164, %v593, %v594
  %v596 = vrot.slane %v499, 1
  %v597 = vsel %vm164, %v594, %v596
  %v598 = vrot.slane %v486, 1
  %v599 = vrot.slane %v408, 1
  %v600 = vsel %vm164, %v598, %v599
  %v601 = vrot.slane %v502, 1
  %v602 = vsel %vm164, %v599, %v601
  %v603 = vrot.slane %v487, 1
  %v604 = vrot.slane %v411, 1
  %v605 = vsel %vm164, %v603, %v604
  %v606 = vrot.slane %v503, 1
  %v607 = vsel %vm164, %v604, %v606
  %v608 = vrot.slane %v490, 1
  %v609 = vrot.slane %v420, 1
  %v610 = vsel %vm164, %v608, %v609
  %v611 = vrot.slane %v506, 1
  %v612 = vsel %vm164, %v609, %v611
  %v613 = vrot.slane %v491, 1
  %v614 = vrot.slane %v423, 1
  %v615 = vsel %vm164, %v613, %v614
  %v616 = vrot.slane %v507, 1
  %v617 = vsel %vm164, %v614, %v616
  %618 = vrot.lane.b32.xlu0 %v587, 64
  %v619 = vpop.permute.xlu0 %618
  %620 = vrot.lane.b32.xlu0 %v590, 64
  %v621 = vpop.permute.xlu0 %620
  %622 = vrot.lane.b32.xlu0 %v592, 64
  %v623 = vpop.permute.xlu0 %622
  %624 = vrot.lane.b32.xlu0 %v595, 64
  %v625 = vpop.permute.xlu0 %624
  %626 = vrot.lane.b32.xlu0 %v597, 64
  %v627 = vpop.permute.xlu0 %626
  %628 = vrot.lane.b32.xlu0 %v600, 64
  %v629 = vpop.permute.xlu0 %628
  %630 = vrot.lane.b32.xlu0 %v602, 64
  %v631 = vpop.permute.xlu0 %630
  %632 = vrot.lane.b32.xlu0 %v605, 64
  %v633 = vpop.permute.xlu0 %632
  %634 = vrot.lane.b32.xlu0 %v607, 64
  %v635 = vpop.permute.xlu0 %634
  %636 = vrot.lane.b32.xlu0 %v610, 64
  %v637 = vpop.permute.xlu0 %636
  %638 = vrot.lane.b32.xlu0 %v612, 64
  %v639 = vpop.permute.xlu0 %638
  %640 = vrot.lane.b32.xlu0 %v615, 64
  %v641 = vpop.permute.xlu0 %640
  %642 = vrot.lane.b32.xlu0 %v617, 64
  %v643 = vpop.permute.xlu0 %642
  %v663 = vrot.slane %v484, 1
  %v664 = vrot.slane %v402, 1
  %v665 = vsel %vm164, %v663, %v664
  %v666 = vrot.slane %v500, 1
  %v667 = vsel %vm164, %v664, %v666
  %v668 = vrot.slane %v485, 1
  %v669 = vrot.slane %v405, 1
  %v670 = vsel %vm164, %v668, %v669
  %v671 = vrot.slane %v501, 1
  %v672 = vsel %vm164, %v669, %v671
  %v673 = vrot.slane %v488, 1
  %v674 = vrot.slane %v414, 1
  %v675 = vsel %vm164, %v673, %v674
  %v676 = vrot.slane %v504, 1
  %v677 = vsel %vm164, %v674, %v676
  %v678 = vrot.slane %v489, 1
  %v679 = vrot.slane %v417, 1
  %v680 = vsel %vm164, %v678, %v679
  %v681 = vrot.slane %v505, 1
  %v682 = vsel %vm164, %v679, %v681
  %v683 = vrot.slane %v492, 1
  %v684 = vrot.slane %v426, 1
  %v685 = vsel %vm164, %v683, %v684
  %v686 = vrot.slane %v508, 1
  %v687 = vsel %vm164, %v684, %v686
  %v688 = vrot.slane %v493, 1
  %v689 = vrot.slane %v429, 1
  %v690 = vsel %vm164, %v688, %v689
  %v691 = vrot.slane %v509, 1
  %v692 = vsel %vm164, %v689, %v691
  %v710 = vrot.slane %v494, 1
  %v711 = vrot.slane %v432, 1
  %v712 = vsel %vm164, %v710, %v711
  %v713 = vrot.slane %v510, 1
  %v714 = vsel %vm164, %v711, %v713
  %v715 = vrot.slane %v495, 1
  %v716 = vrot.slane %v435, 1
  %v717 = vsel %vm164, %v715, %v716
  %v718 = vrot.slane %v511, 1
  %v719 = vsel %vm164, %v716, %v718
  %720 = vrot.lane.b32.xlu0 %v712, 64
  %v721 = vpop.permute.xlu0 %720
  %722 = vrot.lane.b32.xlu0 %v714, 64
  %v723 = vpop.permute.xlu0 %722
  %724 = vrot.lane.b32.xlu0 %v717, 64
  %v725 = vpop.permute.xlu0 %724
  %726 = vrot.lane.b32.xlu0 %v719, 64
  %v727 = vpop.permute.xlu0 %726
  %v734 = vrot.slane %v496, 1
  %v735 = vrot.slane %v438, 1
  %v736 = vsel %vm164, %v734, %v735
  %v737 = vrot.slane %v512, 1
  %v738 = vsel %vm164, %v735, %v737
  %v739 = vrot.slane %v497, 1
  %v740 = vrot.slane %v441, 1
  %v741 = vsel %vm164, %v739, %v740
  %v742 = vrot.slane %v513, 1
  %v743 = vsel %vm164, %v740, %v742
  %vm748 = vcmask 1045504
  %v749 = vrot.slane 0.0, 2
  %v750 = vsel %vm748, %v749, %v749
  %v751 = vrot.slane %v482, 2
  %v752 = vrot.slane %v396, 2
  %v753 = vsel %vm748, %v751, %v752
  %v754 = vrot.slane %v498, 2
  %v755 = vsel %vm748, %v752, %v754
  %v756 = vrot.slane %v483, 2
  %v757 = vrot.slane %v399, 2
  %v758 = vsel %vm748, %v756, %v757
  %v759 = vrot.slane %v499, 2
  %v760 = vsel %vm748, %v757, %v759
  %v761 = vrot.slane %v486, 2
  %v762 = vrot.slane %v408, 2
  %v763 = vsel %vm748, %v761, %v762
  %v764 = vrot.slane %v502, 2
  %v765 = vsel %vm748, %v762, %v764
  %v766 = vrot.slane %v487, 2
  %v767 = vrot.slane %v411, 2
  %v768 = vsel %vm748, %v766, %v767
  %v769 = vrot.slane %v503, 2
  %v770 = vsel %vm748, %v767, %v769
  %v771 = vrot.slane %v490, 2
  %v772 = vrot.slane %v420, 2
  %v773 = vsel %vm748, %v771, %v772
  %v774 = vrot.slane %v506, 2
  %v775 = vsel %vm748, %v772, %v774
  %v776 = vrot.slane %v491, 2
  %v777 = vrot.slane %v423, 2
  %v778 = vsel %vm748, %v776, %v777
  %v779 = vrot.slane %v507, 2
  %v780 = vsel %vm748, %v777, %v779
  %v794 = vrot.slane %v484, 2
  %v795 = vrot.slane %v402, 2
  %v796 = vsel %vm748, %v794, %v795
  %v797 = vrot.slane %v500, 2
  %v798 = vsel %vm748, %v795, %v797
  %v799 = vrot.slane %v485, 2
  %v800 = vrot.slane %v405, 2
  %v801 = vsel %vm748, %v799, %v800
  %v802 = vrot.slane %v501, 2
  %v803 = vsel %vm748, %v800, %v802
  %v804 = vrot.slane %v488, 2
  %v805 = vrot.slane %v414, 2
  %v806 = vsel %vm748, %v804, %v805
  %v807 = vrot.slane %v504, 2
  %v808 = vsel %vm748, %v805, %v807
  %v809 = vrot.slane %v489, 2
  %v810 = vrot.slane %v417, 2
  %v811 = vsel %vm748, %v809, %v810
  %v812 = vrot.slane %v505, 2
  %v813 = vsel %vm748, %v810, %v812
  %v814 = vrot.slane %v492, 2
  %v815 = vrot.slane %v426, 2
  %v816 = vsel %vm748, %v814, %v815
  %v817 = vrot.slane %v508, 2
  %v818 = vsel %vm748, %v815, %v817
  %v819 = vrot.slane %v493, 2
  %v820 = vrot.slane %v429, 2
  %v821 = vsel %vm748, %v819, %v820
  %v822 = vrot.slane %v509, 2
  %v823 = vsel %vm748, %v820, %v822
  %824 = vrot.lane.b32.xlu0 %v750, 64
  %v825 = vpop.permute.xlu0 %824
  %826 = vrot.lane.b32.xlu0 %v796, 64
  %v827 = vpop.permute.xlu0 %826
  %828 = vrot.lane.b32.xlu0 %v798, 64
  %v829 = vpop.permute.xlu0 %828
  %830 = vrot.lane.b32.xlu0 %v801, 64
  %v831 = vpop.permute.xlu0 %830
  %832 = vrot.lane.b32.xlu0 %v803, 64
  %v833 = vpop.permute.xlu0 %832
  %834 = vrot.lane.b32.xlu0 %v806, 64
  %v835 = vpop.permute.xlu0 %834
  %836 = vrot.lane.b32.xlu0 %v808, 64
  %v837 = vpop.permute.xlu0 %836
  %838 = vrot.lane.b32.xlu0 %v811, 64
  %v839 = vpop.permute.xlu0 %838
  %840 = vrot.lane.b32.xlu0 %v813, 64
  %v841 = vpop.permute.xlu0 %840
  %842 = vrot.lane.b32.xlu0 %v816, 64
  %v843 = vpop.permute.xlu0 %842
  %844 = vrot.lane.b32.xlu0 %v818, 64
  %v845 = vpop.permute.xlu0 %844
  %846 = vrot.lane.b32.xlu0 %v821, 64
  %v847 = vpop.permute.xlu0 %846
  %848 = vrot.lane.b32.xlu0 %v823, 64
  %v849 = vpop.permute.xlu0 %848
  %v863 = vrot.slane %v494, 2
  %v864 = vrot.slane %v432, 2
  %v865 = vsel %vm748, %v863, %v864
  %v866 = vrot.slane %v510, 2
  %v867 = vsel %vm748, %v864, %v866
  %v868 = vrot.slane %v495, 2
  %v869 = vrot.slane %v435, 2
  %v870 = vsel %vm748, %v868, %v869
  %v871 = vrot.slane %v511, 2
  %v872 = vsel %vm748, %v869, %v871
  %v877 = vrot.slane %v496, 2
  %v878 = vrot.slane %v438, 2
  %v879 = vsel %vm748, %v877, %v878
  %v880 = vrot.slane %v512, 2
  %v881 = vsel %vm748, %v878, %v880
  %v882 = vrot.slane %v497, 2
  %v883 = vrot.slane %v441, 2
  %v884 = vsel %vm748, %v882, %v883
  %v885 = vrot.slane %v513, 2
  %v886 = vsel %vm748, %v883, %v885
  %887 = vrot.lane.b32.xlu0 %v879, 64
  %v888 = vpop.permute.xlu0 %887
  %889 = vrot.lane.b32.xlu0 %v881, 64
  %v890 = vpop.permute.xlu0 %889
  %891 = vrot.lane.b32.xlu0 %v884, 64
  %v892 = vpop.permute.xlu0 %891
  %893 = vrot.lane.b32.xlu0 %v886, 64
  %v894 = vpop.permute.xlu0 %893
  %vm899 = vcmask 523264
  %v900 = vsel %vm899, 0.0, %v522
  %v901 = vsel %vm899, %v482, %v524
  %v902 = vsel %vm899, %v396, %v526
  %v903 = vsel %vm899, %v483, %v528
  %v904 = vsel %vm899, %v399, %v530
  %v905 = vsel %vm899, %v486, %v532
  %v906 = vsel %vm899, %v408, %v534
  %v907 = vsel %vm899, %v487, %v536
  %v908 = vsel %vm899, %v411, %v538
  %v909 = vsel %vm899, %v490, %v540
  %v910 = vsel %vm899, %v420, %v542
  %v911 = vsel %vm899, %v491, %v544
  %v912 = vsel %vm899, %v423, %v546
  %v913 = vsel %vm899, %v494, %v563
  %v914 = vsel %vm899, %v432, %v565
  %v915 = vsel %vm899, %v495, %v567
  %v916 = vsel %vm899, %v435, %v569
  %v917 = vsel %vm899, %v486, %v619
  %v918 = vsel %vm899, %v408, %v619
  %v919 = vsel %vm899, %v487, %v619
  %v920 = vsel %vm899, %v411, %v619
  %v921 = vsel %vm899, %v490, %v621
  %v922 = vsel %vm899, %v420, %v623
  %v923 = vsel %vm899, %v491, %v625
  %v924 = vsel %vm899, %v423, %v627
  %v925 = vsel %vm899, %v494, %v629
  %v926 = vsel %vm899, %v432, %v631
  %v927 = vsel %vm899, %v495, %v633
  %v928 = vsel %vm899, %v435, %v635
  %v929 = vsel %vm899, 0.0, %v637
  %v930 = vsel %vm899, 0.0, %v639
  %v931 = vsel %vm899, 0.0, %v641
  %v932 = vsel %vm899, 0.0, %v643
  %v933 = vsel %vm899, %v587, %v621
  %v934 = vsel %vm899, %v587, %v623
  %v935 = vsel %vm899, %v587, %v625
  %v936 = vsel %vm899, %v587, %v627
  %v937 = vsel %vm899, %v665, %v629
  %v938 = vsel %vm899, %v667, %v631
  %v939 = vsel %vm899, %v670, %v633
  %v940 = vsel %vm899, %v672, %v635
  %v941 = vsel %vm899, %v675, %v637
  %v942 = vsel %vm899, %v677, %v639
  %v943 = vsel %vm899, %v680, %v641
  %v944 = vsel %vm899, %v682, %v643
  %v945 = vsel %vm899, %v685, %v721
  %v946 = vsel %vm899, %v687, %v723
  %v947 = vsel %vm899, %v690, %v725
  %v948 = vsel %vm899, %v692, %v727
  %v949 = vsel %vm899, %v736, %v619
  %v950 = vsel %vm899, %v738, %v619
  %v951 = vsel %vm899, %v741, %v619
  %v952 = vsel %vm899, %v743, %v619
  %v953 = vsel %vm899, %v750, %v825
  %v954 = vsel %vm899, %v753, %v827
  %v955 = vsel %vm899, %v755, %v829
  %v956 = vsel %vm899, %v758, %v831
  %v957 = vsel %vm899, %v760, %v833
  %v958 = vsel %vm899, %v763, %v835
  %v959 = vsel %vm899, %v765, %v837
  %v960 = vsel %vm899, %v768, %v839
  %v961 = vsel %vm899, %v770, %v841
  %v962 = vsel %vm899, %v773, %v843
  %v963 = vsel %vm899, %v775, %v845
  %v964 = vsel %vm899, %v778, %v847
  %v965 = vsel %vm899, %v780, %v849
  %v966 = vsel %vm899, %v865, %v888
  %v967 = vsel %vm899, %v867, %v890
  %v968 = vsel %vm899, %v870, %v892
  %v969 = vsel %vm899, %v872, %v894
  %v970 = vpack.c.bf16 %v900, %v900
  %v971 = vpack.c.bf16 %v902, %v901
  %v972 = vpack.c.bf16 %v918, %v917
  %v973 = vpack.c.bf16 %v934, %v933
  %v974 = vpack.c.bf16 %v938, %v937
  %v975 = vpack.c.bf16 %v953, %v953
  %v976 = vpack.c.bf16 %v955, %v954
  %v977 = vpack.c.bf16 %v765, %v763
  %v978 = vpack.c.bf16 %v904, %v903
  %v979 = vpack.c.bf16 %v920, %v919
  %v980 = vpack.c.bf16 %v936, %v935
  %v981 = vpack.c.bf16 %v940, %v939
  %v982 = vpack.c.bf16 %v957, %v956
  %v983 = vpack.c.bf16 %v770, %v768
  %v984 = vpack.c.bf16 %v906, %v905
  %v985 = vpack.c.bf16 %v922, %v921
  %v986 = vpack.c.bf16 %v942, %v941
  %v987 = vpack.c.bf16 %v959, %v958
  %v988 = vpack.c.bf16 %v775, %v773
  %v989 = vpack.c.bf16 %v908, %v907
  %v990 = vpack.c.bf16 %v924, %v923
  %v991 = vpack.c.bf16 %v944, %v943
  %v992 = vpack.c.bf16 %v961, %v960
  %v993 = vpack.c.bf16 %v780, %v778
  %v994 = vpack.c.bf16 %v910, %v909
  %v995 = vpack.c.bf16 %v926, %v925
  %v996 = vpack.c.bf16 %v946, %v945
  %v997 = vpack.c.bf16 %v963, %v962
  %v998 = vpack.c.bf16 %v867, %v865
  %v999 = vpack.c.bf16 %v912, %v911
  %v1000 = vpack.c.bf16 %v928, %v927
  %v1001 = vpack.c.bf16 %v948, %v947
  %v1002 = vpack.c.bf16 %v965, %v964
  %v1003 = vpack.c.bf16 %v872, %v870
  %v1004 = vpack.c.bf16 %v914, %v913
  %v1005 = vpack.c.bf16 %v930, %v929
  %v1006 = vpack.c.bf16 %v950, %v949
  %v1007 = vpack.c.bf16 %v967, %v966
  %v1008 = vpack.c.bf16 %v750, %v750
  %v1009 = vpack.c.bf16 %v916, %v915
  %v1010 = vpack.c.bf16 %v932, %v931
  %v1011 = vpack.c.bf16 %v952, %v951
  %v1012 = vpack.c.bf16 %v969, %v968
  %v1013 = vld [vmem:[%s4] sm:$0xf]
  %v1014 = vld [vmem:[%s4 + $0x4] sm:$0xf]
  %v1015 = vld [vmem:[%s4 + $0x8] sm:$0xf]
  %v1016 = vld [vmem:[%s4 + $0xc] sm:$0xf]
  %v1017 = vld [vmem:[%s4 + $0x10] sm:$0xf]
  %v1018 = vld [vmem:[%s4 + $0x14] sm:$0xf]
  %v1019 = vld [vmem:[%s4 + $0x18] sm:$0xf]
  %v1020 = vld [vmem:[%s4 + $0x1c] sm:$0xf]
  %v1021 = vld [vmem:[%s4 + $0x20] sm:$0xf]
  %v1022 = vld [vmem:[%s4 + $0x24] sm:$0xf]
  %v1023 = vld [vmem:[%s4 + $0x28] sm:$0xf]
  %v1024 = vld [vmem:[%s4 + $0x2c] sm:$0xf]
  %v1025 = vld [vmem:[%s4 + $0x30] sm:$0xf]
  %v1026 = vld [vmem:[%s4 + $0x34] sm:$0xf]
  %v1027 = vld [vmem:[%s4 + $0x38] sm:$0xf]
  %v1028 = vld [vmem:[%s4 + $0x3c] sm:$0xf]
  %v1029 = vld [vmem:[%s4 + $0x40] sm:$0xf]
  %v1030 = vld [vmem:[%s4 + $0x44] sm:$0xf]
  %v1031 = vld [vmem:[%s4 + $0x48] sm:$0xf]
  %v1032 = vld [vmem:[%s4 + $0x4c] sm:$0xf]
  %v1033 = vld [vmem:[%s4 + $0x50] sm:$0xf]
  %v1034 = vld [vmem:[%s4 + $0x54] sm:$0xf]
  %v1035 = vld [vmem:[%s4 + $0x58] sm:$0xf]
  %v1036 = vld [vmem:[%s4 + $0x5c] sm:$0xf]
  %v1037 = vld [vmem:[%s4 + $0x60] sm:$0xf]
  %v1038 = vld [vmem:[%s4 + $0x64] sm:$0xf]
  %v1039 = vld [vmem:[%s4 + $0x68] sm:$0xf]
  %v1040 = vld [vmem:[%s4 + $0x6c] sm:$0xf]
  %v1041 = vld [vmem:[%s4 + $0x70] sm:$0xf]
  %v1042 = vld [vmem:[%s4 + $0x74] sm:$0xf]
  %v1043 = vld [vmem:[%s4 + $0x78] sm:$0xf]
  %v1044 = vld [vmem:[%s4 + $0x7c] sm:$0xf]
  %v1045 = vld [vmem:[%s4 + $0x80] sm:$0xf]
  %v1046 = vld [vmem:[%s4 + $0x84] sm:$0xf]
  %v1047 = vld [vmem:[%s4 + $0x88] sm:$0xf]
  %v1048 = vld [vmem:[%s4 + $0x8c] sm:$0xf]
  %v1049 = vld [vmem:[%s4 + $0x90] sm:$0xf]
  %v1050 = vld [vmem:[%s4 + $0x94] sm:$0xf]
  %v1051 = vld [vmem:[%s4 + $0x98] sm:$0xf]
  %v1052 = vld [vmem:[%s4 + $0x9c] sm:$0xf]
  %v1053 = vld [vmem:[%s4 + $0xa0] sm:$0xf]
  %v1054 = vld [vmem:[%s4 + $0xa4] sm:$0xf]
  %v1055 = vld [vmem:[%s4 + $0xa8] sm:$0xf]
  %v1056 = vld [vmem:[%s4 + $0xac] sm:$0xf]
  %v1057 = vld [vmem:[%s4 + $0xb0] sm:$0xf]
  %v1058 = vld [vmem:[%s4 + $0xb4] sm:$0xf]
  %v1059 = vld [vmem:[%s4 + $0xb8] sm:$0xf]
  %v1060 = vld [vmem:[%s4 + $0xbc] sm:$0xf]
  %v1061 = vld [vmem:[%s4 + $0xc0] sm:$0xf]
  %v1062 = vld [vmem:[%s4 + $0xc4] sm:$0xf]
  %v1063 = vld [vmem:[%s4 + $0xc8] sm:$0xf]
  %v1064 = vld [vmem:[%s4 + $0xcc] sm:$0xf]
  %v1065 = vld [vmem:[%s4 + $0xd0] sm:$0xf]
  %v1066 = vld [vmem:[%s4 + $0xd4] sm:$0xf]
  %v1067 = vld [vmem:[%s4 + $0xd8] sm:$0xf]
  %v1068 = vld [vmem:[%s4 + $0xdc] sm:$0xf]
  %v1069 = vld [vmem:[%s4 + $0xe0] sm:$0xf]
  %v1070 = vld [vmem:[%s4 + $0xe4] sm:$0xf]
  %v1071 = vld [vmem:[%s4 + $0xe8] sm:$0xf]
  %v1072 = vld [vmem:[%s4 + $0xec] sm:$0xf]
  %v1073 = vld [vmem:[%s4 + $0xf0] sm:$0xf]
  %v1074 = vld [vmem:[%s4 + $0xf4] sm:$0xf]
  %v1075 = vld [vmem:[%s4 + $0xf8] sm:$0xf]
  %v1076 = vld [vmem:[%s4 + $0xfc] sm:$0xf]
  %v1077 = vld [vmem:[%s4 + $0x100] sm:$0xf]
  %v1078 = vld [vmem:[%s4 + $0x104] sm:$0xf]
  %v1079 = vld [vmem:[%s4 + $0x108] sm:$0xf]
  %v1080 = vld [vmem:[%s4 + $0x10c] sm:$0xf]
  %v1081 = vld [vmem:[%s4 + $0x110] sm:$0xf]
  %v1082 = vld [vmem:[%s4 + $0x114] sm:$0xf]
  %v1083 = vld [vmem:[%s4 + $0x118] sm:$0xf]
  %v1084 = vld [vmem:[%s4 + $0x11c] sm:$0xf]
  %v1085 = vld [vmem:[%s4 + $0x120] sm:$0xf]
  %v1086 = vld [vmem:[%s4 + $0x124] sm:$0xf]
  %v1087 = vld [vmem:[%s4 + $0x128] sm:$0xf]
  %v1088 = vld [vmem:[%s4 + $0x12c] sm:$0xf]
  %v1089 = vld [vmem:[%s4 + $0x130] sm:$0xf]
  %v1090 = vld [vmem:[%s4 + $0x134] sm:$0xf]
  %v1091 = vld [vmem:[%s4 + $0x138] sm:$0xf]
  %v1092 = vld [vmem:[%s4 + $0x13c] sm:$0xf]
  %v1093 = vld [vmem:[%s4 + $0x140] sm:$0xf]
  %v1094 = vld [vmem:[%s4 + $0x144] sm:$0xf]
  %v1095 = vld [vmem:[%s4 + $0x148] sm:$0xf]
  %v1096 = vld [vmem:[%s4 + $0x14c] sm:$0xf]
  %v1097 = vld [vmem:[%s4 + $0x150] sm:$0xf]
  %v1098 = vld [vmem:[%s4 + $0x154] sm:$0xf]
  %v1099 = vld [vmem:[%s4 + $0x158] sm:$0xf]
  %v1100 = vld [vmem:[%s4 + $0x15c] sm:$0xf]
  %v1101 = vld [vmem:[%s4 + $0x160] sm:$0xf]
  %v1102 = vld [vmem:[%s4 + $0x164] sm:$0xf]
  %v1103 = vld [vmem:[%s4 + $0x168] sm:$0xf]
  %v1104 = vld [vmem:[%s4 + $0x16c] sm:$0xf]
  %v1105 = vld [vmem:[%s4 + $0x170] sm:$0xf]
  %v1106 = vld [vmem:[%s4 + $0x174] sm:$0xf]
  %v1107 = vld [vmem:[%s4 + $0x178] sm:$0xf]
  %v1108 = vld [vmem:[%s4 + $0x17c] sm:$0xf]
  %v1109 = vld [vmem:[%s4 + $0x180] sm:$0xf]
  %v1110 = vld [vmem:[%s4 + $0x184] sm:$0xf]
  %v1111 = vld [vmem:[%s4 + $0x188] sm:$0xf]
  %v1112 = vld [vmem:[%s4 + $0x18c] sm:$0xf]
  %v1113 = vld [vmem:[%s4 + $0x190] sm:$0xf]
  %v1114 = vld [vmem:[%s4 + $0x194] sm:$0xf]
  %v1115 = vld [vmem:[%s4 + $0x198] sm:$0xf]
  %v1116 = vld [vmem:[%s4 + $0x19c] sm:$0xf]
  %v1117 = vld [vmem:[%s4 + $0x1a0] sm:$0xf]
  %v1118 = vld [vmem:[%s4 + $0x1a4] sm:$0xf]
  %v1119 = vld [vmem:[%s4 + $0x1a8] sm:$0xf]
  %v1120 = vld [vmem:[%s4 + $0x1ac] sm:$0xf]
  %v1121 = vld [vmem:[%s4 + $0x1b0] sm:$0xf]
  %v1122 = vld [vmem:[%s4 + $0x1b4] sm:$0xf]
  %v1123 = vld [vmem:[%s4 + $0x1b8] sm:$0xf]
  %v1124 = vld [vmem:[%s4 + $0x1bc] sm:$0xf]
  %v1125 = vld [vmem:[%s4 + $0x1c0] sm:$0xf]
  %v1126 = vld [vmem:[%s4 + $0x1c4] sm:$0xf]
  %v1127 = vld [vmem:[%s4 + $0x1c8] sm:$0xf]
  %v1128 = vld [vmem:[%s4 + $0x1cc] sm:$0xf]
  %v1129 = vld [vmem:[%s4 + $0x1d0] sm:$0xf]
  %v1130 = vld [vmem:[%s4 + $0x1d4] sm:$0xf]
  %v1131 = vld [vmem:[%s4 + $0x1d8] sm:$0xf]
  %v1132 = vld [vmem:[%s4 + $0x1dc] sm:$0xf]
  %v1133 = vld [vmem:[%s5] sm:$0x1]
  %v1135 = vlaneseq
  %v1136 = vshrl.u32 %v1135, 7
  %v1137 = vsub.s32 0, %v1136
  %v1138 = vrot.slane %v1133, %v1137
  %v1260 = vunpack.c.l.b16 %v1013
  %v1261 = vunpack.c.l.b16 %v1014
  %v1262 = vunpack.c.l.b16 %v1015
  %v1263 = vunpack.c.l.b16 %v1016
  %v1264 = vunpack.c.l.b16 %v1017
  %v1265 = vunpack.c.l.b16 %v1018
  %v1266 = vunpack.c.l.b16 %v1019
  %v1267 = vunpack.c.l.b16 %v1020
  %v1268 = vunpack.c.l.b16 %v1021
  %v1269 = vunpack.c.l.b16 %v1022
  %v1270 = vunpack.c.l.b16 %v1023
  %v1271 = vunpack.c.l.b16 %v1024
  %v1272 = vunpack.c.l.b16 %v1025
  %v1273 = vunpack.c.l.b16 %v1026
  %v1274 = vunpack.c.l.b16 %v1027
  %v1275 = vunpack.c.l.b16 %v1028
  %v1276 = vunpack.c.l.b16 %v1029
  %v1277 = vunpack.c.l.b16 %v1030
  %v1278 = vunpack.c.l.b16 %v1031
  %v1279 = vunpack.c.l.b16 %v1032
  %v1280 = vunpack.c.l.b16 %v1033
  %v1281 = vunpack.c.l.b16 %v1034
  %v1282 = vunpack.c.l.b16 %v1035
  %v1283 = vunpack.c.l.b16 %v1036
  %v1284 = vunpack.c.l.b16 %v1037
  %v1285 = vunpack.c.l.b16 %v1038
  %v1286 = vunpack.c.l.b16 %v1039
  %v1287 = vunpack.c.l.b16 %v1040
  %v1288 = vunpack.c.l.b16 %v1041
  %v1289 = vunpack.c.l.b16 %v1042
  %v1290 = vunpack.c.l.b16 %v1043
  %v1291 = vunpack.c.l.b16 %v1044
  %v1292 = vunpack.c.l.b16 %v1045
  %v1293 = vunpack.c.l.b16 %v1046
  %v1294 = vunpack.c.l.b16 %v1047
  %v1295 = vunpack.c.l.b16 %v1048
  %v1296 = vunpack.c.l.b16 %v1049
  %v1297 = vunpack.c.l.b16 %v1050
  %v1298 = vunpack.c.l.b16 %v1051
  %v1299 = vunpack.c.l.b16 %v1052
  %v1300 = vunpack.c.l.b16 %v1053
  %v1301 = vunpack.c.l.b16 %v1054
  %v1302 = vunpack.c.l.b16 %v1055
  %v1303 = vunpack.c.l.b16 %v1056
  %v1304 = vunpack.c.l.b16 %v1057
  %v1305 = vunpack.c.l.b16 %v1058
  %v1306 = vunpack.c.l.b16 %v1059
  %v1307 = vunpack.c.l.b16 %v1060
  %v1308 = vunpack.c.l.b16 %v1061
  %v1309 = vunpack.c.l.b16 %v1062
  %v1310 = vunpack.c.l.b16 %v1063
  %v1311 = vunpack.c.l.b16 %v1064
  %v1312 = vunpack.c.l.b16 %v1065
  %v1313 = vunpack.c.l.b16 %v1066
  %v1314 = vunpack.c.l.b16 %v1067
  %v1315 = vunpack.c.l.b16 %v1068
  %v1316 = vunpack.c.l.b16 %v1069
  %v1317 = vunpack.c.l.b16 %v1070
  %v1318 = vunpack.c.l.b16 %v1071
  %v1319 = vunpack.c.l.b16 %v1072
  %v1320 = vunpack.c.l.b16 %v1073
  %v1321 = vunpack.c.l.b16 %v1074
  %v1322 = vunpack.c.l.b16 %v1075
  %v1323 = vunpack.c.l.b16 %v1076
  %v1324 = vunpack.c.l.b16 %v1077
  %v1325 = vunpack.c.l.b16 %v1078
  %v1326 = vunpack.c.l.b16 %v1079
  %v1327 = vunpack.c.l.b16 %v1080
  %v1328 = vunpack.c.l.b16 %v1081
  %v1329 = vunpack.c.l.b16 %v1082
  %v1330 = vunpack.c.l.b16 %v1083
  %v1331 = vunpack.c.l.b16 %v1084
  %v1332 = vunpack.c.l.b16 %v1085
  %v1333 = vunpack.c.l.b16 %v1086
  %v1334 = vunpack.c.l.b16 %v1087
  %v1335 = vunpack.c.l.b16 %v1088
  %v1336 = vunpack.c.l.b16 %v1089
  %v1337 = vunpack.c.l.b16 %v1090
  %v1338 = vunpack.c.l.b16 %v1091
  %v1339 = vunpack.c.l.b16 %v1092
  %v1340 = vunpack.c.l.b16 %v1093
  %v1341 = vunpack.c.l.b16 %v1094
  %v1342 = vunpack.c.l.b16 %v1095
  %v1343 = vunpack.c.l.b16 %v1096
  %v1344 = vunpack.c.l.b16 %v1097
  %v1345 = vunpack.c.l.b16 %v1098
  %v1346 = vunpack.c.l.b16 %v1099
  %v1347 = vunpack.c.l.b16 %v1100
  %v1348 = vunpack.c.l.b16 %v1101
  %v1349 = vunpack.c.l.b16 %v1102
  %v1350 = vunpack.c.l.b16 %v1103
  %v1351 = vunpack.c.l.b16 %v1104
  %v1352 = vunpack.c.l.b16 %v1105
  %v1353 = vunpack.c.l.b16 %v1106
  %v1354 = vunpack.c.l.b16 %v1107
  %v1355 = vunpack.c.l.b16 %v1108
  %v1356 = vunpack.c.l.b16 %v1109
  %v1357 = vunpack.c.l.b16 %v1110
  %v1358 = vunpack.c.l.b16 %v1111
  %v1359 = vunpack.c.l.b16 %v1112
  %v1360 = vunpack.c.l.b16 %v1113
  %v1361 = vunpack.c.l.b16 %v1114
  %v1362 = vunpack.c.l.b16 %v1115
  %v1363 = vunpack.c.l.b16 %v1116
  %v1364 = vunpack.c.l.b16 %v1117
  %v1365 = vunpack.c.l.b16 %v1118
  %v1366 = vunpack.c.l.b16 %v1119
  %v1367 = vunpack.c.l.b16 %v1120
  %v1368 = vunpack.c.l.b16 %v1121
  %v1369 = vunpack.c.l.b16 %v1122
  %v1370 = vunpack.c.l.b16 %v1123
  %v1371 = vunpack.c.l.b16 %v1124
  %v1372 = vunpack.c.l.b16 %v1125
  %v1373 = vunpack.c.l.b16 %v1126
  %v1374 = vunpack.c.l.b16 %v1127
  %v1375 = vunpack.c.l.b16 %v1128
  %v1376 = vunpack.c.l.b16 %v1129
  %v1377 = vunpack.c.l.b16 %v1130
  %v1378 = vunpack.c.l.b16 %v1131
  %v1379 = vunpack.c.l.b16 %v1132
  %v1380 = vpack.c.b16 %v1261, %v1260
  %v1381 = vpack.c.b16 %v1263, %v1262
  %v1382 = vpack.c.b16 %v1265, %v1264
  %v1383 = vpack.c.b16 %v1267, %v1266
  %v1384 = vpack.c.b16 %v1269, %v1268
  %v1385 = vpack.c.b16 %v1271, %v1270
  %v1386 = vpack.c.b16 %v1273, %v1272
  %v1387 = vpack.c.b16 %v1275, %v1274
  %v1388 = vpack.c.b16 %v1277, %v1276
  %v1389 = vpack.c.b16 %v1279, %v1278
  %v1390 = vpack.c.b16 %v1281, %v1280
  %v1391 = vpack.c.b16 %v1283, %v1282
  %v1392 = vpack.c.b16 %v1285, %v1284
  %v1393 = vpack.c.b16 %v1287, %v1286
  %v1394 = vpack.c.b16 %v1289, %v1288
  %v1395 = vpack.c.b16 %v1291, %v1290
  %v1396 = vpack.c.b16 %v1293, %v1292
  %v1397 = vpack.c.b16 %v1295, %v1294
  %v1398 = vpack.c.b16 %v1297, %v1296
  %v1399 = vpack.c.b16 %v1299, %v1298
  %v1400 = vpack.c.b16 %v1301, %v1300
  %v1401 = vpack.c.b16 %v1303, %v1302
  %v1402 = vpack.c.b16 %v1305, %v1304
  %v1403 = vpack.c.b16 %v1307, %v1306
  %v1404 = vpack.c.b16 %v1309, %v1308
  %v1405 = vpack.c.b16 %v1311, %v1310
  %v1406 = vpack.c.b16 %v1313, %v1312
  %v1407 = vpack.c.b16 %v1315, %v1314
  %v1408 = vpack.c.b16 %v1317, %v1316
  %v1409 = vpack.c.b16 %v1319, %v1318
  %v1410 = vpack.c.b16 %v1321, %v1320
  %v1411 = vpack.c.b16 %v1323, %v1322
  %v1412 = vpack.c.b16 %v1325, %v1324
  %v1413 = vpack.c.b16 %v1327, %v1326
  %v1414 = vpack.c.b16 %v1329, %v1328
  %v1415 = vpack.c.b16 %v1331, %v1330
  %v1416 = vpack.c.b16 %v1333, %v1332
  %v1417 = vpack.c.b16 %v1335, %v1334
  %v1418 = vpack.c.b16 %v1337, %v1336
  %v1419 = vpack.c.b16 %v1339, %v1338
  %v1420 = vpack.c.b16 %v1341, %v1340
  %v1421 = vpack.c.b16 %v1343, %v1342
  %v1422 = vpack.c.b16 %v1345, %v1344
  %v1423 = vpack.c.b16 %v1347, %v1346
  %v1424 = vpack.c.b16 %v1349, %v1348
  %v1425 = vpack.c.b16 %v1351, %v1350
  %v1426 = vpack.c.b16 %v1353, %v1352
  %v1427 = vpack.c.b16 %v1355, %v1354
  %v1428 = vpack.c.b16 %v1357, %v1356
  %v1429 = vpack.c.b16 %v1359, %v1358
  %v1430 = vpack.c.b16 %v1361, %v1360
  %v1431 = vpack.c.b16 %v1363, %v1362
  %v1432 = vpack.c.b16 %v1365, %v1364
  %v1433 = vpack.c.b16 %v1367, %v1366
  %v1434 = vpack.c.b16 %v1369, %v1368
  %v1435 = vpack.c.b16 %v1371, %v1370
  %v1436 = vpack.c.b16 %v1373, %v1372
  %v1437 = vpack.c.b16 %v1375, %v1374
  %v1438 = vpack.c.b16 %v1377, %v1376
  %v1439 = vpack.c.b16 %v1379, %v1378
  %v1501 = vsel %vm899, %v977, 0
  %v1504 = vsel %vm899, %v983, 0
  %v1507 = vsel %vm899, %v988, 0
  %v1510 = vsel %vm899, %v993, 0
  %v1513 = vsel %vm899, %v998, 0
  %v1516 = vsel %vm899, %v1003, 0
  %v1519 = vsel %vm899, %v1008, 0
  %1521 = vmatprep.subr.bf16.mxu0 0
  %1522 = vmatpush1.bf16.msra.mxu0 %v1387
  %1523 = vmatprep.subr.bf16.mxu0 0
  %1524 = vmatpush1.bf16.msra.mxu0 %v1386
  %1525 = vmatprep.subr.bf16.mxu0 0
  %1526 = vmatpush1.bf16.msra.mxu0 %v1385
  %1527 = vmatprep.subr.bf16.mxu0 0
  %1528 = vmatpush1.bf16.msra.mxu0 %v1384
  %1529 = vmatprep.subr.bf16.mxu0 0
  %1530 = vmatpush1.bf16.msra.mxu0 %v1383
  %1531 = vmatprep.subr.bf16.mxu0 0
  %1532 = vmatpush1.bf16.msra.mxu0 %v1382
  %1533 = vmatprep.subr.bf16.mxu0 0
  %1534 = vmatpush1.bf16.msra.mxu0 %v1381
  %1535 = vmatprep.subr.bf16.mxu0 0
  %1536 = vmatpush1.bf16.msra.mxu0 %v1380
  %1537 = vmatprep.subr.bf16.mxu0 0
  %1538 = vmatpush2.bf16.msra.mxu0 %v1395
  %1539 = vmatprep.subr.bf16.mxu0 0
  %1540 = vmatpush2.bf16.msra.mxu0 %v1394
  %1541 = vmatprep.subr.bf16.mxu0 0
  %1542 = vmatpush2.bf16.msra.mxu0 %v1393
  %1543 = vmatprep.subr.bf16.mxu0 0
  %1544 = vmatpush2.bf16.msra.mxu0 %v1392
  %1545 = vmatprep.subr.bf16.mxu0 0
  %1546 = vmatpush2.bf16.msra.mxu0 %v1391
  %1547 = vmatprep.subr.bf16.mxu0 0
  %1548 = vmatpush2.bf16.msra.mxu0 %v1390
  %1549 = vmatprep.subr.bf16.mxu0 0
  %1550 = vmatpush2.bf16.msra.mxu0 %v1389
  %1551 = vmatprep.subr.bf16.mxu0 0
  %1552 = vmatpush2.bf16.msra.mxu0 %v1388
  %1553 = vmatprep.mubr.bf16.mxu0 %v971
  %1554 = vmatmul.mubr.bf16.gmra.mxu0 %v970
  %v1555 = vpop.f32.mrf.mxu0
  %v1556 = vadd.f32 %v1138, %v1555
  %v1557 = vpop.f32.mrf.mxu0
  %v1558 = vpop.f32.mrf.mxu0
  %v1559 = vadd.f32 %v1138, %v1558
  %v1560 = vpop.f32.mrf.mxu0
  %1561 = vmatprep.mubr.bf16.mxu0 %v978
  %1562 = vmatmul.mubr.bf16.gmra.mxu0 %v970
  %v1563 = vpop.f32.mrf.mxu0
  %v1564 = vadd.f32 %v1138, %v1563
  %v1565 = vpop.f32.mrf.mxu0
  %v1566 = vpop.f32.mrf.mxu0
  %v1567 = vadd.f32 %v1138, %v1566
  %v1568 = vpop.f32.mrf.mxu0
  %1569 = vmatprep.mubr.bf16.mxu0 %v984
  %1570 = vmatmul.mubr.bf16.gmra.mxu0 %v971
  %v1571 = vpop.f32.mrf.mxu0
  %v1572 = vadd.f32 %v1138, %v1571
  %v1573 = vpop.f32.mrf.mxu0
  %v1574 = vpop.f32.mrf.mxu0
  %v1575 = vadd.f32 %v1138, %v1574
  %v1576 = vpop.f32.mrf.mxu0
  %1577 = vmatprep.mubr.bf16.mxu0 %v989
  %1578 = vmatmul.mubr.bf16.gmra.mxu0 %v978
  %v1579 = vpop.f32.mrf.mxu0
  %v1580 = vadd.f32 %v1138, %v1579
  %v1581 = vpop.f32.mrf.mxu0
  %v1582 = vpop.f32.mrf.mxu0
  %v1583 = vadd.f32 %v1138, %v1582
  %v1584 = vpop.f32.mrf.mxu0
  %1585 = vmatprep.mubr.bf16.mxu0 %v994
  %1586 = vmatmul.mubr.bf16.gmra.mxu0 %v984
  %v1587 = vpop.f32.mrf.mxu0
  %v1588 = vadd.f32 %v1138, %v1587
  %v1589 = vpop.f32.mrf.mxu0
  %v1590 = vpop.f32.mrf.mxu0
  %v1591 = vadd.f32 %v1138, %v1590
  %v1592 = vpop.f32.mrf.mxu0
  %1593 = vmatprep.mubr.bf16.mxu0 %v999
  %1594 = vmatmul.mubr.bf16.gmra.mxu0 %v989
  %v1595 = vpop.f32.mrf.mxu0
  %v1596 = vadd.f32 %v1138, %v1595
  %v1597 = vpop.f32.mrf.mxu0
  %v1598 = vpop.f32.mrf.mxu0
  %v1599 = vadd.f32 %v1138, %v1598
  %v1600 = vpop.f32.mrf.mxu0
  %1601 = vmatprep.mubr.bf16.mxu0 %v1004
  %1602 = vmatmul.mubr.bf16.gmra.mxu0 %v994
  %v1603 = vpop.f32.mrf.mxu0
  %v1604 = vadd.f32 %v1138, %v1603
  %v1605 = vpop.f32.mrf.mxu0
  %v1606 = vpop.f32.mrf.mxu0
  %v1607 = vadd.f32 %v1138, %v1606
  %v1608 = vpop.f32.mrf.mxu0
  %1609 = vmatprep.mubr.bf16.mxu0 %v1009
  %1610 = vmatmul.mubr.bf16.gmra.mxu0 %v999
  %v1611 = vpop.f32.mrf.mxu0
  %v1612 = vadd.f32 %v1138, %v1611
  %v1613 = vpop.f32.mrf.mxu0
  %v1614 = vpop.f32.mrf.mxu0
  %v1615 = vadd.f32 %v1138, %v1614
  %v1616 = vpop.f32.mrf.mxu0
  %1617 = vdwg.mxu0
  %1618 = vmatprep.subr.bf16.mxu0 0
  %1619 = vmatpush1.bf16.msra.mxu0 %v1403
  %1620 = vmatprep.subr.bf16.mxu0 0
  %1621 = vmatpush1.bf16.msra.mxu0 %v1402
  %1622 = vmatprep.subr.bf16.mxu0 0
  %1623 = vmatpush1.bf16.msra.mxu0 %v1401
  %1624 = vmatprep.subr.bf16.mxu0 0
  %1625 = vmatpush1.bf16.msra.mxu0 %v1400
  %1626 = vmatprep.subr.bf16.mxu0 0
  %1627 = vmatpush1.bf16.msra.mxu0 %v1399
  %1628 = vmatprep.subr.bf16.mxu0 0
  %1629 = vmatpush1.bf16.msra.mxu0 %v1398
  %1630 = vmatprep.subr.bf16.mxu0 0
  %1631 = vmatpush1.bf16.msra.mxu0 %v1397
  %1632 = vmatprep.subr.bf16.mxu0 0
  %1633 = vmatpush1.bf16.msra.mxu0 %v1396
  %1634 = vmatprep.subr.bf16.mxu0 0
  %1635 = vmatpush2.bf16.msra.mxu0 %v1411
  %1636 = vmatprep.subr.bf16.mxu0 0
  %1637 = vmatpush2.bf16.msra.mxu0 %v1410
  %1638 = vmatprep.subr.bf16.mxu0 0
  %1639 = vmatpush2.bf16.msra.mxu0 %v1409
  %1640 = vmatprep.subr.bf16.mxu0 0
  %1641 = vmatpush2.bf16.msra.mxu0 %v1408
  %1642 = vmatprep.subr.bf16.mxu0 0
  %1643 = vmatpush2.bf16.msra.mxu0 %v1407
  %1644 = vmatprep.subr.bf16.mxu0 0
  %1645 = vmatpush2.bf16.msra.mxu0 %v1406
  %1646 = vmatprep.subr.bf16.mxu0 0
  %1647 = vmatpush2.bf16.msra.mxu0 %v1405
  %1648 = vmatprep.subr.bf16.mxu0 0
  %1649 = vmatpush2.bf16.msra.mxu0 %v1404
  %1650 = vmatprep.mubr.bf16.mxu0 %v973
  %1651 = vmatmul.mubr.bf16.gmra.mxu0 %v972
  %v1652 = vpop.f32.mrf.mxu0
  %v1653 = vadd.f32 %v1556, %v1652
  %v1654 = vpop.f32.mrf.mxu0
  %v1655 = vpop.f32.mrf.mxu0
  %v1656 = vadd.f32 %v1559, %v1655
  %v1657 = vpop.f32.mrf.mxu0
  %1658 = vmatprep.mubr.bf16.mxu0 %v980
  %1659 = vmatmul.mubr.bf16.gmra.mxu0 %v979
  %v1660 = vpop.f32.mrf.mxu0
  %v1661 = vadd.f32 %v1564, %v1660
  %v1662 = vpop.f32.mrf.mxu0
  %v1663 = vpop.f32.mrf.mxu0
  %v1664 = vadd.f32 %v1567, %v1663
  %v1665 = vpop.f32.mrf.mxu0
  %1666 = vmatprep.mubr.bf16.mxu0 %v974
  %1667 = vmatmul.mubr.bf16.gmra.mxu0 %v985
  %v1668 = vpop.f32.mrf.mxu0
  %v1669 = vadd.f32 %v1572, %v1668
  %v1670 = vpop.f32.mrf.mxu0
  %v1671 = vpop.f32.mrf.mxu0
  %v1672 = vadd.f32 %v1575, %v1671
  %v1673 = vpop.f32.mrf.mxu0
  %1674 = vmatprep.mubr.bf16.mxu0 %v981
  %1675 = vmatmul.mubr.bf16.gmra.mxu0 %v990
  %v1676 = vpop.f32.mrf.mxu0
  %v1677 = vadd.f32 %v1580, %v1676
  %v1678 = vpop.f32.mrf.mxu0
  %v1679 = vpop.f32.mrf.mxu0
  %v1680 = vadd.f32 %v1583, %v1679
  %v1681 = vpop.f32.mrf.mxu0
  %1682 = vmatprep.mubr.bf16.mxu0 %v986
  %1683 = vmatmul.mubr.bf16.gmra.mxu0 %v995
  %v1684 = vpop.f32.mrf.mxu0
  %v1685 = vadd.f32 %v1588, %v1684
  %v1686 = vpop.f32.mrf.mxu0
  %v1687 = vpop.f32.mrf.mxu0
  %v1688 = vadd.f32 %v1591, %v1687
  %v1689 = vpop.f32.mrf.mxu0
  %1690 = vmatprep.mubr.bf16.mxu0 %v991
  %1691 = vmatmul.mubr.bf16.gmra.mxu0 %v1000
  %v1692 = vpop.f32.mrf.mxu0
  %v1693 = vadd.f32 %v1596, %v1692
  %v1694 = vpop.f32.mrf.mxu0
  %v1695 = vpop.f32.mrf.mxu0
  %v1696 = vadd.f32 %v1599, %v1695
  %v1697 = vpop.f32.mrf.mxu0
  %1698 = vmatprep.mubr.bf16.mxu0 %v996
  %1699 = vmatmul.mubr.bf16.gmra.mxu0 %v1005
  %v1700 = vpop.f32.mrf.mxu0
  %v1701 = vadd.f32 %v1604, %v1700
  %v1702 = vpop.f32.mrf.mxu0
  %v1703 = vpop.f32.mrf.mxu0
  %v1704 = vadd.f32 %v1607, %v1703
  %v1705 = vpop.f32.mrf.mxu0
  %1706 = vmatprep.mubr.bf16.mxu0 %v1001
  %1707 = vmatmul.mubr.bf16.gmra.mxu0 %v1010
  %v1708 = vpop.f32.mrf.mxu0
  %v1709 = vadd.f32 %v1612, %v1708
  %v1710 = vpop.f32.mrf.mxu0
  %v1711 = vpop.f32.mrf.mxu0
  %v1712 = vadd.f32 %v1615, %v1711
  %v1713 = vpop.f32.mrf.mxu0
  %1714 = vdwg.mxu0
  %1715 = vmatprep.subr.bf16.mxu0 0
  %1716 = vmatpush1.bf16.msra.mxu0 %v1419
  %1717 = vmatprep.subr.bf16.mxu0 0
  %1718 = vmatpush1.bf16.msra.mxu0 %v1418
  %1719 = vmatprep.subr.bf16.mxu0 0
  %1720 = vmatpush1.bf16.msra.mxu0 %v1417
  %1721 = vmatprep.subr.bf16.mxu0 0
  %1722 = vmatpush1.bf16.msra.mxu0 %v1416
  %1723 = vmatprep.subr.bf16.mxu0 0
  %1724 = vmatpush1.bf16.msra.mxu0 %v1415
  %1725 = vmatprep.subr.bf16.mxu0 0
  %1726 = vmatpush1.bf16.msra.mxu0 %v1414
  %1727 = vmatprep.subr.bf16.mxu0 0
  %1728 = vmatpush1.bf16.msra.mxu0 %v1413
  %1729 = vmatprep.subr.bf16.mxu0 0
  %1730 = vmatpush1.bf16.msra.mxu0 %v1412
  %1731 = vmatprep.subr.bf16.mxu0 0
  %1732 = vmatpush2.bf16.msra.mxu0 %v1427
  %1733 = vmatprep.subr.bf16.mxu0 0
  %1734 = vmatpush2.bf16.msra.mxu0 %v1426
  %1735 = vmatprep.subr.bf16.mxu0 0
  %1736 = vmatpush2.bf16.msra.mxu0 %v1425
  %1737 = vmatprep.subr.bf16.mxu0 0
  %1738 = vmatpush2.bf16.msra.mxu0 %v1424
  %1739 = vmatprep.subr.bf16.mxu0 0
  %1740 = vmatpush2.bf16.msra.mxu0 %v1423
  %1741 = vmatprep.subr.bf16.mxu0 0
  %1742 = vmatpush2.bf16.msra.mxu0 %v1422
  %1743 = vmatprep.subr.bf16.mxu0 0
  %1744 = vmatpush2.bf16.msra.mxu0 %v1421
  %1745 = vmatprep.subr.bf16.mxu0 0
  %1746 = vmatpush2.bf16.msra.mxu0 %v1420
  %1747 = vmatprep.mubr.bf16.mxu0 %v975
  %1748 = vmatmul.mubr.bf16.gmra.mxu0 %v974
  %v1749 = vpop.f32.mrf.mxu0
  %v1750 = vadd.f32 %v1653, %v1749
  %v1751 = vpop.f32.mrf.mxu0
  %v1752 = vpop.f32.mrf.mxu0
  %v1753 = vadd.f32 %v1656, %v1752
  %v1754 = vpop.f32.mrf.mxu0
  %1755 = vmatprep.mubr.bf16.mxu0 %v975
  %1756 = vmatmul.mubr.bf16.gmra.mxu0 %v981
  %v1757 = vpop.f32.mrf.mxu0
  %v1758 = vadd.f32 %v1661, %v1757
  %v1759 = vpop.f32.mrf.mxu0
  %v1760 = vpop.f32.mrf.mxu0
  %v1761 = vadd.f32 %v1664, %v1760
  %v1762 = vpop.f32.mrf.mxu0
  %1763 = vmatprep.mubr.bf16.mxu0 %v976
  %1764 = vmatmul.mubr.bf16.gmra.mxu0 %v986
  %v1765 = vpop.f32.mrf.mxu0
  %v1766 = vadd.f32 %v1669, %v1765
  %v1767 = vpop.f32.mrf.mxu0
  %v1768 = vpop.f32.mrf.mxu0
  %v1769 = vadd.f32 %v1672, %v1768
  %v1770 = vpop.f32.mrf.mxu0
  %1771 = vmatprep.mubr.bf16.mxu0 %v982
  %1772 = vmatmul.mubr.bf16.gmra.mxu0 %v991
  %v1773 = vpop.f32.mrf.mxu0
  %v1774 = vadd.f32 %v1677, %v1773
  %v1775 = vpop.f32.mrf.mxu0
  %v1776 = vpop.f32.mrf.mxu0
  %v1777 = vadd.f32 %v1680, %v1776
  %v1778 = vpop.f32.mrf.mxu0
  %1779 = vmatprep.mubr.bf16.mxu0 %v987
  %1780 = vmatmul.mubr.bf16.gmra.mxu0 %v996
  %v1781 = vpop.f32.mrf.mxu0
  %v1782 = vadd.f32 %v1685, %v1781
  %v1783 = vpop.f32.mrf.mxu0
  %v1784 = vpop.f32.mrf.mxu0
  %v1785 = vadd.f32 %v1688, %v1784
  %v1786 = vpop.f32.mrf.mxu0
  %1787 = vmatprep.mubr.bf16.mxu0 %v992
  %1788 = vmatmul.mubr.bf16.gmra.mxu0 %v1001
  %v1789 = vpop.f32.mrf.mxu0
  %v1790 = vadd.f32 %v1693, %v1789
  %v1791 = vpop.f32.mrf.mxu0
  %v1792 = vpop.f32.mrf.mxu0
  %v1793 = vadd.f32 %v1696, %v1792
  %v1794 = vpop.f32.mrf.mxu0
  %1795 = vmatprep.mubr.bf16.mxu0 %v997
  %1796 = vmatmul.mubr.bf16.gmra.mxu0 %v1006
  %v1797 = vpop.f32.mrf.mxu0
  %v1798 = vadd.f32 %v1701, %v1797
  %v1799 = vpop.f32.mrf.mxu0
  %v1800 = vpop.f32.mrf.mxu0
  %v1801 = vadd.f32 %v1704, %v1800
  %v1802 = vpop.f32.mrf.mxu0
  %1803 = vmatprep.mubr.bf16.mxu0 %v1002
  %1804 = vmatmul.mubr.bf16.gmra.mxu0 %v1011
  %v1805 = vpop.f32.mrf.mxu0
  %v1806 = vadd.f32 %v1709, %v1805
  %v1807 = vpop.f32.mrf.mxu0
  %v1808 = vpop.f32.mrf.mxu0
  %v1809 = vadd.f32 %v1712, %v1808
  %v1810 = vpop.f32.mrf.mxu0
  %1811 = vdwg.mxu0
  %1812 = vmatprep.subr.bf16.mxu0 0
  %1813 = vmatpush1.bf16.msra.mxu0 %v1435
  %1814 = vmatprep.subr.bf16.mxu0 0
  %1815 = vmatpush1.bf16.msra.mxu0 %v1434
  %1816 = vmatprep.subr.bf16.mxu0 0
  %1817 = vmatpush1.bf16.msra.mxu0 %v1433
  %1818 = vmatprep.subr.bf16.mxu0 0
  %1819 = vmatpush1.bf16.msra.mxu0 %v1432
  %1820 = vmatprep.subr.bf16.mxu0 0
  %1821 = vmatpush1.bf16.msra.mxu0 %v1431
  %1822 = vmatprep.subr.bf16.mxu0 0
  %1823 = vmatpush1.bf16.msra.mxu0 %v1430
  %1824 = vmatprep.subr.bf16.mxu0 0
  %1825 = vmatpush1.bf16.msra.mxu0 %v1429
  %1826 = vmatprep.subr.bf16.mxu0 0
  %1827 = vmatpush1.bf16.msra.mxu0 %v1428
  %1828 = vmatprep.subr.bf16.mxu0 0
  %1829 = vmatpush2.bf16.msra.mxu0 0
  %1830 = vmatprep.subr.bf16.mxu0 0
  %1831 = vmatpush2.bf16.msra.mxu0 0
  %1832 = vmatprep.subr.bf16.mxu0 0
  %1833 = vmatpush2.bf16.msra.mxu0 0
  %1834 = vmatprep.subr.bf16.mxu0 0
  %1835 = vmatpush2.bf16.msra.mxu0 0
  %1836 = vmatprep.subr.bf16.mxu0 0
  %1837 = vmatpush2.bf16.msra.mxu0 %v1439
  %1838 = vmatprep.subr.bf16.mxu0 0
  %1839 = vmatpush2.bf16.msra.mxu0 %v1438
  %1840 = vmatprep.subr.bf16.mxu0 0
  %1841 = vmatpush2.bf16.msra.mxu0 %v1437
  %1842 = vmatprep.subr.bf16.mxu0 0
  %1843 = vmatpush2.bf16.msra.mxu0 %v1436
  %1844 = vmatprep.mubr.bf16.mxu0 %v1501
  %1845 = vmatmul.mubr.bf16.gmra.mxu0 %v976
  %v1846 = vpop.f32.mrf.mxu0
  %v1847 = vadd.f32 %v1750, %v1846
  %v1848 = vpop.f32.mrf.mxu0
  %v1849 = vpop.f32.mrf.mxu0
  %v1850 = vadd.f32 %v1753, %v1849
  %v1851 = vpop.f32.mrf.mxu0
  %1852 = vmatprep.mubr.bf16.mxu0 %v1504
  %1853 = vmatmul.mubr.bf16.gmra.mxu0 %v982
  %v1854 = vpop.f32.mrf.mxu0
  %v1855 = vadd.f32 %v1758, %v1854
  %v1856 = vpop.f32.mrf.mxu0
  %v1857 = vpop.f32.mrf.mxu0
  %v1858 = vadd.f32 %v1761, %v1857
  %v1859 = vpop.f32.mrf.mxu0
  %1860 = vmatprep.mubr.bf16.mxu0 %v1507
  %1861 = vmatmul.mubr.bf16.gmra.mxu0 %v987
  %v1862 = vpop.f32.mrf.mxu0
  %v1863 = vadd.f32 %v1766, %v1862
  %v1864 = vpop.f32.mrf.mxu0
  %v1865 = vpop.f32.mrf.mxu0
  %v1866 = vadd.f32 %v1769, %v1865
  %v1867 = vpop.f32.mrf.mxu0
  %1868 = vmatprep.mubr.bf16.mxu0 %v1510
  %1869 = vmatmul.mubr.bf16.gmra.mxu0 %v992
  %v1870 = vpop.f32.mrf.mxu0
  %v1871 = vadd.f32 %v1774, %v1870
  %v1872 = vpop.f32.mrf.mxu0
  %v1873 = vpop.f32.mrf.mxu0
  %v1874 = vadd.f32 %v1777, %v1873
  %v1875 = vpop.f32.mrf.mxu0
  %1876 = vmatprep.mubr.bf16.mxu0 %v1513
  %1877 = vmatmul.mubr.bf16.gmra.mxu0 %v997
  %v1878 = vpop.f32.mrf.mxu0
  %v1879 = vadd.f32 %v1782, %v1878
  %v1880 = vpop.f32.mrf.mxu0
  %v1881 = vpop.f32.mrf.mxu0
  %v1882 = vadd.f32 %v1785, %v1881
  %v1883 = vpop.f32.mrf.mxu0
  %1884 = vmatprep.mubr.bf16.mxu0 %v1516
  %1885 = vmatmul.mubr.bf16.gmra.mxu0 %v1002
  %v1886 = vpop.f32.mrf.mxu0
  %v1887 = vadd.f32 %v1790, %v1886
  %v1888 = vpop.f32.mrf.mxu0
  %v1889 = vpop.f32.mrf.mxu0
  %v1890 = vadd.f32 %v1793, %v1889
  %v1891 = vpop.f32.mrf.mxu0
  %1892 = vmatprep.mubr.bf16.mxu0 %v1519
  %1893 = vmatmul.mubr.bf16.gmra.mxu0 %v1007
  %v1894 = vpop.f32.mrf.mxu0
  %v1895 = vadd.f32 %v1798, %v1894
  %v1896 = vpop.f32.mrf.mxu0
  %v1897 = vpop.f32.mrf.mxu0
  %v1898 = vadd.f32 %v1801, %v1897
  %v1899 = vpop.f32.mrf.mxu0
  %1900 = vmatprep.mubr.bf16.mxu0 %v1519
  %1901 = vmatmul.mubr.bf16.gmra.mxu0 %v1012
  %v1902 = vpop.f32.mrf.mxu0
  %v1903 = vadd.f32 %v1806, %v1902
  %v1904 = vpop.f32.mrf.mxu0
  %v1905 = vpop.f32.mrf.mxu0
  %v1906 = vadd.f32 %v1809, %v1905
  %v1907 = vpop.f32.mrf.mxu0
  %1908 = vdwg.mxu0
  %v1909 = vmax.f32 %v1847, 0.0
  %v1910 = vmax.f32 %v1850, 0.0
  %v1911 = vmax.f32 %v1855, 0.0
  %v1912 = vmax.f32 %v1858, 0.0
  %v1913 = vmax.f32 %v1863, 0.0
  %v1914 = vmax.f32 %v1866, 0.0
  %v1915 = vmax.f32 %v1871, 0.0
  %v1916 = vmax.f32 %v1874, 0.0
  %v1917 = vmax.f32 %v1879, 0.0
  %v1918 = vmax.f32 %v1882, 0.0
  %v1919 = vmax.f32 %v1887, 0.0
  %v1920 = vmax.f32 %v1890, 0.0
  %v1921 = vmax.f32 %v1895, 0.0
  %v1922 = vmax.f32 %v1898, 0.0
  %v1923 = vmax.f32 %v1903, 0.0
  %v1924 = vmax.f32 %v1906, 0.0
  %v1941 = vrot.slane %v1909, 7
  %v1942 = vrot.slane %v1910, 7
  %v1943 = vsel %vm393, %v1941, %v1942
  %v1944 = vrot.slane %v1911, 7
  %v1945 = vrot.slane %v1912, 7
  %v1946 = vsel %vm393, %v1944, %v1945
  %v1947 = vrot.slane %v1913, 7
  %v1948 = vrot.slane %v1914, 7
  %v1949 = vsel %vm393, %v1947, %v1948
  %v1950 = vrot.slane %v1915, 7
  %v1951 = vrot.slane %v1916, 7
  %v1952 = vsel %vm393, %v1950, %v1951
  %v1953 = vrot.slane %v1917, 7
  %v1954 = vrot.slane %v1918, 7
  %v1955 = vsel %vm393, %v1953, %v1954
  %v1956 = vrot.slane %v1919, 7
  %v1957 = vrot.slane %v1920, 7
  %v1958 = vsel %vm393, %v1956, %v1957
  %v1959 = vrot.slane %v1921, 7
  %v1960 = vrot.slane %v1922, 7
  %v1961 = vsel %vm393, %v1959, %v1960
  %v1962 = vrot.slane %v1923, 7
  %v1963 = vrot.slane %v1924, 7
  %v1964 = vsel %vm393, %v1962, %v1963
  %v1989 = vsel %vm393, 0.0, %v1941
  %v1990 = vsel %vm393, 0.0, %v1944
  %v1991 = vsel %vm393, 0.0, %v1947
  %v1992 = vsel %vm393, 0.0, %v1950
  %v1993 = vsel %vm393, 0.0, %v1953
  %v1994 = vsel %vm393, 0.0, %v1956
  %v1995 = vsel %vm393, 0.0, %v1959
  %v1996 = vsel %vm393, 0.0, %v1962
  %v1997 = vsel %vm393, %v1942, 0.0
  %v1998 = vsel %vm393, %v1945, 0.0
  %v1999 = vsel %vm393, %v1948, 0.0
  %v2000 = vsel %vm393, %v1951, 0.0
  %v2001 = vsel %vm393, %v1954, 0.0
  %v2002 = vsel %vm393, %v1957, 0.0
  %v2003 = vsel %vm393, %v1960, 0.0
  %v2004 = vsel %vm393, %v1963, 0.0
  %v2009 = vrot.slane %v1989, 1
  %v2010 = vrot.slane %v1943, 1
  %v2011 = vsel %vm164, %v2009, %v2010
  %v2012 = vrot.slane %v1997, 1
  %v2013 = vsel %vm164, %v2010, %v2012
  %v2014 = vrot.slane %v1990, 1
  %v2015 = vrot.slane %v1946, 1
  %v2016 = vsel %vm164, %v2014, %v2015
  %v2017 = vrot.slane %v1998, 1
  %v2018 = vsel %vm164, %v2015, %v2017
  %v2027 = vrot.slane %v1991, 1
  %v2028 = vrot.slane %v1949, 1
  %v2029 = vsel %vm164, %v2027, %v2028
  %v2030 = vrot.slane %v1999, 1
  %v2031 = vsel %vm164, %v2028, %v2030
  %v2032 = vrot.slane %v1992, 1
  %v2033 = vrot.slane %v1952, 1
  %v2034 = vsel %vm164, %v2032, %v2033
  %v2035 = vrot.slane %v2000, 1
  %v2036 = vsel %vm164, %v2033, %v2035
  %v2045 = vrot.slane %v1993, 1
  %v2046 = vrot.slane %v1955, 1
  %v2047 = vsel %vm164, %v2045, %v2046
  %v2048 = vrot.slane %v2001, 1
  %v2049 = vsel %vm164, %v2046, %v2048
  %v2050 = vrot.slane %v1994, 1
  %v2051 = vrot.slane %v1958, 1
  %v2052 = vsel %vm164, %v2050, %v2051
  %v2053 = vrot.slane %v2002, 1
  %v2054 = vsel %vm164, %v2051, %v2053
  %v2063 = vrot.slane %v1995, 1
  %v2064 = vrot.slane %v1961, 1
  %v2065 = vsel %vm164, %v2063, %v2064
  %v2066 = vrot.slane %v2003, 1
  %v2067 = vsel %vm164, %v2064, %v2066
  %v2068 = vrot.slane %v1996, 1
  %v2069 = vrot.slane %v1964, 1
  %v2070 = vsel %vm164, %v2068, %v2069
  %v2071 = vrot.slane %v2004, 1
  %v2072 = vsel %vm164, %v2069, %v2071
  %v2077 = vrot.slane %v1989, 2
  %v2078 = vrot.slane %v1943, 2
  %v2079 = vsel %vm748, %v2077, %v2078
  %v2080 = vrot.slane %v1997, 2
  %v2081 = vsel %vm748, %v2078, %v2080
  %v2082 = vrot.slane %v1990, 2
  %v2083 = vrot.slane %v1946, 2
  %v2084 = vsel %vm748, %v2082, %v2083
  %v2085 = vrot.slane %v1998, 2
  %v2086 = vsel %vm748, %v2083, %v2085
  %v2091 = vrot.slane %v1991, 2
  %v2092 = vrot.slane %v1949, 2
  %v2093 = vsel %vm748, %v2091, %v2092
  %v2094 = vrot.slane %v1999, 2
  %v2095 = vsel %vm748, %v2092, %v2094
  %v2096 = vrot.slane %v1992, 2
  %v2097 = vrot.slane %v1952, 2
  %v2098 = vsel %vm748, %v2096, %v2097
  %v2099 = vrot.slane %v2000, 2
  %v2100 = vsel %vm748, %v2097, %v2099
  %v2105 = vrot.slane %v1993, 2
  %v2106 = vrot.slane %v1955, 2
  %v2107 = vsel %vm748, %v2105, %v2106
  %v2108 = vrot.slane %v2001, 2
  %v2109 = vsel %vm748, %v2106, %v2108
  %v2110 = vrot.slane %v1994, 2
  %v2111 = vrot.slane %v1958, 2
  %v2112 = vsel %vm748, %v2110, %v2111
  %v2113 = vrot.slane %v2002, 2
  %v2114 = vsel %vm748, %v2111, %v2113
  %v2119 = vrot.slane %v1995, 2
  %v2120 = vrot.slane %v1961, 2
  %v2121 = vsel %vm748, %v2119, %v2120
  %v2122 = vrot.slane %v2003, 2
  %v2123 = vsel %vm748, %v2120, %v2122
  %v2124 = vrot.slane %v1996, 2
  %v2125 = vrot.slane %v1964, 2
  %v2126 = vsel %vm748, %v2124, %v2125
  %v2127 = vrot.slane %v2004, 2
  %v2128 = vsel %vm748, %v2125, %v2127
  %v2133 = vpack.c.bf16 0.0, 0.0
  %v2134 = vpack.c.bf16 %v1943, %v1989
  %v2135 = vpack.c.bf16 %v1949, %v1991
  %v2136 = vpack.c.bf16 %v1955, %v1993
  %v2137 = vpack.c.bf16 %v587, %v587
  %v2138 = vpack.c.bf16 %v2013, %v2011
  %v2139 = vpack.c.bf16 %v2031, %v2029
  %v2140 = vpack.c.bf16 %v2049, %v2047
  %v2141 = vpack.c.bf16 %v2081, %v2079
  %v2142 = vpack.c.bf16 %v2095, %v2093
  %v2143 = vpack.c.bf16 %v2109, %v2107
  %v2144 = vpack.c.bf16 %v1946, %v1990
  %v2145 = vpack.c.bf16 %v1952, %v1992
  %v2146 = vpack.c.bf16 %v1958, %v1994
  %v2147 = vpack.c.bf16 %v2018, %v2016
  %v2148 = vpack.c.bf16 %v2036, %v2034
  %v2149 = vpack.c.bf16 %v2054, %v2052
  %v2150 = vpack.c.bf16 %v2086, %v2084
  %v2151 = vpack.c.bf16 %v2100, %v2098
  %v2152 = vpack.c.bf16 %v2114, %v2112
  %v2153 = vpack.c.bf16 %v1961, %v1995
  %v2154 = vpack.c.bf16 %v2067, %v2065
  %v2155 = vpack.c.bf16 %v2123, %v2121
  %v2156 = vpack.c.bf16 %v1964, %v1996
  %v2157 = vpack.c.bf16 %v2072, %v2070
  %v2158 = vpack.c.bf16 %v2128, %v2126
  %v2159 = vld [vmem:[%s6] sm:$0xf]
  %v2160 = vld [vmem:[%s6 + $0x4] sm:$0xf]
  %v2161 = vld [vmem:[%s6 + $0x8] sm:$0xf]
  %v2162 = vld [vmem:[%s6 + $0xc] sm:$0xf]
  %v2163 = vld [vmem:[%s6 + $0x10] sm:$0xf]
  %v2164 = vld [vmem:[%s6 + $0x14] sm:$0xf]
  %v2165 = vld [vmem:[%s6 + $0x18] sm:$0xf]
  %v2166 = vld [vmem:[%s6 + $0x1c] sm:$0xf]
  %v2167 = vld [vmem:[%s6 + $0x20] sm:$0xf]
  %v2168 = vld [vmem:[%s6 + $0x24] sm:$0xf]
  %v2169 = vld [vmem:[%s6 + $0x28] sm:$0xf]
  %v2170 = vld [vmem:[%s6 + $0x2c] sm:$0xf]
  %v2171 = vld [vmem:[%s6 + $0x30] sm:$0xf]
  %v2172 = vld [vmem:[%s6 + $0x34] sm:$0xf]
  %v2173 = vld [vmem:[%s6 + $0x38] sm:$0xf]
  %v2174 = vld [vmem:[%s6 + $0x3c] sm:$0xf]
  %v2175 = vld [vmem:[%s6 + $0x40] sm:$0xf]
  %v2176 = vld [vmem:[%s6 + $0x44] sm:$0xf]
  %v2177 = vld [vmem:[%s6 + $0x48] sm:$0xf]
  %v2178 = vld [vmem:[%s6 + $0x4c] sm:$0xf]
  %v2179 = vld [vmem:[%s6 + $0x50] sm:$0xf]
  %v2180 = vld [vmem:[%s6 + $0x54] sm:$0xf]
  %v2181 = vld [vmem:[%s6 + $0x58] sm:$0xf]
  %v2182 = vld [vmem:[%s6 + $0x5c] sm:$0xf]
  %v2183 = vld [vmem:[%s6 + $0x60] sm:$0xf]
  %v2184 = vld [vmem:[%s6 + $0x64] sm:$0xf]
  %v2185 = vld [vmem:[%s6 + $0x68] sm:$0xf]
  %v2186 = vld [vmem:[%s6 + $0x6c] sm:$0xf]
  %v2187 = vld [vmem:[%s6 + $0x70] sm:$0xf]
  %v2188 = vld [vmem:[%s6 + $0x74] sm:$0xf]
  %v2189 = vld [vmem:[%s6 + $0x78] sm:$0xf]
  %v2190 = vld [vmem:[%s6 + $0x7c] sm:$0xf]
  %v2191 = vld [vmem:[%s6 + $0x80] sm:$0xf]
  %v2192 = vld [vmem:[%s6 + $0x84] sm:$0xf]
  %v2193 = vld [vmem:[%s6 + $0x88] sm:$0xf]
  %v2194 = vld [vmem:[%s6 + $0x8c] sm:$0xf]
  %v2195 = vld [vmem:[%s6 + $0x90] sm:$0xf]
  %v2196 = vld [vmem:[%s6 + $0x94] sm:$0xf]
  %v2197 = vld [vmem:[%s6 + $0x98] sm:$0xf]
  %v2198 = vld [vmem:[%s6 + $0x9c] sm:$0xf]
  %v2199 = vld [vmem:[%s6 + $0xa0] sm:$0xf]
  %v2200 = vld [vmem:[%s6 + $0xa4] sm:$0xf]
  %v2201 = vld [vmem:[%s6 + $0xa8] sm:$0xf]
  %v2202 = vld [vmem:[%s6 + $0xac] sm:$0xf]
  %v2203 = vld [vmem:[%s6 + $0xb0] sm:$0xf]
  %v2204 = vld [vmem:[%s6 + $0xb4] sm:$0xf]
  %v2205 = vld [vmem:[%s6 + $0xb8] sm:$0xf]
  %v2206 = vld [vmem:[%s6 + $0xbc] sm:$0xf]
  %v2207 = vld [vmem:[%s6 + $0xc0] sm:$0xf]
  %v2208 = vld [vmem:[%s6 + $0xc4] sm:$0xf]
  %v2209 = vld [vmem:[%s6 + $0xc8] sm:$0xf]
  %v2210 = vld [vmem:[%s6 + $0xcc] sm:$0xf]
  %v2211 = vld [vmem:[%s6 + $0xd0] sm:$0xf]
  %v2212 = vld [vmem:[%s6 + $0xd4] sm:$0xf]
  %v2213 = vld [vmem:[%s6 + $0xd8] sm:$0xf]
  %v2214 = vld [vmem:[%s6 + $0xdc] sm:$0xf]
  %v2215 = vld [vmem:[%s6 + $0xe0] sm:$0xf]
  %v2216 = vld [vmem:[%s6 + $0xe4] sm:$0xf]
  %v2217 = vld [vmem:[%s6 + $0xe8] sm:$0xf]
  %v2218 = vld [vmem:[%s6 + $0xec] sm:$0xf]
  %v2219 = vld [vmem:[%s6 + $0xf0] sm:$0xf]
  %v2220 = vld [vmem:[%s6 + $0xf4] sm:$0xf]
  %v2221 = vld [vmem:[%s6 + $0xf8] sm:$0xf]
  %v2222 = vld [vmem:[%s6 + $0xfc] sm:$0xf]
  %v2223 = vld [vmem:[%s6 + $0x100] sm:$0xf]
  %v2224 = vld [vmem:[%s6 + $0x104] sm:$0xf]
  %v2225 = vld [vmem:[%s6 + $0x108] sm:$0xf]
  %v2226 = vld [vmem:[%s6 + $0x10c] sm:$0xf]
  %v2227 = vld [vmem:[%s6 + $0x110] sm:$0xf]
  %v2228 = vld [vmem:[%s6 + $0x114] sm:$0xf]
  %v2229 = vld [vmem:[%s6 + $0x118] sm:$0xf]
  %v2230 = vld [vmem:[%s6 + $0x11c] sm:$0xf]
  %v2231 = vld [vmem:[%s6 + $0x120] sm:$0xf]
  %v2232 = vld [vmem:[%s6 + $0x124] sm:$0xf]
  %v2233 = vld [vmem:[%s6 + $0x128] sm:$0xf]
  %v2234 = vld [vmem:[%s6 + $0x12c] sm:$0xf]
  %v2235 = vld [vmem:[%s6 + $0x130] sm:$0xf]
  %v2236 = vld [vmem:[%s6 + $0x134] sm:$0xf]
  %v2237 = vld [vmem:[%s6 + $0x138] sm:$0xf]
  %v2238 = vld [vmem:[%s6 + $0x13c] sm:$0xf]
  %v2239 = vld [vmem:[%s6 + $0x140] sm:$0xf]
  %v2240 = vld [vmem:[%s6 + $0x144] sm:$0xf]
  %v2241 = vld [vmem:[%s6 + $0x148] sm:$0xf]
  %v2242 = vld [vmem:[%s6 + $0x14c] sm:$0xf]
  %v2243 = vld [vmem:[%s6 + $0x150] sm:$0xf]
  %v2244 = vld [vmem:[%s6 + $0x154] sm:$0xf]
  %v2245 = vld [vmem:[%s6 + $0x158] sm:$0xf]
  %v2246 = vld [vmem:[%s6 + $0x15c] sm:$0xf]
  %v2247 = vld [vmem:[%s6 + $0x160] sm:$0xf]
  %v2248 = vld [vmem:[%s6 + $0x164] sm:$0xf]
  %v2249 = vld [vmem:[%s6 + $0x168] sm:$0xf]
  %v2250 = vld [vmem:[%s6 + $0x16c] sm:$0xf]
  %v2251 = vld [vmem:[%s6 + $0x170] sm:$0xf]
  %v2252 = vld [vmem:[%s6 + $0x174] sm:$0xf]
  %v2253 = vld [vmem:[%s6 + $0x178] sm:$0xf]
  %v2254 = vld [vmem:[%s6 + $0x17c] sm:$0xf]
  %v2255 = vld [vmem:[%s6 + $0x180] sm:$0xf]
  %v2256 = vld [vmem:[%s6 + $0x184] sm:$0xf]
  %v2257 = vld [vmem:[%s6 + $0x188] sm:$0xf]
  %v2258 = vld [vmem:[%s6 + $0x18c] sm:$0xf]
  %v2259 = vld [vmem:[%s6 + $0x190] sm:$0xf]
  %v2260 = vld [vmem:[%s6 + $0x194] sm:$0xf]
  %v2261 = vld [vmem:[%s6 + $0x198] sm:$0xf]
  %v2262 = vld [vmem:[%s6 + $0x19c] sm:$0xf]
  %v2263 = vld [vmem:[%s6 + $0x1a0] sm:$0xf]
  %v2264 = vld [vmem:[%s6 + $0x1a4] sm:$0xf]
  %v2265 = vld [vmem:[%s6 + $0x1a8] sm:$0xf]
  %v2266 = vld [vmem:[%s6 + $0x1ac] sm:$0xf]
  %v2267 = vld [vmem:[%s6 + $0x1b0] sm:$0xf]
  %v2268 = vld [vmem:[%s6 + $0x1b4] sm:$0xf]
  %v2269 = vld [vmem:[%s6 + $0x1b8] sm:$0xf]
  %v2270 = vld [vmem:[%s6 + $0x1bc] sm:$0xf]
  %v2271 = vld [vmem:[%s6 + $0x1c0] sm:$0xf]
  %v2272 = vld [vmem:[%s6 + $0x1c4] sm:$0xf]
  %v2273 = vld [vmem:[%s6 + $0x1c8] sm:$0xf]
  %v2274 = vld [vmem:[%s6 + $0x1cc] sm:$0xf]
  %v2275 = vld [vmem:[%s6 + $0x1d0] sm:$0xf]
  %v2276 = vld [vmem:[%s6 + $0x1d4] sm:$0xf]
  %v2277 = vld [vmem:[%s6 + $0x1d8] sm:$0xf]
  %v2278 = vld [vmem:[%s6 + $0x1dc] sm:$0xf]
  %v2279 = vld [vmem:[%s6 + $0x1e0] sm:$0xf]
  %v2280 = vld [vmem:[%s6 + $0x1e4] sm:$0xf]
  %v2281 = vld [vmem:[%s6 + $0x1e8] sm:$0xf]
  %v2282 = vld [vmem:[%s6 + $0x1ec] sm:$0xf]
  %v2283 = vld [vmem:[%s6 + $0x1f0] sm:$0xf]
  %v2284 = vld [vmem:[%s6 + $0x1f4] sm:$0xf]
  %v2285 = vld [vmem:[%s6 + $0x1f8] sm:$0xf]
  %v2286 = vld [vmem:[%s6 + $0x1fc] sm:$0xf]
  %v2287 = vld [vmem:[%s6 + $0x200] sm:$0xf]
  %v2288 = vld [vmem:[%s6 + $0x204] sm:$0xf]
  %v2289 = vld [vmem:[%s6 + $0x208] sm:$0xf]
  %v2290 = vld [vmem:[%s6 + $0x20c] sm:$0xf]
  %v2291 = vld [vmem:[%s6 + $0x210] sm:$0xf]
  %v2292 = vld [vmem:[%s6 + $0x214] sm:$0xf]
  %v2293 = vld [vmem:[%s6 + $0x218] sm:$0xf]
  %v2294 = vld [vmem:[%s6 + $0x21c] sm:$0xf]
  %v2295 = vld [vmem:[%s6 + $0x220] sm:$0xf]
  %v2296 = vld [vmem:[%s6 + $0x224] sm:$0xf]
  %v2297 = vld [vmem:[%s6 + $0x228] sm:$0xf]
  %v2298 = vld [vmem:[%s6 + $0x22c] sm:$0xf]
  %v2299 = vld [vmem:[%s6 + $0x230] sm:$0xf]
  %v2300 = vld [vmem:[%s6 + $0x234] sm:$0xf]
  %v2301 = vld [vmem:[%s6 + $0x238] sm:$0xf]
  %v2302 = vld [vmem:[%s6 + $0x23c] sm:$0xf]
  %v2303 = vld [vmem:[%s6 + $0x240] sm:$0xf]
  %v2304 = vld [vmem:[%s6 + $0x244] sm:$0xf]
  %v2305 = vld [vmem:[%s6 + $0x248] sm:$0xf]
  %v2306 = vld [vmem:[%s6 + $0x24c] sm:$0xf]
  %v2307 = vld [vmem:[%s6 + $0x250] sm:$0xf]
  %v2308 = vld [vmem:[%s6 + $0x254] sm:$0xf]
  %v2309 = vld [vmem:[%s6 + $0x258] sm:$0xf]
  %v2310 = vld [vmem:[%s6 + $0x25c] sm:$0xf]
  %v2311 = vld [vmem:[%s6 + $0x260] sm:$0xf]
  %v2312 = vld [vmem:[%s6 + $0x264] sm:$0xf]
  %v2313 = vld [vmem:[%s6 + $0x268] sm:$0xf]
  %v2314 = vld [vmem:[%s6 + $0x26c] sm:$0xf]
  %v2315 = vld [vmem:[%s6 + $0x270] sm:$0xf]
  %v2316 = vld [vmem:[%s6 + $0x274] sm:$0xf]
  %v2317 = vld [vmem:[%s6 + $0x278] sm:$0xf]
  %v2318 = vld [vmem:[%s6 + $0x27c] sm:$0xf]
  %v2319 = vld [vmem:[%s6 + $0x280] sm:$0xf]
  %v2320 = vld [vmem:[%s6 + $0x284] sm:$0xf]
  %v2321 = vld [vmem:[%s6 + $0x288] sm:$0xf]
  %v2322 = vld [vmem:[%s6 + $0x28c] sm:$0xf]
  %v2323 = vld [vmem:[%s6 + $0x290] sm:$0xf]
  %v2324 = vld [vmem:[%s6 + $0x294] sm:$0xf]
  %v2325 = vld [vmem:[%s6 + $0x298] sm:$0xf]
  %v2326 = vld [vmem:[%s6 + $0x29c] sm:$0xf]
  %v2327 = vld [vmem:[%s6 + $0x2a0] sm:$0xf]
  %v2328 = vld [vmem:[%s6 + $0x2a4] sm:$0xf]
  %v2329 = vld [vmem:[%s6 + $0x2a8] sm:$0xf]
  %v2330 = vld [vmem:[%s6 + $0x2ac] sm:$0xf]
  %v2331 = vld [vmem:[%s6 + $0x2b0] sm:$0xf]
  %v2332 = vld [vmem:[%s6 + $0x2b4] sm:$0xf]
  %v2333 = vld [vmem:[%s6 + $0x2b8] sm:$0xf]
  %v2334 = vld [vmem:[%s6 + $0x2bc] sm:$0xf]
  %v2335 = vld [vmem:[%s6 + $0x2c0] sm:$0xf]
  %v2336 = vld [vmem:[%s6 + $0x2c4] sm:$0xf]
  %v2337 = vld [vmem:[%s6 + $0x2c8] sm:$0xf]
  %v2338 = vld [vmem:[%s6 + $0x2cc] sm:$0xf]
  %v2339 = vld [vmem:[%s6 + $0x2d0] sm:$0xf]
  %v2340 = vld [vmem:[%s6 + $0x2d4] sm:$0xf]
  %v2341 = vld [vmem:[%s6 + $0x2d8] sm:$0xf]
  %v2342 = vld [vmem:[%s6 + $0x2dc] sm:$0xf]
  %v2343 = vld [vmem:[%s6 + $0x2e0] sm:$0xf]
  %v2344 = vld [vmem:[%s6 + $0x2e4] sm:$0xf]
  %v2345 = vld [vmem:[%s6 + $0x2e8] sm:$0xf]
  %v2346 = vld [vmem:[%s6 + $0x2ec] sm:$0xf]
  %v2347 = vld [vmem:[%s6 + $0x2f0] sm:$0xf]
  %v2348 = vld [vmem:[%s6 + $0x2f4] sm:$0xf]
  %v2349 = vld [vmem:[%s6 + $0x2f8] sm:$0xf]
  %v2350 = vld [vmem:[%s6 + $0x2fc] sm:$0xf]
  %v2351 = vld [vmem:[%s6 + $0x300] sm:$0xf]
  %v2352 = vld [vmem:[%s6 + $0x304] sm:$0xf]
  %v2353 = vld [vmem:[%s6 + $0x308] sm:$0xf]
  %v2354 = vld [vmem:[%s6 + $0x30c] sm:$0xf]
  %v2355 = vld [vmem:[%s6 + $0x310] sm:$0xf]
  %v2356 = vld [vmem:[%s6 + $0x314] sm:$0xf]
  %v2357 = vld [vmem:[%s6 + $0x318] sm:$0xf]
  %v2358 = vld [vmem:[%s6 + $0x31c] sm:$0xf]
  %v2359 = vld [vmem:[%s6 + $0x320] sm:$0xf]
  %v2360 = vld [vmem:[%s6 + $0x324] sm:$0xf]
  %v2361 = vld [vmem:[%s6 + $0x328] sm:$0xf]
  %v2362 = vld [vmem:[%s6 + $0x32c] sm:$0xf]
  %v2363 = vld [vmem:[%s6 + $0x330] sm:$0xf]
  %v2364 = vld [vmem:[%s6 + $0x334] sm:$0xf]
  %v2365 = vld [vmem:[%s6 + $0x338] sm:$0xf]
  %v2366 = vld [vmem:[%s6 + $0x33c] sm:$0xf]
  %v2367 = vld [vmem:[%s6 + $0x340] sm:$0xf]
  %v2368 = vld [vmem:[%s6 + $0x344] sm:$0xf]
  %v2369 = vld [vmem:[%s6 + $0x348] sm:$0xf]
  %v2370 = vld [vmem:[%s6 + $0x34c] sm:$0xf]
  %v2371 = vld [vmem:[%s6 + $0x350] sm:$0xf]
  %v2372 = vld [vmem:[%s6 + $0x354] sm:$0xf]
  %v2373 = vld [vmem:[%s6 + $0x358] sm:$0xf]
  %v2374 = vld [vmem:[%s6 + $0x35c] sm:$0xf]
  %v2375 = vld [vmem:[%s6 + $0x360] sm:$0xf]
  %v2376 = vld [vmem:[%s6 + $0x364] sm:$0xf]
  %v2377 = vld [vmem:[%s6 + $0x368] sm:$0xf]
  %v2378 = vld [vmem:[%s6 + $0x36c] sm:$0xf]
  %v2379 = vld [vmem:[%s6 + $0x370] sm:$0xf]
  %v2380 = vld [vmem:[%s6 + $0x374] sm:$0xf]
  %v2381 = vld [vmem:[%s6 + $0x378] sm:$0xf]
  %v2382 = vld [vmem:[%s6 + $0x37c] sm:$0xf]
  %v2383 = vld [vmem:[%s6 + $0x380] sm:$0xf]
  %v2384 = vld [vmem:[%s6 + $0x384] sm:$0xf]
  %v2385 = vld [vmem:[%s6 + $0x388] sm:$0xf]
  %v2386 = vld [vmem:[%s6 + $0x38c] sm:$0xf]
  %v2387 = vld [vmem:[%s6 + $0x390] sm:$0xf]
  %v2388 = vld [vmem:[%s6 + $0x394] sm:$0xf]
  %v2389 = vld [vmem:[%s6 + $0x398] sm:$0xf]
  %v2390 = vld [vmem:[%s6 + $0x39c] sm:$0xf]
  %v2391 = vld [vmem:[%s6 + $0x3a0] sm:$0xf]
  %v2392 = vld [vmem:[%s6 + $0x3a4] sm:$0xf]
  %v2393 = vld [vmem:[%s6 + $0x3a8] sm:$0xf]
  %v2394 = vld [vmem:[%s6 + $0x3ac] sm:$0xf]
  %v2395 = vld [vmem:[%s6 + $0x3b0] sm:$0xf]
  %v2396 = vld [vmem:[%s6 + $0x3b4] sm:$0xf]
  %v2397 = vld [vmem:[%s6 + $0x3b8] sm:$0xf]
  %v2398 = vld [vmem:[%s6 + $0x3bc] sm:$0xf]
  %v2399 = vld [vmem:[%s7] sm:$0x1]
  %v2401 = vlaneseq
  %v2402 = vshrl.u32 %v2401, 7
  %v2403 = vsub.s32 0, %v2402
  %v2404 = vrot.slane %v2399, %v2403
  %v2646 = vunpack.c.l.b16 %v2159
  %v2647 = vunpack.c.l.b16 %v2160
  %v2648 = vunpack.c.l.b16 %v2161
  %v2649 = vunpack.c.l.b16 %v2162
  %v2650 = vunpack.c.l.b16 %v2163
  %v2651 = vunpack.c.l.b16 %v2164
  %v2652 = vunpack.c.l.b16 %v2165
  %v2653 = vunpack.c.l.b16 %v2166
  %v2654 = vunpack.c.l.b16 %v2167
  %v2655 = vunpack.c.l.b16 %v2168
  %v2656 = vunpack.c.l.b16 %v2169
  %v2657 = vunpack.c.l.b16 %v2170
  %v2658 = vunpack.c.l.b16 %v2171
  %v2659 = vunpack.c.l.b16 %v2172
  %v2660 = vunpack.c.l.b16 %v2173
  %v2661 = vunpack.c.l.b16 %v2174
  %v2662 = vunpack.c.l.b16 %v2175
  %v2663 = vunpack.c.l.b16 %v2176
  %v2664 = vunpack.c.l.b16 %v2177
  %v2665 = vunpack.c.l.b16 %v2178
  %v2666 = vunpack.c.l.b16 %v2179
  %v2667 = vunpack.c.l.b16 %v2180
  %v2668 = vunpack.c.l.b16 %v2181
  %v2669 = vunpack.c.l.b16 %v2182
  %v2670 = vunpack.c.l.b16 %v2183
  %v2671 = vunpack.c.l.b16 %v2184
  %v2672 = vunpack.c.l.b16 %v2185
  %v2673 = vunpack.c.l.b16 %v2186
  %v2674 = vunpack.c.l.b16 %v2187
  %v2675 = vunpack.c.l.b16 %v2188
  %v2676 = vunpack.c.l.b16 %v2189
  %v2677 = vunpack.c.l.b16 %v2190
  %v2678 = vunpack.c.l.b16 %v2191
  %v2679 = vunpack.c.l.b16 %v2192
  %v2680 = vunpack.c.l.b16 %v2193
  %v2681 = vunpack.c.l.b16 %v2194
  %v2682 = vunpack.c.l.b16 %v2195
  %v2683 = vunpack.c.l.b16 %v2196
  %v2684 = vunpack.c.l.b16 %v2197
  %v2685 = vunpack.c.l.b16 %v2198
  %v2686 = vunpack.c.l.b16 %v2199
  %v2687 = vunpack.c.l.b16 %v2200
  %v2688 = vunpack.c.l.b16 %v2201
  %v2689 = vunpack.c.l.b16 %v2202
  %v2690 = vunpack.c.l.b16 %v2203
  %v2691 = vunpack.c.l.b16 %v2204
  %v2692 = vunpack.c.l.b16 %v2205
  %v2693 = vunpack.c.l.b16 %v2206
  %v2694 = vunpack.c.l.b16 %v2207
  %v2695 = vunpack.c.l.b16 %v2208
  %v2696 = vunpack.c.l.b16 %v2209
  %v2697 = vunpack.c.l.b16 %v2210
  %v2698 = vunpack.c.l.b16 %v2211
  %v2699 = vunpack.c.l.b16 %v2212
  %v2700 = vunpack.c.l.b16 %v2213
  %v2701 = vunpack.c.l.b16 %v2214
  %v2702 = vunpack.c.l.b16 %v2215
  %v2703 = vunpack.c.l.b16 %v2216
  %v2704 = vunpack.c.l.b16 %v2217
  %v2705 = vunpack.c.l.b16 %v2218
  %v2706 = vunpack.c.l.b16 %v2219
  %v2707 = vunpack.c.l.b16 %v2220
  %v2708 = vunpack.c.l.b16 %v2221
  %v2709 = vunpack.c.l.b16 %v2222
  %v2710 = vunpack.c.l.b16 %v2223
  %v2711 = vunpack.c.l.b16 %v2224
  %v2712 = vunpack.c.l.b16 %v2225
  %v2713 = vunpack.c.l.b16 %v2226
  %v2714 = vunpack.c.l.b16 %v2227
  %v2715 = vunpack.c.l.b16 %v2228
  %v2716 = vunpack.c.l.b16 %v2229
  %v2717 = vunpack.c.l.b16 %v2230
  %v2718 = vunpack.c.l.b16 %v2231
  %v2719 = vunpack.c.l.b16 %v2232
  %v2720 = vunpack.c.l.b16 %v2233
  %v2721 = vunpack.c.l.b16 %v2234
  %v2722 = vunpack.c.l.b16 %v2235
  %v2723 = vunpack.c.l.b16 %v2236
  %v2724 = vunpack.c.l.b16 %v2237
  %v2725 = vunpack.c.l.b16 %v2238
  %v2726 = vunpack.c.l.b16 %v2239
  %v2727 = vunpack.c.l.b16 %v2240
  %v2728 = vunpack.c.l.b16 %v2241
  %v2729 = vunpack.c.l.b16 %v2242
  %v2730 = vunpack.c.l.b16 %v2243
  %v2731 = vunpack.c.l.b16 %v2244
  %v2732 = vunpack.c.l.b16 %v2245
  %v2733 = vunpack.c.l.b16 %v2246
  %v2734 = vunpack.c.l.b16 %v2247
  %v2735 = vunpack.c.l.b16 %v2248
  %v2736 = vunpack.c.l.b16 %v2249
  %v2737 = vunpack.c.l.b16 %v2250
  %v2738 = vunpack.c.l.b16 %v2251
  %v2739 = vunpack.c.l.b16 %v2252
  %v2740 = vunpack.c.l.b16 %v2253
  %v2741 = vunpack.c.l.b16 %v2254
  %v2742 = vunpack.c.l.b16 %v2255
  %v2743 = vunpack.c.l.b16 %v2256
  %v2744 = vunpack.c.l.b16 %v2257
  %v2745 = vunpack.c.l.b16 %v2258
  %v2746 = vunpack.c.l.b16 %v2259
  %v2747 = vunpack.c.l.b16 %v2260
  %v2748 = vunpack.c.l.b16 %v2261
  %v2749 = vunpack.c.l.b16 %v2262
  %v2750 = vunpack.c.l.b16 %v2263
  %v2751 = vunpack.c.l.b16 %v2264
  %v2752 = vunpack.c.l.b16 %v2265
  %v2753 = vunpack.c.l.b16 %v2266
  %v2754 = vunpack.c.l.b16 %v2267
  %v2755 = vunpack.c.l.b16 %v2268
  %v2756 = vunpack.c.l.b16 %v2269
  %v2757 = vunpack.c.l.b16 %v2270
  %v2758 = vunpack.c.l.b16 %v2271
  %v2759 = vunpack.c.l.b16 %v2272
  %v2760 = vunpack.c.l.b16 %v2273
  %v2761 = vunpack.c.l.b16 %v2274
  %v2762 = vunpack.c.l.b16 %v2275
  %v2763 = vunpack.c.l.b16 %v2276
  %v2764 = vunpack.c.l.b16 %v2277
  %v2765 = vunpack.c.l.b16 %v2278
  %v2766 = vunpack.c.l.b16 %v2279
  %v2767 = vunpack.c.l.b16 %v2280
  %v2768 = vunpack.c.l.b16 %v2281
  %v2769 = vunpack.c.l.b16 %v2282
  %v2770 = vunpack.c.l.b16 %v2283
  %v2771 = vunpack.c.l.b16 %v2284
  %v2772 = vunpack.c.l.b16 %v2285
  %v2773 = vunpack.c.l.b16 %v2286
  %v2774 = vunpack.c.l.b16 %v2287
  %v2775 = vunpack.c.l.b16 %v2288
  %v2776 = vunpack.c.l.b16 %v2289
  %v2777 = vunpack.c.l.b16 %v2290
  %v2778 = vunpack.c.l.b16 %v2291
  %v2779 = vunpack.c.l.b16 %v2292
  %v2780 = vunpack.c.l.b16 %v2293
  %v2781 = vunpack.c.l.b16 %v2294
  %v2782 = vunpack.c.l.b16 %v2295
  %v2783 = vunpack.c.l.b16 %v2296
  %v2784 = vunpack.c.l.b16 %v2297
  %v2785 = vunpack.c.l.b16 %v2298
  %v2786 = vunpack.c.l.b16 %v2299
  %v2787 = vunpack.c.l.b16 %v2300
  %v2788 = vunpack.c.l.b16 %v2301
  %v2789 = vunpack.c.l.b16 %v2302
  %v2790 = vunpack.c.l.b16 %v2303
  %v2791 = vunpack.c.l.b16 %v2304
  %v2792 = vunpack.c.l.b16 %v2305
  %v2793 = vunpack.c.l.b16 %v2306
  %v2794 = vunpack.c.l.b16 %v2307
  %v2795 = vunpack.c.l.b16 %v2308
  %v2796 = vunpack.c.l.b16 %v2309
  %v2797 = vunpack.c.l.b16 %v2310
  %v2798 = vunpack.c.l.b16 %v2311
  %v2799 = vunpack.c.l.b16 %v2312
  %v2800 = vunpack.c.l.b16 %v2313
  %v2801 = vunpack.c.l.b16 %v2314
  %v2802 = vunpack.c.l.b16 %v2315
  %v2803 = vunpack.c.l.b16 %v2316
  %v2804 = vunpack.c.l.b16 %v2317
  %v2805 = vunpack.c.l.b16 %v2318
  %v2806 = vunpack.c.l.b16 %v2319
  %v2807 = vunpack.c.l.b16 %v2320
  %v2808 = vunpack.c.l.b16 %v2321
  %v2809 = vunpack.c.l.b16 %v2322
  %v2810 = vunpack.c.l.b16 %v2323
  %v2811 = vunpack.c.l.b16 %v2324
  %v2812 = vunpack.c.l.b16 %v2325
  %v2813 = vunpack.c.l.b16 %v2326
  %v2814 = vunpack.c.l.b16 %v2327
  %v2815 = vunpack.c.l.b16 %v2328
  %v2816 = vunpack.c.l.b16 %v2329
  %v2817 = vunpack.c.l.b16 %v2330
  %v2818 = vunpack.c.l.b16 %v2331
  %v2819 = vunpack.c.l.b16 %v2332
  %v2820 = vunpack.c.l.b16 %v2333
  %v2821 = vunpack.c.l.b16 %v2334
  %v2822 = vunpack.c.l.b16 %v2335
  %v2823 = vunpack.c.l.b16 %v2336
  %v2824 = vunpack.c.l.b16 %v2337
  %v2825 = vunpack.c.l.b16 %v2338
  %v2826 = vunpack.c.l.b16 %v2339
  %v2827 = vunpack.c.l.b16 %v2340
  %v2828 = vunpack.c.l.b16 %v2341
  %v2829 = vunpack.c.l.b16 %v2342
  %v2830 = vunpack.c.l.b16 %v2343
  %v2831 = vunpack.c.l.b16 %v2344
  %v2832 = vunpack.c.l.b16 %v2345
  %v2833 = vunpack.c.l.b16 %v2346
  %v2834 = vunpack.c.l.b16 %v2347
  %v2835 = vunpack.c.l.b16 %v2348
  %v2836 = vunpack.c.l.b16 %v2349
  %v2837 = vunpack.c.l.b16 %v2350
  %v2838 = vunpack.c.l.b16 %v2351
  %v2839 = vunpack.c.l.b16 %v2352
  %v2840 = vunpack.c.l.b16 %v2353
  %v2841 = vunpack.c.l.b16 %v2354
  %v2842 = vunpack.c.l.b16 %v2355
  %v2843 = vunpack.c.l.b16 %v2356
  %v2844 = vunpack.c.l.b16 %v2357
  %v2845 = vunpack.c.l.b16 %v2358
  %v2846 = vunpack.c.l.b16 %v2359
  %v2847 = vunpack.c.l.b16 %v2360
  %v2848 = vunpack.c.l.b16 %v2361
  %v2849 = vunpack.c.l.b16 %v2362
  %v2850 = vunpack.c.l.b16 %v2363
  %v2851 = vunpack.c.l.b16 %v2364
  %v2852 = vunpack.c.l.b16 %v2365
  %v2853 = vunpack.c.l.b16 %v2366
  %v2854 = vunpack.c.l.b16 %v2367
  %v2855 = vunpack.c.l.b16 %v2368
  %v2856 = vunpack.c.l.b16 %v2369
  %v2857 = vunpack.c.l.b16 %v2370
  %v2858 = vunpack.c.l.b16 %v2371
  %v2859 = vunpack.c.l.b16 %v2372
  %v2860 = vunpack.c.l.b16 %v2373
  %v2861 = vunpack.c.l.b16 %v2374
  %v2862 = vunpack.c.l.b16 %v2375
  %v2863 = vunpack.c.l.b16 %v2376
  %v2864 = vunpack.c.l.b16 %v2377
  %v2865 = vunpack.c.l.b16 %v2378
  %v2866 = vunpack.c.l.b16 %v2379
  %v2867 = vunpack.c.l.b16 %v2380
  %v2868 = vunpack.c.l.b16 %v2381
  %v2869 = vunpack.c.l.b16 %v2382
  %v2870 = vunpack.c.l.b16 %v2383
  %v2871 = vunpack.c.l.b16 %v2384
  %v2872 = vunpack.c.l.b16 %v2385
  %v2873 = vunpack.c.l.b16 %v2386
  %v2874 = vunpack.c.l.b16 %v2387
  %v2875 = vunpack.c.l.b16 %v2388
  %v2876 = vunpack.c.l.b16 %v2389
  %v2877 = vunpack.c.l.b16 %v2390
  %v2878 = vunpack.c.l.b16 %v2391
  %v2879 = vunpack.c.l.b16 %v2392
  %v2880 = vunpack.c.l.b16 %v2393
  %v2881 = vunpack.c.l.b16 %v2394
  %v2882 = vunpack.c.l.b16 %v2395
  %v2883 = vunpack.c.l.b16 %v2396
  %v2884 = vunpack.c.l.b16 %v2397
  %v2885 = vunpack.c.l.b16 %v2398
  %v2886 = vpack.c.b16 %v2647, %v2646
  %v2887 = vpack.c.b16 %v2649, %v2648
  %v2888 = vpack.c.b16 %v2651, %v2650
  %v2889 = vpack.c.b16 %v2653, %v2652
  %v2890 = vpack.c.b16 %v2655, %v2654
  %v2891 = vpack.c.b16 %v2657, %v2656
  %v2892 = vpack.c.b16 %v2659, %v2658
  %v2893 = vpack.c.b16 %v2661, %v2660
  %v2894 = vpack.c.b16 %v2663, %v2662
  %v2895 = vpack.c.b16 %v2665, %v2664
  %v2896 = vpack.c.b16 %v2667, %v2666
  %v2897 = vpack.c.b16 %v2669, %v2668
  %v2898 = vpack.c.b16 %v2671, %v2670
  %v2899 = vpack.c.b16 %v2673, %v2672
  %v2900 = vpack.c.b16 %v2675, %v2674
  %v2901 = vpack.c.b16 %v2677, %v2676
  %v2902 = vpack.c.b16 %v2679, %v2678
  %v2903 = vpack.c.b16 %v2681, %v2680
  %v2904 = vpack.c.b16 %v2683, %v2682
  %v2905 = vpack.c.b16 %v2685, %v2684
  %v2906 = vpack.c.b16 %v2687, %v2686
  %v2907 = vpack.c.b16 %v2689, %v2688
  %v2908 = vpack.c.b16 %v2691, %v2690
  %v2909 = vpack.c.b16 %v2693, %v2692
  %v2910 = vpack.c.b16 %v2695, %v2694
  %v2911 = vpack.c.b16 %v2697, %v2696
  %v2912 = vpack.c.b16 %v2699, %v2698
  %v2913 = vpack.c.b16 %v2701, %v2700
  %v2914 = vpack.c.b16 %v2703, %v2702
  %v2915 = vpack.c.b16 %v2705, %v2704
  %v2916 = vpack.c.b16 %v2707, %v2706
  %v2917 = vpack.c.b16 %v2709, %v2708
  %v2918 = vpack.c.b16 %v2711, %v2710
  %v2919 = vpack.c.b16 %v2713, %v2712
  %v2920 = vpack.c.b16 %v2715, %v2714
  %v2921 = vpack.c.b16 %v2717, %v2716
  %v2922 = vpack.c.b16 %v2719, %v2718
  %v2923 = vpack.c.b16 %v2721, %v2720
  %v2924 = vpack.c.b16 %v2723, %v2722
  %v2925 = vpack.c.b16 %v2725, %v2724
  %v2926 = vpack.c.b16 %v2727, %v2726
  %v2927 = vpack.c.b16 %v2729, %v2728
  %v2928 = vpack.c.b16 %v2731, %v2730
  %v2929 = vpack.c.b16 %v2733, %v2732
  %v2930 = vpack.c.b16 %v2735, %v2734
  %v2931 = vpack.c.b16 %v2737, %v2736
  %v2932 = vpack.c.b16 %v2739, %v2738
  %v2933 = vpack.c.b16 %v2741, %v2740
  %v2934 = vpack.c.b16 %v2743, %v2742
  %v2935 = vpack.c.b16 %v2745, %v2744
  %v2936 = vpack.c.b16 %v2747, %v2746
  %v2937 = vpack.c.b16 %v2749, %v2748
  %v2938 = vpack.c.b16 %v2751, %v2750
  %v2939 = vpack.c.b16 %v2753, %v2752
  %v2940 = vpack.c.b16 %v2755, %v2754
  %v2941 = vpack.c.b16 %v2757, %v2756
  %v2942 = vpack.c.b16 %v2759, %v2758
  %v2943 = vpack.c.b16 %v2761, %v2760
  %v2944 = vpack.c.b16 %v2763, %v2762
  %v2945 = vpack.c.b16 %v2765, %v2764
  %v2946 = vpack.c.b16 %v2767, %v2766
  %v2947 = vpack.c.b16 %v2769, %v2768
  %v2948 = vpack.c.b16 %v2771, %v2770
  %v2949 = vpack.c.b16 %v2773, %v2772
  %v2950 = vpack.c.b16 %v2775, %v2774
  %v2951 = vpack.c.b16 %v2777, %v2776
  %v2952 = vpack.c.b16 %v2779, %v2778
  %v2953 = vpack.c.b16 %v2781, %v2780
  %v2954 = vpack.c.b16 %v2783, %v2782
  %v2955 = vpack.c.b16 %v2785, %v2784
  %v2956 = vpack.c.b16 %v2787, %v2786
  %v2957 = vpack.c.b16 %v2789, %v2788
  %v2958 = vpack.c.b16 %v2791, %v2790
  %v2959 = vpack.c.b16 %v2793, %v2792
  %v2960 = vpack.c.b16 %v2795, %v2794
  %v2961 = vpack.c.b16 %v2797, %v2796
  %v2962 = vpack.c.b16 %v2799, %v2798
  %v2963 = vpack.c.b16 %v2801, %v2800
  %v2964 = vpack.c.b16 %v2803, %v2802
  %v2965 = vpack.c.b16 %v2805, %v2804
  %v2966 = vpack.c.b16 %v2807, %v2806
  %v2967 = vpack.c.b16 %v2809, %v2808
  %v2968 = vpack.c.b16 %v2811, %v2810
  %v2969 = vpack.c.b16 %v2813, %v2812
  %v2970 = vpack.c.b16 %v2815, %v2814
  %v2971 = vpack.c.b16 %v2817, %v2816
  %v2972 = vpack.c.b16 %v2819, %v2818
  %v2973 = vpack.c.b16 %v2821, %v2820
  %v2974 = vpack.c.b16 %v2823, %v2822
  %v2975 = vpack.c.b16 %v2825, %v2824
  %v2976 = vpack.c.b16 %v2827, %v2826
  %v2977 = vpack.c.b16 %v2829, %v2828
  %v2978 = vpack.c.b16 %v2831, %v2830
  %v2979 = vpack.c.b16 %v2833, %v2832
  %v2980 = vpack.c.b16 %v2835, %v2834
  %v2981 = vpack.c.b16 %v2837, %v2836
  %v2982 = vpack.c.b16 %v2839, %v2838
  %v2983 = vpack.c.b16 %v2841, %v2840
  %v2984 = vpack.c.b16 %v2843, %v2842
  %v2985 = vpack.c.b16 %v2845, %v2844
  %v2986 = vpack.c.b16 %v2847, %v2846
  %v2987 = vpack.c.b16 %v2849, %v2848
  %v2988 = vpack.c.b16 %v2851, %v2850
  %v2989 = vpack.c.b16 %v2853, %v2852
  %v2990 = vpack.c.b16 %v2855, %v2854
  %v2991 = vpack.c.b16 %v2857, %v2856
  %v2992 = vpack.c.b16 %v2859, %v2858
  %v2993 = vpack.c.b16 %v2861, %v2860
  %v2994 = vpack.c.b16 %v2863, %v2862
  %v2995 = vpack.c.b16 %v2865, %v2864
  %v2996 = vpack.c.b16 %v2867, %v2866
  %v2997 = vpack.c.b16 %v2869, %v2868
  %v2998 = vpack.c.b16 %v2871, %v2870
  %v2999 = vpack.c.b16 %v2873, %v2872
  %v3000 = vpack.c.b16 %v2875, %v2874
  %v3001 = vpack.c.b16 %v2877, %v2876
  %v3002 = vpack.c.b16 %v2879, %v2878
  %v3003 = vpack.c.b16 %v2881, %v2880
  %v3004 = vpack.c.b16 %v2883, %v2882
  %v3005 = vpack.c.b16 %v2885, %v2884
  %3126 = vmatprep.subr.bf16.mxu0 0
  %3127 = vmatpush1.bf16.msra.mxu0 %v2893
  %3128 = vmatprep.subr.bf16.mxu0 0
  %3129 = vmatpush1.bf16.msra.mxu0 %v2892
  %3130 = vmatprep.subr.bf16.mxu0 0
  %3131 = vmatpush1.bf16.msra.mxu0 %v2891
  %3132 = vmatprep.subr.bf16.mxu0 0
  %3133 = vmatpush1.bf16.msra.mxu0 %v2890
  %3134 = vmatprep.subr.bf16.mxu0 0
  %3135 = vmatpush1.bf16.msra.mxu0 %v2889
  %3136 = vmatprep.subr.bf16.mxu0 0
  %3137 = vmatpush1.bf16.msra.mxu0 %v2888
  %3138 = vmatprep.subr.bf16.mxu0 0
  %3139 = vmatpush1.bf16.msra.mxu0 %v2887
  %3140 = vmatprep.subr.bf16.mxu0 0
  %3141 = vmatpush1.bf16.msra.mxu0 %v2886
  %3142 = vmatprep.subr.bf16.mxu0 0
  %3143 = vmatpush2.bf16.msra.mxu0 %v2901
  %3144 = vmatprep.subr.bf16.mxu0 0
  %3145 = vmatpush2.bf16.msra.mxu0 %v2900
  %3146 = vmatprep.subr.bf16.mxu0 0
  %3147 = vmatpush2.bf16.msra.mxu0 %v2899
  %3148 = vmatprep.subr.bf16.mxu0 0
  %3149 = vmatpush2.bf16.msra.mxu0 %v2898
  %3150 = vmatprep.subr.bf16.mxu0 0
  %3151 = vmatpush2.bf16.msra.mxu0 %v2897
  %3152 = vmatprep.subr.bf16.mxu0 0
  %3153 = vmatpush2.bf16.msra.mxu0 %v2896
  %3154 = vmatprep.subr.bf16.mxu0 0
  %3155 = vmatpush2.bf16.msra.mxu0 %v2895
  %3156 = vmatprep.subr.bf16.mxu0 0
  %3157 = vmatpush2.bf16.msra.mxu0 %v2894
  %3158 = vmatprep.mubr.bf16.mxu0 %v2133
  %3159 = vmatmul.mubr.bf16.gmra.mxu0 %v2133
  %v3160 = vpop.f32.mrf.mxu0
  %v3161 = vadd.f32 %v2404, %v3160
  %v3162 = vpop.f32.mrf.mxu0
  %v3163 = vpop.f32.mrf.mxu0
  %v3164 = vadd.f32 %v2404, %v3163
  %v3165 = vpop.f32.mrf.mxu0
  %3166 = vmatprep.mubr.bf16.mxu0 %v2133
  %3167 = vmatmul.mubr.bf16.gmra.mxu0 %v2133
  %v3168 = vpop.f32.mrf.mxu0
  %v3169 = vadd.f32 %v2404, %v3168
  %v3170 = vpop.f32.mrf.mxu0
  %v3171 = vpop.f32.mrf.mxu0
  %v3172 = vadd.f32 %v2404, %v3171
  %v3173 = vpop.f32.mrf.mxu0
  %3174 = vmatprep.mubr.bf16.mxu0 %v2135
  %3175 = vmatmul.mubr.bf16.gmra.mxu0 %v2134
  %v3176 = vpop.f32.mrf.mxu0
  %v3177 = vadd.f32 %v2404, %v3176
  %v3178 = vpop.f32.mrf.mxu0
  %v3179 = vpop.f32.mrf.mxu0
  %v3180 = vadd.f32 %v2404, %v3179
  %v3181 = vpop.f32.mrf.mxu0
  %3182 = vmatprep.mubr.bf16.mxu0 %v2145
  %3183 = vmatmul.mubr.bf16.gmra.mxu0 %v2144
  %v3184 = vpop.f32.mrf.mxu0
  %v3185 = vadd.f32 %v2404, %v3184
  %v3186 = vpop.f32.mrf.mxu0
  %v3187 = vpop.f32.mrf.mxu0
  %v3188 = vadd.f32 %v2404, %v3187
  %v3189 = vpop.f32.mrf.mxu0
  %3190 = vdwg.mxu0
  %3191 = vmatprep.subr.bf16.mxu0 0
  %3192 = vmatpush1.bf16.msra.mxu0 %v2909
  %3193 = vmatprep.subr.bf16.mxu0 0
  %3194 = vmatpush1.bf16.msra.mxu0 %v2908
  %3195 = vmatprep.subr.bf16.mxu0 0
  %3196 = vmatpush1.bf16.msra.mxu0 %v2907
  %3197 = vmatprep.subr.bf16.mxu0 0
  %3198 = vmatpush1.bf16.msra.mxu0 %v2906
  %3199 = vmatprep.subr.bf16.mxu0 0
  %3200 = vmatpush1.bf16.msra.mxu0 %v2905
  %3201 = vmatprep.subr.bf16.mxu0 0
  %3202 = vmatpush1.bf16.msra.mxu0 %v2904
  %3203 = vmatprep.subr.bf16.mxu0 0
  %3204 = vmatpush1.bf16.msra.mxu0 %v2903
  %3205 = vmatprep.subr.bf16.mxu0 0
  %3206 = vmatpush1.bf16.msra.mxu0 %v2902
  %3207 = vmatprep.subr.bf16.mxu0 0
  %3208 = vmatpush2.bf16.msra.mxu0 %v2917
  %3209 = vmatprep.subr.bf16.mxu0 0
  %3210 = vmatpush2.bf16.msra.mxu0 %v2916
  %3211 = vmatprep.subr.bf16.mxu0 0
  %3212 = vmatpush2.bf16.msra.mxu0 %v2915
  %3213 = vmatprep.subr.bf16.mxu0 0
  %3214 = vmatpush2.bf16.msra.mxu0 %v2914
  %3215 = vmatprep.subr.bf16.mxu0 0
  %3216 = vmatpush2.bf16.msra.mxu0 %v2913
  %3217 = vmatprep.subr.bf16.mxu0 0
  %3218 = vmatpush2.bf16.msra.mxu0 %v2912
  %3219 = vmatprep.subr.bf16.mxu0 0
  %3220 = vmatpush2.bf16.msra.mxu0 %v2911
  %3221 = vmatprep.subr.bf16.mxu0 0
  %3222 = vmatpush2.bf16.msra.mxu0 %v2910
  %3223 = vmatprep.mubr.bf16.mxu0 %v2135
  %3224 = vmatmul.mubr.bf16.gmra.mxu0 %v2134
  %v3225 = vpop.f32.mrf.mxu0
  %v3226 = vadd.f32 %v3161, %v3225
  %v3227 = vpop.f32.mrf.mxu0
  %v3228 = vpop.f32.mrf.mxu0
  %v3229 = vadd.f32 %v3164, %v3228
  %v3230 = vpop.f32.mrf.mxu0
  %3231 = vmatprep.mubr.bf16.mxu0 %v2145
  %3232 = vmatmul.mubr.bf16.gmra.mxu0 %v2144
  %v3233 = vpop.f32.mrf.mxu0
  %v3234 = vadd.f32 %v3169, %v3233
  %v3235 = vpop.f32.mrf.mxu0
  %v3236 = vpop.f32.mrf.mxu0
  %v3237 = vadd.f32 %v3172, %v3236
  %v3238 = vpop.f32.mrf.mxu0
  %3239 = vmatprep.mubr.bf16.mxu0 %v2153
  %3240 = vmatmul.mubr.bf16.gmra.mxu0 %v2136
  %v3241 = vpop.f32.mrf.mxu0
  %v3242 = vadd.f32 %v3177, %v3241
  %v3243 = vpop.f32.mrf.mxu0
  %v3244 = vpop.f32.mrf.mxu0
  %v3245 = vadd.f32 %v3180, %v3244
  %v3246 = vpop.f32.mrf.mxu0
  %3247 = vmatprep.mubr.bf16.mxu0 %v2156
  %3248 = vmatmul.mubr.bf16.gmra.mxu0 %v2146
  %v3249 = vpop.f32.mrf.mxu0
  %v3250 = vadd.f32 %v3185, %v3249
  %v3251 = vpop.f32.mrf.mxu0
  %v3252 = vpop.f32.mrf.mxu0
  %v3253 = vadd.f32 %v3188, %v3252
  %v3254 = vpop.f32.mrf.mxu0
  %3255 = vdwg.mxu0
  %3256 = vmatprep.subr.bf16.mxu0 0
  %3257 = vmatpush1.bf16.msra.mxu0 %v2925
  %3258 = vmatprep.subr.bf16.mxu0 0
  %3259 = vmatpush1.bf16.msra.mxu0 %v2924
  %3260 = vmatprep.subr.bf16.mxu0 0
  %3261 = vmatpush1.bf16.msra.mxu0 %v2923
  %3262 = vmatprep.subr.bf16.mxu0 0
  %3263 = vmatpush1.bf16.msra.mxu0 %v2922
  %3264 = vmatprep.subr.bf16.mxu0 0
  %3265 = vmatpush1.bf16.msra.mxu0 %v2921
  %3266 = vmatprep.subr.bf16.mxu0 0
  %3267 = vmatpush1.bf16.msra.mxu0 %v2920
  %3268 = vmatprep.subr.bf16.mxu0 0
  %3269 = vmatpush1.bf16.msra.mxu0 %v2919
  %3270 = vmatprep.subr.bf16.mxu0 0
  %3271 = vmatpush1.bf16.msra.mxu0 %v2918
  %3272 = vmatprep.subr.bf16.mxu0 0
  %3273 = vmatpush2.bf16.msra.mxu0 %v2933
  %3274 = vmatprep.subr.bf16.mxu0 0
  %3275 = vmatpush2.bf16.msra.mxu0 %v2932
  %3276 = vmatprep.subr.bf16.mxu0 0
  %3277 = vmatpush2.bf16.msra.mxu0 %v2931
  %3278 = vmatprep.subr.bf16.mxu0 0
  %3279 = vmatpush2.bf16.msra.mxu0 %v2930
  %3280 = vmatprep.subr.bf16.mxu0 0
  %3281 = vmatpush2.bf16.msra.mxu0 %v2929
  %3282 = vmatprep.subr.bf16.mxu0 0
  %3283 = vmatpush2.bf16.msra.mxu0 %v2928
  %3284 = vmatprep.subr.bf16.mxu0 0
  %3285 = vmatpush2.bf16.msra.mxu0 %v2927
  %3286 = vmatprep.subr.bf16.mxu0 0
  %3287 = vmatpush2.bf16.msra.mxu0 %v2926
  %3288 = vmatprep.mubr.bf16.mxu0 %v2137
  %3289 = vmatmul.mubr.bf16.gmra.mxu0 %v2136
  %v3290 = vpop.f32.mrf.mxu0
  %v3291 = vadd.f32 %v3226, %v3290
  %v3292 = vpop.f32.mrf.mxu0
  %v3293 = vpop.f32.mrf.mxu0
  %v3294 = vadd.f32 %v3229, %v3293
  %v3295 = vpop.f32.mrf.mxu0
  %3296 = vmatprep.mubr.bf16.mxu0 %v2137
  %3297 = vmatmul.mubr.bf16.gmra.mxu0 %v2146
  %v3298 = vpop.f32.mrf.mxu0
  %v3299 = vadd.f32 %v3234, %v3298
  %v3300 = vpop.f32.mrf.mxu0
  %v3301 = vpop.f32.mrf.mxu0
  %v3302 = vadd.f32 %v3237, %v3301
  %v3303 = vpop.f32.mrf.mxu0
  %3304 = vmatprep.mubr.bf16.mxu0 %v2138
  %3305 = vmatmul.mubr.bf16.gmra.mxu0 %v2133
  %v3306 = vpop.f32.mrf.mxu0
  %v3307 = vadd.f32 %v3242, %v3306
  %v3308 = vpop.f32.mrf.mxu0
  %v3309 = vpop.f32.mrf.mxu0
  %v3310 = vadd.f32 %v3245, %v3309
  %v3311 = vpop.f32.mrf.mxu0
  %3312 = vmatprep.mubr.bf16.mxu0 %v2147
  %3313 = vmatmul.mubr.bf16.gmra.mxu0 %v2133
  %v3314 = vpop.f32.mrf.mxu0
  %v3315 = vadd.f32 %v3250, %v3314
  %v3316 = vpop.f32.mrf.mxu0
  %v3317 = vpop.f32.mrf.mxu0
  %v3318 = vadd.f32 %v3253, %v3317
  %v3319 = vpop.f32.mrf.mxu0
  %3320 = vdwg.mxu0
  %3321 = vmatprep.subr.bf16.mxu0 0
  %3322 = vmatpush1.bf16.msra.mxu0 %v2941
  %3323 = vmatprep.subr.bf16.mxu0 0
  %3324 = vmatpush1.bf16.msra.mxu0 %v2940
  %3325 = vmatprep.subr.bf16.mxu0 0
  %3326 = vmatpush1.bf16.msra.mxu0 %v2939
  %3327 = vmatprep.subr.bf16.mxu0 0
  %3328 = vmatpush1.bf16.msra.mxu0 %v2938
  %3329 = vmatprep.subr.bf16.mxu0 0
  %3330 = vmatpush1.bf16.msra.mxu0 %v2937
  %3331 = vmatprep.subr.bf16.mxu0 0
  %3332 = vmatpush1.bf16.msra.mxu0 %v2936
  %3333 = vmatprep.subr.bf16.mxu0 0
  %3334 = vmatpush1.bf16.msra.mxu0 %v2935
  %3335 = vmatprep.subr.bf16.mxu0 0
  %3336 = vmatpush1.bf16.msra.mxu0 %v2934
  %3337 = vmatprep.subr.bf16.mxu0 0
  %3338 = vmatpush2.bf16.msra.mxu0 %v2949
  %3339 = vmatprep.subr.bf16.mxu0 0
  %3340 = vmatpush2.bf16.msra.mxu0 %v2948
  %3341 = vmatprep.subr.bf16.mxu0 0
  %3342 = vmatpush2.bf16.msra.mxu0 %v2947
  %3343 = vmatprep.subr.bf16.mxu0 0
  %3344 = vmatpush2.bf16.msra.mxu0 %v2946
  %3345 = vmatprep.subr.bf16.mxu0 0
  %3346 = vmatpush2.bf16.msra.mxu0 %v2945
  %3347 = vmatprep.subr.bf16.mxu0 0
  %3348 = vmatpush2.bf16.msra.mxu0 %v2944
  %3349 = vmatprep.subr.bf16.mxu0 0
  %3350 = vmatpush2.bf16.msra.mxu0 %v2943
  %3351 = vmatprep.subr.bf16.mxu0 0
  %3352 = vmatpush2.bf16.msra.mxu0 %v2942
  %3353 = vmatprep.mubr.bf16.mxu0 %v2138
  %3354 = vmatmul.mubr.bf16.gmra.mxu0 %v2137
  %v3355 = vpop.f32.mrf.mxu0
  %v3356 = vadd.f32 %v3291, %v3355
  %v3357 = vpop.f32.mrf.mxu0
  %v3358 = vpop.f32.mrf.mxu0
  %v3359 = vadd.f32 %v3294, %v3358
  %v3360 = vpop.f32.mrf.mxu0
  %3361 = vmatprep.mubr.bf16.mxu0 %v2147
  %3362 = vmatmul.mubr.bf16.gmra.mxu0 %v2137
  %v3363 = vpop.f32.mrf.mxu0
  %v3364 = vadd.f32 %v3299, %v3363
  %v3365 = vpop.f32.mrf.mxu0
  %v3366 = vpop.f32.mrf.mxu0
  %v3367 = vadd.f32 %v3302, %v3366
  %v3368 = vpop.f32.mrf.mxu0
  %3369 = vmatprep.mubr.bf16.mxu0 %v2140
  %3370 = vmatmul.mubr.bf16.gmra.mxu0 %v2139
  %v3371 = vpop.f32.mrf.mxu0
  %v3372 = vadd.f32 %v3307, %v3371
  %v3373 = vpop.f32.mrf.mxu0
  %v3374 = vpop.f32.mrf.mxu0
  %v3375 = vadd.f32 %v3310, %v3374
  %v3376 = vpop.f32.mrf.mxu0
  %3377 = vmatprep.mubr.bf16.mxu0 %v2149
  %3378 = vmatmul.mubr.bf16.gmra.mxu0 %v2148
  %v3379 = vpop.f32.mrf.mxu0
  %v3380 = vadd.f32 %v3315, %v3379
  %v3381 = vpop.f32.mrf.mxu0
  %v3382 = vpop.f32.mrf.mxu0
  %v3383 = vadd.f32 %v3318, %v3382
  %v3384 = vpop.f32.mrf.mxu0
  %3385 = vdwg.mxu0
  %3386 = vmatprep.subr.bf16.mxu0 0
  %3387 = vmatpush1.bf16.msra.mxu0 %v2957
  %3388 = vmatprep.subr.bf16.mxu0 0
  %3389 = vmatpush1.bf16.msra.mxu0 %v2956
  %3390 = vmatprep.subr.bf16.mxu0 0
  %3391 = vmatpush1.bf16.msra.mxu0 %v2955
  %3392 = vmatprep.subr.bf16.mxu0 0
  %3393 = vmatpush1.bf16.msra.mxu0 %v2954
  %3394 = vmatprep.subr.bf16.mxu0 0
  %3395 = vmatpush1.bf16.msra.mxu0 %v2953
  %3396 = vmatprep.subr.bf16.mxu0 0
  %3397 = vmatpush1.bf16.msra.mxu0 %v2952
  %3398 = vmatprep.subr.bf16.mxu0 0
  %3399 = vmatpush1.bf16.msra.mxu0 %v2951
  %3400 = vmatprep.subr.bf16.mxu0 0
  %3401 = vmatpush1.bf16.msra.mxu0 %v2950
  %3402 = vmatprep.subr.bf16.mxu0 0
  %3403 = vmatpush2.bf16.msra.mxu0 %v2965
  %3404 = vmatprep.subr.bf16.mxu0 0
  %3405 = vmatpush2.bf16.msra.mxu0 %v2964
  %3406 = vmatprep.subr.bf16.mxu0 0
  %3407 = vmatpush2.bf16.msra.mxu0 %v2963
  %3408 = vmatprep.subr.bf16.mxu0 0
  %3409 = vmatpush2.bf16.msra.mxu0 %v2962
  %3410 = vmatprep.subr.bf16.mxu0 0
  %3411 = vmatpush2.bf16.msra.mxu0 %v2961
  %3412 = vmatprep.subr.bf16.mxu0 0
  %3413 = vmatpush2.bf16.msra.mxu0 %v2960
  %3414 = vmatprep.subr.bf16.mxu0 0
  %3415 = vmatpush2.bf16.msra.mxu0 %v2959
  %3416 = vmatprep.subr.bf16.mxu0 0
  %3417 = vmatpush2.bf16.msra.mxu0 %v2958
  %3418 = vmatprep.mubr.bf16.mxu0 %v2140
  %3419 = vmatmul.mubr.bf16.gmra.mxu0 %v2139
  %v3420 = vpop.f32.mrf.mxu0
  %v3421 = vadd.f32 %v3356, %v3420
  %v3422 = vpop.f32.mrf.mxu0
  %v3423 = vpop.f32.mrf.mxu0
  %v3424 = vadd.f32 %v3359, %v3423
  %v3425 = vpop.f32.mrf.mxu0
  %3426 = vmatprep.mubr.bf16.mxu0 %v2149
  %3427 = vmatmul.mubr.bf16.gmra.mxu0 %v2148
  %v3428 = vpop.f32.mrf.mxu0
  %v3429 = vadd.f32 %v3364, %v3428
  %v3430 = vpop.f32.mrf.mxu0
  %v3431 = vpop.f32.mrf.mxu0
  %v3432 = vadd.f32 %v3367, %v3431
  %v3433 = vpop.f32.mrf.mxu0
  %3434 = vmatprep.mubr.bf16.mxu0 %v2137
  %3435 = vmatmul.mubr.bf16.gmra.mxu0 %v2154
  %v3436 = vpop.f32.mrf.mxu0
  %v3437 = vadd.f32 %v3372, %v3436
  %v3438 = vpop.f32.mrf.mxu0
  %v3439 = vpop.f32.mrf.mxu0
  %v3440 = vadd.f32 %v3375, %v3439
  %v3441 = vpop.f32.mrf.mxu0
  %3442 = vmatprep.mubr.bf16.mxu0 %v2137
  %3443 = vmatmul.mubr.bf16.gmra.mxu0 %v2157
  %v3444 = vpop.f32.mrf.mxu0
  %v3445 = vadd.f32 %v3380, %v3444
  %v3446 = vpop.f32.mrf.mxu0
  %v3447 = vpop.f32.mrf.mxu0
  %v3448 = vadd.f32 %v3383, %v3447
  %v3449 = vpop.f32.mrf.mxu0
  %3450 = vdwg.mxu0
  %3451 = vmatprep.subr.bf16.mxu0 0
  %3452 = vmatpush1.bf16.msra.mxu0 %v2973
  %3453 = vmatprep.subr.bf16.mxu0 0
  %3454 = vmatpush1.bf16.msra.mxu0 %v2972
  %3455 = vmatprep.subr.bf16.mxu0 0
  %3456 = vmatpush1.bf16.msra.mxu0 %v2971
  %3457 = vmatprep.subr.bf16.mxu0 0
  %3458 = vmatpush1.bf16.msra.mxu0 %v2970
  %3459 = vmatprep.subr.bf16.mxu0 0
  %3460 = vmatpush1.bf16.msra.mxu0 %v2969
  %3461 = vmatprep.subr.bf16.mxu0 0
  %3462 = vmatpush1.bf16.msra.mxu0 %v2968
  %3463 = vmatprep.subr.bf16.mxu0 0
  %3464 = vmatpush1.bf16.msra.mxu0 %v2967
  %3465 = vmatprep.subr.bf16.mxu0 0
  %3466 = vmatpush1.bf16.msra.mxu0 %v2966
  %3467 = vmatprep.subr.bf16.mxu0 0
  %3468 = vmatpush2.bf16.msra.mxu0 %v2981
  %3469 = vmatprep.subr.bf16.mxu0 0
  %3470 = vmatpush2.bf16.msra.mxu0 %v2980
  %3471 = vmatprep.subr.bf16.mxu0 0
  %3472 = vmatpush2.bf16.msra.mxu0 %v2979
  %3473 = vmatprep.subr.bf16.mxu0 0
  %3474 = vmatpush2.bf16.msra.mxu0 %v2978
  %3475 = vmatprep.subr.bf16.mxu0 0
  %3476 = vmatpush2.bf16.msra.mxu0 %v2977
  %3477 = vmatprep.subr.bf16.mxu0 0
  %3478 = vmatpush2.bf16.msra.mxu0 %v2976
  %3479 = vmatprep.subr.bf16.mxu0 0
  %3480 = vmatpush2.bf16.msra.mxu0 %v2975
  %3481 = vmatprep.subr.bf16.mxu0 0
  %3482 = vmatpush2.bf16.msra.mxu0 %v2974
  %3483 = vmatprep.mubr.bf16.mxu0 %v1008
  %3484 = vmatmul.mubr.bf16.gmra.mxu0 %v1008
  %v3485 = vpop.f32.mrf.mxu0
  %v3486 = vadd.f32 %v3421, %v3485
  %v3487 = vpop.f32.mrf.mxu0
  %v3488 = vpop.f32.mrf.mxu0
  %v3489 = vadd.f32 %v3424, %v3488
  %v3490 = vpop.f32.mrf.mxu0
  %3491 = vmatprep.mubr.bf16.mxu0 %v1008
  %3492 = vmatmul.mubr.bf16.gmra.mxu0 %v1008
  %v3493 = vpop.f32.mrf.mxu0
  %v3494 = vadd.f32 %v3429, %v3493
  %v3495 = vpop.f32.mrf.mxu0
  %v3496 = vpop.f32.mrf.mxu0
  %v3497 = vadd.f32 %v3432, %v3496
  %v3498 = vpop.f32.mrf.mxu0
  %3499 = vmatprep.mubr.bf16.mxu0 %v2142
  %3500 = vmatmul.mubr.bf16.gmra.mxu0 %v2141
  %v3501 = vpop.f32.mrf.mxu0
  %v3502 = vadd.f32 %v3437, %v3501
  %v3503 = vpop.f32.mrf.mxu0
  %v3504 = vpop.f32.mrf.mxu0
  %v3505 = vadd.f32 %v3440, %v3504
  %v3506 = vpop.f32.mrf.mxu0
  %3507 = vmatprep.mubr.bf16.mxu0 %v2151
  %3508 = vmatmul.mubr.bf16.gmra.mxu0 %v2150
  %v3509 = vpop.f32.mrf.mxu0
  %v3510 = vadd.f32 %v3445, %v3509
  %v3511 = vpop.f32.mrf.mxu0
  %v3512 = vpop.f32.mrf.mxu0
  %v3513 = vadd.f32 %v3448, %v3512
  %v3514 = vpop.f32.mrf.mxu0
  %3515 = vdwg.mxu0
  %3516 = vmatprep.subr.bf16.mxu0 0
  %3517 = vmatpush1.bf16.msra.mxu0 %v2989
  %3518 = vmatprep.subr.bf16.mxu0 0
  %3519 = vmatpush1.bf16.msra.mxu0 %v2988
  %3520 = vmatprep.subr.bf16.mxu0 0
  %3521 = vmatpush1.bf16.msra.mxu0 %v2987
  %3522 = vmatprep.subr.bf16.mxu0 0
  %3523 = vmatpush1.bf16.msra.mxu0 %v2986
  %3524 = vmatprep.subr.bf16.mxu0 0
  %3525 = vmatpush1.bf16.msra.mxu0 %v2985
  %3526 = vmatprep.subr.bf16.mxu0 0
  %3527 = vmatpush1.bf16.msra.mxu0 %v2984
  %3528 = vmatprep.subr.bf16.mxu0 0
  %3529 = vmatpush1.bf16.msra.mxu0 %v2983
  %3530 = vmatprep.subr.bf16.mxu0 0
  %3531 = vmatpush1.bf16.msra.mxu0 %v2982
  %3532 = vmatprep.subr.bf16.mxu0 0
  %3533 = vmatpush2.bf16.msra.mxu0 %v2997
  %3534 = vmatprep.subr.bf16.mxu0 0
  %3535 = vmatpush2.bf16.msra.mxu0 %v2996
  %3536 = vmatprep.subr.bf16.mxu0 0
  %3537 = vmatpush2.bf16.msra.mxu0 %v2995
  %3538 = vmatprep.subr.bf16.mxu0 0
  %3539 = vmatpush2.bf16.msra.mxu0 %v2994
  %3540 = vmatprep.subr.bf16.mxu0 0
  %3541 = vmatpush2.bf16.msra.mxu0 %v2993
  %3542 = vmatprep.subr.bf16.mxu0 0
  %3543 = vmatpush2.bf16.msra.mxu0 %v2992
  %3544 = vmatprep.subr.bf16.mxu0 0
  %3545 = vmatpush2.bf16.msra.mxu0 %v2991
  %3546 = vmatprep.subr.bf16.mxu0 0
  %3547 = vmatpush2.bf16.msra.mxu0 %v2990
  %3548 = vmatprep.mubr.bf16.mxu0 %v2142
  %3549 = vmatmul.mubr.bf16.gmra.mxu0 %v2141
  %v3550 = vpop.f32.mrf.mxu0
  %v3551 = vadd.f32 %v3486, %v3550
  %v3552 = vpop.f32.mrf.mxu0
  %v3553 = vpop.f32.mrf.mxu0
  %v3554 = vadd.f32 %v3489, %v3553
  %v3555 = vpop.f32.mrf.mxu0
  %3556 = vmatprep.mubr.bf16.mxu0 %v2151
  %3557 = vmatmul.mubr.bf16.gmra.mxu0 %v2150
  %v3558 = vpop.f32.mrf.mxu0
  %v3559 = vadd.f32 %v3494, %v3558
  %v3560 = vpop.f32.mrf.mxu0
  %v3561 = vpop.f32.mrf.mxu0
  %v3562 = vadd.f32 %v3497, %v3561
  %v3563 = vpop.f32.mrf.mxu0
  %3564 = vmatprep.mubr.bf16.mxu0 %v2155
  %3565 = vmatmul.mubr.bf16.gmra.mxu0 %v2143
  %v3566 = vpop.f32.mrf.mxu0
  %v3567 = vadd.f32 %v3502, %v3566
  %v3568 = vpop.f32.mrf.mxu0
  %v3569 = vpop.f32.mrf.mxu0
  %v3570 = vadd.f32 %v3505, %v3569
  %v3571 = vpop.f32.mrf.mxu0
  %3572 = vmatprep.mubr.bf16.mxu0 %v2158
  %3573 = vmatmul.mubr.bf16.gmra.mxu0 %v2152
  %v3574 = vpop.f32.mrf.mxu0
  %v3575 = vadd.f32 %v3510, %v3574
  %v3576 = vpop.f32.mrf.mxu0
  %v3577 = vpop.f32.mrf.mxu0
  %v3578 = vadd.f32 %v3513, %v3577
  %v3579 = vpop.f32.mrf.mxu0
  %3580 = vdwg.mxu0
  %3581 = vmatprep.subr.bf16.mxu0 0
  %3582 = vmatpush1.bf16.msra.mxu0 %v3005
  %3583 = vmatprep.subr.bf16.mxu0 0
  %3584 = vmatpush1.bf16.msra.mxu0 %v3004
  %3585 = vmatprep.subr.bf16.mxu0 0
  %3586 = vmatpush1.bf16.msra.mxu0 %v3003
  %3587 = vmatprep.subr.bf16.mxu0 0
  %3588 = vmatpush1.bf16.msra.mxu0 %v3002
  %3589 = vmatprep.subr.bf16.mxu0 0
  %3590 = vmatpush1.bf16.msra.mxu0 %v3001
  %3591 = vmatprep.subr.bf16.mxu0 0
  %3592 = vmatpush1.bf16.msra.mxu0 %v3000
  %3593 = vmatprep.subr.bf16.mxu0 0
  %3594 = vmatpush1.bf16.msra.mxu0 %v2999
  %3595 = vmatprep.subr.bf16.mxu0 0
  %3596 = vmatpush1.bf16.msra.mxu0 %v2998
  %3597 = vmatprep.subr.bf16.mxu0 0
  %3598 = vmatpush2.bf16.msra.mxu0 0
  %3599 = vmatprep.subr.bf16.mxu0 0
  %3600 = vmatpush2.bf16.msra.mxu0 0
  %3601 = vmatprep.subr.bf16.mxu0 0
  %3602 = vmatpush2.bf16.msra.mxu0 0
  %3603 = vmatprep.subr.bf16.mxu0 0
  %3604 = vmatpush2.bf16.msra.mxu0 0
  %3605 = vmatprep.subr.bf16.mxu0 0
  %3606 = vmatpush2.bf16.msra.mxu0 0
  %3607 = vmatprep.subr.bf16.mxu0 0
  %3608 = vmatpush2.bf16.msra.mxu0 0
  %3609 = vmatprep.subr.bf16.mxu0 0
  %3610 = vmatpush2.bf16.msra.mxu0 0
  %3611 = vmatprep.subr.bf16.mxu0 0
  %3612 = vmatpush2.bf16.msra.mxu0 0
  %3613 = vmatprep.mubr.bf16.mxu0 0
  %3614 = vmatmul.mubr.bf16.gmra.mxu0 %v2143
  %v3615 = vpop.f32.mrf.mxu0
  %v3616 = vadd.f32 %v3551, %v3615
  %v3617 = vpop.f32.mrf.mxu0
  %v3618 = vpop.f32.mrf.mxu0
  %v3619 = vadd.f32 %v3554, %v3618
  %v3620 = vpop.f32.mrf.mxu0
  %3621 = vmatprep.mubr.bf16.mxu0 0
  %3622 = vmatmul.mubr.bf16.gmra.mxu0 %v2152
  %v3623 = vpop.f32.mrf.mxu0
  %v3624 = vadd.f32 %v3559, %v3623
  %v3625 = vpop.f32.mrf.mxu0
  %v3626 = vpop.f32.mrf.mxu0
  %v3627 = vadd.f32 %v3562, %v3626
  %v3628 = vpop.f32.mrf.mxu0
  %3629 = vmatprep.mubr.bf16.mxu0 0
  %3630 = vmatmul.mubr.bf16.gmra.mxu0 %v1008
  %v3631 = vpop.f32.mrf.mxu0
  %v3632 = vadd.f32 %v3567, %v3631
  %v3633 = vpop.f32.mrf.mxu0
  %v3634 = vpop.f32.mrf.mxu0
  %v3635 = vadd.f32 %v3570, %v3634
  %v3636 = vpop.f32.mrf.mxu0
  %3637 = vmatprep.mubr.bf16.mxu0 0
  %3638 = vmatmul.mubr.bf16.gmra.mxu0 %v1008
  %v3639 = vpop.f32.mrf.mxu0
  %v3640 = vadd.f32 %v3575, %v3639
  %v3641 = vpop.f32.mrf.mxu0
  %v3642 = vpop.f32.mrf.mxu0
  %v3643 = vadd.f32 %v3578, %v3642
  %v3644 = vpop.f32.mrf.mxu0
  %3645 = vdwg.mxu0
  %v3646 = vmax.f32 %v3616, 0.0
  %v3647 = vmax.f32 %v3619, 0.0
  %v3648 = vmax.f32 %v3624, 0.0
  %v3649 = vmax.f32 %v3627, 0.0
  %v3650 = vmax.f32 %v3632, 0.0
  %v3651 = vmax.f32 %v3635, 0.0
  %v3652 = vmax.f32 %v3640, 0.0
  %v3653 = vmax.f32 %v3643, 0.0
  %v3656 = vrot.slane %v3648, 7
  %vm3657 = vcmask 1041409
  %v3658 = vsel %vm3657, %v3656, %v3646
  %v3660 = vrot.slane %v3646, 1
  %v3661 = vsel %vm3657, %v3648, %v3660
  %3662 = vrot.lane.b32.xlu0 %v3661, 64
  %v3663 = vpop.permute.xlu0 %3662
  %v3665 = vrot.slane %v3646, 2
  %v3666 = vrot.slane %v3648, 1
  %v3667 = vsel %vm3657, %v3666, %v3665
  %v3669 = vrot.slane %v3646, 3
  %v3670 = vrot.slane %v3648, 2
  %v3671 = vsel %vm3657, %v3670, %v3669
  %3672 = vrot.lane.b32.xlu0 %v3671, 64
  %v3673 = vpop.permute.xlu0 %3672
  %v3675 = vrot.slane %v3646, 4
  %v3676 = vrot.slane %v3648, 3
  %v3677 = vsel %vm3657, %v3676, %v3675
  %v3679 = vrot.slane %v3646, 5
  %v3680 = vrot.slane %v3648, 4
  %v3681 = vsel %vm3657, %v3680, %v3679
  %3682 = vrot.lane.b32.xlu0 %v3681, 64
  %v3683 = vpop.permute.xlu0 %3682
  %v3685 = vrot.slane %v3646, 6
  %v3686 = vrot.slane %v3648, 5
  %v3687 = vsel %vm3657, %v3686, %v3685
  %v3689 = vrot.slane %v3646, 7
  %v3690 = vrot.slane %v3648, 6
  %v3691 = vsel %vm3657, %v3690, %v3689
  %3692 = vrot.lane.b32.xlu0 %v3691, 64
  %v3693 = vpop.permute.xlu0 %3692
  %v3697 = vrot.slane %v3649, 7
  %v3698 = vsel %vm3657, %v3697, %v3647
  %v3700 = vrot.slane %v3647, 1
  %v3701 = vsel %vm3657, %v3649, %v3700
  %3702 = vrot.lane.b32.xlu0 %v3701, 64
  %v3703 = vpop.permute.xlu0 %3702
  %v3705 = vrot.slane %v3647, 2
  %v3706 = vrot.slane %v3649, 1
  %v3707 = vsel %vm3657, %v3706, %v3705
  %v3709 = vrot.slane %v3647, 3
  %v3710 = vrot.slane %v3649, 2
  %v3711 = vsel %vm3657, %v3710, %v3709
  %3712 = vrot.lane.b32.xlu0 %v3711, 64
  %v3713 = vpop.permute.xlu0 %3712
  %v3715 = vrot.slane %v3647, 4
  %v3716 = vrot.slane %v3649, 3
  %v3717 = vsel %vm3657, %v3716, %v3715
  %v3719 = vrot.slane %v3647, 5
  %v3720 = vrot.slane %v3649, 4
  %v3721 = vsel %vm3657, %v3720, %v3719
  %3722 = vrot.lane.b32.xlu0 %v3721, 64
  %v3723 = vpop.permute.xlu0 %3722
  %v3725 = vrot.slane %v3647, 6
  %v3726 = vrot.slane %v3649, 5
  %v3727 = vsel %vm3657, %v3726, %v3725
  %v3729 = vrot.slane %v3647, 7
  %v3730 = vrot.slane %v3649, 6
  %v3731 = vsel %vm3657, %v3730, %v3729
  %3732 = vrot.lane.b32.xlu0 %v3731, 64
  %v3733 = vpop.permute.xlu0 %3732
  %v3735 = vsel %vm899, %v3658, %v3663
  %v3736 = vsel %vm899, %v3667, %v3673
  %v3737 = vsel %vm899, %v3677, %v3683
  %v3738 = vsel %vm899, %v3687, %v3693
  %v3739 = vsel %vm899, %v3698, %v3703
  %v3740 = vsel %vm899, %v3707, %v3713
  %v3741 = vsel %vm899, %v3717, %v3723
  %v3742 = vsel %vm899, %v3727, %v3733
  %v3745 = vrot.slane %v3652, 7
  %v3746 = vsel %vm3657, %v3745, %v3650
  %v3748 = vrot.slane %v3650, 1
  %v3749 = vsel %vm3657, %v3652, %v3748
  %3750 = vrot.lane.b32.xlu0 %v3749, 64
  %v3751 = vpop.permute.xlu0 %3750
  %v3753 = vrot.slane %v3650, 2
  %v3754 = vrot.slane %v3652, 1
  %v3755 = vsel %vm3657, %v3754, %v3753
  %v3757 = vrot.slane %v3650, 3
  %v3758 = vrot.slane %v3652, 2
  %v3759 = vsel %vm3657, %v3758, %v3757
  %3760 = vrot.lane.b32.xlu0 %v3759, 64
  %v3761 = vpop.permute.xlu0 %3760
  %v3763 = vrot.slane %v3650, 4
  %v3764 = vrot.slane %v3652, 3
  %v3765 = vsel %vm3657, %v3764, %v3763
  %v3767 = vrot.slane %v3650, 5
  %v3768 = vrot.slane %v3652, 4
  %v3769 = vsel %vm3657, %v3768, %v3767
  %3770 = vrot.lane.b32.xlu0 %v3769, 64
  %v3771 = vpop.permute.xlu0 %3770
  %v3773 = vrot.slane %v3650, 6
  %v3774 = vrot.slane %v3652, 5
  %v3775 = vsel %vm3657, %v3774, %v3773
  %v3777 = vrot.slane %v3650, 7
  %v3778 = vrot.slane %v3652, 6
  %v3779 = vsel %vm3657, %v3778, %v3777
  %3780 = vrot.lane.b32.xlu0 %v3779, 64
  %v3781 = vpop.permute.xlu0 %3780
  %v3785 = vrot.slane %v3653, 7
  %v3786 = vsel %vm3657, %v3785, %v3651
  %v3788 = vrot.slane %v3651, 1
  %v3789 = vsel %vm3657, %v3653, %v3788
  %3790 = vrot.lane.b32.xlu0 %v3789, 64
  %v3791 = vpop.permute.xlu0 %3790
  %v3793 = vrot.slane %v3651, 2
  %v3794 = vrot.slane %v3653, 1
  %v3795 = vsel %vm3657, %v3794, %v3793
  %v3797 = vrot.slane %v3651, 3
  %v3798 = vrot.slane %v3653, 2
  %v3799 = vsel %vm3657, %v3798, %v3797
  %3800 = vrot.lane.b32.xlu0 %v3799, 64
  %v3801 = vpop.permute.xlu0 %3800
  %v3803 = vrot.slane %v3651, 4
  %v3804 = vrot.slane %v3653, 3
  %v3805 = vsel %vm3657, %v3804, %v3803
  %v3807 = vrot.slane %v3651, 5
  %v3808 = vrot.slane %v3653, 4
  %v3809 = vsel %vm3657, %v3808, %v3807
  %3810 = vrot.lane.b32.xlu0 %v3809, 64
  %v3811 = vpop.permute.xlu0 %3810
  %v3813 = vrot.slane %v3651, 6
  %v3814 = vrot.slane %v3653, 5
  %v3815 = vsel %vm3657, %v3814, %v3813
  %v3817 = vrot.slane %v3651, 7
  %v3818 = vrot.slane %v3653, 6
  %v3819 = vsel %vm3657, %v3818, %v3817
  %3820 = vrot.lane.b32.xlu0 %v3819, 64
  %v3821 = vpop.permute.xlu0 %3820
  %v3823 = vsel %vm899, %v3746, %v3751
  %v3824 = vsel %vm899, %v3755, %v3761
  %v3825 = vsel %vm899, %v3765, %v3771
  %v3826 = vsel %vm899, %v3775, %v3781
  %v3827 = vsel %vm899, %v3786, %v3791
  %v3828 = vsel %vm899, %v3795, %v3801
  %v3829 = vsel %vm899, %v3805, %v3811
  %v3830 = vsel %vm899, %v3815, %v3821
  %v3831 = vpack.c.bf16 %v3735, %v3735
  %v3832 = vpack.c.bf16 %v3736, %v3736
  %v3833 = vpack.c.bf16 %v3737, %v3737
  %v3834 = vpack.c.bf16 %v3738, %v3738
  %v3835 = vpack.c.bf16 %v3739, %v3739
  %v3836 = vpack.c.bf16 %v3740, %v3740
  %v3837 = vpack.c.bf16 %v3741, %v3741
  %v3838 = vpack.c.bf16 %v3742, %v3742
  %v3839 = vpack.c.bf16 %v3823, %v3823
  %v3840 = vpack.c.bf16 %v3824, %v3824
  %v3841 = vpack.c.bf16 %v3825, %v3825
  %v3842 = vpack.c.bf16 %v3826, %v3826
  %v3843 = vpack.c.bf16 %v3827, %v3827
  %v3844 = vpack.c.bf16 %v3828, %v3828
  %v3845 = vpack.c.bf16 %v3829, %v3829
  %v3846 = vpack.c.bf16 %v3830, %v3830
  %v3847 = vld [vmem:[%s8] sm:$0xff]
  %v3848 = vld [vmem:[%s8 + $0x8] sm:$0xff]
  %v3849 = vld [vmem:[%s8 + $0x10] sm:$0xff]
  %v3850 = vld [vmem:[%s8 + $0x18] sm:$0xff]
  %v3851 = vld [vmem:[%s8 + $0x20] sm:$0xff]
  %v3852 = vld [vmem:[%s8 + $0x28] sm:$0xff]
  %v3853 = vld [vmem:[%s8 + $0x30] sm:$0xff]
  %v3854 = vld [vmem:[%s8 + $0x38] sm:$0xff]
  %v3855 = vld [vmem:[%s8 + $0x40] sm:$0xff]
  %v3856 = vld [vmem:[%s8 + $0x48] sm:$0xff]
  %v3857 = vld [vmem:[%s8 + $0x50] sm:$0xff]
  %v3858 = vld [vmem:[%s8 + $0x58] sm:$0xff]
  %v3859 = vld [vmem:[%s8 + $0x60] sm:$0xff]
  %v3860 = vld [vmem:[%s8 + $0x68] sm:$0xff]
  %v3861 = vld [vmem:[%s8 + $0x70] sm:$0xff]
  %v3862 = vld [vmem:[%s8 + $0x78] sm:$0xff]
  %v3863 = vld [vmem:[%s8 + $0x80] sm:$0xff]
  %v3864 = vld [vmem:[%s8 + $0x88] sm:$0xff]
  %v3865 = vld [vmem:[%s8 + $0x90] sm:$0xff]
  %v3866 = vld [vmem:[%s8 + $0x98] sm:$0xff]
  %v3867 = vld [vmem:[%s8 + $0xa0] sm:$0xff]
  %v3868 = vld [vmem:[%s8 + $0xa8] sm:$0xff]
  %v3869 = vld [vmem:[%s8 + $0xb0] sm:$0xff]
  %v3870 = vld [vmem:[%s8 + $0xb8] sm:$0xff]
  %v3871 = vld [vmem:[%s8 + $0xc0] sm:$0xff]
  %v3872 = vld [vmem:[%s8 + $0xc8] sm:$0xff]
  %v3873 = vld [vmem:[%s8 + $0xd0] sm:$0xff]
  %v3874 = vld [vmem:[%s8 + $0xd8] sm:$0xff]
  %v3875 = vld [vmem:[%s8 + $0xe0] sm:$0xff]
  %v3876 = vld [vmem:[%s8 + $0xe8] sm:$0xff]
  %v3877 = vld [vmem:[%s8 + $0xf0] sm:$0xff]
  %v3878 = vld [vmem:[%s8 + $0xf8] sm:$0xff]
  %v3879 = vld [vmem:[%s8 + $0x100] sm:$0xff]
  %v3880 = vld [vmem:[%s8 + $0x108] sm:$0xff]
  %v3881 = vld [vmem:[%s8 + $0x110] sm:$0xff]
  %v3882 = vld [vmem:[%s8 + $0x118] sm:$0xff]
  %v3883 = vld [vmem:[%s8 + $0x120] sm:$0xff]
  %v3884 = vld [vmem:[%s8 + $0x128] sm:$0xff]
  %v3885 = vld [vmem:[%s8 + $0x130] sm:$0xff]
  %v3886 = vld [vmem:[%s8 + $0x138] sm:$0xff]
  %v3887 = vld [vmem:[%s8 + $0x140] sm:$0xff]
  %v3888 = vld [vmem:[%s8 + $0x148] sm:$0xff]
  %v3889 = vld [vmem:[%s8 + $0x150] sm:$0xff]
  %v3890 = vld [vmem:[%s8 + $0x158] sm:$0xff]
  %v3891 = vld [vmem:[%s8 + $0x160] sm:$0xff]
  %v3892 = vld [vmem:[%s8 + $0x168] sm:$0xff]
  %v3893 = vld [vmem:[%s8 + $0x170] sm:$0xff]
  %v3894 = vld [vmem:[%s8 + $0x178] sm:$0xff]
  %v3895 = vld [vmem:[%s8 + $0x180] sm:$0xff]
  %v3896 = vld [vmem:[%s8 + $0x188] sm:$0xff]
  %v3897 = vld [vmem:[%s8 + $0x190] sm:$0xff]
  %v3898 = vld [vmem:[%s8 + $0x198] sm:$0xff]
  %v3899 = vld [vmem:[%s8 + $0x1a0] sm:$0xff]
  %v3900 = vld [vmem:[%s8 + $0x1a8] sm:$0xff]
  %v3901 = vld [vmem:[%s8 + $0x1b0] sm:$0xff]
  %v3902 = vld [vmem:[%s8 + $0x1b8] sm:$0xff]
  %v3903 = vld [vmem:[%s8 + $0x1c0] sm:$0xff]
  %v3904 = vld [vmem:[%s8 + $0x1c8] sm:$0xff]
  %v3905 = vld [vmem:[%s8 + $0x1d0] sm:$0xff]
  %v3906 = vld [vmem:[%s8 + $0x1d8] sm:$0xff]
  %v3907 = vld [vmem:[%s8 + $0x1e0] sm:$0xff]
  %v3908 = vld [vmem:[%s8 + $0x1e8] sm:$0xff]
  %v3909 = vld [vmem:[%s8 + $0x1f0] sm:$0xff]
  %v3910 = vld [vmem:[%s8 + $0x1f8] sm:$0xff]
  %v3911 = vld [vmem:[%s8 + $0x200] sm:$0xff]
  %v3912 = vld [vmem:[%s8 + $0x208] sm:$0xff]
  %v3913 = vld [vmem:[%s8 + $0x210] sm:$0xff]
  %v3914 = vld [vmem:[%s8 + $0x218] sm:$0xff]
  %v3915 = vld [vmem:[%s8 + $0x220] sm:$0xff]
  %v3916 = vld [vmem:[%s8 + $0x228] sm:$0xff]
  %v3917 = vld [vmem:[%s8 + $0x230] sm:$0xff]
  %v3918 = vld [vmem:[%s8 + $0x238] sm:$0xff]
  %v3919 = vld [vmem:[%s8 + $0x240] sm:$0xff]
  %v3920 = vld [vmem:[%s8 + $0x248] sm:$0xff]
  %v3921 = vld [vmem:[%s8 + $0x250] sm:$0xff]
  %v3922 = vld [vmem:[%s8 + $0x258] sm:$0xff]
  %v3923 = vld [vmem:[%s8 + $0x260] sm:$0xff]
  %v3924 = vld [vmem:[%s8 + $0x268] sm:$0xff]
  %v3925 = vld [vmem:[%s8 + $0x270] sm:$0xff]
  %v3926 = vld [vmem:[%s8 + $0x278] sm:$0xff]
  %v3927 = vld [vmem:[%s8 + $0x280] sm:$0xff]
  %v3928 = vld [vmem:[%s8 + $0x288] sm:$0xff]
  %v3929 = vld [vmem:[%s8 + $0x290] sm:$0xff]
  %v3930 = vld [vmem:[%s8 + $0x298] sm:$0xff]
  %v3931 = vld [vmem:[%s8 + $0x2a0] sm:$0xff]
  %v3932 = vld [vmem:[%s8 + $0x2a8] sm:$0xff]
  %v3933 = vld [vmem:[%s8 + $0x2b0] sm:$0xff]
  %v3934 = vld [vmem:[%s8 + $0x2b8] sm:$0xff]
  %v3935 = vld [vmem:[%s8 + $0x2c0] sm:$0xff]
  %v3936 = vld [vmem:[%s8 + $0x2c8] sm:$0xff]
  %v3937 = vld [vmem:[%s8 + $0x2d0] sm:$0xff]
  %v3938 = vld [vmem:[%s8 + $0x2d8] sm:$0xff]
  %v3939 = vld [vmem:[%s8 + $0x2e0] sm:$0xff]
  %v3940 = vld [vmem:[%s8 + $0x2e8] sm:$0xff]
  %v3941 = vld [vmem:[%s8 + $0x2f0] sm:$0xff]
  %v3942 = vld [vmem:[%s8 + $0x2f8] sm:$0xff]
  %v3943 = vld [vmem:[%s8 + $0x300] sm:$0xff]
  %v3944 = vld [vmem:[%s8 + $0x308] sm:$0xff]
  %v3945 = vld [vmem:[%s8 + $0x310] sm:$0xff]
  %v3946 = vld [vmem:[%s8 + $0x318] sm:$0xff]
  %v3947 = vld [vmem:[%s8 + $0x320] sm:$0xff]
  %v3948 = vld [vmem:[%s8 + $0x328] sm:$0xff]
  %v3949 = vld [vmem:[%s8 + $0x330] sm:$0xff]
  %v3950 = vld [vmem:[%s8 + $0x338] sm:$0xff]
  %v3951 = vld [vmem:[%s8 + $0x340] sm:$0xff]
  %v3952 = vld [vmem:[%s8 + $0x348] sm:$0xff]
  %v3953 = vld [vmem:[%s8 + $0x350] sm:$0xff]
  %v3954 = vld [vmem:[%s8 + $0x358] sm:$0xff]
  %v3955 = vld [vmem:[%s8 + $0x360] sm:$0xff]
  %v3956 = vld [vmem:[%s8 + $0x368] sm:$0xff]
  %v3957 = vld [vmem:[%s8 + $0x370] sm:$0xff]
  %v3958 = vld [vmem:[%s8 + $0x378] sm:$0xff]
  %v3959 = vld [vmem:[%s8 + $0x380] sm:$0xff]
  %v3960 = vld [vmem:[%s8 + $0x388] sm:$0xff]
  %v3961 = vld [vmem:[%s8 + $0x390] sm:$0xff]
  %v3962 = vld [vmem:[%s8 + $0x398] sm:$0xff]
  %v3963 = vld [vmem:[%s8 + $0x3a0] sm:$0xff]
  %v3964 = vld [vmem:[%s8 + $0x3a8] sm:$0xff]
  %v3965 = vld [vmem:[%s8 + $0x3b0] sm:$0xff]
  %v3966 = vld [vmem:[%s8 + $0x3b8] sm:$0xff]
  %v3967 = vld [vmem:[%s8 + $0x3c0] sm:$0xff]
  %v3968 = vld [vmem:[%s8 + $0x3c8] sm:$0xff]
  %v3969 = vld [vmem:[%s8 + $0x3d0] sm:$0xff]
  %v3970 = vld [vmem:[%s8 + $0x3d8] sm:$0xff]
  %v3971 = vld [vmem:[%s8 + $0x3e0] sm:$0xff]
  %v3972 = vld [vmem:[%s8 + $0x3e8] sm:$0xff]
  %v3973 = vld [vmem:[%s8 + $0x3f0] sm:$0xff]
  %v3974 = vld [vmem:[%s8 + $0x3f8] sm:$0xff]
  %v3975 = vld [vmem:[%s8 + $0x400] sm:$0xff]
  %v3976 = vld [vmem:[%s8 + $0x408] sm:$0xff]
  %v3977 = vld [vmem:[%s8 + $0x410] sm:$0xff]
  %v3978 = vld [vmem:[%s8 + $0x418] sm:$0xff]
  %v3979 = vld [vmem:[%s8 + $0x420] sm:$0xff]
  %v3980 = vld [vmem:[%s8 + $0x428] sm:$0xff]
  %v3981 = vld [vmem:[%s8 + $0x430] sm:$0xff]
  %v3982 = vld [vmem:[%s8 + $0x438] sm:$0xff]
  %v3983 = vld [vmem:[%s8 + $0x440] sm:$0xff]
  %v3984 = vld [vmem:[%s8 + $0x448] sm:$0xff]
  %v3985 = vld [vmem:[%s8 + $0x450] sm:$0xff]
  %v3986 = vld [vmem:[%s8 + $0x458] sm:$0xff]
  %v3987 = vld [vmem:[%s8 + $0x460] sm:$0xff]
  %v3988 = vld [vmem:[%s8 + $0x468] sm:$0xff]
  %v3989 = vld [vmem:[%s8 + $0x470] sm:$0xff]
  %v3990 = vld [vmem:[%s8 + $0x478] sm:$0xff]
  %v3991 = vld [vmem:[%s8 + $0x480] sm:$0xff]
  %v3992 = vld [vmem:[%s8 + $0x488] sm:$0xff]
  %v3993 = vld [vmem:[%s8 + $0x490] sm:$0xff]
  %v3994 = vld [vmem:[%s8 + $0x498] sm:$0xff]
  %v3995 = vld [vmem:[%s8 + $0x4a0] sm:$0xff]
  %v3996 = vld [vmem:[%s8 + $0x4a8] sm:$0xff]
  %v3997 = vld [vmem:[%s8 + $0x4b0] sm:$0xff]
  %v3998 = vld [vmem:[%s8 + $0x4b8] sm:$0xff]
  %v3999 = vld [vmem:[%s8 + $0x4c0] sm:$0xff]
  %v4000 = vld [vmem:[%s8 + $0x4c8] sm:$0xff]
  %v4001 = vld [vmem:[%s8 + $0x4d0] sm:$0xff]
  %v4002 = vld [vmem:[%s8 + $0x4d8] sm:$0xff]
  %v4003 = vld [vmem:[%s8 + $0x4e0] sm:$0xff]
  %v4004 = vld [vmem:[%s8 + $0x4e8] sm:$0xff]
  %v4005 = vld [vmem:[%s8 + $0x4f0] sm:$0xff]
  %v4006 = vld [vmem:[%s8 + $0x4f8] sm:$0xff]
  %v4007 = vld [vmem:[%s8 + $0x500] sm:$0xff]
  %v4008 = vld [vmem:[%s8 + $0x508] sm:$0xff]
  %v4009 = vld [vmem:[%s8 + $0x510] sm:$0xff]
  %v4010 = vld [vmem:[%s8 + $0x518] sm:$0xff]
  %v4011 = vld [vmem:[%s8 + $0x520] sm:$0xff]
  %v4012 = vld [vmem:[%s8 + $0x528] sm:$0xff]
  %v4013 = vld [vmem:[%s8 + $0x530] sm:$0xff]
  %v4014 = vld [vmem:[%s8 + $0x538] sm:$0xff]
  %v4015 = vld [vmem:[%s8 + $0x540] sm:$0xff]
  %v4016 = vld [vmem:[%s8 + $0x548] sm:$0xff]
  %v4017 = vld [vmem:[%s8 + $0x550] sm:$0xff]
  %v4018 = vld [vmem:[%s8 + $0x558] sm:$0xff]
  %v4019 = vld [vmem:[%s8 + $0x560] sm:$0xff]
  %v4020 = vld [vmem:[%s8 + $0x568] sm:$0xff]
  %v4021 = vld [vmem:[%s8 + $0x570] sm:$0xff]
  %v4022 = vld [vmem:[%s8 + $0x578] sm:$0xff]
  %v4023 = vld [vmem:[%s8 + $0x580] sm:$0xff]
  %v4024 = vld [vmem:[%s8 + $0x588] sm:$0xff]
  %v4025 = vld [vmem:[%s8 + $0x590] sm:$0xff]
  %v4026 = vld [vmem:[%s8 + $0x598] sm:$0xff]
  %v4027 = vld [vmem:[%s8 + $0x5a0] sm:$0xff]
  %v4028 = vld [vmem:[%s8 + $0x5a8] sm:$0xff]
  %v4029 = vld [vmem:[%s8 + $0x5b0] sm:$0xff]
  %v4030 = vld [vmem:[%s8 + $0x5b8] sm:$0xff]
  %v4031 = vld [vmem:[%s8 + $0x5c0] sm:$0xff]
  %v4032 = vld [vmem:[%s8 + $0x5c8] sm:$0xff]
  %v4033 = vld [vmem:[%s8 + $0x5d0] sm:$0xff]
  %v4034 = vld [vmem:[%s8 + $0x5d8] sm:$0xff]
  %v4035 = vld [vmem:[%s8 + $0x5e0] sm:$0xff]
  %v4036 = vld [vmem:[%s8 + $0x5e8] sm:$0xff]
  %v4037 = vld [vmem:[%s8 + $0x5f0] sm:$0xff]
  %v4038 = vld [vmem:[%s8 + $0x5f8] sm:$0xff]
  %v4039 = vld [vmem:[%s8 + $0x600] sm:$0xff]
  %v4040 = vld [vmem:[%s8 + $0x608] sm:$0xff]
  %v4041 = vld [vmem:[%s8 + $0x610] sm:$0xff]
  %v4042 = vld [vmem:[%s8 + $0x618] sm:$0xff]
  %v4043 = vld [vmem:[%s8 + $0x620] sm:$0xff]
  %v4044 = vld [vmem:[%s8 + $0x628] sm:$0xff]
  %v4045 = vld [vmem:[%s8 + $0x630] sm:$0xff]
  %v4046 = vld [vmem:[%s8 + $0x638] sm:$0xff]
  %v4047 = vld [vmem:[%s8 + $0x640] sm:$0xff]
  %v4048 = vld [vmem:[%s8 + $0x648] sm:$0xff]
  %v4049 = vld [vmem:[%s8 + $0x650] sm:$0xff]
  %v4050 = vld [vmem:[%s8 + $0x658] sm:$0xff]
  %v4051 = vld [vmem:[%s8 + $0x660] sm:$0xff]
  %v4052 = vld [vmem:[%s8 + $0x668] sm:$0xff]
  %v4053 = vld [vmem:[%s8 + $0x670] sm:$0xff]
  %v4054 = vld [vmem:[%s8 + $0x678] sm:$0xff]
  %v4055 = vld [vmem:[%s8 + $0x680] sm:$0xff]
  %v4056 = vld [vmem:[%s8 + $0x688] sm:$0xff]
  %v4057 = vld [vmem:[%s8 + $0x690] sm:$0xff]
  %v4058 = vld [vmem:[%s8 + $0x698] sm:$0xff]
  %v4059 = vld [vmem:[%s8 + $0x6a0] sm:$0xff]
  %v4060 = vld [vmem:[%s8 + $0x6a8] sm:$0xff]
  %v4061 = vld [vmem:[%s8 + $0x6b0] sm:$0xff]
  %v4062 = vld [vmem:[%s8 + $0x6b8] sm:$0xff]
  %v4063 = vld [vmem:[%s8 + $0x6c0] sm:$0xff]
  %v4064 = vld [vmem:[%s8 + $0x6c8] sm:$0xff]
  %v4065 = vld [vmem:[%s8 + $0x6d0] sm:$0xff]
  %v4066 = vld [vmem:[%s8 + $0x6d8] sm:$0xff]
  %v4067 = vld [vmem:[%s8 + $0x6e0] sm:$0xff]
  %v4068 = vld [vmem:[%s8 + $0x6e8] sm:$0xff]
  %v4069 = vld [vmem:[%s8 + $0x6f0] sm:$0xff]
  %v4070 = vld [vmem:[%s8 + $0x6f8] sm:$0xff]
  %v4071 = vld [vmem:[%s8 + $0x700] sm:$0xff]
  %v4072 = vld [vmem:[%s8 + $0x708] sm:$0xff]
  %v4073 = vld [vmem:[%s8 + $0x710] sm:$0xff]
  %v4074 = vld [vmem:[%s8 + $0x718] sm:$0xff]
  %v4075 = vld [vmem:[%s8 + $0x720] sm:$0xff]
  %v4076 = vld [vmem:[%s8 + $0x728] sm:$0xff]
  %v4077 = vld [vmem:[%s8 + $0x730] sm:$0xff]
  %v4078 = vld [vmem:[%s8 + $0x738] sm:$0xff]
  %v4079 = vld [vmem:[%s8 + $0x740] sm:$0xff]
  %v4080 = vld [vmem:[%s8 + $0x748] sm:$0xff]
  %v4081 = vld [vmem:[%s8 + $0x750] sm:$0xff]
  %v4082 = vld [vmem:[%s8 + $0x758] sm:$0xff]
  %v4083 = vld [vmem:[%s8 + $0x760] sm:$0xff]
  %v4084 = vld [vmem:[%s8 + $0x768] sm:$0xff]
  %v4085 = vld [vmem:[%s8 + $0x770] sm:$0xff]
  %v4086 = vld [vmem:[%s8 + $0x778] sm:$0xff]
  %v4087 = vld [vmem:[%s8 + $0x780] sm:$0xff]
  %v4088 = vld [vmem:[%s8 + $0x788] sm:$0xff]
  %v4089 = vld [vmem:[%s8 + $0x790] sm:$0xff]
  %v4090 = vld [vmem:[%s8 + $0x798] sm:$0xff]
  %v4091 = vld [vmem:[%s8 + $0x7a0] sm:$0xff]
  %v4092 = vld [vmem:[%s8 + $0x7a8] sm:$0xff]
  %v4093 = vld [vmem:[%s8 + $0x7b0] sm:$0xff]
  %v4094 = vld [vmem:[%s8 + $0x7b8] sm:$0xff]
  %v4095 = vld [vmem:[%s8 + $0x7c0] sm:$0xff]
  %v4096 = vld [vmem:[%s8 + $0x7c8] sm:$0xff]
  %v4097 = vld [vmem:[%s8 + $0x7d0] sm:$0xff]
  %v4098 = vld [vmem:[%s8 + $0x7d8] sm:$0xff]
  %v4099 = vld [vmem:[%s8 + $0x7e0] sm:$0xff]
  %v4100 = vld [vmem:[%s8 + $0x7e8] sm:$0xff]
  %v4101 = vld [vmem:[%s8 + $0x7f0] sm:$0xff]
  %v4102 = vld [vmem:[%s8 + $0x7f8] sm:$0xff]
  %v4103 = vld [vmem:[%s8 + $0x800] sm:$0xff]
  %v4104 = vld [vmem:[%s8 + $0x808] sm:$0xff]
  %v4105 = vld [vmem:[%s8 + $0x810] sm:$0xff]
  %v4106 = vld [vmem:[%s8 + $0x818] sm:$0xff]
  %v4107 = vld [vmem:[%s8 + $0x820] sm:$0xff]
  %v4108 = vld [vmem:[%s8 + $0x828] sm:$0xff]
  %v4109 = vld [vmem:[%s8 + $0x830] sm:$0xff]
  %v4110 = vld [vmem:[%s8 + $0x838] sm:$0xff]
  %v4111 = vld [vmem:[%s8 + $0x840] sm:$0xff]
  %v4112 = vld [vmem:[%s8 + $0x848] sm:$0xff]
  %v4113 = vld [vmem:[%s8 + $0x850] sm:$0xff]
  %v4114 = vld [vmem:[%s8 + $0x858] sm:$0xff]
  %v4115 = vld [vmem:[%s8 + $0x860] sm:$0xff]
  %v4116 = vld [vmem:[%s8 + $0x868] sm:$0xff]
  %v4117 = vld [vmem:[%s8 + $0x870] sm:$0xff]
  %v4118 = vld [vmem:[%s8 + $0x878] sm:$0xff]
  %v4119 = vld [vmem:[%s8 + $0x880] sm:$0xff]
  %v4120 = vld [vmem:[%s8 + $0x888] sm:$0xff]
  %v4121 = vld [vmem:[%s8 + $0x890] sm:$0xff]
  %v4122 = vld [vmem:[%s8 + $0x898] sm:$0xff]
  %v4123 = vld [vmem:[%s8 + $0x8a0] sm:$0xff]
  %v4124 = vld [vmem:[%s8 + $0x8a8] sm:$0xff]
  %v4125 = vld [vmem:[%s8 + $0x8b0] sm:$0xff]
  %v4126 = vld [vmem:[%s8 + $0x8b8] sm:$0xff]
  %v4127 = vld [vmem:[%s8 + $0x8c0] sm:$0xff]
  %v4128 = vld [vmem:[%s8 + $0x8c8] sm:$0xff]
  %v4129 = vld [vmem:[%s8 + $0x8d0] sm:$0xff]
  %v4130 = vld [vmem:[%s8 + $0x8d8] sm:$0xff]
  %v4131 = vld [vmem:[%s8 + $0x8e0] sm:$0xff]
  %v4132 = vld [vmem:[%s8 + $0x8e8] sm:$0xff]
  %v4133 = vld [vmem:[%s8 + $0x8f0] sm:$0xff]
  %v4134 = vld [vmem:[%s8 + $0x8f8] sm:$0xff]
  %v4135 = vld [vmem:[%s8 + $0x900] sm:$0xff]
  %v4136 = vld [vmem:[%s8 + $0x908] sm:$0xff]
  %v4137 = vld [vmem:[%s8 + $0x910] sm:$0xff]
  %v4138 = vld [vmem:[%s8 + $0x918] sm:$0xff]
  %v4139 = vld [vmem:[%s8 + $0x920] sm:$0xff]
  %v4140 = vld [vmem:[%s8 + $0x928] sm:$0xff]
  %v4141 = vld [vmem:[%s8 + $0x930] sm:$0xff]
  %v4142 = vld [vmem:[%s8 + $0x938] sm:$0xff]
  %v4143 = vld [vmem:[%s8 + $0x940] sm:$0xff]
  %v4144 = vld [vmem:[%s8 + $0x948] sm:$0xff]
  %v4145 = vld [vmem:[%s8 + $0x950] sm:$0xff]
  %v4146 = vld [vmem:[%s8 + $0x958] sm:$0xff]
  %v4147 = vld [vmem:[%s8 + $0x960] sm:$0xff]
  %v4148 = vld [vmem:[%s8 + $0x968] sm:$0xff]
  %v4149 = vld [vmem:[%s8 + $0x970] sm:$0xff]
  %v4150 = vld [vmem:[%s8 + $0x978] sm:$0xff]
  %v4151 = vld [vmem:[%s8 + $0x980] sm:$0xff]
  %v4152 = vld [vmem:[%s8 + $0x988] sm:$0xff]
  %v4153 = vld [vmem:[%s8 + $0x990] sm:$0xff]
  %v4154 = vld [vmem:[%s8 + $0x998] sm:$0xff]
  %v4155 = vld [vmem:[%s8 + $0x9a0] sm:$0xff]
  %v4156 = vld [vmem:[%s8 + $0x9a8] sm:$0xff]
  %v4157 = vld [vmem:[%s8 + $0x9b0] sm:$0xff]
  %v4158 = vld [vmem:[%s8 + $0x9b8] sm:$0xff]
  %v4159 = vld [vmem:[%s8 + $0x9c0] sm:$0xff]
  %v4160 = vld [vmem:[%s8 + $0x9c8] sm:$0xff]
  %v4161 = vld [vmem:[%s8 + $0x9d0] sm:$0xff]
  %v4162 = vld [vmem:[%s8 + $0x9d8] sm:$0xff]
  %v4163 = vld [vmem:[%s8 + $0x9e0] sm:$0xff]
  %v4164 = vld [vmem:[%s8 + $0x9e8] sm:$0xff]
  %v4165 = vld [vmem:[%s8 + $0x9f0] sm:$0xff]
  %v4166 = vld [vmem:[%s8 + $0x9f8] sm:$0xff]
  %v4167 = vld [vmem:[%s8 + $0xa00] sm:$0xff]
  %v4168 = vld [vmem:[%s8 + $0xa08] sm:$0xff]
  %v4169 = vld [vmem:[%s8 + $0xa10] sm:$0xff]
  %v4170 = vld [vmem:[%s8 + $0xa18] sm:$0xff]
  %v4171 = vld [vmem:[%s8 + $0xa20] sm:$0xff]
  %v4172 = vld [vmem:[%s8 + $0xa28] sm:$0xff]
  %v4173 = vld [vmem:[%s8 + $0xa30] sm:$0xff]
  %v4174 = vld [vmem:[%s8 + $0xa38] sm:$0xff]
  %v4175 = vld [vmem:[%s8 + $0xa40] sm:$0xff]
  %v4176 = vld [vmem:[%s8 + $0xa48] sm:$0xff]
  %v4177 = vld [vmem:[%s8 + $0xa50] sm:$0xff]
  %v4178 = vld [vmem:[%s8 + $0xa58] sm:$0xff]
  %v4179 = vld [vmem:[%s8 + $0xa60] sm:$0xff]
  %v4180 = vld [vmem:[%s8 + $0xa68] sm:$0xff]
  %v4181 = vld [vmem:[%s8 + $0xa70] sm:$0xff]
  %v4182 = vld [vmem:[%s8 + $0xa78] sm:$0xff]
  %v4183 = vld [vmem:[%s8 + $0xa80] sm:$0xff]
  %v4184 = vld [vmem:[%s8 + $0xa88] sm:$0xff]
  %v4185 = vld [vmem:[%s8 + $0xa90] sm:$0xff]
  %v4186 = vld [vmem:[%s8 + $0xa98] sm:$0xff]
  %v4187 = vld [vmem:[%s8 + $0xaa0] sm:$0xff]
  %v4188 = vld [vmem:[%s8 + $0xaa8] sm:$0xff]
  %v4189 = vld [vmem:[%s8 + $0xab0] sm:$0xff]
  %v4190 = vld [vmem:[%s8 + $0xab8] sm:$0xff]
  %v4191 = vld [vmem:[%s8 + $0xac0] sm:$0xff]
  %v4192 = vld [vmem:[%s8 + $0xac8] sm:$0xff]
  %v4193 = vld [vmem:[%s8 + $0xad0] sm:$0xff]
  %v4194 = vld [vmem:[%s8 + $0xad8] sm:$0xff]
  %v4195 = vld [vmem:[%s8 + $0xae0] sm:$0xff]
  %v4196 = vld [vmem:[%s8 + $0xae8] sm:$0xff]
  %v4197 = vld [vmem:[%s8 + $0xaf0] sm:$0xff]
  %v4198 = vld [vmem:[%s8 + $0xaf8] sm:$0xff]
  %v4199 = vld [vmem:[%s8 + $0xb00] sm:$0xff]
  %v4200 = vld [vmem:[%s8 + $0xb08] sm:$0xff]
  %v4201 = vld [vmem:[%s8 + $0xb10] sm:$0xff]
  %v4202 = vld [vmem:[%s8 + $0xb18] sm:$0xff]
  %v4203 = vld [vmem:[%s8 + $0xb20] sm:$0xff]
  %v4204 = vld [vmem:[%s8 + $0xb28] sm:$0xff]
  %v4205 = vld [vmem:[%s8 + $0xb30] sm:$0xff]
  %v4206 = vld [vmem:[%s8 + $0xb38] sm:$0xff]
  %v4207 = vld [vmem:[%s8 + $0xb40] sm:$0xff]
  %v4208 = vld [vmem:[%s8 + $0xb48] sm:$0xff]
  %v4209 = vld [vmem:[%s8 + $0xb50] sm:$0xff]
  %v4210 = vld [vmem:[%s8 + $0xb58] sm:$0xff]
  %v4211 = vld [vmem:[%s8 + $0xb60] sm:$0xff]
  %v4212 = vld [vmem:[%s8 + $0xb68] sm:$0xff]
  %v4213 = vld [vmem:[%s8 + $0xb70] sm:$0xff]
  %v4214 = vld [vmem:[%s8 + $0xb78] sm:$0xff]
  %v4215 = vld [vmem:[%s8 + $0xb80] sm:$0xff]
  %v4216 = vld [vmem:[%s8 + $0xb88] sm:$0xff]
  %v4217 = vld [vmem:[%s8 + $0xb90] sm:$0xff]
  %v4218 = vld [vmem:[%s8 + $0xb98] sm:$0xff]
  %v4219 = vld [vmem:[%s8 + $0xba0] sm:$0xff]
  %v4220 = vld [vmem:[%s8 + $0xba8] sm:$0xff]
  %v4221 = vld [vmem:[%s8 + $0xbb0] sm:$0xff]
  %v4222 = vld [vmem:[%s8 + $0xbb8] sm:$0xff]
  %v4223 = vld [vmem:[%s8 + $0xbc0] sm:$0xff]
  %v4224 = vld [vmem:[%s8 + $0xbc8] sm:$0xff]
  %v4225 = vld [vmem:[%s8 + $0xbd0] sm:$0xff]
  %v4226 = vld [vmem:[%s8 + $0xbd8] sm:$0xff]
  %v4227 = vld [vmem:[%s8 + $0xbe0] sm:$0xff]
  %v4228 = vld [vmem:[%s8 + $0xbe8] sm:$0xff]
  %v4229 = vld [vmem:[%s8 + $0xbf0] sm:$0xff]
  %v4230 = vld [vmem:[%s8 + $0xbf8] sm:$0xff]
  %v4231 = vld [vmem:[%s8 + $0xc00] sm:$0xff]
  %v4232 = vld [vmem:[%s8 + $0xc08] sm:$0xff]
  %v4233 = vld [vmem:[%s8 + $0xc10] sm:$0xff]
  %v4234 = vld [vmem:[%s8 + $0xc18] sm:$0xff]
  %v4235 = vld [vmem:[%s8 + $0xc20] sm:$0xff]
  %v4236 = vld [vmem:[%s8 + $0xc28] sm:$0xff]
  %v4237 = vld [vmem:[%s8 + $0xc30] sm:$0xff]
  %v4238 = vld [vmem:[%s8 + $0xc38] sm:$0xff]
  %v4239 = vld [vmem:[%s8 + $0xc40] sm:$0xff]
  %v4240 = vld [vmem:[%s8 + $0xc48] sm:$0xff]
  %v4241 = vld [vmem:[%s8 + $0xc50] sm:$0xff]
  %v4242 = vld [vmem:[%s8 + $0xc58] sm:$0xff]
  %v4243 = vld [vmem:[%s8 + $0xc60] sm:$0xff]
  %v4244 = vld [vmem:[%s8 + $0xc68] sm:$0xff]
  %v4245 = vld [vmem:[%s8 + $0xc70] sm:$0xff]
  %v4246 = vld [vmem:[%s8 + $0xc78] sm:$0xff]
  %v4247 = vld [vmem:[%s8 + $0xc80] sm:$0xff]
  %v4248 = vld [vmem:[%s8 + $0xc88] sm:$0xff]
  %v4249 = vld [vmem:[%s8 + $0xc90] sm:$0xff]
  %v4250 = vld [vmem:[%s8 + $0xc98] sm:$0xff]
  %v4251 = vld [vmem:[%s8 + $0xca0] sm:$0xff]
  %v4252 = vld [vmem:[%s8 + $0xca8] sm:$0xff]
  %v4253 = vld [vmem:[%s8 + $0xcb0] sm:$0xff]
  %v4254 = vld [vmem:[%s8 + $0xcb8] sm:$0xff]
  %v4255 = vld [vmem:[%s8 + $0xcc0] sm:$0xff]
  %v4256 = vld [vmem:[%s8 + $0xcc8] sm:$0xff]
  %v4257 = vld [vmem:[%s8 + $0xcd0] sm:$0xff]
  %v4258 = vld [vmem:[%s8 + $0xcd8] sm:$0xff]
  %v4259 = vld [vmem:[%s8 + $0xce0] sm:$0xff]
  %v4260 = vld [vmem:[%s8 + $0xce8] sm:$0xff]
  %v4261 = vld [vmem:[%s8 + $0xcf0] sm:$0xff]
  %v4262 = vld [vmem:[%s8 + $0xcf8] sm:$0xff]
  %v4263 = vld [vmem:[%s8 + $0xd00] sm:$0xff]
  %v4264 = vld [vmem:[%s8 + $0xd08] sm:$0xff]
  %v4265 = vld [vmem:[%s8 + $0xd10] sm:$0xff]
  %v4266 = vld [vmem:[%s8 + $0xd18] sm:$0xff]
  %v4267 = vld [vmem:[%s8 + $0xd20] sm:$0xff]
  %v4268 = vld [vmem:[%s8 + $0xd28] sm:$0xff]
  %v4269 = vld [vmem:[%s8 + $0xd30] sm:$0xff]
  %v4270 = vld [vmem:[%s8 + $0xd38] sm:$0xff]
  %v4271 = vld [vmem:[%s8 + $0xd40] sm:$0xff]
  %v4272 = vld [vmem:[%s8 + $0xd48] sm:$0xff]
  %v4273 = vld [vmem:[%s8 + $0xd50] sm:$0xff]
  %v4274 = vld [vmem:[%s8 + $0xd58] sm:$0xff]
  %v4275 = vld [vmem:[%s8 + $0xd60] sm:$0xff]
  %v4276 = vld [vmem:[%s8 + $0xd68] sm:$0xff]
  %v4277 = vld [vmem:[%s8 + $0xd70] sm:$0xff]
  %v4278 = vld [vmem:[%s8 + $0xd78] sm:$0xff]
  %v4279 = vld [vmem:[%s8 + $0xd80] sm:$0xff]
  %v4280 = vld [vmem:[%s8 + $0xd88] sm:$0xff]
  %v4281 = vld [vmem:[%s8 + $0xd90] sm:$0xff]
  %v4282 = vld [vmem:[%s8 + $0xd98] sm:$0xff]
  %v4283 = vld [vmem:[%s8 + $0xda0] sm:$0xff]
  %v4284 = vld [vmem:[%s8 + $0xda8] sm:$0xff]
  %v4285 = vld [vmem:[%s8 + $0xdb0] sm:$0xff]
  %v4286 = vld [vmem:[%s8 + $0xdb8] sm:$0xff]
  %v4287 = vld [vmem:[%s8 + $0xdc0] sm:$0xff]
  %v4288 = vld [vmem:[%s8 + $0xdc8] sm:$0xff]
  %v4289 = vld [vmem:[%s8 + $0xdd0] sm:$0xff]
  %v4290 = vld [vmem:[%s8 + $0xdd8] sm:$0xff]
  %v4291 = vld [vmem:[%s8 + $0xde0] sm:$0xff]
  %v4292 = vld [vmem:[%s8 + $0xde8] sm:$0xff]
  %v4293 = vld [vmem:[%s8 + $0xdf0] sm:$0xff]
  %v4294 = vld [vmem:[%s8 + $0xdf8] sm:$0xff]
  %v4295 = vld [vmem:[%s8 + $0xe00] sm:$0xff]
  %v4296 = vld [vmem:[%s8 + $0xe08] sm:$0xff]
  %v4297 = vld [vmem:[%s8 + $0xe10] sm:$0xff]
  %v4298 = vld [vmem:[%s8 + $0xe18] sm:$0xff]
  %v4299 = vld [vmem:[%s8 + $0xe20] sm:$0xff]
  %v4300 = vld [vmem:[%s8 + $0xe28] sm:$0xff]
  %v4301 = vld [vmem:[%s8 + $0xe30] sm:$0xff]
  %v4302 = vld [vmem:[%s8 + $0xe38] sm:$0xff]
  %v4303 = vld [vmem:[%s8 + $0xe40] sm:$0xff]
  %v4304 = vld [vmem:[%s8 + $0xe48] sm:$0xff]
  %v4305 = vld [vmem:[%s8 + $0xe50] sm:$0xff]
  %v4306 = vld [vmem:[%s8 + $0xe58] sm:$0xff]
  %v4307 = vld [vmem:[%s8 + $0xe60] sm:$0xff]
  %v4308 = vld [vmem:[%s8 + $0xe68] sm:$0xff]
  %v4309 = vld [vmem:[%s8 + $0xe70] sm:$0xff]
  %v4310 = vld [vmem:[%s8 + $0xe78] sm:$0xff]
  %v4311 = vld [vmem:[%s8 + $0xe80] sm:$0xff]
  %v4312 = vld [vmem:[%s8 + $0xe88] sm:$0xff]
  %v4313 = vld [vmem:[%s8 + $0xe90] sm:$0xff]
  %v4314 = vld [vmem:[%s8 + $0xe98] sm:$0xff]
  %v4315 = vld [vmem:[%s8 + $0xea0] sm:$0xff]
  %v4316 = vld [vmem:[%s8 + $0xea8] sm:$0xff]
  %v4317 = vld [vmem:[%s8 + $0xeb0] sm:$0xff]
  %v4318 = vld [vmem:[%s8 + $0xeb8] sm:$0xff]
  %v4319 = vld [vmem:[%s8 + $0xec0] sm:$0xff]
  %v4320 = vld [vmem:[%s8 + $0xec8] sm:$0xff]
  %v4321 = vld [vmem:[%s8 + $0xed0] sm:$0xff]
  %v4322 = vld [vmem:[%s8 + $0xed8] sm:$0xff]
  %v4323 = vld [vmem:[%s8 + $0xee0] sm:$0xff]
  %v4324 = vld [vmem:[%s8 + $0xee8] sm:$0xff]
  %v4325 = vld [vmem:[%s8 + $0xef0] sm:$0xff]
  %v4326 = vld [vmem:[%s8 + $0xef8] sm:$0xff]
  %v4327 = vld [vmem:[%s8 + $0xf00] sm:$0xff]
  %v4328 = vld [vmem:[%s8 + $0xf08] sm:$0xff]
  %v4329 = vld [vmem:[%s8 + $0xf10] sm:$0xff]
  %v4330 = vld [vmem:[%s8 + $0xf18] sm:$0xff]
  %v4331 = vld [vmem:[%s8 + $0xf20] sm:$0xff]
  %v4332 = vld [vmem:[%s8 + $0xf28] sm:$0xff]
  %v4333 = vld [vmem:[%s8 + $0xf30] sm:$0xff]
  %v4334 = vld [vmem:[%s8 + $0xf38] sm:$0xff]
  %v4335 = vld [vmem:[%s8 + $0xf40] sm:$0xff]
  %v4336 = vld [vmem:[%s8 + $0xf48] sm:$0xff]
  %v4337 = vld [vmem:[%s8 + $0xf50] sm:$0xff]
  %v4338 = vld [vmem:[%s8 + $0xf58] sm:$0xff]
  %v4339 = vld [vmem:[%s8 + $0xf60] sm:$0xff]
  %v4340 = vld [vmem:[%s8 + $0xf68] sm:$0xff]
  %v4341 = vld [vmem:[%s8 + $0xf70] sm:$0xff]
  %v4342 = vld [vmem:[%s8 + $0xf78] sm:$0xff]
  %v4343 = vld [vmem:[%s8 + $0xf80] sm:$0xff]
  %v4344 = vld [vmem:[%s8 + $0xf88] sm:$0xff]
  %v4345 = vld [vmem:[%s8 + $0xf90] sm:$0xff]
  %v4346 = vld [vmem:[%s8 + $0xf98] sm:$0xff]
  %v4347 = vld [vmem:[%s8 + $0xfa0] sm:$0xff]
  %v4348 = vld [vmem:[%s8 + $0xfa8] sm:$0xff]
  %v4349 = vld [vmem:[%s8 + $0xfb0] sm:$0xff]
  %v4350 = vld [vmem:[%s8 + $0xfb8] sm:$0xff]
  %v4351 = vld [vmem:[%s8 + $0xfc0] sm:$0xff]
  %v4352 = vld [vmem:[%s8 + $0xfc8] sm:$0xff]
  %v4353 = vld [vmem:[%s8 + $0xfd0] sm:$0xff]
  %v4354 = vld [vmem:[%s8 + $0xfd8] sm:$0xff]
  %v4355 = vld [vmem:[%s8 + $0xfe0] sm:$0xff]
  %v4356 = vld [vmem:[%s8 + $0xfe8] sm:$0xff]
  %v4357 = vld [vmem:[%s8 + $0xff0] sm:$0xff]
  %v4358 = vld [vmem:[%s8 + $0xff8] sm:$0xff]
  %v4359 = vld [vmem:[%s8 + $0x1000] sm:$0xff]
  %v4360 = vld [vmem:[%s8 + $0x1008] sm:$0xff]
  %v4361 = vld [vmem:[%s8 + $0x1010] sm:$0xff]
  %v4362 = vld [vmem:[%s8 + $0x1018] sm:$0xff]
  %v4363 = vld [vmem:[%s8 + $0x1020] sm:$0xff]
  %v4364 = vld [vmem:[%s8 + $0x1028] sm:$0xff]
  %v4365 = vld [vmem:[%s8 + $0x1030] sm:$0xff]
  %v4366 = vld [vmem:[%s8 + $0x1038] sm:$0xff]
  %v4367 = vld [vmem:[%s8 + $0x1040] sm:$0xff]
  %v4368 = vld [vmem:[%s8 + $0x1048] sm:$0xff]
  %v4369 = vld [vmem:[%s8 + $0x1050] sm:$0xff]
  %v4370 = vld [vmem:[%s8 + $0x1058] sm:$0xff]
  %v4371 = vld [vmem:[%s8 + $0x1060] sm:$0xff]
  %v4372 = vld [vmem:[%s8 + $0x1068] sm:$0xff]
  %v4373 = vld [vmem:[%s8 + $0x1070] sm:$0xff]
  %v4374 = vld [vmem:[%s8 + $0x1078] sm:$0xff]
  %v4375 = vld [vmem:[%s8 + $0x1080] sm:$0xff]
  %v4376 = vld [vmem:[%s8 + $0x1088] sm:$0xff]
  %v4377 = vld [vmem:[%s8 + $0x1090] sm:$0xff]
  %v4378 = vld [vmem:[%s8 + $0x1098] sm:$0xff]
  %v4379 = vld [vmem:[%s8 + $0x10a0] sm:$0xff]
  %v4380 = vld [vmem:[%s8 + $0x10a8] sm:$0xff]
  %v4381 = vld [vmem:[%s8 + $0x10b0] sm:$0xff]
  %v4382 = vld [vmem:[%s8 + $0x10b8] sm:$0xff]
  %v4383 = vld [vmem:[%s8 + $0x10c0] sm:$0xff]
  %v4384 = vld [vmem:[%s8 + $0x10c8] sm:$0xff]
  %v4385 = vld [vmem:[%s8 + $0x10d0] sm:$0xff]
  %v4386 = vld [vmem:[%s8 + $0x10d8] sm:$0xff]
  %v4387 = vld [vmem:[%s8 + $0x10e0] sm:$0xff]
  %v4388 = vld [vmem:[%s8 + $0x10e8] sm:$0xff]
  %v4389 = vld [vmem:[%s8 + $0x10f0] sm:$0xff]
  %v4390 = vld [vmem:[%s8 + $0x10f8] sm:$0xff]
  %v4391 = vld [vmem:[%s8 + $0x1100] sm:$0xff]
  %v4392 = vld [vmem:[%s8 + $0x1108] sm:$0xff]
  %v4393 = vld [vmem:[%s8 + $0x1110] sm:$0xff]
  %v4394 = vld [vmem:[%s8 + $0x1118] sm:$0xff]
  %v4395 = vld [vmem:[%s8 + $0x1120] sm:$0xff]
  %v4396 = vld [vmem:[%s8 + $0x1128] sm:$0xff]
  %v4397 = vld [vmem:[%s8 + $0x1130] sm:$0xff]
  %v4398 = vld [vmem:[%s8 + $0x1138] sm:$0xff]
  %v4399 = vld [vmem:[%s8 + $0x1140] sm:$0xff]
  %v4400 = vld [vmem:[%s8 + $0x1148] sm:$0xff]
  %v4401 = vld [vmem:[%s8 + $0x1150] sm:$0xff]
  %v4402 = vld [vmem:[%s8 + $0x1158] sm:$0xff]
  %v4403 = vld [vmem:[%s8 + $0x1160] sm:$0xff]
  %v4404 = vld [vmem:[%s8 + $0x1168] sm:$0xff]
  %v4405 = vld [vmem:[%s8 + $0x1170] sm:$0xff]
  %v4406 = vld [vmem:[%s8 + $0x1178] sm:$0xff]
  %v4407 = vld [vmem:[%s8 + $0x1180] sm:$0xff]
  %v4408 = vld [vmem:[%s8 + $0x1188] sm:$0xff]
  %v4409 = vld [vmem:[%s8 + $0x1190] sm:$0xff]
  %v4410 = vld [vmem:[%s8 + $0x1198] sm:$0xff]
  %v4411 = vld [vmem:[%s8 + $0x11a0] sm:$0xff]
  %v4412 = vld [vmem:[%s8 + $0x11a8] sm:$0xff]
  %v4413 = vld [vmem:[%s8 + $0x11b0] sm:$0xff]
  %v4414 = vld [vmem:[%s8 + $0x11b8] sm:$0xff]
  %v4415 = vld [vmem:[%s8 + $0x11c0] sm:$0xff]
  %v4416 = vld [vmem:[%s8 + $0x11c8] sm:$0xff]
  %v4417 = vld [vmem:[%s8 + $0x11d0] sm:$0xff]
  %v4418 = vld [vmem:[%s8 + $0x11d8] sm:$0xff]
  %v4419 = vld [vmem:[%s8 + $0x11e0] sm:$0xff]
  %v4420 = vld [vmem:[%s8 + $0x11e8] sm:$0xff]
  %v4421 = vld [vmem:[%s8 + $0x11f0] sm:$0xff]
  %v4422 = vld [vmem:[%s8 + $0x11f8] sm:$0xff]
  %v4423 = vld [vmem:[%s8 + $0x1200] sm:$0xff]
  %v4424 = vld [vmem:[%s8 + $0x1208] sm:$0xff]
  %v4425 = vld [vmem:[%s8 + $0x1210] sm:$0xff]
  %v4426 = vld [vmem:[%s8 + $0x1218] sm:$0xff]
  %v4427 = vld [vmem:[%s8 + $0x1220] sm:$0xff]
  %v4428 = vld [vmem:[%s8 + $0x1228] sm:$0xff]
  %v4429 = vld [vmem:[%s8 + $0x1230] sm:$0xff]
  %v4430 = vld [vmem:[%s8 + $0x1238] sm:$0xff]
  %v4431 = vld [vmem:[%s8 + $0x1240] sm:$0xff]
  %v4432 = vld [vmem:[%s8 + $0x1248] sm:$0xff]
  %v4433 = vld [vmem:[%s8 + $0x1250] sm:$0xff]
  %v4434 = vld [vmem:[%s8 + $0x1258] sm:$0xff]
  %v4435 = vld [vmem:[%s8 + $0x1260] sm:$0xff]
  %v4436 = vld [vmem:[%s8 + $0x1268] sm:$0xff]
  %v4437 = vld [vmem:[%s8 + $0x1270] sm:$0xff]
  %v4438 = vld [vmem:[%s8 + $0x1278] sm:$0xff]
  %v4439 = vld [vmem:[%s8 + $0x1280] sm:$0xff]
  %v4440 = vld [vmem:[%s8 + $0x1288] sm:$0xff]
  %v4441 = vld [vmem:[%s8 + $0x1290] sm:$0xff]
  %v4442 = vld [vmem:[%s8 + $0x1298] sm:$0xff]
  %v4443 = vld [vmem:[%s8 + $0x12a0] sm:$0xff]
  %v4444 = vld [vmem:[%s8 + $0x12a8] sm:$0xff]
  %v4445 = vld [vmem:[%s8 + $0x12b0] sm:$0xff]
  %v4446 = vld [vmem:[%s8 + $0x12b8] sm:$0xff]
  %v4447 = vld [vmem:[%s8 + $0x12c0] sm:$0xff]
  %v4448 = vld [vmem:[%s8 + $0x12c8] sm:$0xff]
  %v4449 = vld [vmem:[%s8 + $0x12d0] sm:$0xff]
  %v4450 = vld [vmem:[%s8 + $0x12d8] sm:$0xff]
  %v4451 = vld [vmem:[%s8 + $0x12e0] sm:$0xff]
  %v4452 = vld [vmem:[%s8 + $0x12e8] sm:$0xff]
  %v4453 = vld [vmem:[%s8 + $0x12f0] sm:$0xff]
  %v4454 = vld [vmem:[%s8 + $0x12f8] sm:$0xff]
  %v4455 = vld [vmem:[%s8 + $0x1300] sm:$0xff]
  %v4456 = vld [vmem:[%s8 + $0x1308] sm:$0xff]
  %v4457 = vld [vmem:[%s8 + $0x1310] sm:$0xff]
  %v4458 = vld [vmem:[%s8 + $0x1318] sm:$0xff]
  %v4459 = vld [vmem:[%s8 + $0x1320] sm:$0xff]
  %v4460 = vld [vmem:[%s8 + $0x1328] sm:$0xff]
  %v4461 = vld [vmem:[%s8 + $0x1330] sm:$0xff]
  %v4462 = vld [vmem:[%s8 + $0x1338] sm:$0xff]
  %v4463 = vld [vmem:[%s8 + $0x1340] sm:$0xff]
  %v4464 = vld [vmem:[%s8 + $0x1348] sm:$0xff]
  %v4465 = vld [vmem:[%s8 + $0x1350] sm:$0xff]
  %v4466 = vld [vmem:[%s8 + $0x1358] sm:$0xff]
  %v4467 = vld [vmem:[%s8 + $0x1360] sm:$0xff]
  %v4468 = vld [vmem:[%s8 + $0x1368] sm:$0xff]
  %v4469 = vld [vmem:[%s8 + $0x1370] sm:$0xff]
  %v4470 = vld [vmem:[%s8 + $0x1378] sm:$0xff]
  %v4471 = vld [vmem:[%s8 + $0x1380] sm:$0xff]
  %v4472 = vld [vmem:[%s8 + $0x1388] sm:$0xff]
  %v4473 = vld [vmem:[%s8 + $0x1390] sm:$0xff]
  %v4474 = vld [vmem:[%s8 + $0x1398] sm:$0xff]
  %v4475 = vld [vmem:[%s8 + $0x13a0] sm:$0xff]
  %v4476 = vld [vmem:[%s8 + $0x13a8] sm:$0xff]
  %v4477 = vld [vmem:[%s8 + $0x13b0] sm:$0xff]
  %v4478 = vld [vmem:[%s8 + $0x13b8] sm:$0xff]
  %v4479 = vld [vmem:[%s8 + $0x13c0] sm:$0xff]
  %v4480 = vld [vmem:[%s8 + $0x13c8] sm:$0xff]
  %v4481 = vld [vmem:[%s8 + $0x13d0] sm:$0xff]
  %v4482 = vld [vmem:[%s8 + $0x13d8] sm:$0xff]
  %v4483 = vld [vmem:[%s8 + $0x13e0] sm:$0xff]
  %v4484 = vld [vmem:[%s8 + $0x13e8] sm:$0xff]
  %v4485 = vld [vmem:[%s8 + $0x13f0] sm:$0xff]
  %v4486 = vld [vmem:[%s8 + $0x13f8] sm:$0xff]
  %v4487 = vld [vmem:[%s8 + $0x1400] sm:$0xff]
  %v4488 = vld [vmem:[%s8 + $0x1408] sm:$0xff]
  %v4489 = vld [vmem:[%s8 + $0x1410] sm:$0xff]
  %v4490 = vld [vmem:[%s8 + $0x1418] sm:$0xff]
  %v4491 = vld [vmem:[%s8 + $0x1420] sm:$0xff]
  %v4492 = vld [vmem:[%s8 + $0x1428] sm:$0xff]
  %v4493 = vld [vmem:[%s8 + $0x1430] sm:$0xff]
  %v4494 = vld [vmem:[%s8 + $0x1438] sm:$0xff]
  %v4495 = vld [vmem:[%s8 + $0x1440] sm:$0xff]
  %v4496 = vld [vmem:[%s8 + $0x1448] sm:$0xff]
  %v4497 = vld [vmem:[%s8 + $0x1450] sm:$0xff]
  %v4498 = vld [vmem:[%s8 + $0x1458] sm:$0xff]
  %v4499 = vld [vmem:[%s8 + $0x1460] sm:$0xff]
  %v4500 = vld [vmem:[%s8 + $0x1468] sm:$0xff]
  %v4501 = vld [vmem:[%s8 + $0x1470] sm:$0xff]
  %v4502 = vld [vmem:[%s8 + $0x1478] sm:$0xff]
  %v4503 = vld [vmem:[%s8 + $0x1480] sm:$0xff]
  %v4504 = vld [vmem:[%s8 + $0x1488] sm:$0xff]
  %v4505 = vld [vmem:[%s8 + $0x1490] sm:$0xff]
  %v4506 = vld [vmem:[%s8 + $0x1498] sm:$0xff]
  %v4507 = vld [vmem:[%s8 + $0x14a0] sm:$0xff]
  %v4508 = vld [vmem:[%s8 + $0x14a8] sm:$0xff]
  %v4509 = vld [vmem:[%s8 + $0x14b0] sm:$0xff]
  %v4510 = vld [vmem:[%s8 + $0x14b8] sm:$0xff]
  %v4511 = vld [vmem:[%s8 + $0x14c0] sm:$0xff]
  %v4512 = vld [vmem:[%s8 + $0x14c8] sm:$0xff]
  %v4513 = vld [vmem:[%s8 + $0x14d0] sm:$0xff]
  %v4514 = vld [vmem:[%s8 + $0x14d8] sm:$0xff]
  %v4515 = vld [vmem:[%s8 + $0x14e0] sm:$0xff]
  %v4516 = vld [vmem:[%s8 + $0x14e8] sm:$0xff]
  %v4517 = vld [vmem:[%s8 + $0x14f0] sm:$0xff]
  %v4518 = vld [vmem:[%s8 + $0x14f8] sm:$0xff]
  %v4519 = vld [vmem:[%s8 + $0x1500] sm:$0xff]
  %v4520 = vld [vmem:[%s8 + $0x1508] sm:$0xff]
  %v4521 = vld [vmem:[%s8 + $0x1510] sm:$0xff]
  %v4522 = vld [vmem:[%s8 + $0x1518] sm:$0xff]
  %v4523 = vld [vmem:[%s8 + $0x1520] sm:$0xff]
  %v4524 = vld [vmem:[%s8 + $0x1528] sm:$0xff]
  %v4525 = vld [vmem:[%s8 + $0x1530] sm:$0xff]
  %v4526 = vld [vmem:[%s8 + $0x1538] sm:$0xff]
  %v4527 = vld [vmem:[%s8 + $0x1540] sm:$0xff]
  %v4528 = vld [vmem:[%s8 + $0x1548] sm:$0xff]
  %v4529 = vld [vmem:[%s8 + $0x1550] sm:$0xff]
  %v4530 = vld [vmem:[%s8 + $0x1558] sm:$0xff]
  %v4531 = vld [vmem:[%s8 + $0x1560] sm:$0xff]
  %v4532 = vld [vmem:[%s8 + $0x1568] sm:$0xff]
  %v4533 = vld [vmem:[%s8 + $0x1570] sm:$0xff]
  %v4534 = vld [vmem:[%s8 + $0x1578] sm:$0xff]
  %v4535 = vld [vmem:[%s8 + $0x1580] sm:$0xff]
  %v4536 = vld [vmem:[%s8 + $0x1588] sm:$0xff]
  %v4537 = vld [vmem:[%s8 + $0x1590] sm:$0xff]
  %v4538 = vld [vmem:[%s8 + $0x1598] sm:$0xff]
  %v4539 = vld [vmem:[%s8 + $0x15a0] sm:$0xff]
  %v4540 = vld [vmem:[%s8 + $0x15a8] sm:$0xff]
  %v4541 = vld [vmem:[%s8 + $0x15b0] sm:$0xff]
  %v4542 = vld [vmem:[%s8 + $0x15b8] sm:$0xff]
  %v4543 = vld [vmem:[%s8 + $0x15c0] sm:$0xff]
  %v4544 = vld [vmem:[%s8 + $0x15c8] sm:$0xff]
  %v4545 = vld [vmem:[%s8 + $0x15d0] sm:$0xff]
  %v4546 = vld [vmem:[%s8 + $0x15d8] sm:$0xff]
  %v4547 = vld [vmem:[%s8 + $0x15e0] sm:$0xff]
  %v4548 = vld [vmem:[%s8 + $0x15e8] sm:$0xff]
  %v4549 = vld [vmem:[%s8 + $0x15f0] sm:$0xff]
  %v4550 = vld [vmem:[%s8 + $0x15f8] sm:$0xff]
  %v4551 = vld [vmem:[%s8 + $0x1600] sm:$0xff]
  %v4552 = vld [vmem:[%s8 + $0x1608] sm:$0xff]
  %v4553 = vld [vmem:[%s8 + $0x1610] sm:$0xff]
  %v4554 = vld [vmem:[%s8 + $0x1618] sm:$0xff]
  %v4555 = vld [vmem:[%s8 + $0x1620] sm:$0xff]
  %v4556 = vld [vmem:[%s8 + $0x1628] sm:$0xff]
  %v4557 = vld [vmem:[%s8 + $0x1630] sm:$0xff]
  %v4558 = vld [vmem:[%s8 + $0x1638] sm:$0xff]
  %v4559 = vld [vmem:[%s8 + $0x1640] sm:$0xff]
  %v4560 = vld [vmem:[%s8 + $0x1648] sm:$0xff]
  %v4561 = vld [vmem:[%s8 + $0x1650] sm:$0xff]
  %v4562 = vld [vmem:[%s8 + $0x1658] sm:$0xff]
  %v4563 = vld [vmem:[%s8 + $0x1660] sm:$0xff]
  %v4564 = vld [vmem:[%s8 + $0x1668] sm:$0xff]
  %v4565 = vld [vmem:[%s8 + $0x1670] sm:$0xff]
  %v4566 = vld [vmem:[%s8 + $0x1678] sm:$0xff]
  %v4567 = vld [vmem:[%s8 + $0x1680] sm:$0xff]
  %v4568 = vld [vmem:[%s8 + $0x1688] sm:$0xff]
  %v4569 = vld [vmem:[%s8 + $0x1690] sm:$0xff]
  %v4570 = vld [vmem:[%s8 + $0x1698] sm:$0xff]
  %v4571 = vld [vmem:[%s8 + $0x16a0] sm:$0xff]
  %v4572 = vld [vmem:[%s8 + $0x16a8] sm:$0xff]
  %v4573 = vld [vmem:[%s8 + $0x16b0] sm:$0xff]
  %v4574 = vld [vmem:[%s8 + $0x16b8] sm:$0xff]
  %v4575 = vld [vmem:[%s8 + $0x16c0] sm:$0xff]
  %v4576 = vld [vmem:[%s8 + $0x16c8] sm:$0xff]
  %v4577 = vld [vmem:[%s8 + $0x16d0] sm:$0xff]
  %v4578 = vld [vmem:[%s8 + $0x16d8] sm:$0xff]
  %v4579 = vld [vmem:[%s8 + $0x16e0] sm:$0xff]
  %v4580 = vld [vmem:[%s8 + $0x16e8] sm:$0xff]
  %v4581 = vld [vmem:[%s8 + $0x16f0] sm:$0xff]
  %v4582 = vld [vmem:[%s8 + $0x16f8] sm:$0xff]
  %v4583 = vld [vmem:[%s8 + $0x1700] sm:$0xff]
  %v4584 = vld [vmem:[%s8 + $0x1708] sm:$0xff]
  %v4585 = vld [vmem:[%s8 + $0x1710] sm:$0xff]
  %v4586 = vld [vmem:[%s8 + $0x1718] sm:$0xff]
  %v4587 = vld [vmem:[%s8 + $0x1720] sm:$0xff]
  %v4588 = vld [vmem:[%s8 + $0x1728] sm:$0xff]
  %v4589 = vld [vmem:[%s8 + $0x1730] sm:$0xff]
  %v4590 = vld [vmem:[%s8 + $0x1738] sm:$0xff]
  %v4591 = vld [vmem:[%s8 + $0x1740] sm:$0xff]
  %v4592 = vld [vmem:[%s8 + $0x1748] sm:$0xff]
  %v4593 = vld [vmem:[%s8 + $0x1750] sm:$0xff]
  %v4594 = vld [vmem:[%s8 + $0x1758] sm:$0xff]
  %v4595 = vld [vmem:[%s8 + $0x1760] sm:$0xff]
  %v4596 = vld [vmem:[%s8 + $0x1768] sm:$0xff]
  %v4597 = vld [vmem:[%s8 + $0x1770] sm:$0xff]
  %v4598 = vld [vmem:[%s8 + $0x1778] sm:$0xff]
  %v4599 = vld [vmem:[%s8 + $0x1780] sm:$0xff]
  %v4600 = vld [vmem:[%s8 + $0x1788] sm:$0xff]
  %v4601 = vld [vmem:[%s8 + $0x1790] sm:$0xff]
  %v4602 = vld [vmem:[%s8 + $0x1798] sm:$0xff]
  %v4603 = vld [vmem:[%s8 + $0x17a0] sm:$0xff]
  %v4604 = vld [vmem:[%s8 + $0x17a8] sm:$0xff]
  %v4605 = vld [vmem:[%s8 + $0x17b0] sm:$0xff]
  %v4606 = vld [vmem:[%s8 + $0x17b8] sm:$0xff]
  %v4607 = vld [vmem:[%s8 + $0x17c0] sm:$0xff]
  %v4608 = vld [vmem:[%s8 + $0x17c8] sm:$0xff]
  %v4609 = vld [vmem:[%s8 + $0x17d0] sm:$0xff]
  %v4610 = vld [vmem:[%s8 + $0x17d8] sm:$0xff]
  %v4611 = vld [vmem:[%s8 + $0x17e0] sm:$0xff]
  %v4612 = vld [vmem:[%s8 + $0x17e8] sm:$0xff]
  %v4613 = vld [vmem:[%s8 + $0x17f0] sm:$0xff]
  %v4614 = vld [vmem:[%s8 + $0x17f8] sm:$0xff]
  %v4615 = vld [vmem:[%s8 + $0x1800] sm:$0xff]
  %v4616 = vld [vmem:[%s8 + $0x1808] sm:$0xff]
  %v4617 = vld [vmem:[%s8 + $0x1810] sm:$0xff]
  %v4618 = vld [vmem:[%s8 + $0x1818] sm:$0xff]
  %v4619 = vld [vmem:[%s8 + $0x1820] sm:$0xff]
  %v4620 = vld [vmem:[%s8 + $0x1828] sm:$0xff]
  %v4621 = vld [vmem:[%s8 + $0x1830] sm:$0xff]
  %v4622 = vld [vmem:[%s8 + $0x1838] sm:$0xff]
  %v4623 = vld [vmem:[%s8 + $0x1840] sm:$0xff]
  %v4624 = vld [vmem:[%s8 + $0x1848] sm:$0xff]
  %v4625 = vld [vmem:[%s8 + $0x1850] sm:$0xff]
  %v4626 = vld [vmem:[%s8 + $0x1858] sm:$0xff]
  %v4627 = vld [vmem:[%s8 + $0x1860] sm:$0xff]
  %v4628 = vld [vmem:[%s8 + $0x1868] sm:$0xff]
  %v4629 = vld [vmem:[%s8 + $0x1870] sm:$0xff]
  %v4630 = vld [vmem:[%s8 + $0x1878] sm:$0xff]
  %v4631 = vld [vmem:[%s8 + $0x1880] sm:$0xff]
  %v4632 = vld [vmem:[%s8 + $0x1888] sm:$0xff]
  %v4633 = vld [vmem:[%s8 + $0x1890] sm:$0xff]
  %v4634 = vld [vmem:[%s8 + $0x1898] sm:$0xff]
  %v4635 = vld [vmem:[%s8 + $0x18a0] sm:$0xff]
  %v4636 = vld [vmem:[%s8 + $0x18a8] sm:$0xff]
  %v4637 = vld [vmem:[%s8 + $0x18b0] sm:$0xff]
  %v4638 = vld [vmem:[%s8 + $0x18b8] sm:$0xff]
  %v4639 = vld [vmem:[%s8 + $0x18c0] sm:$0xff]
  %v4640 = vld [vmem:[%s8 + $0x18c8] sm:$0xff]
  %v4641 = vld [vmem:[%s8 + $0x18d0] sm:$0xff]
  %v4642 = vld [vmem:[%s8 + $0x18d8] sm:$0xff]
  %v4643 = vld [vmem:[%s8 + $0x18e0] sm:$0xff]
  %v4644 = vld [vmem:[%s8 + $0x18e8] sm:$0xff]
  %v4645 = vld [vmem:[%s8 + $0x18f0] sm:$0xff]
  %v4646 = vld [vmem:[%s8 + $0x18f8] sm:$0xff]
  %v4647 = vld [vmem:[%s8 + $0x1900] sm:$0xff]
  %v4648 = vld [vmem:[%s8 + $0x1908] sm:$0xff]
  %v4649 = vld [vmem:[%s8 + $0x1910] sm:$0xff]
  %v4650 = vld [vmem:[%s8 + $0x1918] sm:$0xff]
  %v4651 = vld [vmem:[%s8 + $0x1920] sm:$0xff]
  %v4652 = vld [vmem:[%s8 + $0x1928] sm:$0xff]
  %v4653 = vld [vmem:[%s8 + $0x1930] sm:$0xff]
  %v4654 = vld [vmem:[%s8 + $0x1938] sm:$0xff]
  %v4655 = vld [vmem:[%s8 + $0x1940] sm:$0xff]
  %v4656 = vld [vmem:[%s8 + $0x1948] sm:$0xff]
  %v4657 = vld [vmem:[%s8 + $0x1950] sm:$0xff]
  %v4658 = vld [vmem:[%s8 + $0x1958] sm:$0xff]
  %v4659 = vld [vmem:[%s8 + $0x1960] sm:$0xff]
  %v4660 = vld [vmem:[%s8 + $0x1968] sm:$0xff]
  %v4661 = vld [vmem:[%s8 + $0x1970] sm:$0xff]
  %v4662 = vld [vmem:[%s8 + $0x1978] sm:$0xff]
  %v4663 = vld [vmem:[%s8 + $0x1980] sm:$0xff]
  %v4664 = vld [vmem:[%s8 + $0x1988] sm:$0xff]
  %v4665 = vld [vmem:[%s8 + $0x1990] sm:$0xff]
  %v4666 = vld [vmem:[%s8 + $0x1998] sm:$0xff]
  %v4667 = vld [vmem:[%s8 + $0x19a0] sm:$0xff]
  %v4668 = vld [vmem:[%s8 + $0x19a8] sm:$0xff]
  %v4669 = vld [vmem:[%s8 + $0x19b0] sm:$0xff]
  %v4670 = vld [vmem:[%s8 + $0x19b8] sm:$0xff]
  %v4671 = vld [vmem:[%s8 + $0x19c0] sm:$0xff]
  %v4672 = vld [vmem:[%s8 + $0x19c8] sm:$0xff]
  %v4673 = vld [vmem:[%s8 + $0x19d0] sm:$0xff]
  %v4674 = vld [vmem:[%s8 + $0x19d8] sm:$0xff]
  %v4675 = vld [vmem:[%s8 + $0x19e0] sm:$0xff]
  %v4676 = vld [vmem:[%s8 + $0x19e8] sm:$0xff]
  %v4677 = vld [vmem:[%s8 + $0x19f0] sm:$0xff]
  %v4678 = vld [vmem:[%s8 + $0x19f8] sm:$0xff]
  %v4679 = vld [vmem:[%s8 + $0x1a00] sm:$0xff]
  %v4680 = vld [vmem:[%s8 + $0x1a08] sm:$0xff]
  %v4681 = vld [vmem:[%s8 + $0x1a10] sm:$0xff]
  %v4682 = vld [vmem:[%s8 + $0x1a18] sm:$0xff]
  %v4683 = vld [vmem:[%s8 + $0x1a20] sm:$0xff]
  %v4684 = vld [vmem:[%s8 + $0x1a28] sm:$0xff]
  %v4685 = vld [vmem:[%s8 + $0x1a30] sm:$0xff]
  %v4686 = vld [vmem:[%s8 + $0x1a38] sm:$0xff]
  %v4687 = vld [vmem:[%s8 + $0x1a40] sm:$0xff]
  %v4688 = vld [vmem:[%s8 + $0x1a48] sm:$0xff]
  %v4689 = vld [vmem:[%s8 + $0x1a50] sm:$0xff]
  %v4690 = vld [vmem:[%s8 + $0x1a58] sm:$0xff]
  %v4691 = vld [vmem:[%s8 + $0x1a60] sm:$0xff]
  %v4692 = vld [vmem:[%s8 + $0x1a68] sm:$0xff]
  %v4693 = vld [vmem:[%s8 + $0x1a70] sm:$0xff]
  %v4694 = vld [vmem:[%s8 + $0x1a78] sm:$0xff]
  %v4695 = vld [vmem:[%s8 + $0x1a80] sm:$0xff]
  %v4696 = vld [vmem:[%s8 + $0x1a88] sm:$0xff]
  %v4697 = vld [vmem:[%s8 + $0x1a90] sm:$0xff]
  %v4698 = vld [vmem:[%s8 + $0x1a98] sm:$0xff]
  %v4699 = vld [vmem:[%s8 + $0x1aa0] sm:$0xff]
  %v4700 = vld [vmem:[%s8 + $0x1aa8] sm:$0xff]
  %v4701 = vld [vmem:[%s8 + $0x1ab0] sm:$0xff]
  %v4702 = vld [vmem:[%s8 + $0x1ab8] sm:$0xff]
  %v4703 = vld [vmem:[%s8 + $0x1ac0] sm:$0xff]
  %v4704 = vld [vmem:[%s8 + $0x1ac8] sm:$0xff]
  %v4705 = vld [vmem:[%s8 + $0x1ad0] sm:$0xff]
  %v4706 = vld [vmem:[%s8 + $0x1ad8] sm:$0xff]
  %v4707 = vld [vmem:[%s8 + $0x1ae0] sm:$0xff]
  %v4708 = vld [vmem:[%s8 + $0x1ae8] sm:$0xff]
  %v4709 = vld [vmem:[%s8 + $0x1af0] sm:$0xff]
  %v4710 = vld [vmem:[%s8 + $0x1af8] sm:$0xff]
  %v4711 = vld [vmem:[%s8 + $0x1b00] sm:$0xff]
  %v4712 = vld [vmem:[%s8 + $0x1b08] sm:$0xff]
  %v4713 = vld [vmem:[%s8 + $0x1b10] sm:$0xff]
  %v4714 = vld [vmem:[%s8 + $0x1b18] sm:$0xff]
  %v4715 = vld [vmem:[%s8 + $0x1b20] sm:$0xff]
  %v4716 = vld [vmem:[%s8 + $0x1b28] sm:$0xff]
  %v4717 = vld [vmem:[%s8 + $0x1b30] sm:$0xff]
  %v4718 = vld [vmem:[%s8 + $0x1b38] sm:$0xff]
  %v4719 = vld [vmem:[%s8 + $0x1b40] sm:$0xff]
  %v4720 = vld [vmem:[%s8 + $0x1b48] sm:$0xff]
  %v4721 = vld [vmem:[%s8 + $0x1b50] sm:$0xff]
  %v4722 = vld [vmem:[%s8 + $0x1b58] sm:$0xff]
  %v4723 = vld [vmem:[%s8 + $0x1b60] sm:$0xff]
  %v4724 = vld [vmem:[%s8 + $0x1b68] sm:$0xff]
  %v4725 = vld [vmem:[%s8 + $0x1b70] sm:$0xff]
  %v4726 = vld [vmem:[%s8 + $0x1b78] sm:$0xff]
  %v4727 = vld [vmem:[%s8 + $0x1b80] sm:$0xff]
  %v4728 = vld [vmem:[%s8 + $0x1b88] sm:$0xff]
  %v4729 = vld [vmem:[%s8 + $0x1b90] sm:$0xff]
  %v4730 = vld [vmem:[%s8 + $0x1b98] sm:$0xff]
  %v4731 = vld [vmem:[%s8 + $0x1ba0] sm:$0xff]
  %v4732 = vld [vmem:[%s8 + $0x1ba8] sm:$0xff]
  %v4733 = vld [vmem:[%s8 + $0x1bb0] sm:$0xff]
  %v4734 = vld [vmem:[%s8 + $0x1bb8] sm:$0xff]
  %v4735 = vld [vmem:[%s8 + $0x1bc0] sm:$0xff]
  %v4736 = vld [vmem:[%s8 + $0x1bc8] sm:$0xff]
  %v4737 = vld [vmem:[%s8 + $0x1bd0] sm:$0xff]
  %v4738 = vld [vmem:[%s8 + $0x1bd8] sm:$0xff]
  %v4739 = vld [vmem:[%s8 + $0x1be0] sm:$0xff]
  %v4740 = vld [vmem:[%s8 + $0x1be8] sm:$0xff]
  %v4741 = vld [vmem:[%s8 + $0x1bf0] sm:$0xff]
  %v4742 = vld [vmem:[%s8 + $0x1bf8] sm:$0xff]
  %v4743 = vld [vmem:[%s8 + $0x1c00] sm:$0xff]
  %v4744 = vld [vmem:[%s8 + $0x1c08] sm:$0xff]
  %v4745 = vld [vmem:[%s8 + $0x1c10] sm:$0xff]
  %v4746 = vld [vmem:[%s8 + $0x1c18] sm:$0xff]
  %v4747 = vld [vmem:[%s8 + $0x1c20] sm:$0xff]
  %v4748 = vld [vmem:[%s8 + $0x1c28] sm:$0xff]
  %v4749 = vld [vmem:[%s8 + $0x1c30] sm:$0xff]
  %v4750 = vld [vmem:[%s8 + $0x1c38] sm:$0xff]
  %v4751 = vld [vmem:[%s8 + $0x1c40] sm:$0xff]
  %v4752 = vld [vmem:[%s8 + $0x1c48] sm:$0xff]
  %v4753 = vld [vmem:[%s8 + $0x1c50] sm:$0xff]
  %v4754 = vld [vmem:[%s8 + $0x1c58] sm:$0xff]
  %v4755 = vld [vmem:[%s8 + $0x1c60] sm:$0xff]
  %v4756 = vld [vmem:[%s8 + $0x1c68] sm:$0xff]
  %v4757 = vld [vmem:[%s8 + $0x1c70] sm:$0xff]
  %v4758 = vld [vmem:[%s8 + $0x1c78] sm:$0xff]
  %v4759 = vld [vmem:[%s8 + $0x1c80] sm:$0xff]
  %v4760 = vld [vmem:[%s8 + $0x1c88] sm:$0xff]
  %v4761 = vld [vmem:[%s8 + $0x1c90] sm:$0xff]
  %v4762 = vld [vmem:[%s8 + $0x1c98] sm:$0xff]
  %v4763 = vld [vmem:[%s8 + $0x1ca0] sm:$0xff]
  %v4764 = vld [vmem:[%s8 + $0x1ca8] sm:$0xff]
  %v4765 = vld [vmem:[%s8 + $0x1cb0] sm:$0xff]
  %v4766 = vld [vmem:[%s8 + $0x1cb8] sm:$0xff]
  %v4767 = vld [vmem:[%s8 + $0x1cc0] sm:$0xff]
  %v4768 = vld [vmem:[%s8 + $0x1cc8] sm:$0xff]
  %v4769 = vld [vmem:[%s8 + $0x1cd0] sm:$0xff]
  %v4770 = vld [vmem:[%s8 + $0x1cd8] sm:$0xff]
  %v4771 = vld [vmem:[%s8 + $0x1ce0] sm:$0xff]
  %v4772 = vld [vmem:[%s8 + $0x1ce8] sm:$0xff]
  %v4773 = vld [vmem:[%s8 + $0x1cf0] sm:$0xff]
  %v4774 = vld [vmem:[%s8 + $0x1cf8] sm:$0xff]
  %v4775 = vld [vmem:[%s8 + $0x1d00] sm:$0xff]
  %v4776 = vld [vmem:[%s8 + $0x1d08] sm:$0xff]
  %v4777 = vld [vmem:[%s8 + $0x1d10] sm:$0xff]
  %v4778 = vld [vmem:[%s8 + $0x1d18] sm:$0xff]
  %v4779 = vld [vmem:[%s8 + $0x1d20] sm:$0xff]
  %v4780 = vld [vmem:[%s8 + $0x1d28] sm:$0xff]
  %v4781 = vld [vmem:[%s8 + $0x1d30] sm:$0xff]
  %v4782 = vld [vmem:[%s8 + $0x1d38] sm:$0xff]
  %v4783 = vld [vmem:[%s8 + $0x1d40] sm:$0xff]
  %v4784 = vld [vmem:[%s8 + $0x1d48] sm:$0xff]
  %v4785 = vld [vmem:[%s8 + $0x1d50] sm:$0xff]
  %v4786 = vld [vmem:[%s8 + $0x1d58] sm:$0xff]
  %v4787 = vld [vmem:[%s8 + $0x1d60] sm:$0xff]
  %v4788 = vld [vmem:[%s8 + $0x1d68] sm:$0xff]
  %v4789 = vld [vmem:[%s8 + $0x1d70] sm:$0xff]
  %v4790 = vld [vmem:[%s8 + $0x1d78] sm:$0xff]
  %v4791 = vld [vmem:[%s8 + $0x1d80] sm:$0xff]
  %v4792 = vld [vmem:[%s8 + $0x1d88] sm:$0xff]
  %v4793 = vld [vmem:[%s8 + $0x1d90] sm:$0xff]
  %v4794 = vld [vmem:[%s8 + $0x1d98] sm:$0xff]
  %v4795 = vld [vmem:[%s8 + $0x1da0] sm:$0xff]
  %v4796 = vld [vmem:[%s8 + $0x1da8] sm:$0xff]
  %v4797 = vld [vmem:[%s8 + $0x1db0] sm:$0xff]
  %v4798 = vld [vmem:[%s8 + $0x1db8] sm:$0xff]
  %v4799 = vld [vmem:[%s8 + $0x1dc0] sm:$0xff]
  %v4800 = vld [vmem:[%s8 + $0x1dc8] sm:$0xff]
  %v4801 = vld [vmem:[%s8 + $0x1dd0] sm:$0xff]
  %v4802 = vld [vmem:[%s8 + $0x1dd8] sm:$0xff]
  %v4803 = vld [vmem:[%s8 + $0x1de0] sm:$0xff]
  %v4804 = vld [vmem:[%s8 + $0x1de8] sm:$0xff]
  %v4805 = vld [vmem:[%s8 + $0x1df0] sm:$0xff]
  %v4806 = vld [vmem:[%s8 + $0x1df8] sm:$0xff]
  %v4807 = vld [vmem:[%s8 + $0x1e00] sm:$0xff]
  %v4808 = vld [vmem:[%s8 + $0x1e08] sm:$0xff]
  %v4809 = vld [vmem:[%s8 + $0x1e10] sm:$0xff]
  %v4810 = vld [vmem:[%s8 + $0x1e18] sm:$0xff]
  %v4811 = vld [vmem:[%s8 + $0x1e20] sm:$0xff]
  %v4812 = vld [vmem:[%s8 + $0x1e28] sm:$0xff]
  %v4813 = vld [vmem:[%s8 + $0x1e30] sm:$0xff]
  %v4814 = vld [vmem:[%s8 + $0x1e38] sm:$0xff]
  %v4815 = vld [vmem:[%s8 + $0x1e40] sm:$0xff]
  %v4816 = vld [vmem:[%s8 + $0x1e48] sm:$0xff]
  %v4817 = vld [vmem:[%s8 + $0x1e50] sm:$0xff]
  %v4818 = vld [vmem:[%s8 + $0x1e58] sm:$0xff]
  %v4819 = vld [vmem:[%s8 + $0x1e60] sm:$0xff]
  %v4820 = vld [vmem:[%s8 + $0x1e68] sm:$0xff]
  %v4821 = vld [vmem:[%s8 + $0x1e70] sm:$0xff]
  %v4822 = vld [vmem:[%s8 + $0x1e78] sm:$0xff]
  %v4823 = vld [vmem:[%s8 + $0x1e80] sm:$0xff]
  %v4824 = vld [vmem:[%s8 + $0x1e88] sm:$0xff]
  %v4825 = vld [vmem:[%s8 + $0x1e90] sm:$0xff]
  %v4826 = vld [vmem:[%s8 + $0x1e98] sm:$0xff]
  %v4827 = vld [vmem:[%s8 + $0x1ea0] sm:$0xff]
  %v4828 = vld [vmem:[%s8 + $0x1ea8] sm:$0xff]
  %v4829 = vld [vmem:[%s8 + $0x1eb0] sm:$0xff]
  %v4830 = vld [vmem:[%s8 + $0x1eb8] sm:$0xff]
  %v4831 = vld [vmem:[%s8 + $0x1ec0] sm:$0xff]
  %v4832 = vld [vmem:[%s8 + $0x1ec8] sm:$0xff]
  %v4833 = vld [vmem:[%s8 + $0x1ed0] sm:$0xff]
  %v4834 = vld [vmem:[%s8 + $0x1ed8] sm:$0xff]
  %v4835 = vld [vmem:[%s8 + $0x1ee0] sm:$0xff]
  %v4836 = vld [vmem:[%s8 + $0x1ee8] sm:$0xff]
  %v4837 = vld [vmem:[%s8 + $0x1ef0] sm:$0xff]
  %v4838 = vld [vmem:[%s8 + $0x1ef8] sm:$0xff]
  %v4839 = vld [vmem:[%s8 + $0x1f00] sm:$0xff]
  %v4840 = vld [vmem:[%s8 + $0x1f08] sm:$0xff]
  %v4841 = vld [vmem:[%s8 + $0x1f10] sm:$0xff]
  %v4842 = vld [vmem:[%s8 + $0x1f18] sm:$0xff]
  %v4843 = vld [vmem:[%s8 + $0x1f20] sm:$0xff]
  %v4844 = vld [vmem:[%s8 + $0x1f28] sm:$0xff]
  %v4845 = vld [vmem:[%s8 + $0x1f30] sm:$0xff]
  %v4846 = vld [vmem:[%s8 + $0x1f38] sm:$0xff]
  %v4847 = vld [vmem:[%s8 + $0x1f40] sm:$0xff]
  %v4848 = vld [vmem:[%s8 + $0x1f48] sm:$0xff]
  %v4849 = vld [vmem:[%s8 + $0x1f50] sm:$0xff]
  %v4850 = vld [vmem:[%s8 + $0x1f58] sm:$0xff]
  %v4851 = vld [vmem:[%s8 + $0x1f60] sm:$0xff]
  %v4852 = vld [vmem:[%s8 + $0x1f68] sm:$0xff]
  %v4853 = vld [vmem:[%s8 + $0x1f70] sm:$0xff]
  %v4854 = vld [vmem:[%s8 + $0x1f78] sm:$0xff]
  %v4855 = vld [vmem:[%s8 + $0x1f80] sm:$0xff]
  %v4856 = vld [vmem:[%s8 + $0x1f88] sm:$0xff]
  %v4857 = vld [vmem:[%s8 + $0x1f90] sm:$0xff]
  %v4858 = vld [vmem:[%s8 + $0x1f98] sm:$0xff]
  %v4859 = vld [vmem:[%s8 + $0x1fa0] sm:$0xff]
  %v4860 = vld [vmem:[%s8 + $0x1fa8] sm:$0xff]
  %v4861 = vld [vmem:[%s8 + $0x1fb0] sm:$0xff]
  %v4862 = vld [vmem:[%s8 + $0x1fb8] sm:$0xff]
  %v4863 = vld [vmem:[%s8 + $0x1fc0] sm:$0xff]
  %v4864 = vld [vmem:[%s8 + $0x1fc8] sm:$0xff]
  %v4865 = vld [vmem:[%s8 + $0x1fd0] sm:$0xff]
  %v4866 = vld [vmem:[%s8 + $0x1fd8] sm:$0xff]
  %v4867 = vld [vmem:[%s8 + $0x1fe0] sm:$0xff]
  %v4868 = vld [vmem:[%s8 + $0x1fe8] sm:$0xff]
  %v4869 = vld [vmem:[%s8 + $0x1ff0] sm:$0xff]
  %v4870 = vld [vmem:[%s8 + $0x1ff8] sm:$0xff]
  %v4871 = vld [vmem:[%s9] sm:$0xff]
  %v4873 = vlaneseq
  %v4874 = vshrl.u32 %v4873, 7
  %v4875 = vsub.s32 0, %v4874
  %v4876 = vrot.slane %v4871, %v4875
  %v4877 = vlaneseq
  %v4878 = vshrl.u32 %v4877, 7
  %v4879 = vsub.s32 1, %v4878
  %v4880 = vrot.slane %v4871, %v4879
  %v4881 = vlaneseq
  %v4882 = vshrl.u32 %v4881, 7
  %v4883 = vsub.s32 2, %v4882
  %v4884 = vrot.slane %v4871, %v4883
  %v4885 = vlaneseq
  %v4886 = vshrl.u32 %v4885, 7
  %v4887 = vsub.s32 3, %v4886
  %v4888 = vrot.slane %v4871, %v4887
  %v4889 = vlaneseq
  %v4890 = vshrl.u32 %v4889, 7
  %v4891 = vsub.s32 4, %v4890
  %v4892 = vrot.slane %v4871, %v4891
  %v4893 = vlaneseq
  %v4894 = vshrl.u32 %v4893, 7
  %v4895 = vsub.s32 5, %v4894
  %v4896 = vrot.slane %v4871, %v4895
  %v4897 = vlaneseq
  %v4898 = vshrl.u32 %v4897, 7
  %v4899 = vsub.s32 6, %v4898
  %v4900 = vrot.slane %v4871, %v4899
  %v4901 = vlaneseq
  %v4902 = vshrl.u32 %v4901, 7
  %v4903 = vsub.s32 7, %v4902
  %v4904 = vrot.slane %v4871, %v4903
  %v5937 = vunpack.c.l.b16 %v3847
  %v5938 = vunpack.c.h.b16 %v3847
  %v5939 = vunpack.c.l.b16 %v3848
  %v5940 = vunpack.c.h.b16 %v3848
  %v5941 = vunpack.c.l.b16 %v3849
  %v5942 = vunpack.c.h.b16 %v3849
  %v5943 = vunpack.c.l.b16 %v3850
  %v5944 = vunpack.c.h.b16 %v3850
  %v5945 = vunpack.c.l.b16 %v3851
  %v5946 = vunpack.c.h.b16 %v3851
  %v5947 = vunpack.c.l.b16 %v3852
  %v5948 = vunpack.c.h.b16 %v3852
  %v5949 = vunpack.c.l.b16 %v3853
  %v5950 = vunpack.c.h.b16 %v3853
  %v5951 = vunpack.c.l.b16 %v3854
  %v5952 = vunpack.c.h.b16 %v3854
  %v5953 = vunpack.c.l.b16 %v3855
  %v5954 = vunpack.c.h.b16 %v3855
  %v5955 = vunpack.c.l.b16 %v3856
  %v5956 = vunpack.c.h.b16 %v3856
  %v5957 = vunpack.c.l.b16 %v3857
  %v5958 = vunpack.c.h.b16 %v3857
  %v5959 = vunpack.c.l.b16 %v3858
  %v5960 = vunpack.c.h.b16 %v3858
  %v5961 = vunpack.c.l.b16 %v3859
  %v5962 = vunpack.c.h.b16 %v3859
  %v5963 = vunpack.c.l.b16 %v3860
  %v5964 = vunpack.c.h.b16 %v3860
  %v5965 = vunpack.c.l.b16 %v3861
  %v5966 = vunpack.c.h.b16 %v3861
  %v5967 = vunpack.c.l.b16 %v3862
  %v5968 = vunpack.c.h.b16 %v3862
  %v5969 = vunpack.c.l.b16 %v3863
  %v5970 = vunpack.c.h.b16 %v3863
  %v5971 = vunpack.c.l.b16 %v3864
  %v5972 = vunpack.c.h.b16 %v3864
  %v5973 = vunpack.c.l.b16 %v3865
  %v5974 = vunpack.c.h.b16 %v3865
  %v5975 = vunpack.c.l.b16 %v3866
  %v5976 = vunpack.c.h.b16 %v3866
  %v5977 = vunpack.c.l.b16 %v3867
  %v5978 = vunpack.c.h.b16 %v3867
  %v5979 = vunpack.c.l.b16 %v3868
  %v5980 = vunpack.c.h.b16 %v3868
  %v5981 = vunpack.c.l.b16 %v3869
  %v5982 = vunpack.c.h.b16 %v3869
  %v5983 = vunpack.c.l.b16 %v3870
  %v5984 = vunpack.c.h.b16 %v3870
  %v5985 = vunpack.c.l.b16 %v3871
  %v5986 = vunpack.c.h.b16 %v3871
  %v5987 = vunpack.c.l.b16 %v3872
  %v5988 = vunpack.c.h.b16 %v3872
  %v5989 = vunpack.c.l.b16 %v3873
  %v5990 = vunpack.c.h.b16 %v3873
  %v5991 = vunpack.c.l.b16 %v3874
  %v5992 = vunpack.c.h.b16 %v3874
  %v5993 = vunpack.c.l.b16 %v3875
  %v5994 = vunpack.c.h.b16 %v3875
  %v5995 = vunpack.c.l.b16 %v3876
  %v5996 = vunpack.c.h.b16 %v3876
  %v5997 = vunpack.c.l.b16 %v3877
  %v5998 = vunpack.c.h.b16 %v3877
  %v5999 = vunpack.c.l.b16 %v3878
  %v6000 = vunpack.c.h.b16 %v3878
  %v6001 = vunpack.c.l.b16 %v3879
  %v6002 = vunpack.c.h.b16 %v3879
  %v6003 = vunpack.c.l.b16 %v3880
  %v6004 = vunpack.c.h.b16 %v3880
  %v6005 = vunpack.c.l.b16 %v3881
  %v6006 = vunpack.c.h.b16 %v3881
  %v6007 = vunpack.c.l.b16 %v3882
  %v6008 = vunpack.c.h.b16 %v3882
  %v6009 = vunpack.c.l.b16 %v3883
  %v6010 = vunpack.c.h.b16 %v3883
  %v6011 = vunpack.c.l.b16 %v3884
  %v6012 = vunpack.c.h.b16 %v3884
  %v6013 = vunpack.c.l.b16 %v3885
  %v6014 = vunpack.c.h.b16 %v3885
  %v6015 = vunpack.c.l.b16 %v3886
  %v6016 = vunpack.c.h.b16 %v3886
  %v6017 = vunpack.c.l.b16 %v3887
  %v6018 = vunpack.c.h.b16 %v3887
  %v6019 = vunpack.c.l.b16 %v3888
  %v6020 = vunpack.c.h.b16 %v3888
  %v6021 = vunpack.c.l.b16 %v3889
  %v6022 = vunpack.c.h.b16 %v3889
  %v6023 = vunpack.c.l.b16 %v3890
  %v6024 = vunpack.c.h.b16 %v3890
  %v6025 = vunpack.c.l.b16 %v3891
  %v6026 = vunpack.c.h.b16 %v3891
  %v6027 = vunpack.c.l.b16 %v3892
  %v6028 = vunpack.c.h.b16 %v3892
  %v6029 = vunpack.c.l.b16 %v3893
  %v6030 = vunpack.c.h.b16 %v3893
  %v6031 = vunpack.c.l.b16 %v3894
  %v6032 = vunpack.c.h.b16 %v3894
  %v6033 = vunpack.c.l.b16 %v3895
  %v6034 = vunpack.c.h.b16 %v3895
  %v6035 = vunpack.c.l.b16 %v3896
  %v6036 = vunpack.c.h.b16 %v3896
  %v6037 = vunpack.c.l.b16 %v3897
  %v6038 = vunpack.c.h.b16 %v3897
  %v6039 = vunpack.c.l.b16 %v3898
  %v6040 = vunpack.c.h.b16 %v3898
  %v6041 = vunpack.c.l.b16 %v3899
  %v6042 = vunpack.c.h.b16 %v3899
  %v6043 = vunpack.c.l.b16 %v3900
  %v6044 = vunpack.c.h.b16 %v3900
  %v6045 = vunpack.c.l.b16 %v3901
  %v6046 = vunpack.c.h.b16 %v3901
  %v6047 = vunpack.c.l.b16 %v3902
  %v6048 = vunpack.c.h.b16 %v3902
  %v6049 = vunpack.c.l.b16 %v3903
  %v6050 = vunpack.c.h.b16 %v3903
  %v6051 = vunpack.c.l.b16 %v3904
  %v6052 = vunpack.c.h.b16 %v3904
  %v6053 = vunpack.c.l.b16 %v3905
  %v6054 = vunpack.c.h.b16 %v3905
  %v6055 = vunpack.c.l.b16 %v3906
  %v6056 = vunpack.c.h.b16 %v3906
  %v6057 = vunpack.c.l.b16 %v3907
  %v6058 = vunpack.c.h.b16 %v3907
  %v6059 = vunpack.c.l.b16 %v3908
  %v6060 = vunpack.c.h.b16 %v3908
  %v6061 = vunpack.c.l.b16 %v3909
  %v6062 = vunpack.c.h.b16 %v3909
  %v6063 = vunpack.c.l.b16 %v3910
  %v6064 = vunpack.c.h.b16 %v3910
  %v6065 = vunpack.c.l.b16 %v3911
  %v6066 = vunpack.c.h.b16 %v3911
  %v6067 = vunpack.c.l.b16 %v3912
  %v6068 = vunpack.c.h.b16 %v3912
  %v6069 = vunpack.c.l.b16 %v3913
  %v6070 = vunpack.c.h.b16 %v3913
  %v6071 = vunpack.c.l.b16 %v3914
  %v6072 = vunpack.c.h.b16 %v3914
  %v6073 = vunpack.c.l.b16 %v3915
  %v6074 = vunpack.c.h.b16 %v3915
  %v6075 = vunpack.c.l.b16 %v3916
  %v6076 = vunpack.c.h.b16 %v3916
  %v6077 = vunpack.c.l.b16 %v3917
  %v6078 = vunpack.c.h.b16 %v3917
  %v6079 = vunpack.c.l.b16 %v3918
  %v6080 = vunpack.c.h.b16 %v3918
  %v6081 = vunpack.c.l.b16 %v3919
  %v6082 = vunpack.c.h.b16 %v3919
  %v6083 = vunpack.c.l.b16 %v3920
  %v6084 = vunpack.c.h.b16 %v3920
  %v6085 = vunpack.c.l.b16 %v3921
  %v6086 = vunpack.c.h.b16 %v3921
  %v6087 = vunpack.c.l.b16 %v3922
  %v6088 = vunpack.c.h.b16 %v3922
  %v6089 = vunpack.c.l.b16 %v3923
  %v6090 = vunpack.c.h.b16 %v3923
  %v6091 = vunpack.c.l.b16 %v3924
  %v6092 = vunpack.c.h.b16 %v3924
  %v6093 = vunpack.c.l.b16 %v3925
  %v6094 = vunpack.c.h.b16 %v3925
  %v6095 = vunpack.c.l.b16 %v3926
  %v6096 = vunpack.c.h.b16 %v3926
  %v6097 = vunpack.c.l.b16 %v3927
  %v6098 = vunpack.c.h.b16 %v3927
  %v6099 = vunpack.c.l.b16 %v3928
  %v6100 = vunpack.c.h.b16 %v3928
  %v6101 = vunpack.c.l.b16 %v3929
  %v6102 = vunpack.c.h.b16 %v3929
  %v6103 = vunpack.c.l.b16 %v3930
  %v6104 = vunpack.c.h.b16 %v3930
  %v6105 = vunpack.c.l.b16 %v3931
  %v6106 = vunpack.c.h.b16 %v3931
  %v6107 = vunpack.c.l.b16 %v3932
  %v6108 = vunpack.c.h.b16 %v3932
  %v6109 = vunpack.c.l.b16 %v3933
  %v6110 = vunpack.c.h.b16 %v3933
  %v6111 = vunpack.c.l.b16 %v3934
  %v6112 = vunpack.c.h.b16 %v3934
  %v6113 = vunpack.c.l.b16 %v3935
  %v6114 = vunpack.c.h.b16 %v3935
  %v6115 = vunpack.c.l.b16 %v3936
  %v6116 = vunpack.c.h.b16 %v3936
  %v6117 = vunpack.c.l.b16 %v3937
  %v6118 = vunpack.c.h.b16 %v3937
  %v6119 = vunpack.c.l.b16 %v3938
  %v6120 = vunpack.c.h.b16 %v3938
  %v6121 = vunpack.c.l.b16 %v3939
  %v6122 = vunpack.c.h.b16 %v3939
  %v6123 = vunpack.c.l.b16 %v3940
  %v6124 = vunpack.c.h.b16 %v3940
  %v6125 = vunpack.c.l.b16 %v3941
  %v6126 = vunpack.c.h.b16 %v3941
  %v6127 = vunpack.c.l.b16 %v3942
  %v6128 = vunpack.c.h.b16 %v3942
  %v6129 = vunpack.c.l.b16 %v3943
  %v6130 = vunpack.c.h.b16 %v3943
  %v6131 = vunpack.c.l.b16 %v3944
  %v6132 = vunpack.c.h.b16 %v3944
  %v6133 = vunpack.c.l.b16 %v3945
  %v6134 = vunpack.c.h.b16 %v3945
  %v6135 = vunpack.c.l.b16 %v3946
  %v6136 = vunpack.c.h.b16 %v3946
  %v6137 = vunpack.c.l.b16 %v3947
  %v6138 = vunpack.c.h.b16 %v3947
  %v6139 = vunpack.c.l.b16 %v3948
  %v6140 = vunpack.c.h.b16 %v3948
  %v6141 = vunpack.c.l.b16 %v3949
  %v6142 = vunpack.c.h.b16 %v3949
  %v6143 = vunpack.c.l.b16 %v3950
  %v6144 = vunpack.c.h.b16 %v3950
  %v6145 = vunpack.c.l.b16 %v3951
  %v6146 = vunpack.c.h.b16 %v3951
  %v6147 = vunpack.c.l.b16 %v3952
  %v6148 = vunpack.c.h.b16 %v3952
  %v6149 = vunpack.c.l.b16 %v3953
  %v6150 = vunpack.c.h.b16 %v3953
  %v6151 = vunpack.c.l.b16 %v3954
  %v6152 = vunpack.c.h.b16 %v3954
  %v6153 = vunpack.c.l.b16 %v3955
  %v6154 = vunpack.c.h.b16 %v3955
  %v6155 = vunpack.c.l.b16 %v3956
  %v6156 = vunpack.c.h.b16 %v3956
  %v6157 = vunpack.c.l.b16 %v3957
  %v6158 = vunpack.c.h.b16 %v3957
  %v6159 = vunpack.c.l.b16 %v3958
  %v6160 = vunpack.c.h.b16 %v3958
  %v6161 = vunpack.c.l.b16 %v3959
  %v6162 = vunpack.c.h.b16 %v3959
  %v6163 = vunpack.c.l.b16 %v3960
  %v6164 = vunpack.c.h.b16 %v3960
  %v6165 = vunpack.c.l.b16 %v3961
  %v6166 = vunpack.c.h.b16 %v3961
  %v6167 = vunpack.c.l.b16 %v3962
  %v6168 = vunpack.c.h.b16 %v3962
  %v6169 = vunpack.c.l.b16 %v3963
  %v6170 = vunpack.c.h.b16 %v3963
  %v6171 = vunpack.c.l.b16 %v3964
  %v6172 = vunpack.c.h.b16 %v3964
  %v6173 = vunpack.c.l.b16 %v3965
  %v6174 = vunpack.c.h.b16 %v3965
  %v6175 = vunpack.c.l.b16 %v3966
  %v6176 = vunpack.c.h.b16 %v3966
  %v6177 = vunpack.c.l.b16 %v3967
  %v6178 = vunpack.c.h.b16 %v3967
  %v6179 = vunpack.c.l.b16 %v3968
  %v6180 = vunpack.c.h.b16 %v3968
  %v6181 = vunpack.c.l.b16 %v3969
  %v6182 = vunpack.c.h.b16 %v3969
  %v6183 = vunpack.c.l.b16 %v3970
  %v6184 = vunpack.c.h.b16 %v3970
  %v6185 = vunpack.c.l.b16 %v3971
  %v6186 = vunpack.c.h.b16 %v3971
  %v6187 = vunpack.c.l.b16 %v3972
  %v6188 = vunpack.c.h.b16 %v3972
  %v6189 = vunpack.c.l.b16 %v3973
  %v6190 = vunpack.c.h.b16 %v3973
  %v6191 = vunpack.c.l.b16 %v3974
  %v6192 = vunpack.c.h.b16 %v3974
  %v6193 = vunpack.c.l.b16 %v3975
  %v6194 = vunpack.c.h.b16 %v3975
  %v6195 = vunpack.c.l.b16 %v3976
  %v6196 = vunpack.c.h.b16 %v3976
  %v6197 = vunpack.c.l.b16 %v3977
  %v6198 = vunpack.c.h.b16 %v3977
  %v6199 = vunpack.c.l.b16 %v3978
  %v6200 = vunpack.c.h.b16 %v3978
  %v6201 = vunpack.c.l.b16 %v3979
  %v6202 = vunpack.c.h.b16 %v3979
  %v6203 = vunpack.c.l.b16 %v3980
  %v6204 = vunpack.c.h.b16 %v3980
  %v6205 = vunpack.c.l.b16 %v3981
  %v6206 = vunpack.c.h.b16 %v3981
  %v6207 = vunpack.c.l.b16 %v3982
  %v6208 = vunpack.c.h.b16 %v3982
  %v6209 = vunpack.c.l.b16 %v3983
  %v6210 = vunpack.c.h.b16 %v3983
  %v6211 = vunpack.c.l.b16 %v3984
  %v6212 = vunpack.c.h.b16 %v3984
  %v6213 = vunpack.c.l.b16 %v3985
  %v6214 = vunpack.c.h.b16 %v3985
  %v6215 = vunpack.c.l.b16 %v3986
  %v6216 = vunpack.c.h.b16 %v3986
  %v6217 = vunpack.c.l.b16 %v3987
  %v6218 = vunpack.c.h.b16 %v3987
  %v6219 = vunpack.c.l.b16 %v3988
  %v6220 = vunpack.c.h.b16 %v3988
  %v6221 = vunpack.c.l.b16 %v3989
  %v6222 = vunpack.c.h.b16 %v3989
  %v6223 = vunpack.c.l.b16 %v3990
  %v6224 = vunpack.c.h.b16 %v3990
  %v6225 = vunpack.c.l.b16 %v3991
  %v6226 = vunpack.c.h.b16 %v3991
  %v6227 = vunpack.c.l.b16 %v3992
  %v6228 = vunpack.c.h.b16 %v3992
  %v6229 = vunpack.c.l.b16 %v3993
  %v6230 = vunpack.c.h.b16 %v3993
  %v6231 = vunpack.c.l.b16 %v3994
  %v6232 = vunpack.c.h.b16 %v3994
  %v6233 = vunpack.c.l.b16 %v3995
  %v6234 = vunpack.c.h.b16 %v3995
  %v6235 = vunpack.c.l.b16 %v3996
  %v6236 = vunpack.c.h.b16 %v3996
  %v6237 = vunpack.c.l.b16 %v3997
  %v6238 = vunpack.c.h.b16 %v3997
  %v6239 = vunpack.c.l.b16 %v3998
  %v6240 = vunpack.c.h.b16 %v3998
  %v6241 = vunpack.c.l.b16 %v3999
  %v6242 = vunpack.c.h.b16 %v3999
  %v6243 = vunpack.c.l.b16 %v4000
  %v6244 = vunpack.c.h.b16 %v4000
  %v6245 = vunpack.c.l.b16 %v4001
  %v6246 = vunpack.c.h.b16 %v4001
  %v6247 = vunpack.c.l.b16 %v4002
  %v6248 = vunpack.c.h.b16 %v4002
  %v6249 = vunpack.c.l.b16 %v4003
  %v6250 = vunpack.c.h.b16 %v4003
  %v6251 = vunpack.c.l.b16 %v4004
  %v6252 = vunpack.c.h.b16 %v4004
  %v6253 = vunpack.c.l.b16 %v4005
  %v6254 = vunpack.c.h.b16 %v4005
  %v6255 = vunpack.c.l.b16 %v4006
  %v6256 = vunpack.c.h.b16 %v4006
  %v6257 = vunpack.c.l.b16 %v4007
  %v6258 = vunpack.c.h.b16 %v4007
  %v6259 = vunpack.c.l.b16 %v4008
  %v6260 = vunpack.c.h.b16 %v4008
  %v6261 = vunpack.c.l.b16 %v4009
  %v6262 = vunpack.c.h.b16 %v4009
  %v6263 = vunpack.c.l.b16 %v4010
  %v6264 = vunpack.c.h.b16 %v4010
  %v6265 = vunpack.c.l.b16 %v4011
  %v6266 = vunpack.c.h.b16 %v4011
  %v6267 = vunpack.c.l.b16 %v4012
  %v6268 = vunpack.c.h.b16 %v4012
  %v6269 = vunpack.c.l.b16 %v4013
  %v6270 = vunpack.c.h.b16 %v4013
  %v6271 = vunpack.c.l.b16 %v4014
  %v6272 = vunpack.c.h.b16 %v4014
  %v6273 = vunpack.c.l.b16 %v4015
  %v6274 = vunpack.c.h.b16 %v4015
  %v6275 = vunpack.c.l.b16 %v4016
  %v6276 = vunpack.c.h.b16 %v4016
  %v6277 = vunpack.c.l.b16 %v4017
  %v6278 = vunpack.c.h.b16 %v4017
  %v6279 = vunpack.c.l.b16 %v4018
  %v6280 = vunpack.c.h.b16 %v4018
  %v6281 = vunpack.c.l.b16 %v4019
  %v6282 = vunpack.c.h.b16 %v4019
  %v6283 = vunpack.c.l.b16 %v4020
  %v6284 = vunpack.c.h.b16 %v4020
  %v6285 = vunpack.c.l.b16 %v4021
  %v6286 = vunpack.c.h.b16 %v4021
  %v6287 = vunpack.c.l.b16 %v4022
  %v6288 = vunpack.c.h.b16 %v4022
  %v6289 = vunpack.c.l.b16 %v4023
  %v6290 = vunpack.c.h.b16 %v4023
  %v6291 = vunpack.c.l.b16 %v4024
  %v6292 = vunpack.c.h.b16 %v4024
  %v6293 = vunpack.c.l.b16 %v4025
  %v6294 = vunpack.c.h.b16 %v4025
  %v6295 = vunpack.c.l.b16 %v4026
  %v6296 = vunpack.c.h.b16 %v4026
  %v6297 = vunpack.c.l.b16 %v4027
  %v6298 = vunpack.c.h.b16 %v4027
  %v6299 = vunpack.c.l.b16 %v4028
  %v6300 = vunpack.c.h.b16 %v4028
  %v6301 = vunpack.c.l.b16 %v4029
  %v6302 = vunpack.c.h.b16 %v4029
  %v6303 = vunpack.c.l.b16 %v4030
  %v6304 = vunpack.c.h.b16 %v4030
  %v6305 = vunpack.c.l.b16 %v4031
  %v6306 = vunpack.c.h.b16 %v4031
  %v6307 = vunpack.c.l.b16 %v4032
  %v6308 = vunpack.c.h.b16 %v4032
  %v6309 = vunpack.c.l.b16 %v4033
  %v6310 = vunpack.c.h.b16 %v4033
  %v6311 = vunpack.c.l.b16 %v4034
  %v6312 = vunpack.c.h.b16 %v4034
  %v6313 = vunpack.c.l.b16 %v4035
  %v6314 = vunpack.c.h.b16 %v4035
  %v6315 = vunpack.c.l.b16 %v4036
  %v6316 = vunpack.c.h.b16 %v4036
  %v6317 = vunpack.c.l.b16 %v4037
  %v6318 = vunpack.c.h.b16 %v4037
  %v6319 = vunpack.c.l.b16 %v4038
  %v6320 = vunpack.c.h.b16 %v4038
  %v6321 = vunpack.c.l.b16 %v4039
  %v6322 = vunpack.c.h.b16 %v4039
  %v6323 = vunpack.c.l.b16 %v4040
  %v6324 = vunpack.c.h.b16 %v4040
  %v6325 = vunpack.c.l.b16 %v4041
  %v6326 = vunpack.c.h.b16 %v4041
  %v6327 = vunpack.c.l.b16 %v4042
  %v6328 = vunpack.c.h.b16 %v4042
  %v6329 = vunpack.c.l.b16 %v4043
  %v6330 = vunpack.c.h.b16 %v4043
  %v6331 = vunpack.c.l.b16 %v4044
  %v6332 = vunpack.c.h.b16 %v4044
  %v6333 = vunpack.c.l.b16 %v4045
  %v6334 = vunpack.c.h.b16 %v4045
  %v6335 = vunpack.c.l.b16 %v4046
  %v6336 = vunpack.c.h.b16 %v4046
  %v6337 = vunpack.c.l.b16 %v4047
  %v6338 = vunpack.c.h.b16 %v4047
  %v6339 = vunpack.c.l.b16 %v4048
  %v6340 = vunpack.c.h.b16 %v4048
  %v6341 = vunpack.c.l.b16 %v4049
  %v6342 = vunpack.c.h.b16 %v4049
  %v6343 = vunpack.c.l.b16 %v4050
  %v6344 = vunpack.c.h.b16 %v4050
  %v6345 = vunpack.c.l.b16 %v4051
  %v6346 = vunpack.c.h.b16 %v4051
  %v6347 = vunpack.c.l.b16 %v4052
  %v6348 = vunpack.c.h.b16 %v4052
  %v6349 = vunpack.c.l.b16 %v4053
  %v6350 = vunpack.c.h.b16 %v4053
  %v6351 = vunpack.c.l.b16 %v4054
  %v6352 = vunpack.c.h.b16 %v4054
  %v6353 = vunpack.c.l.b16 %v4055
  %v6354 = vunpack.c.h.b16 %v4055
  %v6355 = vunpack.c.l.b16 %v4056
  %v6356 = vunpack.c.h.b16 %v4056
  %v6357 = vunpack.c.l.b16 %v4057
  %v6358 = vunpack.c.h.b16 %v4057
  %v6359 = vunpack.c.l.b16 %v4058
  %v6360 = vunpack.c.h.b16 %v4058
  %v6361 = vunpack.c.l.b16 %v4059
  %v6362 = vunpack.c.h.b16 %v4059
  %v6363 = vunpack.c.l.b16 %v4060
  %v6364 = vunpack.c.h.b16 %v4060
  %v6365 = vunpack.c.l.b16 %v4061
  %v6366 = vunpack.c.h.b16 %v4061
  %v6367 = vunpack.c.l.b16 %v4062
  %v6368 = vunpack.c.h.b16 %v4062
  %v6369 = vunpack.c.l.b16 %v4063
  %v6370 = vunpack.c.h.b16 %v4063
  %v6371 = vunpack.c.l.b16 %v4064
  %v6372 = vunpack.c.h.b16 %v4064
  %v6373 = vunpack.c.l.b16 %v4065
  %v6374 = vunpack.c.h.b16 %v4065
  %v6375 = vunpack.c.l.b16 %v4066
  %v6376 = vunpack.c.h.b16 %v4066
  %v6377 = vunpack.c.l.b16 %v4067
  %v6378 = vunpack.c.h.b16 %v4067
  %v6379 = vunpack.c.l.b16 %v4068
  %v6380 = vunpack.c.h.b16 %v4068
  %v6381 = vunpack.c.l.b16 %v4069
  %v6382 = vunpack.c.h.b16 %v4069
  %v6383 = vunpack.c.l.b16 %v4070
  %v6384 = vunpack.c.h.b16 %v4070
  %v6385 = vunpack.c.l.b16 %v4071
  %v6386 = vunpack.c.h.b16 %v4071
  %v6387 = vunpack.c.l.b16 %v4072
  %v6388 = vunpack.c.h.b16 %v4072
  %v6389 = vunpack.c.l.b16 %v4073
  %v6390 = vunpack.c.h.b16 %v4073
  %v6391 = vunpack.c.l.b16 %v4074
  %v6392 = vunpack.c.h.b16 %v4074
  %v6393 = vunpack.c.l.b16 %v4075
  %v6394 = vunpack.c.h.b16 %v4075
  %v6395 = vunpack.c.l.b16 %v4076
  %v6396 = vunpack.c.h.b16 %v4076
  %v6397 = vunpack.c.l.b16 %v4077
  %v6398 = vunpack.c.h.b16 %v4077
  %v6399 = vunpack.c.l.b16 %v4078
  %v6400 = vunpack.c.h.b16 %v4078
  %v6401 = vunpack.c.l.b16 %v4079
  %v6402 = vunpack.c.h.b16 %v4079
  %v6403 = vunpack.c.l.b16 %v4080
  %v6404 = vunpack.c.h.b16 %v4080
  %v6405 = vunpack.c.l.b16 %v4081
  %v6406 = vunpack.c.h.b16 %v4081
  %v6407 = vunpack.c.l.b16 %v4082
  %v6408 = vunpack.c.h.b16 %v4082
  %v6409 = vunpack.c.l.b16 %v4083
  %v6410 = vunpack.c.h.b16 %v4083
  %v6411 = vunpack.c.l.b16 %v4084
  %v6412 = vunpack.c.h.b16 %v4084
  %v6413 = vunpack.c.l.b16 %v4085
  %v6414 = vunpack.c.h.b16 %v4085
  %v6415 = vunpack.c.l.b16 %v4086
  %v6416 = vunpack.c.h.b16 %v4086
  %v6417 = vunpack.c.l.b16 %v4087
  %v6418 = vunpack.c.h.b16 %v4087
  %v6419 = vunpack.c.l.b16 %v4088
  %v6420 = vunpack.c.h.b16 %v4088
  %v6421 = vunpack.c.l.b16 %v4089
  %v6422 = vunpack.c.h.b16 %v4089
  %v6423 = vunpack.c.l.b16 %v4090
  %v6424 = vunpack.c.h.b16 %v4090
  %v6425 = vunpack.c.l.b16 %v4091
  %v6426 = vunpack.c.h.b16 %v4091
  %v6427 = vunpack.c.l.b16 %v4092
  %v6428 = vunpack.c.h.b16 %v4092
  %v6429 = vunpack.c.l.b16 %v4093
  %v6430 = vunpack.c.h.b16 %v4093
  %v6431 = vunpack.c.l.b16 %v4094
  %v6432 = vunpack.c.h.b16 %v4094
  %v6433 = vunpack.c.l.b16 %v4095
  %v6434 = vunpack.c.h.b16 %v4095
  %v6435 = vunpack.c.l.b16 %v4096
  %v6436 = vunpack.c.h.b16 %v4096
  %v6437 = vunpack.c.l.b16 %v4097
  %v6438 = vunpack.c.h.b16 %v4097
  %v6439 = vunpack.c.l.b16 %v4098
  %v6440 = vunpack.c.h.b16 %v4098
  %v6441 = vunpack.c.l.b16 %v4099
  %v6442 = vunpack.c.h.b16 %v4099
  %v6443 = vunpack.c.l.b16 %v4100
  %v6444 = vunpack.c.h.b16 %v4100
  %v6445 = vunpack.c.l.b16 %v4101
  %v6446 = vunpack.c.h.b16 %v4101
  %v6447 = vunpack.c.l.b16 %v4102
  %v6448 = vunpack.c.h.b16 %v4102
  %v6449 = vunpack.c.l.b16 %v4103
  %v6450 = vunpack.c.h.b16 %v4103
  %v6451 = vunpack.c.l.b16 %v4104
  %v6452 = vunpack.c.h.b16 %v4104
  %v6453 = vunpack.c.l.b16 %v4105
  %v6454 = vunpack.c.h.b16 %v4105
  %v6455 = vunpack.c.l.b16 %v4106
  %v6456 = vunpack.c.h.b16 %v4106
  %v6457 = vunpack.c.l.b16 %v4107
  %v6458 = vunpack.c.h.b16 %v4107
  %v6459 = vunpack.c.l.b16 %v4108
  %v6460 = vunpack.c.h.b16 %v4108
  %v6461 = vunpack.c.l.b16 %v4109
  %v6462 = vunpack.c.h.b16 %v4109
  %v6463 = vunpack.c.l.b16 %v4110
  %v6464 = vunpack.c.h.b16 %v4110
  %v6465 = vunpack.c.l.b16 %v4111
  %v6466 = vunpack.c.h.b16 %v4111
  %v6467 = vunpack.c.l.b16 %v4112
  %v6468 = vunpack.c.h.b16 %v4112
  %v6469 = vunpack.c.l.b16 %v4113
  %v6470 = vunpack.c.h.b16 %v4113
  %v6471 = vunpack.c.l.b16 %v4114
  %v6472 = vunpack.c.h.b16 %v4114
  %v6473 = vunpack.c.l.b16 %v4115
  %v6474 = vunpack.c.h.b16 %v4115
  %v6475 = vunpack.c.l.b16 %v4116
  %v6476 = vunpack.c.h.b16 %v4116
  %v6477 = vunpack.c.l.b16 %v4117
  %v6478 = vunpack.c.h.b16 %v4117
  %v6479 = vunpack.c.l.b16 %v4118
  %v6480 = vunpack.c.h.b16 %v4118
  %v6481 = vunpack.c.l.b16 %v4119
  %v6482 = vunpack.c.h.b16 %v4119
  %v6483 = vunpack.c.l.b16 %v4120
  %v6484 = vunpack.c.h.b16 %v4120
  %v6485 = vunpack.c.l.b16 %v4121
  %v6486 = vunpack.c.h.b16 %v4121
  %v6487 = vunpack.c.l.b16 %v4122
  %v6488 = vunpack.c.h.b16 %v4122
  %v6489 = vunpack.c.l.b16 %v4123
  %v6490 = vunpack.c.h.b16 %v4123
  %v6491 = vunpack.c.l.b16 %v4124
  %v6492 = vunpack.c.h.b16 %v4124
  %v6493 = vunpack.c.l.b16 %v4125
  %v6494 = vunpack.c.h.b16 %v4125
  %v6495 = vunpack.c.l.b16 %v4126
  %v6496 = vunpack.c.h.b16 %v4126
  %v6497 = vunpack.c.l.b16 %v4127
  %v6498 = vunpack.c.h.b16 %v4127
  %v6499 = vunpack.c.l.b16 %v4128
  %v6500 = vunpack.c.h.b16 %v4128
  %v6501 = vunpack.c.l.b16 %v4129
  %v6502 = vunpack.c.h.b16 %v4129
  %v6503 = vunpack.c.l.b16 %v4130
  %v6504 = vunpack.c.h.b16 %v4130
  %v6505 = vunpack.c.l.b16 %v4131
  %v6506 = vunpack.c.h.b16 %v4131
  %v6507 = vunpack.c.l.b16 %v4132
  %v6508 = vunpack.c.h.b16 %v4132
  %v6509 = vunpack.c.l.b16 %v4133
  %v6510 = vunpack.c.h.b16 %v4133
  %v6511 = vunpack.c.l.b16 %v4134
  %v6512 = vunpack.c.h.b16 %v4134
  %v6513 = vunpack.c.l.b16 %v4135
  %v6514 = vunpack.c.h.b16 %v4135
  %v6515 = vunpack.c.l.b16 %v4136
  %v6516 = vunpack.c.h.b16 %v4136
  %v6517 = vunpack.c.l.b16 %v4137
  %v6518 = vunpack.c.h.b16 %v4137
  %v6519 = vunpack.c.l.b16 %v4138
  %v6520 = vunpack.c.h.b16 %v4138
  %v6521 = vunpack.c.l.b16 %v4139
  %v6522 = vunpack.c.h.b16 %v4139
  %v6523 = vunpack.c.l.b16 %v4140
  %v6524 = vunpack.c.h.b16 %v4140
  %v6525 = vunpack.c.l.b16 %v4141
  %v6526 = vunpack.c.h.b16 %v4141
  %v6527 = vunpack.c.l.b16 %v4142
  %v6528 = vunpack.c.h.b16 %v4142
  %v6529 = vunpack.c.l.b16 %v4143
  %v6530 = vunpack.c.h.b16 %v4143
  %v6531 = vunpack.c.l.b16 %v4144
  %v6532 = vunpack.c.h.b16 %v4144
  %v6533 = vunpack.c.l.b16 %v4145
  %v6534 = vunpack.c.h.b16 %v4145
  %v6535 = vunpack.c.l.b16 %v4146
  %v6536 = vunpack.c.h.b16 %v4146
  %v6537 = vunpack.c.l.b16 %v4147
  %v6538 = vunpack.c.h.b16 %v4147
  %v6539 = vunpack.c.l.b16 %v4148
  %v6540 = vunpack.c.h.b16 %v4148
  %v6541 = vunpack.c.l.b16 %v4149
  %v6542 = vunpack.c.h.b16 %v4149
  %v6543 = vunpack.c.l.b16 %v4150
  %v6544 = vunpack.c.h.b16 %v4150
  %v6545 = vunpack.c.l.b16 %v4151
  %v6546 = vunpack.c.h.b16 %v4151
  %v6547 = vunpack.c.l.b16 %v4152
  %v6548 = vunpack.c.h.b16 %v4152
  %v6549 = vunpack.c.l.b16 %v4153
  %v6550 = vunpack.c.h.b16 %v4153
  %v6551 = vunpack.c.l.b16 %v4154
  %v6552 = vunpack.c.h.b16 %v4154
  %v6553 = vunpack.c.l.b16 %v4155
  %v6554 = vunpack.c.h.b16 %v4155
  %v6555 = vunpack.c.l.b16 %v4156
  %v6556 = vunpack.c.h.b16 %v4156
  %v6557 = vunpack.c.l.b16 %v4157
  %v6558 = vunpack.c.h.b16 %v4157
  %v6559 = vunpack.c.l.b16 %v4158
  %v6560 = vunpack.c.h.b16 %v4158
  %v6561 = vunpack.c.l.b16 %v4159
  %v6562 = vunpack.c.h.b16 %v4159
  %v6563 = vunpack.c.l.b16 %v4160
  %v6564 = vunpack.c.h.b16 %v4160
  %v6565 = vunpack.c.l.b16 %v4161
  %v6566 = vunpack.c.h.b16 %v4161
  %v6567 = vunpack.c.l.b16 %v4162
  %v6568 = vunpack.c.h.b16 %v4162
  %v6569 = vunpack.c.l.b16 %v4163
  %v6570 = vunpack.c.h.b16 %v4163
  %v6571 = vunpack.c.l.b16 %v4164
  %v6572 = vunpack.c.h.b16 %v4164
  %v6573 = vunpack.c.l.b16 %v4165
  %v6574 = vunpack.c.h.b16 %v4165
  %v6575 = vunpack.c.l.b16 %v4166
  %v6576 = vunpack.c.h.b16 %v4166
  %v6577 = vunpack.c.l.b16 %v4167
  %v6578 = vunpack.c.h.b16 %v4167
  %v6579 = vunpack.c.l.b16 %v4168
  %v6580 = vunpack.c.h.b16 %v4168
  %v6581 = vunpack.c.l.b16 %v4169
  %v6582 = vunpack.c.h.b16 %v4169
  %v6583 = vunpack.c.l.b16 %v4170
  %v6584 = vunpack.c.h.b16 %v4170
  %v6585 = vunpack.c.l.b16 %v4171
  %v6586 = vunpack.c.h.b16 %v4171
  %v6587 = vunpack.c.l.b16 %v4172
  %v6588 = vunpack.c.h.b16 %v4172
  %v6589 = vunpack.c.l.b16 %v4173
  %v6590 = vunpack.c.h.b16 %v4173
  %v6591 = vunpack.c.l.b16 %v4174
  %v6592 = vunpack.c.h.b16 %v4174
  %v6593 = vunpack.c.l.b16 %v4175
  %v6594 = vunpack.c.h.b16 %v4175
  %v6595 = vunpack.c.l.b16 %v4176
  %v6596 = vunpack.c.h.b16 %v4176
  %v6597 = vunpack.c.l.b16 %v4177
  %v6598 = vunpack.c.h.b16 %v4177
  %v6599 = vunpack.c.l.b16 %v4178
  %v6600 = vunpack.c.h.b16 %v4178
  %v6601 = vunpack.c.l.b16 %v4179
  %v6602 = vunpack.c.h.b16 %v4179
  %v6603 = vunpack.c.l.b16 %v4180
  %v6604 = vunpack.c.h.b16 %v4180
  %v6605 = vunpack.c.l.b16 %v4181
  %v6606 = vunpack.c.h.b16 %v4181
  %v6607 = vunpack.c.l.b16 %v4182
  %v6608 = vunpack.c.h.b16 %v4182
  %v6609 = vunpack.c.l.b16 %v4183
  %v6610 = vunpack.c.h.b16 %v4183
  %v6611 = vunpack.c.l.b16 %v4184
  %v6612 = vunpack.c.h.b16 %v4184
  %v6613 = vunpack.c.l.b16 %v4185
  %v6614 = vunpack.c.h.b16 %v4185
  %v6615 = vunpack.c.l.b16 %v4186
  %v6616 = vunpack.c.h.b16 %v4186
  %v6617 = vunpack.c.l.b16 %v4187
  %v6618 = vunpack.c.h.b16 %v4187
  %v6619 = vunpack.c.l.b16 %v4188
  %v6620 = vunpack.c.h.b16 %v4188
  %v6621 = vunpack.c.l.b16 %v4189
  %v6622 = vunpack.c.h.b16 %v4189
  %v6623 = vunpack.c.l.b16 %v4190
  %v6624 = vunpack.c.h.b16 %v4190
  %v6625 = vunpack.c.l.b16 %v4191
  %v6626 = vunpack.c.h.b16 %v4191
  %v6627 = vunpack.c.l.b16 %v4192
  %v6628 = vunpack.c.h.b16 %v4192
  %v6629 = vunpack.c.l.b16 %v4193
  %v6630 = vunpack.c.h.b16 %v4193
  %v6631 = vunpack.c.l.b16 %v4194
  %v6632 = vunpack.c.h.b16 %v4194
  %v6633 = vunpack.c.l.b16 %v4195
  %v6634 = vunpack.c.h.b16 %v4195
  %v6635 = vunpack.c.l.b16 %v4196
  %v6636 = vunpack.c.h.b16 %v4196
  %v6637 = vunpack.c.l.b16 %v4197
  %v6638 = vunpack.c.h.b16 %v4197
  %v6639 = vunpack.c.l.b16 %v4198
  %v6640 = vunpack.c.h.b16 %v4198
  %v6641 = vunpack.c.l.b16 %v4199
  %v6642 = vunpack.c.h.b16 %v4199
  %v6643 = vunpack.c.l.b16 %v4200
  %v6644 = vunpack.c.h.b16 %v4200
  %v6645 = vunpack.c.l.b16 %v4201
  %v6646 = vunpack.c.h.b16 %v4201
  %v6647 = vunpack.c.l.b16 %v4202
  %v6648 = vunpack.c.h.b16 %v4202
  %v6649 = vunpack.c.l.b16 %v4203
  %v6650 = vunpack.c.h.b16 %v4203
  %v6651 = vunpack.c.l.b16 %v4204
  %v6652 = vunpack.c.h.b16 %v4204
  %v6653 = vunpack.c.l.b16 %v4205
  %v6654 = vunpack.c.h.b16 %v4205
  %v6655 = vunpack.c.l.b16 %v4206
  %v6656 = vunpack.c.h.b16 %v4206
  %v6657 = vunpack.c.l.b16 %v4207
  %v6658 = vunpack.c.h.b16 %v4207
  %v6659 = vunpack.c.l.b16 %v4208
  %v6660 = vunpack.c.h.b16 %v4208
  %v6661 = vunpack.c.l.b16 %v4209
  %v6662 = vunpack.c.h.b16 %v4209
  %v6663 = vunpack.c.l.b16 %v4210
  %v6664 = vunpack.c.h.b16 %v4210
  %v6665 = vunpack.c.l.b16 %v4211
  %v6666 = vunpack.c.h.b16 %v4211
  %v6667 = vunpack.c.l.b16 %v4212
  %v6668 = vunpack.c.h.b16 %v4212
  %v6669 = vunpack.c.l.b16 %v4213
  %v6670 = vunpack.c.h.b16 %v4213
  %v6671 = vunpack.c.l.b16 %v4214
  %v6672 = vunpack.c.h.b16 %v4214
  %v6673 = vunpack.c.l.b16 %v4215
  %v6674 = vunpack.c.h.b16 %v4215
  %v6675 = vunpack.c.l.b16 %v4216
  %v6676 = vunpack.c.h.b16 %v4216
  %v6677 = vunpack.c.l.b16 %v4217
  %v6678 = vunpack.c.h.b16 %v4217
  %v6679 = vunpack.c.l.b16 %v4218
  %v6680 = vunpack.c.h.b16 %v4218
  %v6681 = vunpack.c.l.b16 %v4219
  %v6682 = vunpack.c.h.b16 %v4219
  %v6683 = vunpack.c.l.b16 %v4220
  %v6684 = vunpack.c.h.b16 %v4220
  %v6685 = vunpack.c.l.b16 %v4221
  %v6686 = vunpack.c.h.b16 %v4221
  %v6687 = vunpack.c.l.b16 %v4222
  %v6688 = vunpack.c.h.b16 %v4222
  %v6689 = vunpack.c.l.b16 %v4223
  %v6690 = vunpack.c.h.b16 %v4223
  %v6691 = vunpack.c.l.b16 %v4224
  %v6692 = vunpack.c.h.b16 %v4224
  %v6693 = vunpack.c.l.b16 %v4225
  %v6694 = vunpack.c.h.b16 %v4225
  %v6695 = vunpack.c.l.b16 %v4226
  %v6696 = vunpack.c.h.b16 %v4226
  %v6697 = vunpack.c.l.b16 %v4227
  %v6698 = vunpack.c.h.b16 %v4227
  %v6699 = vunpack.c.l.b16 %v4228
  %v6700 = vunpack.c.h.b16 %v4228
  %v6701 = vunpack.c.l.b16 %v4229
  %v6702 = vunpack.c.h.b16 %v4229
  %v6703 = vunpack.c.l.b16 %v4230
  %v6704 = vunpack.c.h.b16 %v4230
  %v6705 = vunpack.c.l.b16 %v4231
  %v6706 = vunpack.c.h.b16 %v4231
  %v6707 = vunpack.c.l.b16 %v4232
  %v6708 = vunpack.c.h.b16 %v4232
  %v6709 = vunpack.c.l.b16 %v4233
  %v6710 = vunpack.c.h.b16 %v4233
  %v6711 = vunpack.c.l.b16 %v4234
  %v6712 = vunpack.c.h.b16 %v4234
  %v6713 = vunpack.c.l.b16 %v4235
  %v6714 = vunpack.c.h.b16 %v4235
  %v6715 = vunpack.c.l.b16 %v4236
  %v6716 = vunpack.c.h.b16 %v4236
  %v6717 = vunpack.c.l.b16 %v4237
  %v6718 = vunpack.c.h.b16 %v4237
  %v6719 = vunpack.c.l.b16 %v4238
  %v6720 = vunpack.c.h.b16 %v4238
  %v6721 = vunpack.c.l.b16 %v4239
  %v6722 = vunpack.c.h.b16 %v4239
  %v6723 = vunpack.c.l.b16 %v4240
  %v6724 = vunpack.c.h.b16 %v4240
  %v6725 = vunpack.c.l.b16 %v4241
  %v6726 = vunpack.c.h.b16 %v4241
  %v6727 = vunpack.c.l.b16 %v4242
  %v6728 = vunpack.c.h.b16 %v4242
  %v6729 = vunpack.c.l.b16 %v4243
  %v6730 = vunpack.c.h.b16 %v4243
  %v6731 = vunpack.c.l.b16 %v4244
  %v6732 = vunpack.c.h.b16 %v4244
  %v6733 = vunpack.c.l.b16 %v4245
  %v6734 = vunpack.c.h.b16 %v4245
  %v6735 = vunpack.c.l.b16 %v4246
  %v6736 = vunpack.c.h.b16 %v4246
  %v6737 = vunpack.c.l.b16 %v4247
  %v6738 = vunpack.c.h.b16 %v4247
  %v6739 = vunpack.c.l.b16 %v4248
  %v6740 = vunpack.c.h.b16 %v4248
  %v6741 = vunpack.c.l.b16 %v4249
  %v6742 = vunpack.c.h.b16 %v4249
  %v6743 = vunpack.c.l.b16 %v4250
  %v6744 = vunpack.c.h.b16 %v4250
  %v6745 = vunpack.c.l.b16 %v4251
  %v6746 = vunpack.c.h.b16 %v4251
  %v6747 = vunpack.c.l.b16 %v4252
  %v6748 = vunpack.c.h.b16 %v4252
  %v6749 = vunpack.c.l.b16 %v4253
  %v6750 = vunpack.c.h.b16 %v4253
  %v6751 = vunpack.c.l.b16 %v4254
  %v6752 = vunpack.c.h.b16 %v4254
  %v6753 = vunpack.c.l.b16 %v4255
  %v6754 = vunpack.c.h.b16 %v4255
  %v6755 = vunpack.c.l.b16 %v4256
  %v6756 = vunpack.c.h.b16 %v4256
  %v6757 = vunpack.c.l.b16 %v4257
  %v6758 = vunpack.c.h.b16 %v4257
  %v6759 = vunpack.c.l.b16 %v4258
  %v6760 = vunpack.c.h.b16 %v4258
  %v6761 = vunpack.c.l.b16 %v4259
  %v6762 = vunpack.c.h.b16 %v4259
  %v6763 = vunpack.c.l.b16 %v4260
  %v6764 = vunpack.c.h.b16 %v4260
  %v6765 = vunpack.c.l.b16 %v4261
  %v6766 = vunpack.c.h.b16 %v4261
  %v6767 = vunpack.c.l.b16 %v4262
  %v6768 = vunpack.c.h.b16 %v4262
  %v6769 = vunpack.c.l.b16 %v4263
  %v6770 = vunpack.c.h.b16 %v4263
  %v6771 = vunpack.c.l.b16 %v4264
  %v6772 = vunpack.c.h.b16 %v4264
  %v6773 = vunpack.c.l.b16 %v4265
  %v6774 = vunpack.c.h.b16 %v4265
  %v6775 = vunpack.c.l.b16 %v4266
  %v6776 = vunpack.c.h.b16 %v4266
  %v6777 = vunpack.c.l.b16 %v4267
  %v6778 = vunpack.c.h.b16 %v4267
  %v6779 = vunpack.c.l.b16 %v4268
  %v6780 = vunpack.c.h.b16 %v4268
  %v6781 = vunpack.c.l.b16 %v4269
  %v6782 = vunpack.c.h.b16 %v4269
  %v6783 = vunpack.c.l.b16 %v4270
  %v6784 = vunpack.c.h.b16 %v4270
  %v6785 = vunpack.c.l.b16 %v4271
  %v6786 = vunpack.c.h.b16 %v4271
  %v6787 = vunpack.c.l.b16 %v4272
  %v6788 = vunpack.c.h.b16 %v4272
  %v6789 = vunpack.c.l.b16 %v4273
  %v6790 = vunpack.c.h.b16 %v4273
  %v6791 = vunpack.c.l.b16 %v4274
  %v6792 = vunpack.c.h.b16 %v4274
  %v6793 = vunpack.c.l.b16 %v4275
  %v6794 = vunpack.c.h.b16 %v4275
  %v6795 = vunpack.c.l.b16 %v4276
  %v6796 = vunpack.c.h.b16 %v4276
  %v6797 = vunpack.c.l.b16 %v4277
  %v6798 = vunpack.c.h.b16 %v4277
  %v6799 = vunpack.c.l.b16 %v4278
  %v6800 = vunpack.c.h.b16 %v4278
  %v6801 = vunpack.c.l.b16 %v4279
  %v6802 = vunpack.c.h.b16 %v4279
  %v6803 = vunpack.c.l.b16 %v4280
  %v6804 = vunpack.c.h.b16 %v4280
  %v6805 = vunpack.c.l.b16 %v4281
  %v6806 = vunpack.c.h.b16 %v4281
  %v6807 = vunpack.c.l.b16 %v4282
  %v6808 = vunpack.c.h.b16 %v4282
  %v6809 = vunpack.c.l.b16 %v4283
  %v6810 = vunpack.c.h.b16 %v4283
  %v6811 = vunpack.c.l.b16 %v4284
  %v6812 = vunpack.c.h.b16 %v4284
  %v6813 = vunpack.c.l.b16 %v4285
  %v6814 = vunpack.c.h.b16 %v4285
  %v6815 = vunpack.c.l.b16 %v4286
  %v6816 = vunpack.c.h.b16 %v4286
  %v6817 = vunpack.c.l.b16 %v4287
  %v6818 = vunpack.c.h.b16 %v4287
  %v6819 = vunpack.c.l.b16 %v4288
  %v6820 = vunpack.c.h.b16 %v4288
  %v6821 = vunpack.c.l.b16 %v4289
  %v6822 = vunpack.c.h.b16 %v4289
  %v6823 = vunpack.c.l.b16 %v4290
  %v6824 = vunpack.c.h.b16 %v4290
  %v6825 = vunpack.c.l.b16 %v4291
  %v6826 = vunpack.c.h.b16 %v4291
  %v6827 = vunpack.c.l.b16 %v4292
  %v6828 = vunpack.c.h.b16 %v4292
  %v6829 = vunpack.c.l.b16 %v4293
  %v6830 = vunpack.c.h.b16 %v4293
  %v6831 = vunpack.c.l.b16 %v4294
  %v6832 = vunpack.c.h.b16 %v4294
  %v6833 = vunpack.c.l.b16 %v4295
  %v6834 = vunpack.c.h.b16 %v4295
  %v6835 = vunpack.c.l.b16 %v4296
  %v6836 = vunpack.c.h.b16 %v4296
  %v6837 = vunpack.c.l.b16 %v4297
  %v6838 = vunpack.c.h.b16 %v4297
  %v6839 = vunpack.c.l.b16 %v4298
  %v6840 = vunpack.c.h.b16 %v4298
  %v6841 = vunpack.c.l.b16 %v4299
  %v6842 = vunpack.c.h.b16 %v4299
  %v6843 = vunpack.c.l.b16 %v4300
  %v6844 = vunpack.c.h.b16 %v4300
  %v6845 = vunpack.c.l.b16 %v4301
  %v6846 = vunpack.c.h.b16 %v4301
  %v6847 = vunpack.c.l.b16 %v4302
  %v6848 = vunpack.c.h.b16 %v4302
  %v6849 = vunpack.c.l.b16 %v4303
  %v6850 = vunpack.c.h.b16 %v4303
  %v6851 = vunpack.c.l.b16 %v4304
  %v6852 = vunpack.c.h.b16 %v4304
  %v6853 = vunpack.c.l.b16 %v4305
  %v6854 = vunpack.c.h.b16 %v4305
  %v6855 = vunpack.c.l.b16 %v4306
  %v6856 = vunpack.c.h.b16 %v4306
  %v6857 = vunpack.c.l.b16 %v4307
  %v6858 = vunpack.c.h.b16 %v4307
  %v6859 = vunpack.c.l.b16 %v4308
  %v6860 = vunpack.c.h.b16 %v4308
  %v6861 = vunpack.c.l.b16 %v4309
  %v6862 = vunpack.c.h.b16 %v4309
  %v6863 = vunpack.c.l.b16 %v4310
  %v6864 = vunpack.c.h.b16 %v4310
  %v6865 = vunpack.c.l.b16 %v4311
  %v6866 = vunpack.c.h.b16 %v4311
  %v6867 = vunpack.c.l.b16 %v4312
  %v6868 = vunpack.c.h.b16 %v4312
  %v6869 = vunpack.c.l.b16 %v4313
  %v6870 = vunpack.c.h.b16 %v4313
  %v6871 = vunpack.c.l.b16 %v4314
  %v6872 = vunpack.c.h.b16 %v4314
  %v6873 = vunpack.c.l.b16 %v4315
  %v6874 = vunpack.c.h.b16 %v4315
  %v6875 = vunpack.c.l.b16 %v4316
  %v6876 = vunpack.c.h.b16 %v4316
  %v6877 = vunpack.c.l.b16 %v4317
  %v6878 = vunpack.c.h.b16 %v4317
  %v6879 = vunpack.c.l.b16 %v4318
  %v6880 = vunpack.c.h.b16 %v4318
  %v6881 = vunpack.c.l.b16 %v4319
  %v6882 = vunpack.c.h.b16 %v4319
  %v6883 = vunpack.c.l.b16 %v4320
  %v6884 = vunpack.c.h.b16 %v4320
  %v6885 = vunpack.c.l.b16 %v4321
  %v6886 = vunpack.c.h.b16 %v4321
  %v6887 = vunpack.c.l.b16 %v4322
  %v6888 = vunpack.c.h.b16 %v4322
  %v6889 = vunpack.c.l.b16 %v4323
  %v6890 = vunpack.c.h.b16 %v4323
  %v6891 = vunpack.c.l.b16 %v4324
  %v6892 = vunpack.c.h.b16 %v4324
  %v6893 = vunpack.c.l.b16 %v4325
  %v6894 = vunpack.c.h.b16 %v4325
  %v6895 = vunpack.c.l.b16 %v4326
  %v6896 = vunpack.c.h.b16 %v4326
  %v6897 = vunpack.c.l.b16 %v4327
  %v6898 = vunpack.c.h.b16 %v4327
  %v6899 = vunpack.c.l.b16 %v4328
  %v6900 = vunpack.c.h.b16 %v4328
  %v6901 = vunpack.c.l.b16 %v4329
  %v6902 = vunpack.c.h.b16 %v4329
  %v6903 = vunpack.c.l.b16 %v4330
  %v6904 = vunpack.c.h.b16 %v4330
  %v6905 = vunpack.c.l.b16 %v4331
  %v6906 = vunpack.c.h.b16 %v4331
  %v6907 = vunpack.c.l.b16 %v4332
  %v6908 = vunpack.c.h.b16 %v4332
  %v6909 = vunpack.c.l.b16 %v4333
  %v6910 = vunpack.c.h.b16 %v4333
  %v6911 = vunpack.c.l.b16 %v4334
  %v6912 = vunpack.c.h.b16 %v4334
  %v6913 = vunpack.c.l.b16 %v4335
  %v6914 = vunpack.c.h.b16 %v4335
  %v6915 = vunpack.c.l.b16 %v4336
  %v6916 = vunpack.c.h.b16 %v4336
  %v6917 = vunpack.c.l.b16 %v4337
  %v6918 = vunpack.c.h.b16 %v4337
  %v6919 = vunpack.c.l.b16 %v4338
  %v6920 = vunpack.c.h.b16 %v4338
  %v6921 = vunpack.c.l.b16 %v4339
  %v6922 = vunpack.c.h.b16 %v4339
  %v6923 = vunpack.c.l.b16 %v4340
  %v6924 = vunpack.c.h.b16 %v4340
  %v6925 = vunpack.c.l.b16 %v4341
  %v6926 = vunpack.c.h.b16 %v4341
  %v6927 = vunpack.c.l.b16 %v4342
  %v6928 = vunpack.c.h.b16 %v4342
  %v6929 = vunpack.c.l.b16 %v4343
  %v6930 = vunpack.c.h.b16 %v4343
  %v6931 = vunpack.c.l.b16 %v4344
  %v6932 = vunpack.c.h.b16 %v4344
  %v6933 = vunpack.c.l.b16 %v4345
  %v6934 = vunpack.c.h.b16 %v4345
  %v6935 = vunpack.c.l.b16 %v4346
  %v6936 = vunpack.c.h.b16 %v4346
  %v6937 = vunpack.c.l.b16 %v4347
  %v6938 = vunpack.c.h.b16 %v4347
  %v6939 = vunpack.c.l.b16 %v4348
  %v6940 = vunpack.c.h.b16 %v4348
  %v6941 = vunpack.c.l.b16 %v4349
  %v6942 = vunpack.c.h.b16 %v4349
  %v6943 = vunpack.c.l.b16 %v4350
  %v6944 = vunpack.c.h.b16 %v4350
  %v6945 = vunpack.c.l.b16 %v4351
  %v6946 = vunpack.c.h.b16 %v4351
  %v6947 = vunpack.c.l.b16 %v4352
  %v6948 = vunpack.c.h.b16 %v4352
  %v6949 = vunpack.c.l.b16 %v4353
  %v6950 = vunpack.c.h.b16 %v4353
  %v6951 = vunpack.c.l.b16 %v4354
  %v6952 = vunpack.c.h.b16 %v4354
  %v6953 = vunpack.c.l.b16 %v4355
  %v6954 = vunpack.c.h.b16 %v4355
  %v6955 = vunpack.c.l.b16 %v4356
  %v6956 = vunpack.c.h.b16 %v4356
  %v6957 = vunpack.c.l.b16 %v4357
  %v6958 = vunpack.c.h.b16 %v4357
  %v6959 = vunpack.c.l.b16 %v4358
  %v6960 = vunpack.c.h.b16 %v4358
  %v6961 = vunpack.c.l.b16 %v4359
  %v6962 = vunpack.c.h.b16 %v4359
  %v6963 = vunpack.c.l.b16 %v4360
  %v6964 = vunpack.c.h.b16 %v4360
  %v6965 = vunpack.c.l.b16 %v4361
  %v6966 = vunpack.c.h.b16 %v4361
  %v6967 = vunpack.c.l.b16 %v4362
  %v6968 = vunpack.c.h.b16 %v4362
  %v6969 = vunpack.c.l.b16 %v4363
  %v6970 = vunpack.c.h.b16 %v4363
  %v6971 = vunpack.c.l.b16 %v4364
  %v6972 = vunpack.c.h.b16 %v4364
  %v6973 = vunpack.c.l.b16 %v4365
  %v6974 = vunpack.c.h.b16 %v4365
  %v6975 = vunpack.c.l.b16 %v4366
  %v6976 = vunpack.c.h.b16 %v4366
  %v6977 = vunpack.c.l.b16 %v4367
  %v6978 = vunpack.c.h.b16 %v4367
  %v6979 = vunpack.c.l.b16 %v4368
  %v6980 = vunpack.c.h.b16 %v4368
  %v6981 = vunpack.c.l.b16 %v4369
  %v6982 = vunpack.c.h.b16 %v4369
  %v6983 = vunpack.c.l.b16 %v4370
  %v6984 = vunpack.c.h.b16 %v4370
  %v6985 = vunpack.c.l.b16 %v4371
  %v6986 = vunpack.c.h.b16 %v4371
  %v6987 = vunpack.c.l.b16 %v4372
  %v6988 = vunpack.c.h.b16 %v4372
  %v6989 = vunpack.c.l.b16 %v4373
  %v6990 = vunpack.c.h.b16 %v4373
  %v6991 = vunpack.c.l.b16 %v4374
  %v6992 = vunpack.c.h.b16 %v4374
  %v6993 = vunpack.c.l.b16 %v4375
  %v6994 = vunpack.c.h.b16 %v4375
  %v6995 = vunpack.c.l.b16 %v4376
  %v6996 = vunpack.c.h.b16 %v4376
  %v6997 = vunpack.c.l.b16 %v4377
  %v6998 = vunpack.c.h.b16 %v4377
  %v6999 = vunpack.c.l.b16 %v4378
  %v7000 = vunpack.c.h.b16 %v4378
  %v7001 = vunpack.c.l.b16 %v4379
  %v7002 = vunpack.c.h.b16 %v4379
  %v7003 = vunpack.c.l.b16 %v4380
  %v7004 = vunpack.c.h.b16 %v4380
  %v7005 = vunpack.c.l.b16 %v4381
  %v7006 = vunpack.c.h.b16 %v4381
  %v7007 = vunpack.c.l.b16 %v4382
  %v7008 = vunpack.c.h.b16 %v4382
  %v7009 = vunpack.c.l.b16 %v4383
  %v7010 = vunpack.c.h.b16 %v4383
  %v7011 = vunpack.c.l.b16 %v4384
  %v7012 = vunpack.c.h.b16 %v4384
  %v7013 = vunpack.c.l.b16 %v4385
  %v7014 = vunpack.c.h.b16 %v4385
  %v7015 = vunpack.c.l.b16 %v4386
  %v7016 = vunpack.c.h.b16 %v4386
  %v7017 = vunpack.c.l.b16 %v4387
  %v7018 = vunpack.c.h.b16 %v4387
  %v7019 = vunpack.c.l.b16 %v4388
  %v7020 = vunpack.c.h.b16 %v4388
  %v7021 = vunpack.c.l.b16 %v4389
  %v7022 = vunpack.c.h.b16 %v4389
  %v7023 = vunpack.c.l.b16 %v4390
  %v7024 = vunpack.c.h.b16 %v4390
  %v7025 = vunpack.c.l.b16 %v4391
  %v7026 = vunpack.c.h.b16 %v4391
  %v7027 = vunpack.c.l.b16 %v4392
  %v7028 = vunpack.c.h.b16 %v4392
  %v7029 = vunpack.c.l.b16 %v4393
  %v7030 = vunpack.c.h.b16 %v4393
  %v7031 = vunpack.c.l.b16 %v4394
  %v7032 = vunpack.c.h.b16 %v4394
  %v7033 = vunpack.c.l.b16 %v4395
  %v7034 = vunpack.c.h.b16 %v4395
  %v7035 = vunpack.c.l.b16 %v4396
  %v7036 = vunpack.c.h.b16 %v4396
  %v7037 = vunpack.c.l.b16 %v4397
  %v7038 = vunpack.c.h.b16 %v4397
  %v7039 = vunpack.c.l.b16 %v4398
  %v7040 = vunpack.c.h.b16 %v4398
  %v7041 = vunpack.c.l.b16 %v4399
  %v7042 = vunpack.c.h.b16 %v4399
  %v7043 = vunpack.c.l.b16 %v4400
  %v7044 = vunpack.c.h.b16 %v4400
  %v7045 = vunpack.c.l.b16 %v4401
  %v7046 = vunpack.c.h.b16 %v4401
  %v7047 = vunpack.c.l.b16 %v4402
  %v7048 = vunpack.c.h.b16 %v4402
  %v7049 = vunpack.c.l.b16 %v4403
  %v7050 = vunpack.c.h.b16 %v4403
  %v7051 = vunpack.c.l.b16 %v4404
  %v7052 = vunpack.c.h.b16 %v4404
  %v7053 = vunpack.c.l.b16 %v4405
  %v7054 = vunpack.c.h.b16 %v4405
  %v7055 = vunpack.c.l.b16 %v4406
  %v7056 = vunpack.c.h.b16 %v4406
  %v7057 = vunpack.c.l.b16 %v4407
  %v7058 = vunpack.c.h.b16 %v4407
  %v7059 = vunpack.c.l.b16 %v4408
  %v7060 = vunpack.c.h.b16 %v4408
  %v7061 = vunpack.c.l.b16 %v4409
  %v7062 = vunpack.c.h.b16 %v4409
  %v7063 = vunpack.c.l.b16 %v4410
  %v7064 = vunpack.c.h.b16 %v4410
  %v7065 = vunpack.c.l.b16 %v4411
  %v7066 = vunpack.c.h.b16 %v4411
  %v7067 = vunpack.c.l.b16 %v4412
  %v7068 = vunpack.c.h.b16 %v4412
  %v7069 = vunpack.c.l.b16 %v4413
  %v7070 = vunpack.c.h.b16 %v4413
  %v7071 = vunpack.c.l.b16 %v4414
  %v7072 = vunpack.c.h.b16 %v4414
  %v7073 = vunpack.c.l.b16 %v4415
  %v7074 = vunpack.c.h.b16 %v4415
  %v7075 = vunpack.c.l.b16 %v4416
  %v7076 = vunpack.c.h.b16 %v4416
  %v7077 = vunpack.c.l.b16 %v4417
  %v7078 = vunpack.c.h.b16 %v4417
  %v7079 = vunpack.c.l.b16 %v4418
  %v7080 = vunpack.c.h.b16 %v4418
  %v7081 = vunpack.c.l.b16 %v4419
  %v7082 = vunpack.c.h.b16 %v4419
  %v7083 = vunpack.c.l.b16 %v4420
  %v7084 = vunpack.c.h.b16 %v4420
  %v7085 = vunpack.c.l.b16 %v4421
  %v7086 = vunpack.c.h.b16 %v4421
  %v7087 = vunpack.c.l.b16 %v4422
  %v7088 = vunpack.c.h.b16 %v4422
  %v7089 = vunpack.c.l.b16 %v4423
  %v7090 = vunpack.c.h.b16 %v4423
  %v7091 = vunpack.c.l.b16 %v4424
  %v7092 = vunpack.c.h.b16 %v4424
  %v7093 = vunpack.c.l.b16 %v4425
  %v7094 = vunpack.c.h.b16 %v4425
  %v7095 = vunpack.c.l.b16 %v4426
  %v7096 = vunpack.c.h.b16 %v4426
  %v7097 = vunpack.c.l.b16 %v4427
  %v7098 = vunpack.c.h.b16 %v4427
  %v7099 = vunpack.c.l.b16 %v4428
  %v7100 = vunpack.c.h.b16 %v4428
  %v7101 = vunpack.c.l.b16 %v4429
  %v7102 = vunpack.c.h.b16 %v4429
  %v7103 = vunpack.c.l.b16 %v4430
  %v7104 = vunpack.c.h.b16 %v4430
  %v7105 = vunpack.c.l.b16 %v4431
  %v7106 = vunpack.c.h.b16 %v4431
  %v7107 = vunpack.c.l.b16 %v4432
  %v7108 = vunpack.c.h.b16 %v4432
  %v7109 = vunpack.c.l.b16 %v4433
  %v7110 = vunpack.c.h.b16 %v4433
  %v7111 = vunpack.c.l.b16 %v4434
  %v7112 = vunpack.c.h.b16 %v4434
  %v7113 = vunpack.c.l.b16 %v4435
  %v7114 = vunpack.c.h.b16 %v4435
  %v7115 = vunpack.c.l.b16 %v4436
  %v7116 = vunpack.c.h.b16 %v4436
  %v7117 = vunpack.c.l.b16 %v4437
  %v7118 = vunpack.c.h.b16 %v4437
  %v7119 = vunpack.c.l.b16 %v4438
  %v7120 = vunpack.c.h.b16 %v4438
  %v7121 = vunpack.c.l.b16 %v4439
  %v7122 = vunpack.c.h.b16 %v4439
  %v7123 = vunpack.c.l.b16 %v4440
  %v7124 = vunpack.c.h.b16 %v4440
  %v7125 = vunpack.c.l.b16 %v4441
  %v7126 = vunpack.c.h.b16 %v4441
  %v7127 = vunpack.c.l.b16 %v4442
  %v7128 = vunpack.c.h.b16 %v4442
  %v7129 = vunpack.c.l.b16 %v4443
  %v7130 = vunpack.c.h.b16 %v4443
  %v7131 = vunpack.c.l.b16 %v4444
  %v7132 = vunpack.c.h.b16 %v4444
  %v7133 = vunpack.c.l.b16 %v4445
  %v7134 = vunpack.c.h.b16 %v4445
  %v7135 = vunpack.c.l.b16 %v4446
  %v7136 = vunpack.c.h.b16 %v4446
  %v7137 = vunpack.c.l.b16 %v4447
  %v7138 = vunpack.c.h.b16 %v4447
  %v7139 = vunpack.c.l.b16 %v4448
  %v7140 = vunpack.c.h.b16 %v4448
  %v7141 = vunpack.c.l.b16 %v4449
  %v7142 = vunpack.c.h.b16 %v4449
  %v7143 = vunpack.c.l.b16 %v4450
  %v7144 = vunpack.c.h.b16 %v4450
  %v7145 = vunpack.c.l.b16 %v4451
  %v7146 = vunpack.c.h.b16 %v4451
  %v7147 = vunpack.c.l.b16 %v4452
  %v7148 = vunpack.c.h.b16 %v4452
  %v7149 = vunpack.c.l.b16 %v4453
  %v7150 = vunpack.c.h.b16 %v4453
  %v7151 = vunpack.c.l.b16 %v4454
  %v7152 = vunpack.c.h.b16 %v4454
  %v7153 = vunpack.c.l.b16 %v4455
  %v7154 = vunpack.c.h.b16 %v4455
  %v7155 = vunpack.c.l.b16 %v4456
  %v7156 = vunpack.c.h.b16 %v4456
  %v7157 = vunpack.c.l.b16 %v4457
  %v7158 = vunpack.c.h.b16 %v4457
  %v7159 = vunpack.c.l.b16 %v4458
  %v7160 = vunpack.c.h.b16 %v4458
  %v7161 = vunpack.c.l.b16 %v4459
  %v7162 = vunpack.c.h.b16 %v4459
  %v7163 = vunpack.c.l.b16 %v4460
  %v7164 = vunpack.c.h.b16 %v4460
  %v7165 = vunpack.c.l.b16 %v4461
  %v7166 = vunpack.c.h.b16 %v4461
  %v7167 = vunpack.c.l.b16 %v4462
  %v7168 = vunpack.c.h.b16 %v4462
  %v7169 = vunpack.c.l.b16 %v4463
  %v7170 = vunpack.c.h.b16 %v4463
  %v7171 = vunpack.c.l.b16 %v4464
  %v7172 = vunpack.c.h.b16 %v4464
  %v7173 = vunpack.c.l.b16 %v4465
  %v7174 = vunpack.c.h.b16 %v4465
  %v7175 = vunpack.c.l.b16 %v4466
  %v7176 = vunpack.c.h.b16 %v4466
  %v7177 = vunpack.c.l.b16 %v4467
  %v7178 = vunpack.c.h.b16 %v4467
  %v7179 = vunpack.c.l.b16 %v4468
  %v7180 = vunpack.c.h.b16 %v4468
  %v7181 = vunpack.c.l.b16 %v4469
  %v7182 = vunpack.c.h.b16 %v4469
  %v7183 = vunpack.c.l.b16 %v4470
  %v7184 = vunpack.c.h.b16 %v4470
  %v7185 = vunpack.c.l.b16 %v4471
  %v7186 = vunpack.c.h.b16 %v4471
  %v7187 = vunpack.c.l.b16 %v4472
  %v7188 = vunpack.c.h.b16 %v4472
  %v7189 = vunpack.c.l.b16 %v4473
  %v7190 = vunpack.c.h.b16 %v4473
  %v7191 = vunpack.c.l.b16 %v4474
  %v7192 = vunpack.c.h.b16 %v4474
  %v7193 = vunpack.c.l.b16 %v4475
  %v7194 = vunpack.c.h.b16 %v4475
  %v7195 = vunpack.c.l.b16 %v4476
  %v7196 = vunpack.c.h.b16 %v4476
  %v7197 = vunpack.c.l.b16 %v4477
  %v7198 = vunpack.c.h.b16 %v4477
  %v7199 = vunpack.c.l.b16 %v4478
  %v7200 = vunpack.c.h.b16 %v4478
  %v7201 = vunpack.c.l.b16 %v4479
  %v7202 = vunpack.c.h.b16 %v4479
  %v7203 = vunpack.c.l.b16 %v4480
  %v7204 = vunpack.c.h.b16 %v4480
  %v7205 = vunpack.c.l.b16 %v4481
  %v7206 = vunpack.c.h.b16 %v4481
  %v7207 = vunpack.c.l.b16 %v4482
  %v7208 = vunpack.c.h.b16 %v4482
  %v7209 = vunpack.c.l.b16 %v4483
  %v7210 = vunpack.c.h.b16 %v4483
  %v7211 = vunpack.c.l.b16 %v4484
  %v7212 = vunpack.c.h.b16 %v4484
  %v7213 = vunpack.c.l.b16 %v4485
  %v7214 = vunpack.c.h.b16 %v4485
  %v7215 = vunpack.c.l.b16 %v4486
  %v7216 = vunpack.c.h.b16 %v4486
  %v7217 = vunpack.c.l.b16 %v4487
  %v7218 = vunpack.c.h.b16 %v4487
  %v7219 = vunpack.c.l.b16 %v4488
  %v7220 = vunpack.c.h.b16 %v4488
  %v7221 = vunpack.c.l.b16 %v4489
  %v7222 = vunpack.c.h.b16 %v4489
  %v7223 = vunpack.c.l.b16 %v4490
  %v7224 = vunpack.c.h.b16 %v4490
  %v7225 = vunpack.c.l.b16 %v4491
  %v7226 = vunpack.c.h.b16 %v4491
  %v7227 = vunpack.c.l.b16 %v4492
  %v7228 = vunpack.c.h.b16 %v4492
  %v7229 = vunpack.c.l.b16 %v4493
  %v7230 = vunpack.c.h.b16 %v4493
  %v7231 = vunpack.c.l.b16 %v4494
  %v7232 = vunpack.c.h.b16 %v4494
  %v7233 = vunpack.c.l.b16 %v4495
  %v7234 = vunpack.c.h.b16 %v4495
  %v7235 = vunpack.c.l.b16 %v4496
  %v7236 = vunpack.c.h.b16 %v4496
  %v7237 = vunpack.c.l.b16 %v4497
  %v7238 = vunpack.c.h.b16 %v4497
  %v7239 = vunpack.c.l.b16 %v4498
  %v7240 = vunpack.c.h.b16 %v4498
  %v7241 = vunpack.c.l.b16 %v4499
  %v7242 = vunpack.c.h.b16 %v4499
  %v7243 = vunpack.c.l.b16 %v4500
  %v7244 = vunpack.c.h.b16 %v4500
  %v7245 = vunpack.c.l.b16 %v4501
  %v7246 = vunpack.c.h.b16 %v4501
  %v7247 = vunpack.c.l.b16 %v4502
  %v7248 = vunpack.c.h.b16 %v4502
  %v7249 = vunpack.c.l.b16 %v4503
  %v7250 = vunpack.c.h.b16 %v4503
  %v7251 = vunpack.c.l.b16 %v4504
  %v7252 = vunpack.c.h.b16 %v4504
  %v7253 = vunpack.c.l.b16 %v4505
  %v7254 = vunpack.c.h.b16 %v4505
  %v7255 = vunpack.c.l.b16 %v4506
  %v7256 = vunpack.c.h.b16 %v4506
  %v7257 = vunpack.c.l.b16 %v4507
  %v7258 = vunpack.c.h.b16 %v4507
  %v7259 = vunpack.c.l.b16 %v4508
  %v7260 = vunpack.c.h.b16 %v4508
  %v7261 = vunpack.c.l.b16 %v4509
  %v7262 = vunpack.c.h.b16 %v4509
  %v7263 = vunpack.c.l.b16 %v4510
  %v7264 = vunpack.c.h.b16 %v4510
  %v7265 = vunpack.c.l.b16 %v4511
  %v7266 = vunpack.c.h.b16 %v4511
  %v7267 = vunpack.c.l.b16 %v4512
  %v7268 = vunpack.c.h.b16 %v4512
  %v7269 = vunpack.c.l.b16 %v4513
  %v7270 = vunpack.c.h.b16 %v4513
  %v7271 = vunpack.c.l.b16 %v4514
  %v7272 = vunpack.c.h.b16 %v4514
  %v7273 = vunpack.c.l.b16 %v4515
  %v7274 = vunpack.c.h.b16 %v4515
  %v7275 = vunpack.c.l.b16 %v4516
  %v7276 = vunpack.c.h.b16 %v4516
  %v7277 = vunpack.c.l.b16 %v4517
  %v7278 = vunpack.c.h.b16 %v4517
  %v7279 = vunpack.c.l.b16 %v4518
  %v7280 = vunpack.c.h.b16 %v4518
  %v7281 = vunpack.c.l.b16 %v4519
  %v7282 = vunpack.c.h.b16 %v4519
  %v7283 = vunpack.c.l.b16 %v4520
  %v7284 = vunpack.c.h.b16 %v4520
  %v7285 = vunpack.c.l.b16 %v4521
  %v7286 = vunpack.c.h.b16 %v4521
  %v7287 = vunpack.c.l.b16 %v4522
  %v7288 = vunpack.c.h.b16 %v4522
  %v7289 = vunpack.c.l.b16 %v4523
  %v7290 = vunpack.c.h.b16 %v4523
  %v7291 = vunpack.c.l.b16 %v4524
  %v7292 = vunpack.c.h.b16 %v4524
  %v7293 = vunpack.c.l.b16 %v4525
  %v7294 = vunpack.c.h.b16 %v4525
  %v7295 = vunpack.c.l.b16 %v4526
  %v7296 = vunpack.c.h.b16 %v4526
  %v7297 = vunpack.c.l.b16 %v4527
  %v7298 = vunpack.c.h.b16 %v4527
  %v7299 = vunpack.c.l.b16 %v4528
  %v7300 = vunpack.c.h.b16 %v4528
  %v7301 = vunpack.c.l.b16 %v4529
  %v7302 = vunpack.c.h.b16 %v4529
  %v7303 = vunpack.c.l.b16 %v4530
  %v7304 = vunpack.c.h.b16 %v4530
  %v7305 = vunpack.c.l.b16 %v4531
  %v7306 = vunpack.c.h.b16 %v4531
  %v7307 = vunpack.c.l.b16 %v4532
  %v7308 = vunpack.c.h.b16 %v4532
  %v7309 = vunpack.c.l.b16 %v4533
  %v7310 = vunpack.c.h.b16 %v4533
  %v7311 = vunpack.c.l.b16 %v4534
  %v7312 = vunpack.c.h.b16 %v4534
  %v7313 = vunpack.c.l.b16 %v4535
  %v7314 = vunpack.c.h.b16 %v4535
  %v7315 = vunpack.c.l.b16 %v4536
  %v7316 = vunpack.c.h.b16 %v4536
  %v7317 = vunpack.c.l.b16 %v4537
  %v7318 = vunpack.c.h.b16 %v4537
  %v7319 = vunpack.c.l.b16 %v4538
  %v7320 = vunpack.c.h.b16 %v4538
  %v7321 = vunpack.c.l.b16 %v4539
  %v7322 = vunpack.c.h.b16 %v4539
  %v7323 = vunpack.c.l.b16 %v4540
  %v7324 = vunpack.c.h.b16 %v4540
  %v7325 = vunpack.c.l.b16 %v4541
  %v7326 = vunpack.c.h.b16 %v4541
  %v7327 = vunpack.c.l.b16 %v4542
  %v7328 = vunpack.c.h.b16 %v4542
  %v7329 = vunpack.c.l.b16 %v4543
  %v7330 = vunpack.c.h.b16 %v4543
  %v7331 = vunpack.c.l.b16 %v4544
  %v7332 = vunpack.c.h.b16 %v4544
  %v7333 = vunpack.c.l.b16 %v4545
  %v7334 = vunpack.c.h.b16 %v4545
  %v7335 = vunpack.c.l.b16 %v4546
  %v7336 = vunpack.c.h.b16 %v4546
  %v7337 = vunpack.c.l.b16 %v4547
  %v7338 = vunpack.c.h.b16 %v4547
  %v7339 = vunpack.c.l.b16 %v4548
  %v7340 = vunpack.c.h.b16 %v4548
  %v7341 = vunpack.c.l.b16 %v4549
  %v7342 = vunpack.c.h.b16 %v4549
  %v7343 = vunpack.c.l.b16 %v4550
  %v7344 = vunpack.c.h.b16 %v4550
  %v7345 = vunpack.c.l.b16 %v4551
  %v7346 = vunpack.c.h.b16 %v4551
  %v7347 = vunpack.c.l.b16 %v4552
  %v7348 = vunpack.c.h.b16 %v4552
  %v7349 = vunpack.c.l.b16 %v4553
  %v7350 = vunpack.c.h.b16 %v4553
  %v7351 = vunpack.c.l.b16 %v4554
  %v7352 = vunpack.c.h.b16 %v4554
  %v7353 = vunpack.c.l.b16 %v4555
  %v7354 = vunpack.c.h.b16 %v4555
  %v7355 = vunpack.c.l.b16 %v4556
  %v7356 = vunpack.c.h.b16 %v4556
  %v7357 = vunpack.c.l.b16 %v4557
  %v7358 = vunpack.c.h.b16 %v4557
  %v7359 = vunpack.c.l.b16 %v4558
  %v7360 = vunpack.c.h.b16 %v4558
  %v7361 = vunpack.c.l.b16 %v4559
  %v7362 = vunpack.c.h.b16 %v4559
  %v7363 = vunpack.c.l.b16 %v4560
  %v7364 = vunpack.c.h.b16 %v4560
  %v7365 = vunpack.c.l.b16 %v4561
  %v7366 = vunpack.c.h.b16 %v4561
  %v7367 = vunpack.c.l.b16 %v4562
  %v7368 = vunpack.c.h.b16 %v4562
  %v7369 = vunpack.c.l.b16 %v4563
  %v7370 = vunpack.c.h.b16 %v4563
  %v7371 = vunpack.c.l.b16 %v4564
  %v7372 = vunpack.c.h.b16 %v4564
  %v7373 = vunpack.c.l.b16 %v4565
  %v7374 = vunpack.c.h.b16 %v4565
  %v7375 = vunpack.c.l.b16 %v4566
  %v7376 = vunpack.c.h.b16 %v4566
  %v7377 = vunpack.c.l.b16 %v4567
  %v7378 = vunpack.c.h.b16 %v4567
  %v7379 = vunpack.c.l.b16 %v4568
  %v7380 = vunpack.c.h.b16 %v4568
  %v7381 = vunpack.c.l.b16 %v4569
  %v7382 = vunpack.c.h.b16 %v4569
  %v7383 = vunpack.c.l.b16 %v4570
  %v7384 = vunpack.c.h.b16 %v4570
  %v7385 = vunpack.c.l.b16 %v4571
  %v7386 = vunpack.c.h.b16 %v4571
  %v7387 = vunpack.c.l.b16 %v4572
  %v7388 = vunpack.c.h.b16 %v4572
  %v7389 = vunpack.c.l.b16 %v4573
  %v7390 = vunpack.c.h.b16 %v4573
  %v7391 = vunpack.c.l.b16 %v4574
  %v7392 = vunpack.c.h.b16 %v4574
  %v7393 = vunpack.c.l.b16 %v4575
  %v7394 = vunpack.c.h.b16 %v4575
  %v7395 = vunpack.c.l.b16 %v4576
  %v7396 = vunpack.c.h.b16 %v4576
  %v7397 = vunpack.c.l.b16 %v4577
  %v7398 = vunpack.c.h.b16 %v4577
  %v7399 = vunpack.c.l.b16 %v4578
  %v7400 = vunpack.c.h.b16 %v4578
  %v7401 = vunpack.c.l.b16 %v4579
  %v7402 = vunpack.c.h.b16 %v4579
  %v7403 = vunpack.c.l.b16 %v4580
  %v7404 = vunpack.c.h.b16 %v4580
  %v7405 = vunpack.c.l.b16 %v4581
  %v7406 = vunpack.c.h.b16 %v4581
  %v7407 = vunpack.c.l.b16 %v4582
  %v7408 = vunpack.c.h.b16 %v4582
  %v7409 = vunpack.c.l.b16 %v4583
  %v7410 = vunpack.c.h.b16 %v4583
  %v7411 = vunpack.c.l.b16 %v4584
  %v7412 = vunpack.c.h.b16 %v4584
  %v7413 = vunpack.c.l.b16 %v4585
  %v7414 = vunpack.c.h.b16 %v4585
  %v7415 = vunpack.c.l.b16 %v4586
  %v7416 = vunpack.c.h.b16 %v4586
  %v7417 = vunpack.c.l.b16 %v4587
  %v7418 = vunpack.c.h.b16 %v4587
  %v7419 = vunpack.c.l.b16 %v4588
  %v7420 = vunpack.c.h.b16 %v4588
  %v7421 = vunpack.c.l.b16 %v4589
  %v7422 = vunpack.c.h.b16 %v4589
  %v7423 = vunpack.c.l.b16 %v4590
  %v7424 = vunpack.c.h.b16 %v4590
  %v7425 = vunpack.c.l.b16 %v4591
  %v7426 = vunpack.c.h.b16 %v4591
  %v7427 = vunpack.c.l.b16 %v4592
  %v7428 = vunpack.c.h.b16 %v4592
  %v7429 = vunpack.c.l.b16 %v4593
  %v7430 = vunpack.c.h.b16 %v4593
  %v7431 = vunpack.c.l.b16 %v4594
  %v7432 = vunpack.c.h.b16 %v4594
  %v7433 = vunpack.c.l.b16 %v4595
  %v7434 = vunpack.c.h.b16 %v4595
  %v7435 = vunpack.c.l.b16 %v4596
  %v7436 = vunpack.c.h.b16 %v4596
  %v7437 = vunpack.c.l.b16 %v4597
  %v7438 = vunpack.c.h.b16 %v4597
  %v7439 = vunpack.c.l.b16 %v4598
  %v7440 = vunpack.c.h.b16 %v4598
  %v7441 = vunpack.c.l.b16 %v4599
  %v7442 = vunpack.c.h.b16 %v4599
  %v7443 = vunpack.c.l.b16 %v4600
  %v7444 = vunpack.c.h.b16 %v4600
  %v7445 = vunpack.c.l.b16 %v4601
  %v7446 = vunpack.c.h.b16 %v4601
  %v7447 = vunpack.c.l.b16 %v4602
  %v7448 = vunpack.c.h.b16 %v4602
  %v7449 = vunpack.c.l.b16 %v4603
  %v7450 = vunpack.c.h.b16 %v4603
  %v7451 = vunpack.c.l.b16 %v4604
  %v7452 = vunpack.c.h.b16 %v4604
  %v7453 = vunpack.c.l.b16 %v4605
  %v7454 = vunpack.c.h.b16 %v4605
  %v7455 = vunpack.c.l.b16 %v4606
  %v7456 = vunpack.c.h.b16 %v4606
  %v7457 = vunpack.c.l.b16 %v4607
  %v7458 = vunpack.c.h.b16 %v4607
  %v7459 = vunpack.c.l.b16 %v4608
  %v7460 = vunpack.c.h.b16 %v4608
  %v7461 = vunpack.c.l.b16 %v4609
  %v7462 = vunpack.c.h.b16 %v4609
  %v7463 = vunpack.c.l.b16 %v4610
  %v7464 = vunpack.c.h.b16 %v4610
  %v7465 = vunpack.c.l.b16 %v4611
  %v7466 = vunpack.c.h.b16 %v4611
  %v7467 = vunpack.c.l.b16 %v4612
  %v7468 = vunpack.c.h.b16 %v4612
  %v7469 = vunpack.c.l.b16 %v4613
  %v7470 = vunpack.c.h.b16 %v4613
  %v7471 = vunpack.c.l.b16 %v4614
  %v7472 = vunpack.c.h.b16 %v4614
  %v7473 = vunpack.c.l.b16 %v4615
  %v7474 = vunpack.c.h.b16 %v4615
  %v7475 = vunpack.c.l.b16 %v4616
  %v7476 = vunpack.c.h.b16 %v4616
  %v7477 = vunpack.c.l.b16 %v4617
  %v7478 = vunpack.c.h.b16 %v4617
  %v7479 = vunpack.c.l.b16 %v4618
  %v7480 = vunpack.c.h.b16 %v4618
  %v7481 = vunpack.c.l.b16 %v4619
  %v7482 = vunpack.c.h.b16 %v4619
  %v7483 = vunpack.c.l.b16 %v4620
  %v7484 = vunpack.c.h.b16 %v4620
  %v7485 = vunpack.c.l.b16 %v4621
  %v7486 = vunpack.c.h.b16 %v4621
  %v7487 = vunpack.c.l.b16 %v4622
  %v7488 = vunpack.c.h.b16 %v4622
  %v7489 = vunpack.c.l.b16 %v4623
  %v7490 = vunpack.c.h.b16 %v4623
  %v7491 = vunpack.c.l.b16 %v4624
  %v7492 = vunpack.c.h.b16 %v4624
  %v7493 = vunpack.c.l.b16 %v4625
  %v7494 = vunpack.c.h.b16 %v4625
  %v7495 = vunpack.c.l.b16 %v4626
  %v7496 = vunpack.c.h.b16 %v4626
  %v7497 = vunpack.c.l.b16 %v4627
  %v7498 = vunpack.c.h.b16 %v4627
  %v7499 = vunpack.c.l.b16 %v4628
  %v7500 = vunpack.c.h.b16 %v4628
  %v7501 = vunpack.c.l.b16 %v4629
  %v7502 = vunpack.c.h.b16 %v4629
  %v7503 = vunpack.c.l.b16 %v4630
  %v7504 = vunpack.c.h.b16 %v4630
  %v7505 = vunpack.c.l.b16 %v4631
  %v7506 = vunpack.c.h.b16 %v4631
  %v7507 = vunpack.c.l.b16 %v4632
  %v7508 = vunpack.c.h.b16 %v4632
  %v7509 = vunpack.c.l.b16 %v4633
  %v7510 = vunpack.c.h.b16 %v4633
  %v7511 = vunpack.c.l.b16 %v4634
  %v7512 = vunpack.c.h.b16 %v4634
  %v7513 = vunpack.c.l.b16 %v4635
  %v7514 = vunpack.c.h.b16 %v4635
  %v7515 = vunpack.c.l.b16 %v4636
  %v7516 = vunpack.c.h.b16 %v4636
  %v7517 = vunpack.c.l.b16 %v4637
  %v7518 = vunpack.c.h.b16 %v4637
  %v7519 = vunpack.c.l.b16 %v4638
  %v7520 = vunpack.c.h.b16 %v4638
  %v7521 = vunpack.c.l.b16 %v4639
  %v7522 = vunpack.c.h.b16 %v4639
  %v7523 = vunpack.c.l.b16 %v4640
  %v7524 = vunpack.c.h.b16 %v4640
  %v7525 = vunpack.c.l.b16 %v4641
  %v7526 = vunpack.c.h.b16 %v4641
  %v7527 = vunpack.c.l.b16 %v4642
  %v7528 = vunpack.c.h.b16 %v4642
  %v7529 = vunpack.c.l.b16 %v4643
  %v7530 = vunpack.c.h.b16 %v4643
  %v7531 = vunpack.c.l.b16 %v4644
  %v7532 = vunpack.c.h.b16 %v4644
  %v7533 = vunpack.c.l.b16 %v4645
  %v7534 = vunpack.c.h.b16 %v4645
  %v7535 = vunpack.c.l.b16 %v4646
  %v7536 = vunpack.c.h.b16 %v4646
  %v7537 = vunpack.c.l.b16 %v4647
  %v7538 = vunpack.c.h.b16 %v4647
  %v7539 = vunpack.c.l.b16 %v4648
  %v7540 = vunpack.c.h.b16 %v4648
  %v7541 = vunpack.c.l.b16 %v4649
  %v7542 = vunpack.c.h.b16 %v4649
  %v7543 = vunpack.c.l.b16 %v4650
  %v7544 = vunpack.c.h.b16 %v4650
  %v7545 = vunpack.c.l.b16 %v4651
  %v7546 = vunpack.c.h.b16 %v4651
  %v7547 = vunpack.c.l.b16 %v4652
  %v7548 = vunpack.c.h.b16 %v4652
  %v7549 = vunpack.c.l.b16 %v4653
  %v7550 = vunpack.c.h.b16 %v4653
  %v7551 = vunpack.c.l.b16 %v4654
  %v7552 = vunpack.c.h.b16 %v4654
  %v7553 = vunpack.c.l.b16 %v4655
  %v7554 = vunpack.c.h.b16 %v4655
  %v7555 = vunpack.c.l.b16 %v4656
  %v7556 = vunpack.c.h.b16 %v4656
  %v7557 = vunpack.c.l.b16 %v4657
  %v7558 = vunpack.c.h.b16 %v4657
  %v7559 = vunpack.c.l.b16 %v4658
  %v7560 = vunpack.c.h.b16 %v4658
  %v7561 = vunpack.c.l.b16 %v4659
  %v7562 = vunpack.c.h.b16 %v4659
  %v7563 = vunpack.c.l.b16 %v4660
  %v7564 = vunpack.c.h.b16 %v4660
  %v7565 = vunpack.c.l.b16 %v4661
  %v7566 = vunpack.c.h.b16 %v4661
  %v7567 = vunpack.c.l.b16 %v4662
  %v7568 = vunpack.c.h.b16 %v4662
  %v7569 = vunpack.c.l.b16 %v4663
  %v7570 = vunpack.c.h.b16 %v4663
  %v7571 = vunpack.c.l.b16 %v4664
  %v7572 = vunpack.c.h.b16 %v4664
  %v7573 = vunpack.c.l.b16 %v4665
  %v7574 = vunpack.c.h.b16 %v4665
  %v7575 = vunpack.c.l.b16 %v4666
  %v7576 = vunpack.c.h.b16 %v4666
  %v7577 = vunpack.c.l.b16 %v4667
  %v7578 = vunpack.c.h.b16 %v4667
  %v7579 = vunpack.c.l.b16 %v4668
  %v7580 = vunpack.c.h.b16 %v4668
  %v7581 = vunpack.c.l.b16 %v4669
  %v7582 = vunpack.c.h.b16 %v4669
  %v7583 = vunpack.c.l.b16 %v4670
  %v7584 = vunpack.c.h.b16 %v4670
  %v7585 = vunpack.c.l.b16 %v4671
  %v7586 = vunpack.c.h.b16 %v4671
  %v7587 = vunpack.c.l.b16 %v4672
  %v7588 = vunpack.c.h.b16 %v4672
  %v7589 = vunpack.c.l.b16 %v4673
  %v7590 = vunpack.c.h.b16 %v4673
  %v7591 = vunpack.c.l.b16 %v4674
  %v7592 = vunpack.c.h.b16 %v4674
  %v7593 = vunpack.c.l.b16 %v4675
  %v7594 = vunpack.c.h.b16 %v4675
  %v7595 = vunpack.c.l.b16 %v4676
  %v7596 = vunpack.c.h.b16 %v4676
  %v7597 = vunpack.c.l.b16 %v4677
  %v7598 = vunpack.c.h.b16 %v4677
  %v7599 = vunpack.c.l.b16 %v4678
  %v7600 = vunpack.c.h.b16 %v4678
  %v7601 = vunpack.c.l.b16 %v4679
  %v7602 = vunpack.c.h.b16 %v4679
  %v7603 = vunpack.c.l.b16 %v4680
  %v7604 = vunpack.c.h.b16 %v4680
  %v7605 = vunpack.c.l.b16 %v4681
  %v7606 = vunpack.c.h.b16 %v4681
  %v7607 = vunpack.c.l.b16 %v4682
  %v7608 = vunpack.c.h.b16 %v4682
  %v7609 = vunpack.c.l.b16 %v4683
  %v7610 = vunpack.c.h.b16 %v4683
  %v7611 = vunpack.c.l.b16 %v4684
  %v7612 = vunpack.c.h.b16 %v4684
  %v7613 = vunpack.c.l.b16 %v4685
  %v7614 = vunpack.c.h.b16 %v4685
  %v7615 = vunpack.c.l.b16 %v4686
  %v7616 = vunpack.c.h.b16 %v4686
  %v7617 = vunpack.c.l.b16 %v4687
  %v7618 = vunpack.c.h.b16 %v4687
  %v7619 = vunpack.c.l.b16 %v4688
  %v7620 = vunpack.c.h.b16 %v4688
  %v7621 = vunpack.c.l.b16 %v4689
  %v7622 = vunpack.c.h.b16 %v4689
  %v7623 = vunpack.c.l.b16 %v4690
  %v7624 = vunpack.c.h.b16 %v4690
  %v7625 = vunpack.c.l.b16 %v4691
  %v7626 = vunpack.c.h.b16 %v4691
  %v7627 = vunpack.c.l.b16 %v4692
  %v7628 = vunpack.c.h.b16 %v4692
  %v7629 = vunpack.c.l.b16 %v4693
  %v7630 = vunpack.c.h.b16 %v4693
  %v7631 = vunpack.c.l.b16 %v4694
  %v7632 = vunpack.c.h.b16 %v4694
  %v7633 = vunpack.c.l.b16 %v4695
  %v7634 = vunpack.c.h.b16 %v4695
  %v7635 = vunpack.c.l.b16 %v4696
  %v7636 = vunpack.c.h.b16 %v4696
  %v7637 = vunpack.c.l.b16 %v4697
  %v7638 = vunpack.c.h.b16 %v4697
  %v7639 = vunpack.c.l.b16 %v4698
  %v7640 = vunpack.c.h.b16 %v4698
  %v7641 = vunpack.c.l.b16 %v4699
  %v7642 = vunpack.c.h.b16 %v4699
  %v7643 = vunpack.c.l.b16 %v4700
  %v7644 = vunpack.c.h.b16 %v4700
  %v7645 = vunpack.c.l.b16 %v4701
  %v7646 = vunpack.c.h.b16 %v4701
  %v7647 = vunpack.c.l.b16 %v4702
  %v7648 = vunpack.c.h.b16 %v4702
  %v7649 = vunpack.c.l.b16 %v4703
  %v7650 = vunpack.c.h.b16 %v4703
  %v7651 = vunpack.c.l.b16 %v4704
  %v7652 = vunpack.c.h.b16 %v4704
  %v7653 = vunpack.c.l.b16 %v4705
  %v7654 = vunpack.c.h.b16 %v4705
  %v7655 = vunpack.c.l.b16 %v4706
  %v7656 = vunpack.c.h.b16 %v4706
  %v7657 = vunpack.c.l.b16 %v4707
  %v7658 = vunpack.c.h.b16 %v4707
  %v7659 = vunpack.c.l.b16 %v4708
  %v7660 = vunpack.c.h.b16 %v4708
  %v7661 = vunpack.c.l.b16 %v4709
  %v7662 = vunpack.c.h.b16 %v4709
  %v7663 = vunpack.c.l.b16 %v4710
  %v7664 = vunpack.c.h.b16 %v4710
  %v7665 = vunpack.c.l.b16 %v4711
  %v7666 = vunpack.c.h.b16 %v4711
  %v7667 = vunpack.c.l.b16 %v4712
  %v7668 = vunpack.c.h.b16 %v4712
  %v7669 = vunpack.c.l.b16 %v4713
  %v7670 = vunpack.c.h.b16 %v4713
  %v7671 = vunpack.c.l.b16 %v4714
  %v7672 = vunpack.c.h.b16 %v4714
  %v7673 = vunpack.c.l.b16 %v4715
  %v7674 = vunpack.c.h.b16 %v4715
  %v7675 = vunpack.c.l.b16 %v4716
  %v7676 = vunpack.c.h.b16 %v4716
  %v7677 = vunpack.c.l.b16 %v4717
  %v7678 = vunpack.c.h.b16 %v4717
  %v7679 = vunpack.c.l.b16 %v4718
  %v7680 = vunpack.c.h.b16 %v4718
  %v7681 = vunpack.c.l.b16 %v4719
  %v7682 = vunpack.c.h.b16 %v4719
  %v7683 = vunpack.c.l.b16 %v4720
  %v7684 = vunpack.c.h.b16 %v4720
  %v7685 = vunpack.c.l.b16 %v4721
  %v7686 = vunpack.c.h.b16 %v4721
  %v7687 = vunpack.c.l.b16 %v4722
  %v7688 = vunpack.c.h.b16 %v4722
  %v7689 = vunpack.c.l.b16 %v4723
  %v7690 = vunpack.c.h.b16 %v4723
  %v7691 = vunpack.c.l.b16 %v4724
  %v7692 = vunpack.c.h.b16 %v4724
  %v7693 = vunpack.c.l.b16 %v4725
  %v7694 = vunpack.c.h.b16 %v4725
  %v7695 = vunpack.c.l.b16 %v4726
  %v7696 = vunpack.c.h.b16 %v4726
  %v7697 = vunpack.c.l.b16 %v4727
  %v7698 = vunpack.c.h.b16 %v4727
  %v7699 = vunpack.c.l.b16 %v4728
  %v7700 = vunpack.c.h.b16 %v4728
  %v7701 = vunpack.c.l.b16 %v4729
  %v7702 = vunpack.c.h.b16 %v4729
  %v7703 = vunpack.c.l.b16 %v4730
  %v7704 = vunpack.c.h.b16 %v4730
  %v7705 = vunpack.c.l.b16 %v4731
  %v7706 = vunpack.c.h.b16 %v4731
  %v7707 = vunpack.c.l.b16 %v4732
  %v7708 = vunpack.c.h.b16 %v4732
  %v7709 = vunpack.c.l.b16 %v4733
  %v7710 = vunpack.c.h.b16 %v4733
  %v7711 = vunpack.c.l.b16 %v4734
  %v7712 = vunpack.c.h.b16 %v4734
  %v7713 = vunpack.c.l.b16 %v4735
  %v7714 = vunpack.c.h.b16 %v4735
  %v7715 = vunpack.c.l.b16 %v4736
  %v7716 = vunpack.c.h.b16 %v4736
  %v7717 = vunpack.c.l.b16 %v4737
  %v7718 = vunpack.c.h.b16 %v4737
  %v7719 = vunpack.c.l.b16 %v4738
  %v7720 = vunpack.c.h.b16 %v4738
  %v7721 = vunpack.c.l.b16 %v4739
  %v7722 = vunpack.c.h.b16 %v4739
  %v7723 = vunpack.c.l.b16 %v4740
  %v7724 = vunpack.c.h.b16 %v4740
  %v7725 = vunpack.c.l.b16 %v4741
  %v7726 = vunpack.c.h.b16 %v4741
  %v7727 = vunpack.c.l.b16 %v4742
  %v7728 = vunpack.c.h.b16 %v4742
  %v7729 = vunpack.c.l.b16 %v4743
  %v7730 = vunpack.c.h.b16 %v4743
  %v7731 = vunpack.c.l.b16 %v4744
  %v7732 = vunpack.c.h.b16 %v4744
  %v7733 = vunpack.c.l.b16 %v4745
  %v7734 = vunpack.c.h.b16 %v4745
  %v7735 = vunpack.c.l.b16 %v4746
  %v7736 = vunpack.c.h.b16 %v4746
  %v7737 = vunpack.c.l.b16 %v4747
  %v7738 = vunpack.c.h.b16 %v4747
  %v7739 = vunpack.c.l.b16 %v4748
  %v7740 = vunpack.c.h.b16 %v4748
  %v7741 = vunpack.c.l.b16 %v4749
  %v7742 = vunpack.c.h.b16 %v4749
  %v7743 = vunpack.c.l.b16 %v4750
  %v7744 = vunpack.c.h.b16 %v4750
  %v7745 = vunpack.c.l.b16 %v4751
  %v7746 = vunpack.c.h.b16 %v4751
  %v7747 = vunpack.c.l.b16 %v4752
  %v7748 = vunpack.c.h.b16 %v4752
  %v7749 = vunpack.c.l.b16 %v4753
  %v7750 = vunpack.c.h.b16 %v4753
  %v7751 = vunpack.c.l.b16 %v4754
  %v7752 = vunpack.c.h.b16 %v4754
  %v7753 = vunpack.c.l.b16 %v4755
  %v7754 = vunpack.c.h.b16 %v4755
  %v7755 = vunpack.c.l.b16 %v4756
  %v7756 = vunpack.c.h.b16 %v4756
  %v7757 = vunpack.c.l.b16 %v4757
  %v7758 = vunpack.c.h.b16 %v4757
  %v7759 = vunpack.c.l.b16 %v4758
  %v7760 = vunpack.c.h.b16 %v4758
  %v7761 = vunpack.c.l.b16 %v4759
  %v7762 = vunpack.c.h.b16 %v4759
  %v7763 = vunpack.c.l.b16 %v4760
  %v7764 = vunpack.c.h.b16 %v4760
  %v7765 = vunpack.c.l.b16 %v4761
  %v7766 = vunpack.c.h.b16 %v4761
  %v7767 = vunpack.c.l.b16 %v4762
  %v7768 = vunpack.c.h.b16 %v4762
  %v7769 = vunpack.c.l.b16 %v4763
  %v7770 = vunpack.c.h.b16 %v4763
  %v7771 = vunpack.c.l.b16 %v4764
  %v7772 = vunpack.c.h.b16 %v4764
  %v7773 = vunpack.c.l.b16 %v4765
  %v7774 = vunpack.c.h.b16 %v4765
  %v7775 = vunpack.c.l.b16 %v4766
  %v7776 = vunpack.c.h.b16 %v4766
  %v7777 = vunpack.c.l.b16 %v4767
  %v7778 = vunpack.c.h.b16 %v4767
  %v7779 = vunpack.c.l.b16 %v4768
  %v7780 = vunpack.c.h.b16 %v4768
  %v7781 = vunpack.c.l.b16 %v4769
  %v7782 = vunpack.c.h.b16 %v4769
  %v7783 = vunpack.c.l.b16 %v4770
  %v7784 = vunpack.c.h.b16 %v4770
  %v7785 = vunpack.c.l.b16 %v4771
  %v7786 = vunpack.c.h.b16 %v4771
  %v7787 = vunpack.c.l.b16 %v4772
  %v7788 = vunpack.c.h.b16 %v4772
  %v7789 = vunpack.c.l.b16 %v4773
  %v7790 = vunpack.c.h.b16 %v4773
  %v7791 = vunpack.c.l.b16 %v4774
  %v7792 = vunpack.c.h.b16 %v4774
  %v7793 = vunpack.c.l.b16 %v4775
  %v7794 = vunpack.c.h.b16 %v4775
  %v7795 = vunpack.c.l.b16 %v4776
  %v7796 = vunpack.c.h.b16 %v4776
  %v7797 = vunpack.c.l.b16 %v4777
  %v7798 = vunpack.c.h.b16 %v4777
  %v7799 = vunpack.c.l.b16 %v4778
  %v7800 = vunpack.c.h.b16 %v4778
  %v7801 = vunpack.c.l.b16 %v4779
  %v7802 = vunpack.c.h.b16 %v4779
  %v7803 = vunpack.c.l.b16 %v4780
  %v7804 = vunpack.c.h.b16 %v4780
  %v7805 = vunpack.c.l.b16 %v4781
  %v7806 = vunpack.c.h.b16 %v4781
  %v7807 = vunpack.c.l.b16 %v4782
  %v7808 = vunpack.c.h.b16 %v4782
  %v7809 = vunpack.c.l.b16 %v4783
  %v7810 = vunpack.c.h.b16 %v4783
  %v7811 = vunpack.c.l.b16 %v4784
  %v7812 = vunpack.c.h.b16 %v4784
  %v7813 = vunpack.c.l.b16 %v4785
  %v7814 = vunpack.c.h.b16 %v4785
  %v7815 = vunpack.c.l.b16 %v4786
  %v7816 = vunpack.c.h.b16 %v4786
  %v7817 = vunpack.c.l.b16 %v4787
  %v7818 = vunpack.c.h.b16 %v4787
  %v7819 = vunpack.c.l.b16 %v4788
  %v7820 = vunpack.c.h.b16 %v4788
  %v7821 = vunpack.c.l.b16 %v4789
  %v7822 = vunpack.c.h.b16 %v4789
  %v7823 = vunpack.c.l.b16 %v4790
  %v7824 = vunpack.c.h.b16 %v4790
  %v7825 = vunpack.c.l.b16 %v4791
  %v7826 = vunpack.c.h.b16 %v4791
  %v7827 = vunpack.c.l.b16 %v4792
  %v7828 = vunpack.c.h.b16 %v4792
  %v7829 = vunpack.c.l.b16 %v4793
  %v7830 = vunpack.c.h.b16 %v4793
  %v7831 = vunpack.c.l.b16 %v4794
  %v7832 = vunpack.c.h.b16 %v4794
  %v7833 = vunpack.c.l.b16 %v4795
  %v7834 = vunpack.c.h.b16 %v4795
  %v7835 = vunpack.c.l.b16 %v4796
  %v7836 = vunpack.c.h.b16 %v4796
  %v7837 = vunpack.c.l.b16 %v4797
  %v7838 = vunpack.c.h.b16 %v4797
  %v7839 = vunpack.c.l.b16 %v4798
  %v7840 = vunpack.c.h.b16 %v4798
  %v7841 = vunpack.c.l.b16 %v4799
  %v7842 = vunpack.c.h.b16 %v4799
  %v7843 = vunpack.c.l.b16 %v4800
  %v7844 = vunpack.c.h.b16 %v4800
  %v7845 = vunpack.c.l.b16 %v4801
  %v7846 = vunpack.c.h.b16 %v4801
  %v7847 = vunpack.c.l.b16 %v4802
  %v7848 = vunpack.c.h.b16 %v4802
  %v7849 = vunpack.c.l.b16 %v4803
  %v7850 = vunpack.c.h.b16 %v4803
  %v7851 = vunpack.c.l.b16 %v4804
  %v7852 = vunpack.c.h.b16 %v4804
  %v7853 = vunpack.c.l.b16 %v4805
  %v7854 = vunpack.c.h.b16 %v4805
  %v7855 = vunpack.c.l.b16 %v4806
  %v7856 = vunpack.c.h.b16 %v4806
  %v7857 = vunpack.c.l.b16 %v4807
  %v7858 = vunpack.c.h.b16 %v4807
  %v7859 = vunpack.c.l.b16 %v4808
  %v7860 = vunpack.c.h.b16 %v4808
  %v7861 = vunpack.c.l.b16 %v4809
  %v7862 = vunpack.c.h.b16 %v4809
  %v7863 = vunpack.c.l.b16 %v4810
  %v7864 = vunpack.c.h.b16 %v4810
  %v7865 = vunpack.c.l.b16 %v4811
  %v7866 = vunpack.c.h.b16 %v4811
  %v7867 = vunpack.c.l.b16 %v4812
  %v7868 = vunpack.c.h.b16 %v4812
  %v7869 = vunpack.c.l.b16 %v4813
  %v7870 = vunpack.c.h.b16 %v4813
  %v7871 = vunpack.c.l.b16 %v4814
  %v7872 = vunpack.c.h.b16 %v4814
  %v7873 = vunpack.c.l.b16 %v4815
  %v7874 = vunpack.c.h.b16 %v4815
  %v7875 = vunpack.c.l.b16 %v4816
  %v7876 = vunpack.c.h.b16 %v4816
  %v7877 = vunpack.c.l.b16 %v4817
  %v7878 = vunpack.c.h.b16 %v4817
  %v7879 = vunpack.c.l.b16 %v4818
  %v7880 = vunpack.c.h.b16 %v4818
  %v7881 = vunpack.c.l.b16 %v4819
  %v7882 = vunpack.c.h.b16 %v4819
  %v7883 = vunpack.c.l.b16 %v4820
  %v7884 = vunpack.c.h.b16 %v4820
  %v7885 = vunpack.c.l.b16 %v4821
  %v7886 = vunpack.c.h.b16 %v4821
  %v7887 = vunpack.c.l.b16 %v4822
  %v7888 = vunpack.c.h.b16 %v4822
  %v7889 = vunpack.c.l.b16 %v4823
  %v7890 = vunpack.c.h.b16 %v4823
  %v7891 = vunpack.c.l.b16 %v4824
  %v7892 = vunpack.c.h.b16 %v4824
  %v7893 = vunpack.c.l.b16 %v4825
  %v7894 = vunpack.c.h.b16 %v4825
  %v7895 = vunpack.c.l.b16 %v4826
  %v7896 = vunpack.c.h.b16 %v4826
  %v7897 = vunpack.c.l.b16 %v4827
  %v7898 = vunpack.c.h.b16 %v4827
  %v7899 = vunpack.c.l.b16 %v4828
  %v7900 = vunpack.c.h.b16 %v4828
  %v7901 = vunpack.c.l.b16 %v4829
  %v7902 = vunpack.c.h.b16 %v4829
  %v7903 = vunpack.c.l.b16 %v4830
  %v7904 = vunpack.c.h.b16 %v4830
  %v7905 = vunpack.c.l.b16 %v4831
  %v7906 = vunpack.c.h.b16 %v4831
  %v7907 = vunpack.c.l.b16 %v4832
  %v7908 = vunpack.c.h.b16 %v4832
  %v7909 = vunpack.c.l.b16 %v4833
  %v7910 = vunpack.c.h.b16 %v4833
  %v7911 = vunpack.c.l.b16 %v4834
  %v7912 = vunpack.c.h.b16 %v4834
  %v7913 = vunpack.c.l.b16 %v4835
  %v7914 = vunpack.c.h.b16 %v4835
  %v7915 = vunpack.c.l.b16 %v4836
  %v7916 = vunpack.c.h.b16 %v4836
  %v7917 = vunpack.c.l.b16 %v4837
  %v7918 = vunpack.c.h.b16 %v4837
  %v7919 = vunpack.c.l.b16 %v4838
  %v7920 = vunpack.c.h.b16 %v4838
  %v7921 = vunpack.c.l.b16 %v4839
  %v7922 = vunpack.c.h.b16 %v4839
  %v7923 = vunpack.c.l.b16 %v4840
  %v7924 = vunpack.c.h.b16 %v4840
  %v7925 = vunpack.c.l.b16 %v4841
  %v7926 = vunpack.c.h.b16 %v4841
  %v7927 = vunpack.c.l.b16 %v4842
  %v7928 = vunpack.c.h.b16 %v4842
  %v7929 = vunpack.c.l.b16 %v4843
  %v7930 = vunpack.c.h.b16 %v4843
  %v7931 = vunpack.c.l.b16 %v4844
  %v7932 = vunpack.c.h.b16 %v4844
  %v7933 = vunpack.c.l.b16 %v4845
  %v7934 = vunpack.c.h.b16 %v4845
  %v7935 = vunpack.c.l.b16 %v4846
  %v7936 = vunpack.c.h.b16 %v4846
  %v7937 = vunpack.c.l.b16 %v4847
  %v7938 = vunpack.c.h.b16 %v4847
  %v7939 = vunpack.c.l.b16 %v4848
  %v7940 = vunpack.c.h.b16 %v4848
  %v7941 = vunpack.c.l.b16 %v4849
  %v7942 = vunpack.c.h.b16 %v4849
  %v7943 = vunpack.c.l.b16 %v4850
  %v7944 = vunpack.c.h.b16 %v4850
  %v7945 = vunpack.c.l.b16 %v4851
  %v7946 = vunpack.c.h.b16 %v4851
  %v7947 = vunpack.c.l.b16 %v4852
  %v7948 = vunpack.c.h.b16 %v4852
  %v7949 = vunpack.c.l.b16 %v4853
  %v7950 = vunpack.c.h.b16 %v4853
  %v7951 = vunpack.c.l.b16 %v4854
  %v7952 = vunpack.c.h.b16 %v4854
  %v7953 = vunpack.c.l.b16 %v4855
  %v7954 = vunpack.c.h.b16 %v4855
  %v7955 = vunpack.c.l.b16 %v4856
  %v7956 = vunpack.c.h.b16 %v4856
  %v7957 = vunpack.c.l.b16 %v4857
  %v7958 = vunpack.c.h.b16 %v4857
  %v7959 = vunpack.c.l.b16 %v4858
  %v7960 = vunpack.c.h.b16 %v4858
  %v7961 = vunpack.c.l.b16 %v4859
  %v7962 = vunpack.c.h.b16 %v4859
  %v7963 = vunpack.c.l.b16 %v4860
  %v7964 = vunpack.c.h.b16 %v4860
  %v7965 = vunpack.c.l.b16 %v4861
  %v7966 = vunpack.c.h.b16 %v4861
  %v7967 = vunpack.c.l.b16 %v4862
  %v7968 = vunpack.c.h.b16 %v4862
  %v7969 = vunpack.c.l.b16 %v4863
  %v7970 = vunpack.c.h.b16 %v4863
  %v7971 = vunpack.c.l.b16 %v4864
  %v7972 = vunpack.c.h.b16 %v4864
  %v7973 = vunpack.c.l.b16 %v4865
  %v7974 = vunpack.c.h.b16 %v4865
  %v7975 = vunpack.c.l.b16 %v4866
  %v7976 = vunpack.c.h.b16 %v4866
  %v7977 = vunpack.c.l.b16 %v4867
  %v7978 = vunpack.c.h.b16 %v4867
  %v7979 = vunpack.c.l.b16 %v4868
  %v7980 = vunpack.c.h.b16 %v4868
  %v7981 = vunpack.c.l.b16 %v4869
  %v7982 = vunpack.c.h.b16 %v4869
  %v7983 = vunpack.c.l.b16 %v4870
  %v7984 = vunpack.c.h.b16 %v4870
  %v7985 = vpack.c.b16 %v5945, %v5937
  %v7986 = vpack.c.b16 %v5946, %v5938
  %v7987 = vpack.c.b16 %v5947, %v5939
  %v7988 = vpack.c.b16 %v5948, %v5940
  %v7989 = vpack.c.b16 %v5949, %v5941
  %v7990 = vpack.c.b16 %v5950, %v5942
  %v7991 = vpack.c.b16 %v5951, %v5943
  %v7992 = vpack.c.b16 %v5952, %v5944
  %v7993 = vpack.c.b16 %v5961, %v5953
  %v7994 = vpack.c.b16 %v5962, %v5954
  %v7995 = vpack.c.b16 %v5963, %v5955
  %v7996 = vpack.c.b16 %v5964, %v5956
  %v7997 = vpack.c.b16 %v5965, %v5957
  %v7998 = vpack.c.b16 %v5966, %v5958
  %v7999 = vpack.c.b16 %v5967, %v5959
  %v8000 = vpack.c.b16 %v5968, %v5960
  %v8001 = vpack.c.b16 %v5977, %v5969
  %v8002 = vpack.c.b16 %v5978, %v5970
  %v8003 = vpack.c.b16 %v5979, %v5971
  %v8004 = vpack.c.b16 %v5980, %v5972
  %v8005 = vpack.c.b16 %v5981, %v5973
  %v8006 = vpack.c.b16 %v5982, %v5974
  %v8007 = vpack.c.b16 %v5983, %v5975
  %v8008 = vpack.c.b16 %v5984, %v5976
  %v8009 = vpack.c.b16 %v5993, %v5985
  %v8010 = vpack.c.b16 %v5994, %v5986
  %v8011 = vpack.c.b16 %v5995, %v5987
  %v8012 = vpack.c.b16 %v5996, %v5988
  %v8013 = vpack.c.b16 %v5997, %v5989
  %v8014 = vpack.c.b16 %v5998, %v5990
  %v8015 = vpack.c.b16 %v5999, %v5991
  %v8016 = vpack.c.b16 %v6000, %v5992
  %v8017 = vpack.c.b16 %v6009, %v6001
  %v8018 = vpack.c.b16 %v6010, %v6002
  %v8019 = vpack.c.b16 %v6011, %v6003
  %v8020 = vpack.c.b16 %v6012, %v6004
  %v8021 = vpack.c.b16 %v6013, %v6005
  %v8022 = vpack.c.b16 %v6014, %v6006
  %v8023 = vpack.c.b16 %v6015, %v6007
  %v8024 = vpack.c.b16 %v6016, %v6008
  %v8025 = vpack.c.b16 %v6025, %v6017
  %v8026 = vpack.c.b16 %v6026, %v6018
  %v8027 = vpack.c.b16 %v6027, %v6019
  %v8028 = vpack.c.b16 %v6028, %v6020
  %v8029 = vpack.c.b16 %v6029, %v6021
  %v8030 = vpack.c.b16 %v6030, %v6022
  %v8031 = vpack.c.b16 %v6031, %v6023
  %v8032 = vpack.c.b16 %v6032, %v6024
  %v8033 = vpack.c.b16 %v6041, %v6033
  %v8034 = vpack.c.b16 %v6042, %v6034
  %v8035 = vpack.c.b16 %v6043, %v6035
  %v8036 = vpack.c.b16 %v6044, %v6036
  %v8037 = vpack.c.b16 %v6045, %v6037
  %v8038 = vpack.c.b16 %v6046, %v6038
  %v8039 = vpack.c.b16 %v6047, %v6039
  %v8040 = vpack.c.b16 %v6048, %v6040
  %v8041 = vpack.c.b16 %v6057, %v6049
  %v8042 = vpack.c.b16 %v6058, %v6050
  %v8043 = vpack.c.b16 %v6059, %v6051
  %v8044 = vpack.c.b16 %v6060, %v6052
  %v8045 = vpack.c.b16 %v6061, %v6053
  %v8046 = vpack.c.b16 %v6062, %v6054
  %v8047 = vpack.c.b16 %v6063, %v6055
  %v8048 = vpack.c.b16 %v6064, %v6056
  %v8049 = vpack.c.b16 %v6073, %v6065
  %v8050 = vpack.c.b16 %v6074, %v6066
  %v8051 = vpack.c.b16 %v6075, %v6067
  %v8052 = vpack.c.b16 %v6076, %v6068
  %v8053 = vpack.c.b16 %v6077, %v6069
  %v8054 = vpack.c.b16 %v6078, %v6070
  %v8055 = vpack.c.b16 %v6079, %v6071
  %v8056 = vpack.c.b16 %v6080, %v6072
  %v8057 = vpack.c.b16 %v6089, %v6081
  %v8058 = vpack.c.b16 %v6090, %v6082
  %v8059 = vpack.c.b16 %v6091, %v6083
  %v8060 = vpack.c.b16 %v6092, %v6084
  %v8061 = vpack.c.b16 %v6093, %v6085
  %v8062 = vpack.c.b16 %v6094, %v6086
  %v8063 = vpack.c.b16 %v6095, %v6087
  %v8064 = vpack.c.b16 %v6096, %v6088
  %v8065 = vpack.c.b16 %v6105, %v6097
  %v8066 = vpack.c.b16 %v6106, %v6098
  %v8067 = vpack.c.b16 %v6107, %v6099
  %v8068 = vpack.c.b16 %v6108, %v6100
  %v8069 = vpack.c.b16 %v6109, %v6101
  %v8070 = vpack.c.b16 %v6110, %v6102
  %v8071 = vpack.c.b16 %v6111, %v6103
  %v8072 = vpack.c.b16 %v6112, %v6104
  %v8073 = vpack.c.b16 %v6121, %v6113
  %v8074 = vpack.c.b16 %v6122, %v6114
  %v8075 = vpack.c.b16 %v6123, %v6115
  %v8076 = vpack.c.b16 %v6124, %v6116
  %v8077 = vpack.c.b16 %v6125, %v6117
  %v8078 = vpack.c.b16 %v6126, %v6118
  %v8079 = vpack.c.b16 %v6127, %v6119
  %v8080 = vpack.c.b16 %v6128, %v6120
  %v8081 = vpack.c.b16 %v6137, %v6129
  %v8082 = vpack.c.b16 %v6138, %v6130
  %v8083 = vpack.c.b16 %v6139, %v6131
  %v8084 = vpack.c.b16 %v6140, %v6132
  %v8085 = vpack.c.b16 %v6141, %v6133
  %v8086 = vpack.c.b16 %v6142, %v6134
  %v8087 = vpack.c.b16 %v6143, %v6135
  %v8088 = vpack.c.b16 %v6144, %v6136
  %v8089 = vpack.c.b16 %v6153, %v6145
  %v8090 = vpack.c.b16 %v6154, %v6146
  %v8091 = vpack.c.b16 %v6155, %v6147
  %v8092 = vpack.c.b16 %v6156, %v6148
  %v8093 = vpack.c.b16 %v6157, %v6149
  %v8094 = vpack.c.b16 %v6158, %v6150
  %v8095 = vpack.c.b16 %v6159, %v6151
  %v8096 = vpack.c.b16 %v6160, %v6152
  %v8097 = vpack.c.b16 %v6169, %v6161
  %v8098 = vpack.c.b16 %v6170, %v6162
  %v8099 = vpack.c.b16 %v6171, %v6163
  %v8100 = vpack.c.b16 %v6172, %v6164
  %v8101 = vpack.c.b16 %v6173, %v6165
  %v8102 = vpack.c.b16 %v6174, %v6166
  %v8103 = vpack.c.b16 %v6175, %v6167
  %v8104 = vpack.c.b16 %v6176, %v6168
  %v8105 = vpack.c.b16 %v6185, %v6177
  %v8106 = vpack.c.b16 %v6186, %v6178
  %v8107 = vpack.c.b16 %v6187, %v6179
  %v8108 = vpack.c.b16 %v6188, %v6180
  %v8109 = vpack.c.b16 %v6189, %v6181
  %v8110 = vpack.c.b16 %v6190, %v6182
  %v8111 = vpack.c.b16 %v6191, %v6183
  %v8112 = vpack.c.b16 %v6192, %v6184
  %v8113 = vpack.c.b16 %v6201, %v6193
  %v8114 = vpack.c.b16 %v6202, %v6194
  %v8115 = vpack.c.b16 %v6203, %v6195
  %v8116 = vpack.c.b16 %v6204, %v6196
  %v8117 = vpack.c.b16 %v6205, %v6197
  %v8118 = vpack.c.b16 %v6206, %v6198
  %v8119 = vpack.c.b16 %v6207, %v6199
  %v8120 = vpack.c.b16 %v6208, %v6200
  %v8121 = vpack.c.b16 %v6217, %v6209
  %v8122 = vpack.c.b16 %v6218, %v6210
  %v8123 = vpack.c.b16 %v6219, %v6211
  %v8124 = vpack.c.b16 %v6220, %v6212
  %v8125 = vpack.c.b16 %v6221, %v6213
  %v8126 = vpack.c.b16 %v6222, %v6214
  %v8127 = vpack.c.b16 %v6223, %v6215
  %v8128 = vpack.c.b16 %v6224, %v6216
  %v8129 = vpack.c.b16 %v6233, %v6225
  %v8130 = vpack.c.b16 %v6234, %v6226
  %v8131 = vpack.c.b16 %v6235, %v6227
  %v8132 = vpack.c.b16 %v6236, %v6228
  %v8133 = vpack.c.b16 %v6237, %v6229
  %v8134 = vpack.c.b16 %v6238, %v6230
  %v8135 = vpack.c.b16 %v6239, %v6231
  %v8136 = vpack.c.b16 %v6240, %v6232
  %v8137 = vpack.c.b16 %v6249, %v6241
  %v8138 = vpack.c.b16 %v6250, %v6242
  %v8139 = vpack.c.b16 %v6251, %v6243
  %v8140 = vpack.c.b16 %v6252, %v6244
  %v8141 = vpack.c.b16 %v6253, %v6245
  %v8142 = vpack.c.b16 %v6254, %v6246
  %v8143 = vpack.c.b16 %v6255, %v6247
  %v8144 = vpack.c.b16 %v6256, %v6248
  %v8145 = vpack.c.b16 %v6265, %v6257
  %v8146 = vpack.c.b16 %v6266, %v6258
  %v8147 = vpack.c.b16 %v6267, %v6259
  %v8148 = vpack.c.b16 %v6268, %v6260
  %v8149 = vpack.c.b16 %v6269, %v6261
  %v8150 = vpack.c.b16 %v6270, %v6262
  %v8151 = vpack.c.b16 %v6271, %v6263
  %v8152 = vpack.c.b16 %v6272, %v6264
  %v8153 = vpack.c.b16 %v6281, %v6273
  %v8154 = vpack.c.b16 %v6282, %v6274
  %v8155 = vpack.c.b16 %v6283, %v6275
  %v8156 = vpack.c.b16 %v6284, %v6276
  %v8157 = vpack.c.b16 %v6285, %v6277
  %v8158 = vpack.c.b16 %v6286, %v6278
  %v8159 = vpack.c.b16 %v6287, %v6279
  %v8160 = vpack.c.b16 %v6288, %v6280
  %v8161 = vpack.c.b16 %v6297, %v6289
  %v8162 = vpack.c.b16 %v6298, %v6290
  %v8163 = vpack.c.b16 %v6299, %v6291
  %v8164 = vpack.c.b16 %v6300, %v6292
  %v8165 = vpack.c.b16 %v6301, %v6293
  %v8166 = vpack.c.b16 %v6302, %v6294
  %v8167 = vpack.c.b16 %v6303, %v6295
  %v8168 = vpack.c.b16 %v6304, %v6296
  %v8169 = vpack.c.b16 %v6313, %v6305
  %v8170 = vpack.c.b16 %v6314, %v6306
  %v8171 = vpack.c.b16 %v6315, %v6307
  %v8172 = vpack.c.b16 %v6316, %v6308
  %v8173 = vpack.c.b16 %v6317, %v6309
  %v8174 = vpack.c.b16 %v6318, %v6310
  %v8175 = vpack.c.b16 %v6319, %v6311
  %v8176 = vpack.c.b16 %v6320, %v6312
  %v8177 = vpack.c.b16 %v6329, %v6321
  %v8178 = vpack.c.b16 %v6330, %v6322
  %v8179 = vpack.c.b16 %v6331, %v6323
  %v8180 = vpack.c.b16 %v6332, %v6324
  %v8181 = vpack.c.b16 %v6333, %v6325
  %v8182 = vpack.c.b16 %v6334, %v6326
  %v8183 = vpack.c.b16 %v6335, %v6327
  %v8184 = vpack.c.b16 %v6336, %v6328
  %v8185 = vpack.c.b16 %v6345, %v6337
  %v8186 = vpack.c.b16 %v6346, %v6338
  %v8187 = vpack.c.b16 %v6347, %v6339
  %v8188 = vpack.c.b16 %v6348, %v6340
  %v8189 = vpack.c.b16 %v6349, %v6341
  %v8190 = vpack.c.b16 %v6350, %v6342
  %v8191 = vpack.c.b16 %v6351, %v6343
  %v8192 = vpack.c.b16 %v6352, %v6344
  %v8193 = vpack.c.b16 %v6361, %v6353
  %v8194 = vpack.c.b16 %v6362, %v6354
  %v8195 = vpack.c.b16 %v6363, %v6355
  %v8196 = vpack.c.b16 %v6364, %v6356
  %v8197 = vpack.c.b16 %v6365, %v6357
  %v8198 = vpack.c.b16 %v6366, %v6358
  %v8199 = vpack.c.b16 %v6367, %v6359
  %v8200 = vpack.c.b16 %v6368, %v6360
  %v8201 = vpack.c.b16 %v6377, %v6369
  %v8202 = vpack.c.b16 %v6378, %v6370
  %v8203 = vpack.c.b16 %v6379, %v6371
  %v8204 = vpack.c.b16 %v6380, %v6372
  %v8205 = vpack.c.b16 %v6381, %v6373
  %v8206 = vpack.c.b16 %v6382, %v6374
  %v8207 = vpack.c.b16 %v6383, %v6375
  %v8208 = vpack.c.b16 %v6384, %v6376
  %v8209 = vpack.c.b16 %v6393, %v6385
  %v8210 = vpack.c.b16 %v6394, %v6386
  %v8211 = vpack.c.b16 %v6395, %v6387
  %v8212 = vpack.c.b16 %v6396, %v6388
  %v8213 = vpack.c.b16 %v6397, %v6389
  %v8214 = vpack.c.b16 %v6398, %v6390
  %v8215 = vpack.c.b16 %v6399, %v6391
  %v8216 = vpack.c.b16 %v6400, %v6392
  %v8217 = vpack.c.b16 %v6409, %v6401
  %v8218 = vpack.c.b16 %v6410, %v6402
  %v8219 = vpack.c.b16 %v6411, %v6403
  %v8220 = vpack.c.b16 %v6412, %v6404
  %v8221 = vpack.c.b16 %v6413, %v6405
  %v8222 = vpack.c.b16 %v6414, %v6406
  %v8223 = vpack.c.b16 %v6415, %v6407
  %v8224 = vpack.c.b16 %v6416, %v6408
  %v8225 = vpack.c.b16 %v6425, %v6417
  %v8226 = vpack.c.b16 %v6426, %v6418
  %v8227 = vpack.c.b16 %v6427, %v6419
  %v8228 = vpack.c.b16 %v6428, %v6420
  %v8229 = vpack.c.b16 %v6429, %v6421
  %v8230 = vpack.c.b16 %v6430, %v6422
  %v8231 = vpack.c.b16 %v6431, %v6423
  %v8232 = vpack.c.b16 %v6432, %v6424
  %v8233 = vpack.c.b16 %v6441, %v6433
  %v8234 = vpack.c.b16 %v6442, %v6434
  %v8235 = vpack.c.b16 %v6443, %v6435
  %v8236 = vpack.c.b16 %v6444, %v6436
  %v8237 = vpack.c.b16 %v6445, %v6437
  %v8238 = vpack.c.b16 %v6446, %v6438
  %v8239 = vpack.c.b16 %v6447, %v6439
  %v8240 = vpack.c.b16 %v6448, %v6440
  %v8241 = vpack.c.b16 %v6457, %v6449
  %v8242 = vpack.c.b16 %v6458, %v6450
  %v8243 = vpack.c.b16 %v6459, %v6451
  %v8244 = vpack.c.b16 %v6460, %v6452
  %v8245 = vpack.c.b16 %v6461, %v6453
  %v8246 = vpack.c.b16 %v6462, %v6454
  %v8247 = vpack.c.b16 %v6463, %v6455
  %v8248 = vpack.c.b16 %v6464, %v6456
  %v8249 = vpack.c.b16 %v6473, %v6465
  %v8250 = vpack.c.b16 %v6474, %v6466
  %v8251 = vpack.c.b16 %v6475, %v6467
  %v8252 = vpack.c.b16 %v6476, %v6468
  %v8253 = vpack.c.b16 %v6477, %v6469
  %v8254 = vpack.c.b16 %v6478, %v6470
  %v8255 = vpack.c.b16 %v6479, %v6471
  %v8256 = vpack.c.b16 %v6480, %v6472
  %v8257 = vpack.c.b16 %v6489, %v6481
  %v8258 = vpack.c.b16 %v6490, %v6482
  %v8259 = vpack.c.b16 %v6491, %v6483
  %v8260 = vpack.c.b16 %v6492, %v6484
  %v8261 = vpack.c.b16 %v6493, %v6485
  %v8262 = vpack.c.b16 %v6494, %v6486
  %v8263 = vpack.c.b16 %v6495, %v6487
  %v8264 = vpack.c.b16 %v6496, %v6488
  %v8265 = vpack.c.b16 %v6505, %v6497
  %v8266 = vpack.c.b16 %v6506, %v6498
  %v8267 = vpack.c.b16 %v6507, %v6499
  %v8268 = vpack.c.b16 %v6508, %v6500
  %v8269 = vpack.c.b16 %v6509, %v6501
  %v8270 = vpack.c.b16 %v6510, %v6502
  %v8271 = vpack.c.b16 %v6511, %v6503
  %v8272 = vpack.c.b16 %v6512, %v6504
  %v8273 = vpack.c.b16 %v6521, %v6513
  %v8274 = vpack.c.b16 %v6522, %v6514
  %v8275 = vpack.c.b16 %v6523, %v6515
  %v8276 = vpack.c.b16 %v6524, %v6516
  %v8277 = vpack.c.b16 %v6525, %v6517
  %v8278 = vpack.c.b16 %v6526, %v6518
  %v8279 = vpack.c.b16 %v6527, %v6519
  %v8280 = vpack.c.b16 %v6528, %v6520
  %v8281 = vpack.c.b16 %v6537, %v6529
  %v8282 = vpack.c.b16 %v6538, %v6530
  %v8283 = vpack.c.b16 %v6539, %v6531
  %v8284 = vpack.c.b16 %v6540, %v6532
  %v8285 = vpack.c.b16 %v6541, %v6533
  %v8286 = vpack.c.b16 %v6542, %v6534
  %v8287 = vpack.c.b16 %v6543, %v6535
  %v8288 = vpack.c.b16 %v6544, %v6536
  %v8289 = vpack.c.b16 %v6553, %v6545
  %v8290 = vpack.c.b16 %v6554, %v6546
  %v8291 = vpack.c.b16 %v6555, %v6547
  %v8292 = vpack.c.b16 %v6556, %v6548
  %v8293 = vpack.c.b16 %v6557, %v6549
  %v8294 = vpack.c.b16 %v6558, %v6550
  %v8295 = vpack.c.b16 %v6559, %v6551
  %v8296 = vpack.c.b16 %v6560, %v6552
  %v8297 = vpack.c.b16 %v6569, %v6561
  %v8298 = vpack.c.b16 %v6570, %v6562
  %v8299 = vpack.c.b16 %v6571, %v6563
  %v8300 = vpack.c.b16 %v6572, %v6564
  %v8301 = vpack.c.b16 %v6573, %v6565
  %v8302 = vpack.c.b16 %v6574, %v6566
  %v8303 = vpack.c.b16 %v6575, %v6567
  %v8304 = vpack.c.b16 %v6576, %v6568
  %v8305 = vpack.c.b16 %v6585, %v6577
  %v8306 = vpack.c.b16 %v6586, %v6578
  %v8307 = vpack.c.b16 %v6587, %v6579
  %v8308 = vpack.c.b16 %v6588, %v6580
  %v8309 = vpack.c.b16 %v6589, %v6581
  %v8310 = vpack.c.b16 %v6590, %v6582
  %v8311 = vpack.c.b16 %v6591, %v6583
  %v8312 = vpack.c.b16 %v6592, %v6584
  %v8313 = vpack.c.b16 %v6601, %v6593
  %v8314 = vpack.c.b16 %v6602, %v6594
  %v8315 = vpack.c.b16 %v6603, %v6595
  %v8316 = vpack.c.b16 %v6604, %v6596
  %v8317 = vpack.c.b16 %v6605, %v6597
  %v8318 = vpack.c.b16 %v6606, %v6598
  %v8319 = vpack.c.b16 %v6607, %v6599
  %v8320 = vpack.c.b16 %v6608, %v6600
  %v8321 = vpack.c.b16 %v6617, %v6609
  %v8322 = vpack.c.b16 %v6618, %v6610
  %v8323 = vpack.c.b16 %v6619, %v6611
  %v8324 = vpack.c.b16 %v6620, %v6612
  %v8325 = vpack.c.b16 %v6621, %v6613
  %v8326 = vpack.c.b16 %v6622, %v6614
  %v8327 = vpack.c.b16 %v6623, %v6615
  %v8328 = vpack.c.b16 %v6624, %v6616
  %v8329 = vpack.c.b16 %v6633, %v6625
  %v8330 = vpack.c.b16 %v6634, %v6626
  %v8331 = vpack.c.b16 %v6635, %v6627
  %v8332 = vpack.c.b16 %v6636, %v6628
  %v8333 = vpack.c.b16 %v6637, %v6629
  %v8334 = vpack.c.b16 %v6638, %v6630
  %v8335 = vpack.c.b16 %v6639, %v6631
  %v8336 = vpack.c.b16 %v6640, %v6632
  %v8337 = vpack.c.b16 %v6649, %v6641
  %v8338 = vpack.c.b16 %v6650, %v6642
  %v8339 = vpack.c.b16 %v6651, %v6643
  %v8340 = vpack.c.b16 %v6652, %v6644
  %v8341 = vpack.c.b16 %v6653, %v6645
  %v8342 = vpack.c.b16 %v6654, %v6646
  %v8343 = vpack.c.b16 %v6655, %v6647
  %v8344 = vpack.c.b16 %v6656, %v6648
  %v8345 = vpack.c.b16 %v6665, %v6657
  %v8346 = vpack.c.b16 %v6666, %v6658
  %v8347 = vpack.c.b16 %v6667, %v6659
  %v8348 = vpack.c.b16 %v6668, %v6660
  %v8349 = vpack.c.b16 %v6669, %v6661
  %v8350 = vpack.c.b16 %v6670, %v6662
  %v8351 = vpack.c.b16 %v6671, %v6663
  %v8352 = vpack.c.b16 %v6672, %v6664
  %v8353 = vpack.c.b16 %v6681, %v6673
  %v8354 = vpack.c.b16 %v6682, %v6674
  %v8355 = vpack.c.b16 %v6683, %v6675
  %v8356 = vpack.c.b16 %v6684, %v6676
  %v8357 = vpack.c.b16 %v6685, %v6677
  %v8358 = vpack.c.b16 %v6686, %v6678
  %v8359 = vpack.c.b16 %v6687, %v6679
  %v8360 = vpack.c.b16 %v6688, %v6680
  %v8361 = vpack.c.b16 %v6697, %v6689
  %v8362 = vpack.c.b16 %v6698, %v6690
  %v8363 = vpack.c.b16 %v6699, %v6691
  %v8364 = vpack.c.b16 %v6700, %v6692
  %v8365 = vpack.c.b16 %v6701, %v6693
  %v8366 = vpack.c.b16 %v6702, %v6694
  %v8367 = vpack.c.b16 %v6703, %v6695
  %v8368 = vpack.c.b16 %v6704, %v6696
  %v8369 = vpack.c.b16 %v6713, %v6705
  %v8370 = vpack.c.b16 %v6714, %v6706
  %v8371 = vpack.c.b16 %v6715, %v6707
  %v8372 = vpack.c.b16 %v6716, %v6708
  %v8373 = vpack.c.b16 %v6717, %v6709
  %v8374 = vpack.c.b16 %v6718, %v6710
  %v8375 = vpack.c.b16 %v6719, %v6711
  %v8376 = vpack.c.b16 %v6720, %v6712
  %v8377 = vpack.c.b16 %v6729, %v6721
  %v8378 = vpack.c.b16 %v6730, %v6722
  %v8379 = vpack.c.b16 %v6731, %v6723
  %v8380 = vpack.c.b16 %v6732, %v6724
  %v8381 = vpack.c.b16 %v6733, %v6725
  %v8382 = vpack.c.b16 %v6734, %v6726
  %v8383 = vpack.c.b16 %v6735, %v6727
  %v8384 = vpack.c.b16 %v6736, %v6728
  %v8385 = vpack.c.b16 %v6745, %v6737
  %v8386 = vpack.c.b16 %v6746, %v6738
  %v8387 = vpack.c.b16 %v6747, %v6739
  %v8388 = vpack.c.b16 %v6748, %v6740
  %v8389 = vpack.c.b16 %v6749, %v6741
  %v8390 = vpack.c.b16 %v6750, %v6742
  %v8391 = vpack.c.b16 %v6751, %v6743
  %v8392 = vpack.c.b16 %v6752, %v6744
  %v8393 = vpack.c.b16 %v6761, %v6753
  %v8394 = vpack.c.b16 %v6762, %v6754
  %v8395 = vpack.c.b16 %v6763, %v6755
  %v8396 = vpack.c.b16 %v6764, %v6756
  %v8397 = vpack.c.b16 %v6765, %v6757
  %v8398 = vpack.c.b16 %v6766, %v6758
  %v8399 = vpack.c.b16 %v6767, %v6759
  %v8400 = vpack.c.b16 %v6768, %v6760
  %v8401 = vpack.c.b16 %v6777, %v6769
  %v8402 = vpack.c.b16 %v6778, %v6770
  %v8403 = vpack.c.b16 %v6779, %v6771
  %v8404 = vpack.c.b16 %v6780, %v6772
  %v8405 = vpack.c.b16 %v6781, %v6773
  %v8406 = vpack.c.b16 %v6782, %v6774
  %v8407 = vpack.c.b16 %v6783, %v6775
  %v8408 = vpack.c.b16 %v6784, %v6776
  %v8409 = vpack.c.b16 %v6793, %v6785
  %v8410 = vpack.c.b16 %v6794, %v6786
  %v8411 = vpack.c.b16 %v6795, %v6787
  %v8412 = vpack.c.b16 %v6796, %v6788
  %v8413 = vpack.c.b16 %v6797, %v6789
  %v8414 = vpack.c.b16 %v6798, %v6790
  %v8415 = vpack.c.b16 %v6799, %v6791
  %v8416 = vpack.c.b16 %v6800, %v6792
  %v8417 = vpack.c.b16 %v6809, %v6801
  %v8418 = vpack.c.b16 %v6810, %v6802
  %v8419 = vpack.c.b16 %v6811, %v6803
  %v8420 = vpack.c.b16 %v6812, %v6804
  %v8421 = vpack.c.b16 %v6813, %v6805
  %v8422 = vpack.c.b16 %v6814, %v6806
  %v8423 = vpack.c.b16 %v6815, %v6807
  %v8424 = vpack.c.b16 %v6816, %v6808
  %v8425 = vpack.c.b16 %v6825, %v6817
  %v8426 = vpack.c.b16 %v6826, %v6818
  %v8427 = vpack.c.b16 %v6827, %v6819
  %v8428 = vpack.c.b16 %v6828, %v6820
  %v8429 = vpack.c.b16 %v6829, %v6821
  %v8430 = vpack.c.b16 %v6830, %v6822
  %v8431 = vpack.c.b16 %v6831, %v6823
  %v8432 = vpack.c.b16 %v6832, %v6824
  %v8433 = vpack.c.b16 %v6841, %v6833
  %v8434 = vpack.c.b16 %v6842, %v6834
  %v8435 = vpack.c.b16 %v6843, %v6835
  %v8436 = vpack.c.b16 %v6844, %v6836
  %v8437 = vpack.c.b16 %v6845, %v6837
  %v8438 = vpack.c.b16 %v6846, %v6838
  %v8439 = vpack.c.b16 %v6847, %v6839
  %v8440 = vpack.c.b16 %v6848, %v6840
  %v8441 = vpack.c.b16 %v6857, %v6849
  %v8442 = vpack.c.b16 %v6858, %v6850
  %v8443 = vpack.c.b16 %v6859, %v6851
  %v8444 = vpack.c.b16 %v6860, %v6852
  %v8445 = vpack.c.b16 %v6861, %v6853
  %v8446 = vpack.c.b16 %v6862, %v6854
  %v8447 = vpack.c.b16 %v6863, %v6855
  %v8448 = vpack.c.b16 %v6864, %v6856
  %v8449 = vpack.c.b16 %v6873, %v6865
  %v8450 = vpack.c.b16 %v6874, %v6866
  %v8451 = vpack.c.b16 %v6875, %v6867
  %v8452 = vpack.c.b16 %v6876, %v6868
  %v8453 = vpack.c.b16 %v6877, %v6869
  %v8454 = vpack.c.b16 %v6878, %v6870
  %v8455 = vpack.c.b16 %v6879, %v6871
  %v8456 = vpack.c.b16 %v6880, %v6872
  %v8457 = vpack.c.b16 %v6889, %v6881
  %v8458 = vpack.c.b16 %v6890, %v6882
  %v8459 = vpack.c.b16 %v6891, %v6883
  %v8460 = vpack.c.b16 %v6892, %v6884
  %v8461 = vpack.c.b16 %v6893, %v6885
  %v8462 = vpack.c.b16 %v6894, %v6886
  %v8463 = vpack.c.b16 %v6895, %v6887
  %v8464 = vpack.c.b16 %v6896, %v6888
  %v8465 = vpack.c.b16 %v6905, %v6897
  %v8466 = vpack.c.b16 %v6906, %v6898
  %v8467 = vpack.c.b16 %v6907, %v6899
  %v8468 = vpack.c.b16 %v6908, %v6900
  %v8469 = vpack.c.b16 %v6909, %v6901
  %v8470 = vpack.c.b16 %v6910, %v6902
  %v8471 = vpack.c.b16 %v6911, %v6903
  %v8472 = vpack.c.b16 %v6912, %v6904
  %v8473 = vpack.c.b16 %v6921, %v6913
  %v8474 = vpack.c.b16 %v6922, %v6914
  %v8475 = vpack.c.b16 %v6923, %v6915
  %v8476 = vpack.c.b16 %v6924, %v6916
  %v8477 = vpack.c.b16 %v6925, %v6917
  %v8478 = vpack.c.b16 %v6926, %v6918
  %v8479 = vpack.c.b16 %v6927, %v6919
  %v8480 = vpack.c.b16 %v6928, %v6920
  %v8481 = vpack.c.b16 %v6937, %v6929
  %v8482 = vpack.c.b16 %v6938, %v6930
  %v8483 = vpack.c.b16 %v6939, %v6931
  %v8484 = vpack.c.b16 %v6940, %v6932
  %v8485 = vpack.c.b16 %v6941, %v6933
  %v8486 = vpack.c.b16 %v6942, %v6934
  %v8487 = vpack.c.b16 %v6943, %v6935
  %v8488 = vpack.c.b16 %v6944, %v6936
  %v8489 = vpack.c.b16 %v6953, %v6945
  %v8490 = vpack.c.b16 %v6954, %v6946
  %v8491 = vpack.c.b16 %v6955, %v6947
  %v8492 = vpack.c.b16 %v6956, %v6948
  %v8493 = vpack.c.b16 %v6957, %v6949
  %v8494 = vpack.c.b16 %v6958, %v6950
  %v8495 = vpack.c.b16 %v6959, %v6951
  %v8496 = vpack.c.b16 %v6960, %v6952
  %v8497 = vpack.c.b16 %v6969, %v6961
  %v8498 = vpack.c.b16 %v6970, %v6962
  %v8499 = vpack.c.b16 %v6971, %v6963
  %v8500 = vpack.c.b16 %v6972, %v6964
  %v8501 = vpack.c.b16 %v6973, %v6965
  %v8502 = vpack.c.b16 %v6974, %v6966
  %v8503 = vpack.c.b16 %v6975, %v6967
  %v8504 = vpack.c.b16 %v6976, %v6968
  %v8505 = vpack.c.b16 %v6985, %v6977
  %v8506 = vpack.c.b16 %v6986, %v6978
  %v8507 = vpack.c.b16 %v6987, %v6979
  %v8508 = vpack.c.b16 %v6988, %v6980
  %v8509 = vpack.c.b16 %v6989, %v6981
  %v8510 = vpack.c.b16 %v6990, %v6982
  %v8511 = vpack.c.b16 %v6991, %v6983
  %v8512 = vpack.c.b16 %v6992, %v6984
  %v8513 = vpack.c.b16 %v7001, %v6993
  %v8514 = vpack.c.b16 %v7002, %v6994
  %v8515 = vpack.c.b16 %v7003, %v6995
  %v8516 = vpack.c.b16 %v7004, %v6996
  %v8517 = vpack.c.b16 %v7005, %v6997
  %v8518 = vpack.c.b16 %v7006, %v6998
  %v8519 = vpack.c.b16 %v7007, %v6999
  %v8520 = vpack.c.b16 %v7008, %v7000
  %v8521 = vpack.c.b16 %v7017, %v7009
  %v8522 = vpack.c.b16 %v7018, %v7010
  %v8523 = vpack.c.b16 %v7019, %v7011
  %v8524 = vpack.c.b16 %v7020, %v7012
  %v8525 = vpack.c.b16 %v7021, %v7013
  %v8526 = vpack.c.b16 %v7022, %v7014
  %v8527 = vpack.c.b16 %v7023, %v7015
  %v8528 = vpack.c.b16 %v7024, %v7016
  %v8529 = vpack.c.b16 %v7033, %v7025
  %v8530 = vpack.c.b16 %v7034, %v7026
  %v8531 = vpack.c.b16 %v7035, %v7027
  %v8532 = vpack.c.b16 %v7036, %v7028
  %v8533 = vpack.c.b16 %v7037, %v7029
  %v8534 = vpack.c.b16 %v7038, %v7030
  %v8535 = vpack.c.b16 %v7039, %v7031
  %v8536 = vpack.c.b16 %v7040, %v7032
  %v8537 = vpack.c.b16 %v7049, %v7041
  %v8538 = vpack.c.b16 %v7050, %v7042
  %v8539 = vpack.c.b16 %v7051, %v7043
  %v8540 = vpack.c.b16 %v7052, %v7044
  %v8541 = vpack.c.b16 %v7053, %v7045
  %v8542 = vpack.c.b16 %v7054, %v7046
  %v8543 = vpack.c.b16 %v7055, %v7047
  %v8544 = vpack.c.b16 %v7056, %v7048
  %v8545 = vpack.c.b16 %v7065, %v7057
  %v8546 = vpack.c.b16 %v7066, %v7058
  %v8547 = vpack.c.b16 %v7067, %v7059
  %v8548 = vpack.c.b16 %v7068, %v7060
  %v8549 = vpack.c.b16 %v7069, %v7061
  %v8550 = vpack.c.b16 %v7070, %v7062
  %v8551 = vpack.c.b16 %v7071, %v7063
  %v8552 = vpack.c.b16 %v7072, %v7064
  %v8553 = vpack.c.b16 %v7081, %v7073
  %v8554 = vpack.c.b16 %v7082, %v7074
  %v8555 = vpack.c.b16 %v7083, %v7075
  %v8556 = vpack.c.b16 %v7084, %v7076
  %v8557 = vpack.c.b16 %v7085, %v7077
  %v8558 = vpack.c.b16 %v7086, %v7078
  %v8559 = vpack.c.b16 %v7087, %v7079
  %v8560 = vpack.c.b16 %v7088, %v7080
  %v8561 = vpack.c.b16 %v7097, %v7089
  %v8562 = vpack.c.b16 %v7098, %v7090
  %v8563 = vpack.c.b16 %v7099, %v7091
  %v8564 = vpack.c.b16 %v7100, %v7092
  %v8565 = vpack.c.b16 %v7101, %v7093
  %v8566 = vpack.c.b16 %v7102, %v7094
  %v8567 = vpack.c.b16 %v7103, %v7095
  %v8568 = vpack.c.b16 %v7104, %v7096
  %v8569 = vpack.c.b16 %v7113, %v7105
  %v8570 = vpack.c.b16 %v7114, %v7106
  %v8571 = vpack.c.b16 %v7115, %v7107
  %v8572 = vpack.c.b16 %v7116, %v7108
  %v8573 = vpack.c.b16 %v7117, %v7109
  %v8574 = vpack.c.b16 %v7118, %v7110
  %v8575 = vpack.c.b16 %v7119, %v7111
  %v8576 = vpack.c.b16 %v7120, %v7112
  %v8577 = vpack.c.b16 %v7129, %v7121
  %v8578 = vpack.c.b16 %v7130, %v7122
  %v8579 = vpack.c.b16 %v7131, %v7123
  %v8580 = vpack.c.b16 %v7132, %v7124
  %v8581 = vpack.c.b16 %v7133, %v7125
  %v8582 = vpack.c.b16 %v7134, %v7126
  %v8583 = vpack.c.b16 %v7135, %v7127
  %v8584 = vpack.c.b16 %v7136, %v7128
  %v8585 = vpack.c.b16 %v7145, %v7137
  %v8586 = vpack.c.b16 %v7146, %v7138
  %v8587 = vpack.c.b16 %v7147, %v7139
  %v8588 = vpack.c.b16 %v7148, %v7140
  %v8589 = vpack.c.b16 %v7149, %v7141
  %v8590 = vpack.c.b16 %v7150, %v7142
  %v8591 = vpack.c.b16 %v7151, %v7143
  %v8592 = vpack.c.b16 %v7152, %v7144
  %v8593 = vpack.c.b16 %v7161, %v7153
  %v8594 = vpack.c.b16 %v7162, %v7154
  %v8595 = vpack.c.b16 %v7163, %v7155
  %v8596 = vpack.c.b16 %v7164, %v7156
  %v8597 = vpack.c.b16 %v7165, %v7157
  %v8598 = vpack.c.b16 %v7166, %v7158
  %v8599 = vpack.c.b16 %v7167, %v7159
  %v8600 = vpack.c.b16 %v7168, %v7160
  %v8601 = vpack.c.b16 %v7177, %v7169
  %v8602 = vpack.c.b16 %v7178, %v7170
  %v8603 = vpack.c.b16 %v7179, %v7171
  %v8604 = vpack.c.b16 %v7180, %v7172
  %v8605 = vpack.c.b16 %v7181, %v7173
  %v8606 = vpack.c.b16 %v7182, %v7174
  %v8607 = vpack.c.b16 %v7183, %v7175
  %v8608 = vpack.c.b16 %v7184, %v7176
  %v8609 = vpack.c.b16 %v7193, %v7185
  %v8610 = vpack.c.b16 %v7194, %v7186
  %v8611 = vpack.c.b16 %v7195, %v7187
  %v8612 = vpack.c.b16 %v7196, %v7188
  %v8613 = vpack.c.b16 %v7197, %v7189
  %v8614 = vpack.c.b16 %v7198, %v7190
  %v8615 = vpack.c.b16 %v7199, %v7191
  %v8616 = vpack.c.b16 %v7200, %v7192
  %v8617 = vpack.c.b16 %v7209, %v7201
  %v8618 = vpack.c.b16 %v7210, %v7202
  %v8619 = vpack.c.b16 %v7211, %v7203
  %v8620 = vpack.c.b16 %v7212, %v7204
  %v8621 = vpack.c.b16 %v7213, %v7205
  %v8622 = vpack.c.b16 %v7214, %v7206
  %v8623 = vpack.c.b16 %v7215, %v7207
  %v8624 = vpack.c.b16 %v7216, %v7208
  %v8625 = vpack.c.b16 %v7225, %v7217
  %v8626 = vpack.c.b16 %v7226, %v7218
  %v8627 = vpack.c.b16 %v7227, %v7219
  %v8628 = vpack.c.b16 %v7228, %v7220
  %v8629 = vpack.c.b16 %v7229, %v7221
  %v8630 = vpack.c.b16 %v7230, %v7222
  %v8631 = vpack.c.b16 %v7231, %v7223
  %v8632 = vpack.c.b16 %v7232, %v7224
  %v8633 = vpack.c.b16 %v7241, %v7233
  %v8634 = vpack.c.b16 %v7242, %v7234
  %v8635 = vpack.c.b16 %v7243, %v7235
  %v8636 = vpack.c.b16 %v7244, %v7236
  %v8637 = vpack.c.b16 %v7245, %v7237
  %v8638 = vpack.c.b16 %v7246, %v7238
  %v8639 = vpack.c.b16 %v7247, %v7239
  %v8640 = vpack.c.b16 %v7248, %v7240
  %v8641 = vpack.c.b16 %v7257, %v7249
  %v8642 = vpack.c.b16 %v7258, %v7250
  %v8643 = vpack.c.b16 %v7259, %v7251
  %v8644 = vpack.c.b16 %v7260, %v7252
  %v8645 = vpack.c.b16 %v7261, %v7253
  %v8646 = vpack.c.b16 %v7262, %v7254
  %v8647 = vpack.c.b16 %v7263, %v7255
  %v8648 = vpack.c.b16 %v7264, %v7256
  %v8649 = vpack.c.b16 %v7273, %v7265
  %v8650 = vpack.c.b16 %v7274, %v7266
  %v8651 = vpack.c.b16 %v7275, %v7267
  %v8652 = vpack.c.b16 %v7276, %v7268
  %v8653 = vpack.c.b16 %v7277, %v7269
  %v8654 = vpack.c.b16 %v7278, %v7270
  %v8655 = vpack.c.b16 %v7279, %v7271
  %v8656 = vpack.c.b16 %v7280, %v7272
  %v8657 = vpack.c.b16 %v7289, %v7281
  %v8658 = vpack.c.b16 %v7290, %v7282
  %v8659 = vpack.c.b16 %v7291, %v7283
  %v8660 = vpack.c.b16 %v7292, %v7284
  %v8661 = vpack.c.b16 %v7293, %v7285
  %v8662 = vpack.c.b16 %v7294, %v7286
  %v8663 = vpack.c.b16 %v7295, %v7287
  %v8664 = vpack.c.b16 %v7296, %v7288
  %v8665 = vpack.c.b16 %v7305, %v7297
  %v8666 = vpack.c.b16 %v7306, %v7298
  %v8667 = vpack.c.b16 %v7307, %v7299
  %v8668 = vpack.c.b16 %v7308, %v7300
  %v8669 = vpack.c.b16 %v7309, %v7301
  %v8670 = vpack.c.b16 %v7310, %v7302
  %v8671 = vpack.c.b16 %v7311, %v7303
  %v8672 = vpack.c.b16 %v7312, %v7304
  %v8673 = vpack.c.b16 %v7321, %v7313
  %v8674 = vpack.c.b16 %v7322, %v7314
  %v8675 = vpack.c.b16 %v7323, %v7315
  %v8676 = vpack.c.b16 %v7324, %v7316
  %v8677 = vpack.c.b16 %v7325, %v7317
  %v8678 = vpack.c.b16 %v7326, %v7318
  %v8679 = vpack.c.b16 %v7327, %v7319
  %v8680 = vpack.c.b16 %v7328, %v7320
  %v8681 = vpack.c.b16 %v7337, %v7329
  %v8682 = vpack.c.b16 %v7338, %v7330
  %v8683 = vpack.c.b16 %v7339, %v7331
  %v8684 = vpack.c.b16 %v7340, %v7332
  %v8685 = vpack.c.b16 %v7341, %v7333
  %v8686 = vpack.c.b16 %v7342, %v7334
  %v8687 = vpack.c.b16 %v7343, %v7335
  %v8688 = vpack.c.b16 %v7344, %v7336
  %v8689 = vpack.c.b16 %v7353, %v7345
  %v8690 = vpack.c.b16 %v7354, %v7346
  %v8691 = vpack.c.b16 %v7355, %v7347
  %v8692 = vpack.c.b16 %v7356, %v7348
  %v8693 = vpack.c.b16 %v7357, %v7349
  %v8694 = vpack.c.b16 %v7358, %v7350
  %v8695 = vpack.c.b16 %v7359, %v7351
  %v8696 = vpack.c.b16 %v7360, %v7352
  %v8697 = vpack.c.b16 %v7369, %v7361
  %v8698 = vpack.c.b16 %v7370, %v7362
  %v8699 = vpack.c.b16 %v7371, %v7363
  %v8700 = vpack.c.b16 %v7372, %v7364
  %v8701 = vpack.c.b16 %v7373, %v7365
  %v8702 = vpack.c.b16 %v7374, %v7366
  %v8703 = vpack.c.b16 %v7375, %v7367
  %v8704 = vpack.c.b16 %v7376, %v7368
  %v8705 = vpack.c.b16 %v7385, %v7377
  %v8706 = vpack.c.b16 %v7386, %v7378
  %v8707 = vpack.c.b16 %v7387, %v7379
  %v8708 = vpack.c.b16 %v7388, %v7380
  %v8709 = vpack.c.b16 %v7389, %v7381
  %v8710 = vpack.c.b16 %v7390, %v7382
  %v8711 = vpack.c.b16 %v7391, %v7383
  %v8712 = vpack.c.b16 %v7392, %v7384
  %v8713 = vpack.c.b16 %v7401, %v7393
  %v8714 = vpack.c.b16 %v7402, %v7394
  %v8715 = vpack.c.b16 %v7403, %v7395
  %v8716 = vpack.c.b16 %v7404, %v7396
  %v8717 = vpack.c.b16 %v7405, %v7397
  %v8718 = vpack.c.b16 %v7406, %v7398
  %v8719 = vpack.c.b16 %v7407, %v7399
  %v8720 = vpack.c.b16 %v7408, %v7400
  %v8721 = vpack.c.b16 %v7417, %v7409
  %v8722 = vpack.c.b16 %v7418, %v7410
  %v8723 = vpack.c.b16 %v7419, %v7411
  %v8724 = vpack.c.b16 %v7420, %v7412
  %v8725 = vpack.c.b16 %v7421, %v7413
  %v8726 = vpack.c.b16 %v7422, %v7414
  %v8727 = vpack.c.b16 %v7423, %v7415
  %v8728 = vpack.c.b16 %v7424, %v7416
  %v8729 = vpack.c.b16 %v7433, %v7425
  %v8730 = vpack.c.b16 %v7434, %v7426
  %v8731 = vpack.c.b16 %v7435, %v7427
  %v8732 = vpack.c.b16 %v7436, %v7428
  %v8733 = vpack.c.b16 %v7437, %v7429
  %v8734 = vpack.c.b16 %v7438, %v7430
  %v8735 = vpack.c.b16 %v7439, %v7431
  %v8736 = vpack.c.b16 %v7440, %v7432
  %v8737 = vpack.c.b16 %v7449, %v7441
  %v8738 = vpack.c.b16 %v7450, %v7442
  %v8739 = vpack.c.b16 %v7451, %v7443
  %v8740 = vpack.c.b16 %v7452, %v7444
  %v8741 = vpack.c.b16 %v7453, %v7445
  %v8742 = vpack.c.b16 %v7454, %v7446
  %v8743 = vpack.c.b16 %v7455, %v7447
  %v8744 = vpack.c.b16 %v7456, %v7448
  %v8745 = vpack.c.b16 %v7465, %v7457
  %v8746 = vpack.c.b16 %v7466, %v7458
  %v8747 = vpack.c.b16 %v7467, %v7459
  %v8748 = vpack.c.b16 %v7468, %v7460
  %v8749 = vpack.c.b16 %v7469, %v7461
  %v8750 = vpack.c.b16 %v7470, %v7462
  %v8751 = vpack.c.b16 %v7471, %v7463
  %v8752 = vpack.c.b16 %v7472, %v7464
  %v8753 = vpack.c.b16 %v7481, %v7473
  %v8754 = vpack.c.b16 %v7482, %v7474
  %v8755 = vpack.c.b16 %v7483, %v7475
  %v8756 = vpack.c.b16 %v7484, %v7476
  %v8757 = vpack.c.b16 %v7485, %v7477
  %v8758 = vpack.c.b16 %v7486, %v7478
  %v8759 = vpack.c.b16 %v7487, %v7479
  %v8760 = vpack.c.b16 %v7488, %v7480
  %v8761 = vpack.c.b16 %v7497, %v7489
  %v8762 = vpack.c.b16 %v7498, %v7490
  %v8763 = vpack.c.b16 %v7499, %v7491
  %v8764 = vpack.c.b16 %v7500, %v7492
  %v8765 = vpack.c.b16 %v7501, %v7493
  %v8766 = vpack.c.b16 %v7502, %v7494
  %v8767 = vpack.c.b16 %v7503, %v7495
  %v8768 = vpack.c.b16 %v7504, %v7496
  %v8769 = vpack.c.b16 %v7513, %v7505
  %v8770 = vpack.c.b16 %v7514, %v7506
  %v8771 = vpack.c.b16 %v7515, %v7507
  %v8772 = vpack.c.b16 %v7516, %v7508
  %v8773 = vpack.c.b16 %v7517, %v7509
  %v8774 = vpack.c.b16 %v7518, %v7510
  %v8775 = vpack.c.b16 %v7519, %v7511
  %v8776 = vpack.c.b16 %v7520, %v7512
  %v8777 = vpack.c.b16 %v7529, %v7521
  %v8778 = vpack.c.b16 %v7530, %v7522
  %v8779 = vpack.c.b16 %v7531, %v7523
  %v8780 = vpack.c.b16 %v7532, %v7524
  %v8781 = vpack.c.b16 %v7533, %v7525
  %v8782 = vpack.c.b16 %v7534, %v7526
  %v8783 = vpack.c.b16 %v7535, %v7527
  %v8784 = vpack.c.b16 %v7536, %v7528
  %v8785 = vpack.c.b16 %v7545, %v7537
  %v8786 = vpack.c.b16 %v7546, %v7538
  %v8787 = vpack.c.b16 %v7547, %v7539
  %v8788 = vpack.c.b16 %v7548, %v7540
  %v8789 = vpack.c.b16 %v7549, %v7541
  %v8790 = vpack.c.b16 %v7550, %v7542
  %v8791 = vpack.c.b16 %v7551, %v7543
  %v8792 = vpack.c.b16 %v7552, %v7544
  %v8793 = vpack.c.b16 %v7561, %v7553
  %v8794 = vpack.c.b16 %v7562, %v7554
  %v8795 = vpack.c.b16 %v7563, %v7555
  %v8796 = vpack.c.b16 %v7564, %v7556
  %v8797 = vpack.c.b16 %v7565, %v7557
  %v8798 = vpack.c.b16 %v7566, %v7558
  %v8799 = vpack.c.b16 %v7567, %v7559
  %v8800 = vpack.c.b16 %v7568, %v7560
  %v8801 = vpack.c.b16 %v7577, %v7569
  %v8802 = vpack.c.b16 %v7578, %v7570
  %v8803 = vpack.c.b16 %v7579, %v7571
  %v8804 = vpack.c.b16 %v7580, %v7572
  %v8805 = vpack.c.b16 %v7581, %v7573
  %v8806 = vpack.c.b16 %v7582, %v7574
  %v8807 = vpack.c.b16 %v7583, %v7575
  %v8808 = vpack.c.b16 %v7584, %v7576
  %v8809 = vpack.c.b16 %v7593, %v7585
  %v8810 = vpack.c.b16 %v7594, %v7586
  %v8811 = vpack.c.b16 %v7595, %v7587
  %v8812 = vpack.c.b16 %v7596, %v7588
  %v8813 = vpack.c.b16 %v7597, %v7589
  %v8814 = vpack.c.b16 %v7598, %v7590
  %v8815 = vpack.c.b16 %v7599, %v7591
  %v8816 = vpack.c.b16 %v7600, %v7592
  %v8817 = vpack.c.b16 %v7609, %v7601
  %v8818 = vpack.c.b16 %v7610, %v7602
  %v8819 = vpack.c.b16 %v7611, %v7603
  %v8820 = vpack.c.b16 %v7612, %v7604
  %v8821 = vpack.c.b16 %v7613, %v7605
  %v8822 = vpack.c.b16 %v7614, %v7606
  %v8823 = vpack.c.b16 %v7615, %v7607
  %v8824 = vpack.c.b16 %v7616, %v7608
  %v8825 = vpack.c.b16 %v7625, %v7617
  %v8826 = vpack.c.b16 %v7626, %v7618
  %v8827 = vpack.c.b16 %v7627, %v7619
  %v8828 = vpack.c.b16 %v7628, %v7620
  %v8829 = vpack.c.b16 %v7629, %v7621
  %v8830 = vpack.c.b16 %v7630, %v7622
  %v8831 = vpack.c.b16 %v7631, %v7623
  %v8832 = vpack.c.b16 %v7632, %v7624
  %v8833 = vpack.c.b16 %v7641, %v7633
  %v8834 = vpack.c.b16 %v7642, %v7634
  %v8835 = vpack.c.b16 %v7643, %v7635
  %v8836 = vpack.c.b16 %v7644, %v7636
  %v8837 = vpack.c.b16 %v7645, %v7637
  %v8838 = vpack.c.b16 %v7646, %v7638
  %v8839 = vpack.c.b16 %v7647, %v7639
  %v8840 = vpack.c.b16 %v7648, %v7640
  %v8841 = vpack.c.b16 %v7657, %v7649
  %v8842 = vpack.c.b16 %v7658, %v7650
  %v8843 = vpack.c.b16 %v7659, %v7651
  %v8844 = vpack.c.b16 %v7660, %v7652
  %v8845 = vpack.c.b16 %v7661, %v7653
  %v8846 = vpack.c.b16 %v7662, %v7654
  %v8847 = vpack.c.b16 %v7663, %v7655
  %v8848 = vpack.c.b16 %v7664, %v7656
  %v8849 = vpack.c.b16 %v7673, %v7665
  %v8850 = vpack.c.b16 %v7674, %v7666
  %v8851 = vpack.c.b16 %v7675, %v7667
  %v8852 = vpack.c.b16 %v7676, %v7668
  %v8853 = vpack.c.b16 %v7677, %v7669
  %v8854 = vpack.c.b16 %v7678, %v7670
  %v8855 = vpack.c.b16 %v7679, %v7671
  %v8856 = vpack.c.b16 %v7680, %v7672
  %v8857 = vpack.c.b16 %v7689, %v7681
  %v8858 = vpack.c.b16 %v7690, %v7682
  %v8859 = vpack.c.b16 %v7691, %v7683
  %v8860 = vpack.c.b16 %v7692, %v7684
  %v8861 = vpack.c.b16 %v7693, %v7685
  %v8862 = vpack.c.b16 %v7694, %v7686
  %v8863 = vpack.c.b16 %v7695, %v7687
  %v8864 = vpack.c.b16 %v7696, %v7688
  %v8865 = vpack.c.b16 %v7705, %v7697
  %v8866 = vpack.c.b16 %v7706, %v7698
  %v8867 = vpack.c.b16 %v7707, %v7699
  %v8868 = vpack.c.b16 %v7708, %v7700
  %v8869 = vpack.c.b16 %v7709, %v7701
  %v8870 = vpack.c.b16 %v7710, %v7702
  %v8871 = vpack.c.b16 %v7711, %v7703
  %v8872 = vpack.c.b16 %v7712, %v7704
  %v8873 = vpack.c.b16 %v7721, %v7713
  %v8874 = vpack.c.b16 %v7722, %v7714
  %v8875 = vpack.c.b16 %v7723, %v7715
  %v8876 = vpack.c.b16 %v7724, %v7716
  %v8877 = vpack.c.b16 %v7725, %v7717
  %v8878 = vpack.c.b16 %v7726, %v7718
  %v8879 = vpack.c.b16 %v7727, %v7719
  %v8880 = vpack.c.b16 %v7728, %v7720
  %v8881 = vpack.c.b16 %v7737, %v7729
  %v8882 = vpack.c.b16 %v7738, %v7730
  %v8883 = vpack.c.b16 %v7739, %v7731
  %v8884 = vpack.c.b16 %v7740, %v7732
  %v8885 = vpack.c.b16 %v7741, %v7733
  %v8886 = vpack.c.b16 %v7742, %v7734
  %v8887 = vpack.c.b16 %v7743, %v7735
  %v8888 = vpack.c.b16 %v7744, %v7736
  %v8889 = vpack.c.b16 %v7753, %v7745
  %v8890 = vpack.c.b16 %v7754, %v7746
  %v8891 = vpack.c.b16 %v7755, %v7747
  %v8892 = vpack.c.b16 %v7756, %v7748
  %v8893 = vpack.c.b16 %v7757, %v7749
  %v8894 = vpack.c.b16 %v7758, %v7750
  %v8895 = vpack.c.b16 %v7759, %v7751
  %v8896 = vpack.c.b16 %v7760, %v7752
  %v8897 = vpack.c.b16 %v7769, %v7761
  %v8898 = vpack.c.b16 %v7770, %v7762
  %v8899 = vpack.c.b16 %v7771, %v7763
  %v8900 = vpack.c.b16 %v7772, %v7764
  %v8901 = vpack.c.b16 %v7773, %v7765
  %v8902 = vpack.c.b16 %v7774, %v7766
  %v8903 = vpack.c.b16 %v7775, %v7767
  %v8904 = vpack.c.b16 %v7776, %v7768
  %v8905 = vpack.c.b16 %v7785, %v7777
  %v8906 = vpack.c.b16 %v7786, %v7778
  %v8907 = vpack.c.b16 %v7787, %v7779
  %v8908 = vpack.c.b16 %v7788, %v7780
  %v8909 = vpack.c.b16 %v7789, %v7781
  %v8910 = vpack.c.b16 %v7790, %v7782
  %v8911 = vpack.c.b16 %v7791, %v7783
  %v8912 = vpack.c.b16 %v7792, %v7784
  %v8913 = vpack.c.b16 %v7801, %v7793
  %v8914 = vpack.c.b16 %v7802, %v7794
  %v8915 = vpack.c.b16 %v7803, %v7795
  %v8916 = vpack.c.b16 %v7804, %v7796
  %v8917 = vpack.c.b16 %v7805, %v7797
  %v8918 = vpack.c.b16 %v7806, %v7798
  %v8919 = vpack.c.b16 %v7807, %v7799
  %v8920 = vpack.c.b16 %v7808, %v7800
  %v8921 = vpack.c.b16 %v7817, %v7809
  %v8922 = vpack.c.b16 %v7818, %v7810
  %v8923 = vpack.c.b16 %v7819, %v7811
  %v8924 = vpack.c.b16 %v7820, %v7812
  %v8925 = vpack.c.b16 %v7821, %v7813
  %v8926 = vpack.c.b16 %v7822, %v7814
  %v8927 = vpack.c.b16 %v7823, %v7815
  %v8928 = vpack.c.b16 %v7824, %v7816
  %v8929 = vpack.c.b16 %v7833, %v7825
  %v8930 = vpack.c.b16 %v7834, %v7826
  %v8931 = vpack.c.b16 %v7835, %v7827
  %v8932 = vpack.c.b16 %v7836, %v7828
  %v8933 = vpack.c.b16 %v7837, %v7829
  %v8934 = vpack.c.b16 %v7838, %v7830
  %v8935 = vpack.c.b16 %v7839, %v7831
  %v8936 = vpack.c.b16 %v7840, %v7832
  %v8937 = vpack.c.b16 %v7849, %v7841
  %v8938 = vpack.c.b16 %v7850, %v7842
  %v8939 = vpack.c.b16 %v7851, %v7843
  %v8940 = vpack.c.b16 %v7852, %v7844
  %v8941 = vpack.c.b16 %v7853, %v7845
  %v8942 = vpack.c.b16 %v7854, %v7846
  %v8943 = vpack.c.b16 %v7855, %v7847
  %v8944 = vpack.c.b16 %v7856, %v7848
  %v8945 = vpack.c.b16 %v7865, %v7857
  %v8946 = vpack.c.b16 %v7866, %v7858
  %v8947 = vpack.c.b16 %v7867, %v7859
  %v8948 = vpack.c.b16 %v7868, %v7860
  %v8949 = vpack.c.b16 %v7869, %v7861
  %v8950 = vpack.c.b16 %v7870, %v7862
  %v8951 = vpack.c.b16 %v7871, %v7863
  %v8952 = vpack.c.b16 %v7872, %v7864
  %v8953 = vpack.c.b16 %v7881, %v7873
  %v8954 = vpack.c.b16 %v7882, %v7874
  %v8955 = vpack.c.b16 %v7883, %v7875
  %v8956 = vpack.c.b16 %v7884, %v7876
  %v8957 = vpack.c.b16 %v7885, %v7877
  %v8958 = vpack.c.b16 %v7886, %v7878
  %v8959 = vpack.c.b16 %v7887, %v7879
  %v8960 = vpack.c.b16 %v7888, %v7880
  %v8961 = vpack.c.b16 %v7897, %v7889
  %v8962 = vpack.c.b16 %v7898, %v7890
  %v8963 = vpack.c.b16 %v7899, %v7891
  %v8964 = vpack.c.b16 %v7900, %v7892
  %v8965 = vpack.c.b16 %v7901, %v7893
  %v8966 = vpack.c.b16 %v7902, %v7894
  %v8967 = vpack.c.b16 %v7903, %v7895
  %v8968 = vpack.c.b16 %v7904, %v7896
  %v8969 = vpack.c.b16 %v7913, %v7905
  %v8970 = vpack.c.b16 %v7914, %v7906
  %v8971 = vpack.c.b16 %v7915, %v7907
  %v8972 = vpack.c.b16 %v7916, %v7908
  %v8973 = vpack.c.b16 %v7917, %v7909
  %v8974 = vpack.c.b16 %v7918, %v7910
  %v8975 = vpack.c.b16 %v7919, %v7911
  %v8976 = vpack.c.b16 %v7920, %v7912
  %v8977 = vpack.c.b16 %v7929, %v7921
  %v8978 = vpack.c.b16 %v7930, %v7922
  %v8979 = vpack.c.b16 %v7931, %v7923
  %v8980 = vpack.c.b16 %v7932, %v7924
  %v8981 = vpack.c.b16 %v7933, %v7925
  %v8982 = vpack.c.b16 %v7934, %v7926
  %v8983 = vpack.c.b16 %v7935, %v7927
  %v8984 = vpack.c.b16 %v7936, %v7928
  %v8985 = vpack.c.b16 %v7945, %v7937
  %v8986 = vpack.c.b16 %v7946, %v7938
  %v8987 = vpack.c.b16 %v7947, %v7939
  %v8988 = vpack.c.b16 %v7948, %v7940
  %v8989 = vpack.c.b16 %v7949, %v7941
  %v8990 = vpack.c.b16 %v7950, %v7942
  %v8991 = vpack.c.b16 %v7951, %v7943
  %v8992 = vpack.c.b16 %v7952, %v7944
  %v8993 = vpack.c.b16 %v7961, %v7953
  %v8994 = vpack.c.b16 %v7962, %v7954
  %v8995 = vpack.c.b16 %v7963, %v7955
  %v8996 = vpack.c.b16 %v7964, %v7956
  %v8997 = vpack.c.b16 %v7965, %v7957
  %v8998 = vpack.c.b16 %v7966, %v7958
  %v8999 = vpack.c.b16 %v7967, %v7959
  %v9000 = vpack.c.b16 %v7968, %v7960
  %v9001 = vpack.c.b16 %v7977, %v7969
  %v9002 = vpack.c.b16 %v7978, %v7970
  %v9003 = vpack.c.b16 %v7979, %v7971
  %v9004 = vpack.c.b16 %v7980, %v7972
  %v9005 = vpack.c.b16 %v7981, %v7973
  %v9006 = vpack.c.b16 %v7982, %v7974
  %v9007 = vpack.c.b16 %v7983, %v7975
  %v9008 = vpack.c.b16 %v7984, %v7976
  %10033 = vmatprep.subr.bf16.mxu0 %v8042
  %10034 = vmatpush1.bf16.msra.mxu0 %v8041
  %10035 = vmatprep.subr.bf16.mxu0 %v8034
  %10036 = vmatpush1.bf16.msra.mxu0 %v8033
  %10037 = vmatprep.subr.bf16.mxu0 %v8026
  %10038 = vmatpush1.bf16.msra.mxu0 %v8025
  %10039 = vmatprep.subr.bf16.mxu0 %v8018
  %10040 = vmatpush1.bf16.msra.mxu0 %v8017
  %10041 = vmatprep.subr.bf16.mxu0 %v8010
  %10042 = vmatpush1.bf16.msra.mxu0 %v8009
  %10043 = vmatprep.subr.bf16.mxu0 %v8002
  %10044 = vmatpush1.bf16.msra.mxu0 %v8001
  %10045 = vmatprep.subr.bf16.mxu0 %v7994
  %10046 = vmatpush1.bf16.msra.mxu0 %v7993
  %10047 = vmatprep.subr.bf16.mxu0 %v7986
  %10048 = vmatpush1.bf16.msra.mxu0 %v7985
  %10049 = vmatprep.subr.bf16.mxu0 %v8106
  %10050 = vmatpush2.bf16.msra.mxu0 %v8105
  %10051 = vmatprep.subr.bf16.mxu0 %v8098
  %10052 = vmatpush2.bf16.msra.mxu0 %v8097
  %10053 = vmatprep.subr.bf16.mxu0 %v8090
  %10054 = vmatpush2.bf16.msra.mxu0 %v8089
  %10055 = vmatprep.subr.bf16.mxu0 %v8082
  %10056 = vmatpush2.bf16.msra.mxu0 %v8081
  %10057 = vmatprep.subr.bf16.mxu0 %v8074
  %10058 = vmatpush2.bf16.msra.mxu0 %v8073
  %10059 = vmatprep.subr.bf16.mxu0 %v8066
  %10060 = vmatpush2.bf16.msra.mxu0 %v8065
  %10061 = vmatprep.subr.bf16.mxu0 %v8058
  %10062 = vmatpush2.bf16.msra.mxu0 %v8057
  %10063 = vmatprep.subr.bf16.mxu0 %v8050
  %10064 = vmatpush2.bf16.msra.mxu0 %v8049
  %10065 = vmatprep.mubr.bf16.mxu0 %v3832
  %10066 = vmatmul.mubr.bf16.gmra.mxu0 %v3831
  %v10067 = vpop.f32.mrf.mxu0
  %v10068 = vadd.f32 %v4876, %v10067
  %v10069 = vpop.f32.mrf.mxu0
  %v10070 = vadd.f32 %v4880, %v10069
  %v10071 = vpop.f32.mrf.mxu0
  %v10072 = vpop.f32.mrf.mxu0
  %10073 = vdwg.mxu0
  %10074 = vmatprep.subr.bf16.mxu0 %v8170
  %10075 = vmatpush1.bf16.msra.mxu0 %v8169
  %10076 = vmatprep.subr.bf16.mxu0 %v8162
  %10077 = vmatpush1.bf16.msra.mxu0 %v8161
  %10078 = vmatprep.subr.bf16.mxu0 %v8154
  %10079 = vmatpush1.bf16.msra.mxu0 %v8153
  %10080 = vmatprep.subr.bf16.mxu0 %v8146
  %10081 = vmatpush1.bf16.msra.mxu0 %v8145
  %10082 = vmatprep.subr.bf16.mxu0 %v8138
  %10083 = vmatpush1.bf16.msra.mxu0 %v8137
  %10084 = vmatprep.subr.bf16.mxu0 %v8130
  %10085 = vmatpush1.bf16.msra.mxu0 %v8129
  %10086 = vmatprep.subr.bf16.mxu0 %v8122
  %10087 = vmatpush1.bf16.msra.mxu0 %v8121
  %10088 = vmatprep.subr.bf16.mxu0 %v8114
  %10089 = vmatpush1.bf16.msra.mxu0 %v8113
  %10090 = vmatprep.subr.bf16.mxu0 %v8234
  %10091 = vmatpush2.bf16.msra.mxu0 %v8233
  %10092 = vmatprep.subr.bf16.mxu0 %v8226
  %10093 = vmatpush2.bf16.msra.mxu0 %v8225
  %10094 = vmatprep.subr.bf16.mxu0 %v8218
  %10095 = vmatpush2.bf16.msra.mxu0 %v8217
  %10096 = vmatprep.subr.bf16.mxu0 %v8210
  %10097 = vmatpush2.bf16.msra.mxu0 %v8209
  %10098 = vmatprep.subr.bf16.mxu0 %v8202
  %10099 = vmatpush2.bf16.msra.mxu0 %v8201
  %10100 = vmatprep.subr.bf16.mxu0 %v8194
  %10101 = vmatpush2.bf16.msra.mxu0 %v8193
  %10102 = vmatprep.subr.bf16.mxu0 %v8186
  %10103 = vmatpush2.bf16.msra.mxu0 %v8185
  %10104 = vmatprep.subr.bf16.mxu0 %v8178
  %10105 = vmatpush2.bf16.msra.mxu0 %v8177
  %10106 = vmatprep.mubr.bf16.mxu0 %v3834
  %10107 = vmatmul.mubr.bf16.gmra.mxu0 %v3833
  %v10108 = vpop.f32.mrf.mxu0
  %v10109 = vadd.f32 %v10068, %v10108
  %v10110 = vpop.f32.mrf.mxu0
  %v10111 = vadd.f32 %v10070, %v10110
  %v10112 = vpop.f32.mrf.mxu0
  %v10113 = vpop.f32.mrf.mxu0
  %10114 = vdwg.mxu0
  %10115 = vmatprep.subr.bf16.mxu0 %v8298
  %10116 = vmatpush1.bf16.msra.mxu0 %v8297
  %10117 = vmatprep.subr.bf16.mxu0 %v8290
  %10118 = vmatpush1.bf16.msra.mxu0 %v8289
  %10119 = vmatprep.subr.bf16.mxu0 %v8282
  %10120 = vmatpush1.bf16.msra.mxu0 %v8281
  %10121 = vmatprep.subr.bf16.mxu0 %v8274
  %10122 = vmatpush1.bf16.msra.mxu0 %v8273
  %10123 = vmatprep.subr.bf16.mxu0 %v8266
  %10124 = vmatpush1.bf16.msra.mxu0 %v8265
  %10125 = vmatprep.subr.bf16.mxu0 %v8258
  %10126 = vmatpush1.bf16.msra.mxu0 %v8257
  %10127 = vmatprep.subr.bf16.mxu0 %v8250
  %10128 = vmatpush1.bf16.msra.mxu0 %v8249
  %10129 = vmatprep.subr.bf16.mxu0 %v8242
  %10130 = vmatpush1.bf16.msra.mxu0 %v8241
  %10131 = vmatprep.subr.bf16.mxu0 %v8362
  %10132 = vmatpush2.bf16.msra.mxu0 %v8361
  %10133 = vmatprep.subr.bf16.mxu0 %v8354
  %10134 = vmatpush2.bf16.msra.mxu0 %v8353
  %10135 = vmatprep.subr.bf16.mxu0 %v8346
  %10136 = vmatpush2.bf16.msra.mxu0 %v8345
  %10137 = vmatprep.subr.bf16.mxu0 %v8338
  %10138 = vmatpush2.bf16.msra.mxu0 %v8337
  %10139 = vmatprep.subr.bf16.mxu0 %v8330
  %10140 = vmatpush2.bf16.msra.mxu0 %v8329
  %10141 = vmatprep.subr.bf16.mxu0 %v8322
  %10142 = vmatpush2.bf16.msra.mxu0 %v8321
  %10143 = vmatprep.subr.bf16.mxu0 %v8314
  %10144 = vmatpush2.bf16.msra.mxu0 %v8313
  %10145 = vmatprep.subr.bf16.mxu0 %v8306
  %10146 = vmatpush2.bf16.msra.mxu0 %v8305
  %10147 = vmatprep.mubr.bf16.mxu0 %v3836
  %10148 = vmatmul.mubr.bf16.gmra.mxu0 %v3835
  %v10149 = vpop.f32.mrf.mxu0
  %v10150 = vadd.f32 %v10109, %v10149
  %v10151 = vpop.f32.mrf.mxu0
  %v10152 = vadd.f32 %v10111, %v10151
  %v10153 = vpop.f32.mrf.mxu0
  %v10154 = vpop.f32.mrf.mxu0
  %10155 = vdwg.mxu0
  %10156 = vmatprep.subr.bf16.mxu0 %v8426
  %10157 = vmatpush1.bf16.msra.mxu0 %v8425
  %10158 = vmatprep.subr.bf16.mxu0 %v8418
  %10159 = vmatpush1.bf16.msra.mxu0 %v8417
  %10160 = vmatprep.subr.bf16.mxu0 %v8410
  %10161 = vmatpush1.bf16.msra.mxu0 %v8409
  %10162 = vmatprep.subr.bf16.mxu0 %v8402
  %10163 = vmatpush1.bf16.msra.mxu0 %v8401
  %10164 = vmatprep.subr.bf16.mxu0 %v8394
  %10165 = vmatpush1.bf16.msra.mxu0 %v8393
  %10166 = vmatprep.subr.bf16.mxu0 %v8386
  %10167 = vmatpush1.bf16.msra.mxu0 %v8385
  %10168 = vmatprep.subr.bf16.mxu0 %v8378
  %10169 = vmatpush1.bf16.msra.mxu0 %v8377
  %10170 = vmatprep.subr.bf16.mxu0 %v8370
  %10171 = vmatpush1.bf16.msra.mxu0 %v8369
  %10172 = vmatprep.subr.bf16.mxu0 %v8490
  %10173 = vmatpush2.bf16.msra.mxu0 %v8489
  %10174 = vmatprep.subr.bf16.mxu0 %v8482
  %10175 = vmatpush2.bf16.msra.mxu0 %v8481
  %10176 = vmatprep.subr.bf16.mxu0 %v8474
  %10177 = vmatpush2.bf16.msra.mxu0 %v8473
  %10178 = vmatprep.subr.bf16.mxu0 %v8466
  %10179 = vmatpush2.bf16.msra.mxu0 %v8465
  %10180 = vmatprep.subr.bf16.mxu0 %v8458
  %10181 = vmatpush2.bf16.msra.mxu0 %v8457
  %10182 = vmatprep.subr.bf16.mxu0 %v8450
  %10183 = vmatpush2.bf16.msra.mxu0 %v8449
  %10184 = vmatprep.subr.bf16.mxu0 %v8442
  %10185 = vmatpush2.bf16.msra.mxu0 %v8441
  %10186 = vmatprep.subr.bf16.mxu0 %v8434
  %10187 = vmatpush2.bf16.msra.mxu0 %v8433
  %10188 = vmatprep.mubr.bf16.mxu0 %v3838
  %10189 = vmatmul.mubr.bf16.gmra.mxu0 %v3837
  %v10190 = vpop.f32.mrf.mxu0
  %v10191 = vadd.f32 %v10150, %v10190
  %v10192 = vpop.f32.mrf.mxu0
  %v10193 = vadd.f32 %v10152, %v10192
  %v10194 = vpop.f32.mrf.mxu0
  %v10195 = vpop.f32.mrf.mxu0
  %10196 = vdwg.mxu0
  %10197 = vmatprep.subr.bf16.mxu0 %v8554
  %10198 = vmatpush1.bf16.msra.mxu0 %v8553
  %10199 = vmatprep.subr.bf16.mxu0 %v8546
  %10200 = vmatpush1.bf16.msra.mxu0 %v8545
  %10201 = vmatprep.subr.bf16.mxu0 %v8538
  %10202 = vmatpush1.bf16.msra.mxu0 %v8537
  %10203 = vmatprep.subr.bf16.mxu0 %v8530
  %10204 = vmatpush1.bf16.msra.mxu0 %v8529
  %10205 = vmatprep.subr.bf16.mxu0 %v8522
  %10206 = vmatpush1.bf16.msra.mxu0 %v8521
  %10207 = vmatprep.subr.bf16.mxu0 %v8514
  %10208 = vmatpush1.bf16.msra.mxu0 %v8513
  %10209 = vmatprep.subr.bf16.mxu0 %v8506
  %10210 = vmatpush1.bf16.msra.mxu0 %v8505
  %10211 = vmatprep.subr.bf16.mxu0 %v8498
  %10212 = vmatpush1.bf16.msra.mxu0 %v8497
  %10213 = vmatprep.subr.bf16.mxu0 %v8618
  %10214 = vmatpush2.bf16.msra.mxu0 %v8617
  %10215 = vmatprep.subr.bf16.mxu0 %v8610
  %10216 = vmatpush2.bf16.msra.mxu0 %v8609
  %10217 = vmatprep.subr.bf16.mxu0 %v8602
  %10218 = vmatpush2.bf16.msra.mxu0 %v8601
  %10219 = vmatprep.subr.bf16.mxu0 %v8594
  %10220 = vmatpush2.bf16.msra.mxu0 %v8593
  %10221 = vmatprep.subr.bf16.mxu0 %v8586
  %10222 = vmatpush2.bf16.msra.mxu0 %v8585
  %10223 = vmatprep.subr.bf16.mxu0 %v8578
  %10224 = vmatpush2.bf16.msra.mxu0 %v8577
  %10225 = vmatprep.subr.bf16.mxu0 %v8570
  %10226 = vmatpush2.bf16.msra.mxu0 %v8569
  %10227 = vmatprep.subr.bf16.mxu0 %v8562
  %10228 = vmatpush2.bf16.msra.mxu0 %v8561
  %10229 = vmatprep.mubr.bf16.mxu0 %v3840
  %10230 = vmatmul.mubr.bf16.gmra.mxu0 %v3839
  %v10231 = vpop.f32.mrf.mxu0
  %v10232 = vadd.f32 %v10191, %v10231
  %v10233 = vpop.f32.mrf.mxu0
  %v10234 = vadd.f32 %v10193, %v10233
  %v10235 = vpop.f32.mrf.mxu0
  %v10236 = vpop.f32.mrf.mxu0
  %10237 = vdwg.mxu0
  %10238 = vmatprep.subr.bf16.mxu0 %v8682
  %10239 = vmatpush1.bf16.msra.mxu0 %v8681
  %10240 = vmatprep.subr.bf16.mxu0 %v8674
  %10241 = vmatpush1.bf16.msra.mxu0 %v8673
  %10242 = vmatprep.subr.bf16.mxu0 %v8666
  %10243 = vmatpush1.bf16.msra.mxu0 %v8665
  %10244 = vmatprep.subr.bf16.mxu0 %v8658
  %10245 = vmatpush1.bf16.msra.mxu0 %v8657
  %10246 = vmatprep.subr.bf16.mxu0 %v8650
  %10247 = vmatpush1.bf16.msra.mxu0 %v8649
  %10248 = vmatprep.subr.bf16.mxu0 %v8642
  %10249 = vmatpush1.bf16.msra.mxu0 %v8641
  %10250 = vmatprep.subr.bf16.mxu0 %v8634
  %10251 = vmatpush1.bf16.msra.mxu0 %v8633
  %10252 = vmatprep.subr.bf16.mxu0 %v8626
  %10253 = vmatpush1.bf16.msra.mxu0 %v8625
  %10254 = vmatprep.subr.bf16.mxu0 %v8746
  %10255 = vmatpush2.bf16.msra.mxu0 %v8745
  %10256 = vmatprep.subr.bf16.mxu0 %v8738
  %10257 = vmatpush2.bf16.msra.mxu0 %v8737
  %10258 = vmatprep.subr.bf16.mxu0 %v8730
  %10259 = vmatpush2.bf16.msra.mxu0 %v8729
  %10260 = vmatprep.subr.bf16.mxu0 %v8722
  %10261 = vmatpush2.bf16.msra.mxu0 %v8721
  %10262 = vmatprep.subr.bf16.mxu0 %v8714
  %10263 = vmatpush2.bf16.msra.mxu0 %v8713
  %10264 = vmatprep.subr.bf16.mxu0 %v8706
  %10265 = vmatpush2.bf16.msra.mxu0 %v8705
  %10266 = vmatprep.subr.bf16.mxu0 %v8698
  %10267 = vmatpush2.bf16.msra.mxu0 %v8697
  %10268 = vmatprep.subr.bf16.mxu0 %v8690
  %10269 = vmatpush2.bf16.msra.mxu0 %v8689
  %10270 = vmatprep.mubr.bf16.mxu0 %v3842
  %10271 = vmatmul.mubr.bf16.gmra.mxu0 %v3841
  %v10272 = vpop.f32.mrf.mxu0
  %v10273 = vadd.f32 %v10232, %v10272
  %v10274 = vpop.f32.mrf.mxu0
  %v10275 = vadd.f32 %v10234, %v10274
  %v10276 = vpop.f32.mrf.mxu0
  %v10277 = vpop.f32.mrf.mxu0
  %10278 = vdwg.mxu0
  %10279 = vmatprep.subr.bf16.mxu0 %v8810
  %10280 = vmatpush1.bf16.msra.mxu0 %v8809
  %10281 = vmatprep.subr.bf16.mxu0 %v8802
  %10282 = vmatpush1.bf16.msra.mxu0 %v8801
  %10283 = vmatprep.subr.bf16.mxu0 %v8794
  %10284 = vmatpush1.bf16.msra.mxu0 %v8793
  %10285 = vmatprep.subr.bf16.mxu0 %v8786
  %10286 = vmatpush1.bf16.msra.mxu0 %v8785
  %10287 = vmatprep.subr.bf16.mxu0 %v8778
  %10288 = vmatpush1.bf16.msra.mxu0 %v8777
  %10289 = vmatprep.subr.bf16.mxu0 %v8770
  %10290 = vmatpush1.bf16.msra.mxu0 %v8769
  %10291 = vmatprep.subr.bf16.mxu0 %v8762
  %10292 = vmatpush1.bf16.msra.mxu0 %v8761
  %10293 = vmatprep.subr.bf16.mxu0 %v8754
  %10294 = vmatpush1.bf16.msra.mxu0 %v8753
  %10295 = vmatprep.subr.bf16.mxu0 %v8874
  %10296 = vmatpush2.bf16.msra.mxu0 %v8873
  %10297 = vmatprep.subr.bf16.mxu0 %v8866
  %10298 = vmatpush2.bf16.msra.mxu0 %v8865
  %10299 = vmatprep.subr.bf16.mxu0 %v8858
  %10300 = vmatpush2.bf16.msra.mxu0 %v8857
  %10301 = vmatprep.subr.bf16.mxu0 %v8850
  %10302 = vmatpush2.bf16.msra.mxu0 %v8849
  %10303 = vmatprep.subr.bf16.mxu0 %v8842
  %10304 = vmatpush2.bf16.msra.mxu0 %v8841
  %10305 = vmatprep.subr.bf16.mxu0 %v8834
  %10306 = vmatpush2.bf16.msra.mxu0 %v8833
  %10307 = vmatprep.subr.bf16.mxu0 %v8826
  %10308 = vmatpush2.bf16.msra.mxu0 %v8825
  %10309 = vmatprep.subr.bf16.mxu0 %v8818
  %10310 = vmatpush2.bf16.msra.mxu0 %v8817
  %10311 = vmatprep.mubr.bf16.mxu0 %v3844
  %10312 = vmatmul.mubr.bf16.gmra.mxu0 %v3843
  %v10313 = vpop.f32.mrf.mxu0
  %v10314 = vadd.f32 %v10273, %v10313
  %v10315 = vpop.f32.mrf.mxu0
  %v10316 = vadd.f32 %v10275, %v10315
  %v10317 = vpop.f32.mrf.mxu0
  %v10318 = vpop.f32.mrf.mxu0
  %10319 = vdwg.mxu0
  %10320 = vmatprep.subr.bf16.mxu0 %v8938
  %10321 = vmatpush1.bf16.msra.mxu0 %v8937
  %10322 = vmatprep.subr.bf16.mxu0 %v8930
  %10323 = vmatpush1.bf16.msra.mxu0 %v8929
  %10324 = vmatprep.subr.bf16.mxu0 %v8922
  %10325 = vmatpush1.bf16.msra.mxu0 %v8921
  %10326 = vmatprep.subr.bf16.mxu0 %v8914
  %10327 = vmatpush1.bf16.msra.mxu0 %v8913
  %10328 = vmatprep.subr.bf16.mxu0 %v8906
  %10329 = vmatpush1.bf16.msra.mxu0 %v8905
  %10330 = vmatprep.subr.bf16.mxu0 %v8898
  %10331 = vmatpush1.bf16.msra.mxu0 %v8897
  %10332 = vmatprep.subr.bf16.mxu0 %v8890
  %10333 = vmatpush1.bf16.msra.mxu0 %v8889
  %10334 = vmatprep.subr.bf16.mxu0 %v8882
  %10335 = vmatpush1.bf16.msra.mxu0 %v8881
  %10336 = vmatprep.subr.bf16.mxu0 %v9002
  %10337 = vmatpush2.bf16.msra.mxu0 %v9001
  %10338 = vmatprep.subr.bf16.mxu0 %v8994
  %10339 = vmatpush2.bf16.msra.mxu0 %v8993
  %10340 = vmatprep.subr.bf16.mxu0 %v8986
  %10341 = vmatpush2.bf16.msra.mxu0 %v8985
  %10342 = vmatprep.subr.bf16.mxu0 %v8978
  %10343 = vmatpush2.bf16.msra.mxu0 %v8977
  %10344 = vmatprep.subr.bf16.mxu0 %v8970
  %10345 = vmatpush2.bf16.msra.mxu0 %v8969
  %10346 = vmatprep.subr.bf16.mxu0 %v8962
  %10347 = vmatpush2.bf16.msra.mxu0 %v8961
  %10348 = vmatprep.subr.bf16.mxu0 %v8954
  %10349 = vmatpush2.bf16.msra.mxu0 %v8953
  %10350 = vmatprep.subr.bf16.mxu0 %v8946
  %10351 = vmatpush2.bf16.msra.mxu0 %v8945
  %10352 = vmatprep.mubr.bf16.mxu0 %v3846
  %10353 = vmatmul.mubr.bf16.gmra.mxu0 %v3845
  %v10354 = vpop.f32.mrf.mxu0
  %v10355 = vadd.f32 %v10314, %v10354
  %v10356 = vpop.f32.mrf.mxu0
  %v10357 = vadd.f32 %v10316, %v10356
  %v10358 = vpop.f32.mrf.mxu0
  %v10359 = vpop.f32.mrf.mxu0
  %10360 = vdwg.mxu0
  %10361 = vmatprep.subr.bf16.mxu0 %v8044
  %10362 = vmatpush1.bf16.msra.mxu0 %v8043
  %10363 = vmatprep.subr.bf16.mxu0 %v8036
  %10364 = vmatpush1.bf16.msra.mxu0 %v8035
  %10365 = vmatprep.subr.bf16.mxu0 %v8028
  %10366 = vmatpush1.bf16.msra.mxu0 %v8027
  %10367 = vmatprep.subr.bf16.mxu0 %v8020
  %10368 = vmatpush1.bf16.msra.mxu0 %v8019
  %10369 = vmatprep.subr.bf16.mxu0 %v8012
  %10370 = vmatpush1.bf16.msra.mxu0 %v8011
  %10371 = vmatprep.subr.bf16.mxu0 %v8004
  %10372 = vmatpush1.bf16.msra.mxu0 %v8003
  %10373 = vmatprep.subr.bf16.mxu0 %v7996
  %10374 = vmatpush1.bf16.msra.mxu0 %v7995
  %10375 = vmatprep.subr.bf16.mxu0 %v7988
  %10376 = vmatpush1.bf16.msra.mxu0 %v7987
  %10377 = vmatprep.subr.bf16.mxu0 %v8108
  %10378 = vmatpush2.bf16.msra.mxu0 %v8107
  %10379 = vmatprep.subr.bf16.mxu0 %v8100
  %10380 = vmatpush2.bf16.msra.mxu0 %v8099
  %10381 = vmatprep.subr.bf16.mxu0 %v8092
  %10382 = vmatpush2.bf16.msra.mxu0 %v8091
  %10383 = vmatprep.subr.bf16.mxu0 %v8084
  %10384 = vmatpush2.bf16.msra.mxu0 %v8083
  %10385 = vmatprep.subr.bf16.mxu0 %v8076
  %10386 = vmatpush2.bf16.msra.mxu0 %v8075
  %10387 = vmatprep.subr.bf16.mxu0 %v8068
  %10388 = vmatpush2.bf16.msra.mxu0 %v8067
  %10389 = vmatprep.subr.bf16.mxu0 %v8060
  %10390 = vmatpush2.bf16.msra.mxu0 %v8059
  %10391 = vmatprep.subr.bf16.mxu0 %v8052
  %10392 = vmatpush2.bf16.msra.mxu0 %v8051
  %10393 = vmatprep.mubr.bf16.mxu0 %v3832
  %10394 = vmatmul.mubr.bf16.gmra.mxu0 %v3831
  %v10395 = vpop.f32.mrf.mxu0
  %v10396 = vadd.f32 %v4884, %v10395
  %v10397 = vpop.f32.mrf.mxu0
  %v10398 = vadd.f32 %v4888, %v10397
  %v10399 = vpop.f32.mrf.mxu0
  %v10400 = vpop.f32.mrf.mxu0
  %10401 = vdwg.mxu0
  %10402 = vmatprep.subr.bf16.mxu0 %v8172
  %10403 = vmatpush1.bf16.msra.mxu0 %v8171
  %10404 = vmatprep.subr.bf16.mxu0 %v8164
  %10405 = vmatpush1.bf16.msra.mxu0 %v8163
  %10406 = vmatprep.subr.bf16.mxu0 %v8156
  %10407 = vmatpush1.bf16.msra.mxu0 %v8155
  %10408 = vmatprep.subr.bf16.mxu0 %v8148
  %10409 = vmatpush1.bf16.msra.mxu0 %v8147
  %10410 = vmatprep.subr.bf16.mxu0 %v8140
  %10411 = vmatpush1.bf16.msra.mxu0 %v8139
  %10412 = vmatprep.subr.bf16.mxu0 %v8132
  %10413 = vmatpush1.bf16.msra.mxu0 %v8131
  %10414 = vmatprep.subr.bf16.mxu0 %v8124
  %10415 = vmatpush1.bf16.msra.mxu0 %v8123
  %10416 = vmatprep.subr.bf16.mxu0 %v8116
  %10417 = vmatpush1.bf16.msra.mxu0 %v8115
  %10418 = vmatprep.subr.bf16.mxu0 %v8236
  %10419 = vmatpush2.bf16.msra.mxu0 %v8235
  %10420 = vmatprep.subr.bf16.mxu0 %v8228
  %10421 = vmatpush2.bf16.msra.mxu0 %v8227
  %10422 = vmatprep.subr.bf16.mxu0 %v8220
  %10423 = vmatpush2.bf16.msra.mxu0 %v8219
  %10424 = vmatprep.subr.bf16.mxu0 %v8212
  %10425 = vmatpush2.bf16.msra.mxu0 %v8211
  %10426 = vmatprep.subr.bf16.mxu0 %v8204
  %10427 = vmatpush2.bf16.msra.mxu0 %v8203
  %10428 = vmatprep.subr.bf16.mxu0 %v8196
  %10429 = vmatpush2.bf16.msra.mxu0 %v8195
  %10430 = vmatprep.subr.bf16.mxu0 %v8188
  %10431 = vmatpush2.bf16.msra.mxu0 %v8187
  %10432 = vmatprep.subr.bf16.mxu0 %v8180
  %10433 = vmatpush2.bf16.msra.mxu0 %v8179
  %10434 = vmatprep.mubr.bf16.mxu0 %v3834
  %10435 = vmatmul.mubr.bf16.gmra.mxu0 %v3833
  %v10436 = vpop.f32.mrf.mxu0
  %v10437 = vadd.f32 %v10396, %v10436
  %v10438 = vpop.f32.mrf.mxu0
  %v10439 = vadd.f32 %v10398, %v10438
  %v10440 = vpop.f32.mrf.mxu0
  %v10441 = vpop.f32.mrf.mxu0
  %10442 = vdwg.mxu0
  %10443 = vmatprep.subr.bf16.mxu0 %v8300
  %10444 = vmatpush1.bf16.msra.mxu0 %v8299
  %10445 = vmatprep.subr.bf16.mxu0 %v8292
  %10446 = vmatpush1.bf16.msra.mxu0 %v8291
  %10447 = vmatprep.subr.bf16.mxu0 %v8284
  %10448 = vmatpush1.bf16.msra.mxu0 %v8283
  %10449 = vmatprep.subr.bf16.mxu0 %v8276
  %10450 = vmatpush1.bf16.msra.mxu0 %v8275
  %10451 = vmatprep.subr.bf16.mxu0 %v8268
  %10452 = vmatpush1.bf16.msra.mxu0 %v8267
  %10453 = vmatprep.subr.bf16.mxu0 %v8260
  %10454 = vmatpush1.bf16.msra.mxu0 %v8259
  %10455 = vmatprep.subr.bf16.mxu0 %v8252
  %10456 = vmatpush1.bf16.msra.mxu0 %v8251
  %10457 = vmatprep.subr.bf16.mxu0 %v8244
  %10458 = vmatpush1.bf16.msra.mxu0 %v8243
  %10459 = vmatprep.subr.bf16.mxu0 %v8364
  %10460 = vmatpush2.bf16.msra.mxu0 %v8363
  %10461 = vmatprep.subr.bf16.mxu0 %v8356
  %10462 = vmatpush2.bf16.msra.mxu0 %v8355
  %10463 = vmatprep.subr.bf16.mxu0 %v8348
  %10464 = vmatpush2.bf16.msra.mxu0 %v8347
  %10465 = vmatprep.subr.bf16.mxu0 %v8340
  %10466 = vmatpush2.bf16.msra.mxu0 %v8339
  %10467 = vmatprep.subr.bf16.mxu0 %v8332
  %10468 = vmatpush2.bf16.msra.mxu0 %v8331
  %10469 = vmatprep.subr.bf16.mxu0 %v8324
  %10470 = vmatpush2.bf16.msra.mxu0 %v8323
  %10471 = vmatprep.subr.bf16.mxu0 %v8316
  %10472 = vmatpush2.bf16.msra.mxu0 %v8315
  %10473 = vmatprep.subr.bf16.mxu0 %v8308
  %10474 = vmatpush2.bf16.msra.mxu0 %v8307
  %10475 = vmatprep.mubr.bf16.mxu0 %v3836
  %10476 = vmatmul.mubr.bf16.gmra.mxu0 %v3835
  %v10477 = vpop.f32.mrf.mxu0
  %v10478 = vadd.f32 %v10437, %v10477
  %v10479 = vpop.f32.mrf.mxu0
  %v10480 = vadd.f32 %v10439, %v10479
  %v10481 = vpop.f32.mrf.mxu0
  %v10482 = vpop.f32.mrf.mxu0
  %10483 = vdwg.mxu0
  %10484 = vmatprep.subr.bf16.mxu0 %v8428
  %10485 = vmatpush1.bf16.msra.mxu0 %v8427
  %10486 = vmatprep.subr.bf16.mxu0 %v8420
  %10487 = vmatpush1.bf16.msra.mxu0 %v8419
  %10488 = vmatprep.subr.bf16.mxu0 %v8412
  %10489 = vmatpush1.bf16.msra.mxu0 %v8411
  %10490 = vmatprep.subr.bf16.mxu0 %v8404
  %10491 = vmatpush1.bf16.msra.mxu0 %v8403
  %10492 = vmatprep.subr.bf16.mxu0 %v8396
  %10493 = vmatpush1.bf16.msra.mxu0 %v8395
  %10494 = vmatprep.subr.bf16.mxu0 %v8388
  %10495 = vmatpush1.bf16.msra.mxu0 %v8387
  %10496 = vmatprep.subr.bf16.mxu0 %v8380
  %10497 = vmatpush1.bf16.msra.mxu0 %v8379
  %10498 = vmatprep.subr.bf16.mxu0 %v8372
  %10499 = vmatpush1.bf16.msra.mxu0 %v8371
  %10500 = vmatprep.subr.bf16.mxu0 %v8492
  %10501 = vmatpush2.bf16.msra.mxu0 %v8491
  %10502 = vmatprep.subr.bf16.mxu0 %v8484
  %10503 = vmatpush2.bf16.msra.mxu0 %v8483
  %10504 = vmatprep.subr.bf16.mxu0 %v8476
  %10505 = vmatpush2.bf16.msra.mxu0 %v8475
  %10506 = vmatprep.subr.bf16.mxu0 %v8468
  %10507 = vmatpush2.bf16.msra.mxu0 %v8467
  %10508 = vmatprep.subr.bf16.mxu0 %v8460
  %10509 = vmatpush2.bf16.msra.mxu0 %v8459
  %10510 = vmatprep.subr.bf16.mxu0 %v8452
  %10511 = vmatpush2.bf16.msra.mxu0 %v8451
  %10512 = vmatprep.subr.bf16.mxu0 %v8444
  %10513 = vmatpush2.bf16.msra.mxu0 %v8443
  %10514 = vmatprep.subr.bf16.mxu0 %v8436
  %10515 = vmatpush2.bf16.msra.mxu0 %v8435
  %10516 = vmatprep.mubr.bf16.mxu0 %v3838
  %10517 = vmatmul.mubr.bf16.gmra.mxu0 %v3837
  %v10518 = vpop.f32.mrf.mxu0
  %v10519 = vadd.f32 %v10478, %v10518
  %v10520 = vpop.f32.mrf.mxu0
  %v10521 = vadd.f32 %v10480, %v10520
  %v10522 = vpop.f32.mrf.mxu0
  %v10523 = vpop.f32.mrf.mxu0
  %10524 = vdwg.mxu0
  %10525 = vmatprep.subr.bf16.mxu0 %v8556
  %10526 = vmatpush1.bf16.msra.mxu0 %v8555
  %10527 = vmatprep.subr.bf16.mxu0 %v8548
  %10528 = vmatpush1.bf16.msra.mxu0 %v8547
  %10529 = vmatprep.subr.bf16.mxu0 %v8540
  %10530 = vmatpush1.bf16.msra.mxu0 %v8539
  %10531 = vmatprep.subr.bf16.mxu0 %v8532
  %10532 = vmatpush1.bf16.msra.mxu0 %v8531
  %10533 = vmatprep.subr.bf16.mxu0 %v8524
  %10534 = vmatpush1.bf16.msra.mxu0 %v8523
  %10535 = vmatprep.subr.bf16.mxu0 %v8516
  %10536 = vmatpush1.bf16.msra.mxu0 %v8515
  %10537 = vmatprep.subr.bf16.mxu0 %v8508
  %10538 = vmatpush1.bf16.msra.mxu0 %v8507
  %10539 = vmatprep.subr.bf16.mxu0 %v8500
  %10540 = vmatpush1.bf16.msra.mxu0 %v8499
  %10541 = vmatprep.subr.bf16.mxu0 %v8620
  %10542 = vmatpush2.bf16.msra.mxu0 %v8619
  %10543 = vmatprep.subr.bf16.mxu0 %v8612
  %10544 = vmatpush2.bf16.msra.mxu0 %v8611
  %10545 = vmatprep.subr.bf16.mxu0 %v8604
  %10546 = vmatpush2.bf16.msra.mxu0 %v8603
  %10547 = vmatprep.subr.bf16.mxu0 %v8596
  %10548 = vmatpush2.bf16.msra.mxu0 %v8595
  %10549 = vmatprep.subr.bf16.mxu0 %v8588
  %10550 = vmatpush2.bf16.msra.mxu0 %v8587
  %10551 = vmatprep.subr.bf16.mxu0 %v8580
  %10552 = vmatpush2.bf16.msra.mxu0 %v8579
  %10553 = vmatprep.subr.bf16.mxu0 %v8572
  %10554 = vmatpush2.bf16.msra.mxu0 %v8571
  %10555 = vmatprep.subr.bf16.mxu0 %v8564
  %10556 = vmatpush2.bf16.msra.mxu0 %v8563
  %10557 = vmatprep.mubr.bf16.mxu0 %v3840
  %10558 = vmatmul.mubr.bf16.gmra.mxu0 %v3839
  %v10559 = vpop.f32.mrf.mxu0
  %v10560 = vadd.f32 %v10519, %v10559
  %v10561 = vpop.f32.mrf.mxu0
  %v10562 = vadd.f32 %v10521, %v10561
  %v10563 = vpop.f32.mrf.mxu0
  %v10564 = vpop.f32.mrf.mxu0
  %10565 = vdwg.mxu0
  %10566 = vmatprep.subr.bf16.mxu0 %v8684
  %10567 = vmatpush1.bf16.msra.mxu0 %v8683
  %10568 = vmatprep.subr.bf16.mxu0 %v8676
  %10569 = vmatpush1.bf16.msra.mxu0 %v8675
  %10570 = vmatprep.subr.bf16.mxu0 %v8668
  %10571 = vmatpush1.bf16.msra.mxu0 %v8667
  %10572 = vmatprep.subr.bf16.mxu0 %v8660
  %10573 = vmatpush1.bf16.msra.mxu0 %v8659
  %10574 = vmatprep.subr.bf16.mxu0 %v8652
  %10575 = vmatpush1.bf16.msra.mxu0 %v8651
  %10576 = vmatprep.subr.bf16.mxu0 %v8644
  %10577 = vmatpush1.bf16.msra.mxu0 %v8643
  %10578 = vmatprep.subr.bf16.mxu0 %v8636
  %10579 = vmatpush1.bf16.msra.mxu0 %v8635
  %10580 = vmatprep.subr.bf16.mxu0 %v8628
  %10581 = vmatpush1.bf16.msra.mxu0 %v8627
  %10582 = vmatprep.subr.bf16.mxu0 %v8748
  %10583 = vmatpush2.bf16.msra.mxu0 %v8747
  %10584 = vmatprep.subr.bf16.mxu0 %v8740
  %10585 = vmatpush2.bf16.msra.mxu0 %v8739
  %10586 = vmatprep.subr.bf16.mxu0 %v8732
  %10587 = vmatpush2.bf16.msra.mxu0 %v8731
  %10588 = vmatprep.subr.bf16.mxu0 %v8724
  %10589 = vmatpush2.bf16.msra.mxu0 %v8723
  %10590 = vmatprep.subr.bf16.mxu0 %v8716
  %10591 = vmatpush2.bf16.msra.mxu0 %v8715
  %10592 = vmatprep.subr.bf16.mxu0 %v8708
  %10593 = vmatpush2.bf16.msra.mxu0 %v8707
  %10594 = vmatprep.subr.bf16.mxu0 %v8700
  %10595 = vmatpush2.bf16.msra.mxu0 %v8699
  %10596 = vmatprep.subr.bf16.mxu0 %v8692
  %10597 = vmatpush2.bf16.msra.mxu0 %v8691
  %10598 = vmatprep.mubr.bf16.mxu0 %v3842
  %10599 = vmatmul.mubr.bf16.gmra.mxu0 %v3841
  %v10600 = vpop.f32.mrf.mxu0
  %v10601 = vadd.f32 %v10560, %v10600
  %v10602 = vpop.f32.mrf.mxu0
  %v10603 = vadd.f32 %v10562, %v10602
  %v10604 = vpop.f32.mrf.mxu0
  %v10605 = vpop.f32.mrf.mxu0
  %10606 = vdwg.mxu0
  %10607 = vmatprep.subr.bf16.mxu0 %v8812
  %10608 = vmatpush1.bf16.msra.mxu0 %v8811
  %10609 = vmatprep.subr.bf16.mxu0 %v8804
  %10610 = vmatpush1.bf16.msra.mxu0 %v8803
  %10611 = vmatprep.subr.bf16.mxu0 %v8796
  %10612 = vmatpush1.bf16.msra.mxu0 %v8795
  %10613 = vmatprep.subr.bf16.mxu0 %v8788
  %10614 = vmatpush1.bf16.msra.mxu0 %v8787
  %10615 = vmatprep.subr.bf16.mxu0 %v8780
  %10616 = vmatpush1.bf16.msra.mxu0 %v8779
  %10617 = vmatprep.subr.bf16.mxu0 %v8772
  %10618 = vmatpush1.bf16.msra.mxu0 %v8771
  %10619 = vmatprep.subr.bf16.mxu0 %v8764
  %10620 = vmatpush1.bf16.msra.mxu0 %v8763
  %10621 = vmatprep.subr.bf16.mxu0 %v8756
  %10622 = vmatpush1.bf16.msra.mxu0 %v8755
  %10623 = vmatprep.subr.bf16.mxu0 %v8876
  %10624 = vmatpush2.bf16.msra.mxu0 %v8875
  %10625 = vmatprep.subr.bf16.mxu0 %v8868
  %10626 = vmatpush2.bf16.msra.mxu0 %v8867
  %10627 = vmatprep.subr.bf16.mxu0 %v8860
  %10628 = vmatpush2.bf16.msra.mxu0 %v8859
  %10629 = vmatprep.subr.bf16.mxu0 %v8852
  %10630 = vmatpush2.bf16.msra.mxu0 %v8851
  %10631 = vmatprep.subr.bf16.mxu0 %v8844
  %10632 = vmatpush2.bf16.msra.mxu0 %v8843
  %10633 = vmatprep.subr.bf16.mxu0 %v8836
  %10634 = vmatpush2.bf16.msra.mxu0 %v8835
  %10635 = vmatprep.subr.bf16.mxu0 %v8828
  %10636 = vmatpush2.bf16.msra.mxu0 %v8827
  %10637 = vmatprep.subr.bf16.mxu0 %v8820
  %10638 = vmatpush2.bf16.msra.mxu0 %v8819
  %10639 = vmatprep.mubr.bf16.mxu0 %v3844
  %10640 = vmatmul.mubr.bf16.gmra.mxu0 %v3843
  %v10641 = vpop.f32.mrf.mxu0
  %v10642 = vadd.f32 %v10601, %v10641
  %v10643 = vpop.f32.mrf.mxu0
  %v10644 = vadd.f32 %v10603, %v10643
  %v10645 = vpop.f32.mrf.mxu0
  %v10646 = vpop.f32.mrf.mxu0
  %10647 = vdwg.mxu0
  %10648 = vmatprep.subr.bf16.mxu0 %v8940
  %10649 = vmatpush1.bf16.msra.mxu0 %v8939
  %10650 = vmatprep.subr.bf16.mxu0 %v8932
  %10651 = vmatpush1.bf16.msra.mxu0 %v8931
  %10652 = vmatprep.subr.bf16.mxu0 %v8924
  %10653 = vmatpush1.bf16.msra.mxu0 %v8923
  %10654 = vmatprep.subr.bf16.mxu0 %v8916
  %10655 = vmatpush1.bf16.msra.mxu0 %v8915
  %10656 = vmatprep.subr.bf16.mxu0 %v8908
  %10657 = vmatpush1.bf16.msra.mxu0 %v8907
  %10658 = vmatprep.subr.bf16.mxu0 %v8900
  %10659 = vmatpush1.bf16.msra.mxu0 %v8899
  %10660 = vmatprep.subr.bf16.mxu0 %v8892
  %10661 = vmatpush1.bf16.msra.mxu0 %v8891
  %10662 = vmatprep.subr.bf16.mxu0 %v8884
  %10663 = vmatpush1.bf16.msra.mxu0 %v8883
  %10664 = vmatprep.subr.bf16.mxu0 %v9004
  %10665 = vmatpush2.bf16.msra.mxu0 %v9003
  %10666 = vmatprep.subr.bf16.mxu0 %v8996
  %10667 = vmatpush2.bf16.msra.mxu0 %v8995
  %10668 = vmatprep.subr.bf16.mxu0 %v8988
  %10669 = vmatpush2.bf16.msra.mxu0 %v8987
  %10670 = vmatprep.subr.bf16.mxu0 %v8980
  %10671 = vmatpush2.bf16.msra.mxu0 %v8979
  %10672 = vmatprep.subr.bf16.mxu0 %v8972
  %10673 = vmatpush2.bf16.msra.mxu0 %v8971
  %10674 = vmatprep.subr.bf16.mxu0 %v8964
  %10675 = vmatpush2.bf16.msra.mxu0 %v8963
  %10676 = vmatprep.subr.bf16.mxu0 %v8956
  %10677 = vmatpush2.bf16.msra.mxu0 %v8955
  %10678 = vmatprep.subr.bf16.mxu0 %v8948
  %10679 = vmatpush2.bf16.msra.mxu0 %v8947
  %10680 = vmatprep.mubr.bf16.mxu0 %v3846
  %10681 = vmatmul.mubr.bf16.gmra.mxu0 %v3845
  %v10682 = vpop.f32.mrf.mxu0
  %v10683 = vadd.f32 %v10642, %v10682
  %v10684 = vpop.f32.mrf.mxu0
  %v10685 = vadd.f32 %v10644, %v10684
  %v10686 = vpop.f32.mrf.mxu0
  %v10687 = vpop.f32.mrf.mxu0
  %10688 = vdwg.mxu0
  %10689 = vmatprep.subr.bf16.mxu0 %v8046
  %10690 = vmatpush1.bf16.msra.mxu0 %v8045
  %10691 = vmatprep.subr.bf16.mxu0 %v8038
  %10692 = vmatpush1.bf16.msra.mxu0 %v8037
  %10693 = vmatprep.subr.bf16.mxu0 %v8030
  %10694 = vmatpush1.bf16.msra.mxu0 %v8029
  %10695 = vmatprep.subr.bf16.mxu0 %v8022
  %10696 = vmatpush1.bf16.msra.mxu0 %v8021
  %10697 = vmatprep.subr.bf16.mxu0 %v8014
  %10698 = vmatpush1.bf16.msra.mxu0 %v8013
  %10699 = vmatprep.subr.bf16.mxu0 %v8006
  %10700 = vmatpush1.bf16.msra.mxu0 %v8005
  %10701 = vmatprep.subr.bf16.mxu0 %v7998
  %10702 = vmatpush1.bf16.msra.mxu0 %v7997
  %10703 = vmatprep.subr.bf16.mxu0 %v7990
  %10704 = vmatpush1.bf16.msra.mxu0 %v7989
  %10705 = vmatprep.subr.bf16.mxu0 %v8110
  %10706 = vmatpush2.bf16.msra.mxu0 %v8109
  %10707 = vmatprep.subr.bf16.mxu0 %v8102
  %10708 = vmatpush2.bf16.msra.mxu0 %v8101
  %10709 = vmatprep.subr.bf16.mxu0 %v8094
  %10710 = vmatpush2.bf16.msra.mxu0 %v8093
  %10711 = vmatprep.subr.bf16.mxu0 %v8086
  %10712 = vmatpush2.bf16.msra.mxu0 %v8085
  %10713 = vmatprep.subr.bf16.mxu0 %v8078
  %10714 = vmatpush2.bf16.msra.mxu0 %v8077
  %10715 = vmatprep.subr.bf16.mxu0 %v8070
  %10716 = vmatpush2.bf16.msra.mxu0 %v8069
  %10717 = vmatprep.subr.bf16.mxu0 %v8062
  %10718 = vmatpush2.bf16.msra.mxu0 %v8061
  %10719 = vmatprep.subr.bf16.mxu0 %v8054
  %10720 = vmatpush2.bf16.msra.mxu0 %v8053
  %10721 = vmatprep.mubr.bf16.mxu0 %v3832
  %10722 = vmatmul.mubr.bf16.gmra.mxu0 %v3831
  %v10723 = vpop.f32.mrf.mxu0
  %v10724 = vadd.f32 %v4892, %v10723
  %v10725 = vpop.f32.mrf.mxu0
  %v10726 = vadd.f32 %v4896, %v10725
  %v10727 = vpop.f32.mrf.mxu0
  %v10728 = vpop.f32.mrf.mxu0
  %10729 = vdwg.mxu0
  %10730 = vmatprep.subr.bf16.mxu0 %v8174
  %10731 = vmatpush1.bf16.msra.mxu0 %v8173
  %10732 = vmatprep.subr.bf16.mxu0 %v8166
  %10733 = vmatpush1.bf16.msra.mxu0 %v8165
  %10734 = vmatprep.subr.bf16.mxu0 %v8158
  %10735 = vmatpush1.bf16.msra.mxu0 %v8157
  %10736 = vmatprep.subr.bf16.mxu0 %v8150
  %10737 = vmatpush1.bf16.msra.mxu0 %v8149
  %10738 = vmatprep.subr.bf16.mxu0 %v8142
  %10739 = vmatpush1.bf16.msra.mxu0 %v8141
  %10740 = vmatprep.subr.bf16.mxu0 %v8134
  %10741 = vmatpush1.bf16.msra.mxu0 %v8133
  %10742 = vmatprep.subr.bf16.mxu0 %v8126
  %10743 = vmatpush1.bf16.msra.mxu0 %v8125
  %10744 = vmatprep.subr.bf16.mxu0 %v8118
  %10745 = vmatpush1.bf16.msra.mxu0 %v8117
  %10746 = vmatprep.subr.bf16.mxu0 %v8238
  %10747 = vmatpush2.bf16.msra.mxu0 %v8237
  %10748 = vmatprep.subr.bf16.mxu0 %v8230
  %10749 = vmatpush2.bf16.msra.mxu0 %v8229
  %10750 = vmatprep.subr.bf16.mxu0 %v8222
  %10751 = vmatpush2.bf16.msra.mxu0 %v8221
  %10752 = vmatprep.subr.bf16.mxu0 %v8214
  %10753 = vmatpush2.bf16.msra.mxu0 %v8213
  %10754 = vmatprep.subr.bf16.mxu0 %v8206
  %10755 = vmatpush2.bf16.msra.mxu0 %v8205
  %10756 = vmatprep.subr.bf16.mxu0 %v8198
  %10757 = vmatpush2.bf16.msra.mxu0 %v8197
  %10758 = vmatprep.subr.bf16.mxu0 %v8190
  %10759 = vmatpush2.bf16.msra.mxu0 %v8189
  %10760 = vmatprep.subr.bf16.mxu0 %v8182
  %10761 = vmatpush2.bf16.msra.mxu0 %v8181
  %10762 = vmatprep.mubr.bf16.mxu0 %v3834
  %10763 = vmatmul.mubr.bf16.gmra.mxu0 %v3833
  %v10764 = vpop.f32.mrf.mxu0
  %v10765 = vadd.f32 %v10724, %v10764
  %v10766 = vpop.f32.mrf.mxu0
  %v10767 = vadd.f32 %v10726, %v10766
  %v10768 = vpop.f32.mrf.mxu0
  %v10769 = vpop.f32.mrf.mxu0
  %10770 = vdwg.mxu0
  %10771 = vmatprep.subr.bf16.mxu0 %v8302
  %10772 = vmatpush1.bf16.msra.mxu0 %v8301
  %10773 = vmatprep.subr.bf16.mxu0 %v8294
  %10774 = vmatpush1.bf16.msra.mxu0 %v8293
  %10775 = vmatprep.subr.bf16.mxu0 %v8286
  %10776 = vmatpush1.bf16.msra.mxu0 %v8285
  %10777 = vmatprep.subr.bf16.mxu0 %v8278
  %10778 = vmatpush1.bf16.msra.mxu0 %v8277
  %10779 = vmatprep.subr.bf16.mxu0 %v8270
  %10780 = vmatpush1.bf16.msra.mxu0 %v8269
  %10781 = vmatprep.subr.bf16.mxu0 %v8262
  %10782 = vmatpush1.bf16.msra.mxu0 %v8261
  %10783 = vmatprep.subr.bf16.mxu0 %v8254
  %10784 = vmatpush1.bf16.msra.mxu0 %v8253
  %10785 = vmatprep.subr.bf16.mxu0 %v8246
  %10786 = vmatpush1.bf16.msra.mxu0 %v8245
  %10787 = vmatprep.subr.bf16.mxu0 %v8366
  %10788 = vmatpush2.bf16.msra.mxu0 %v8365
  %10789 = vmatprep.subr.bf16.mxu0 %v8358
  %10790 = vmatpush2.bf16.msra.mxu0 %v8357
  %10791 = vmatprep.subr.bf16.mxu0 %v8350
  %10792 = vmatpush2.bf16.msra.mxu0 %v8349
  %10793 = vmatprep.subr.bf16.mxu0 %v8342
  %10794 = vmatpush2.bf16.msra.mxu0 %v8341
  %10795 = vmatprep.subr.bf16.mxu0 %v8334
  %10796 = vmatpush2.bf16.msra.mxu0 %v8333
  %10797 = vmatprep.subr.bf16.mxu0 %v8326
  %10798 = vmatpush2.bf16.msra.mxu0 %v8325
  %10799 = vmatprep.subr.bf16.mxu0 %v8318
  %10800 = vmatpush2.bf16.msra.mxu0 %v8317
  %10801 = vmatprep.subr.bf16.mxu0 %v8310
  %10802 = vmatpush2.bf16.msra.mxu0 %v8309
  %10803 = vmatprep.mubr.bf16.mxu0 %v3836
  %10804 = vmatmul.mubr.bf16.gmra.mxu0 %v3835
  %v10805 = vpop.f32.mrf.mxu0
  %v10806 = vadd.f32 %v10765, %v10805
  %v10807 = vpop.f32.mrf.mxu0
  %v10808 = vadd.f32 %v10767, %v10807
  %v10809 = vpop.f32.mrf.mxu0
  %v10810 = vpop.f32.mrf.mxu0
  %10811 = vdwg.mxu0
  %10812 = vmatprep.subr.bf16.mxu0 %v8430
  %10813 = vmatpush1.bf16.msra.mxu0 %v8429
  %10814 = vmatprep.subr.bf16.mxu0 %v8422
  %10815 = vmatpush1.bf16.msra.mxu0 %v8421
  %10816 = vmatprep.subr.bf16.mxu0 %v8414
  %10817 = vmatpush1.bf16.msra.mxu0 %v8413
  %10818 = vmatprep.subr.bf16.mxu0 %v8406
  %10819 = vmatpush1.bf16.msra.mxu0 %v8405
  %10820 = vmatprep.subr.bf16.mxu0 %v8398
  %10821 = vmatpush1.bf16.msra.mxu0 %v8397
  %10822 = vmatprep.subr.bf16.mxu0 %v8390
  %10823 = vmatpush1.bf16.msra.mxu0 %v8389
  %10824 = vmatprep.subr.bf16.mxu0 %v8382
  %10825 = vmatpush1.bf16.msra.mxu0 %v8381
  %10826 = vmatprep.subr.bf16.mxu0 %v8374
  %10827 = vmatpush1.bf16.msra.mxu0 %v8373
  %10828 = vmatprep.subr.bf16.mxu0 %v8494
  %10829 = vmatpush2.bf16.msra.mxu0 %v8493
  %10830 = vmatprep.subr.bf16.mxu0 %v8486
  %10831 = vmatpush2.bf16.msra.mxu0 %v8485
  %10832 = vmatprep.subr.bf16.mxu0 %v8478
  %10833 = vmatpush2.bf16.msra.mxu0 %v8477
  %10834 = vmatprep.subr.bf16.mxu0 %v8470
  %10835 = vmatpush2.bf16.msra.mxu0 %v8469
  %10836 = vmatprep.subr.bf16.mxu0 %v8462
  %10837 = vmatpush2.bf16.msra.mxu0 %v8461
  %10838 = vmatprep.subr.bf16.mxu0 %v8454
  %10839 = vmatpush2.bf16.msra.mxu0 %v8453
  %10840 = vmatprep.subr.bf16.mxu0 %v8446
  %10841 = vmatpush2.bf16.msra.mxu0 %v8445
  %10842 = vmatprep.subr.bf16.mxu0 %v8438
  %10843 = vmatpush2.bf16.msra.mxu0 %v8437
  %10844 = vmatprep.mubr.bf16.mxu0 %v3838
  %10845 = vmatmul.mubr.bf16.gmra.mxu0 %v3837
  %v10846 = vpop.f32.mrf.mxu0
  %v10847 = vadd.f32 %v10806, %v10846
  %v10848 = vpop.f32.mrf.mxu0
  %v10849 = vadd.f32 %v10808, %v10848
  %v10850 = vpop.f32.mrf.mxu0
  %v10851 = vpop.f32.mrf.mxu0
  %10852 = vdwg.mxu0
  %10853 = vmatprep.subr.bf16.mxu0 %v8558
  %10854 = vmatpush1.bf16.msra.mxu0 %v8557
  %10855 = vmatprep.subr.bf16.mxu0 %v8550
  %10856 = vmatpush1.bf16.msra.mxu0 %v8549
  %10857 = vmatprep.subr.bf16.mxu0 %v8542
  %10858 = vmatpush1.bf16.msra.mxu0 %v8541
  %10859 = vmatprep.subr.bf16.mxu0 %v8534
  %10860 = vmatpush1.bf16.msra.mxu0 %v8533
  %10861 = vmatprep.subr.bf16.mxu0 %v8526
  %10862 = vmatpush1.bf16.msra.mxu0 %v8525
  %10863 = vmatprep.subr.bf16.mxu0 %v8518
  %10864 = vmatpush1.bf16.msra.mxu0 %v8517
  %10865 = vmatprep.subr.bf16.mxu0 %v8510
  %10866 = vmatpush1.bf16.msra.mxu0 %v8509
  %10867 = vmatprep.subr.bf16.mxu0 %v8502
  %10868 = vmatpush1.bf16.msra.mxu0 %v8501
  %10869 = vmatprep.subr.bf16.mxu0 %v8622
  %10870 = vmatpush2.bf16.msra.mxu0 %v8621
  %10871 = vmatprep.subr.bf16.mxu0 %v8614
  %10872 = vmatpush2.bf16.msra.mxu0 %v8613
  %10873 = vmatprep.subr.bf16.mxu0 %v8606
  %10874 = vmatpush2.bf16.msra.mxu0 %v8605
  %10875 = vmatprep.subr.bf16.mxu0 %v8598
  %10876 = vmatpush2.bf16.msra.mxu0 %v8597
  %10877 = vmatprep.subr.bf16.mxu0 %v8590
  %10878 = vmatpush2.bf16.msra.mxu0 %v8589
  %10879 = vmatprep.subr.bf16.mxu0 %v8582
  %10880 = vmatpush2.bf16.msra.mxu0 %v8581
  %10881 = vmatprep.subr.bf16.mxu0 %v8574
  %10882 = vmatpush2.bf16.msra.mxu0 %v8573
  %10883 = vmatprep.subr.bf16.mxu0 %v8566
  %10884 = vmatpush2.bf16.msra.mxu0 %v8565
  %10885 = vmatprep.mubr.bf16.mxu0 %v3840
  %10886 = vmatmul.mubr.bf16.gmra.mxu0 %v3839
  %v10887 = vpop.f32.mrf.mxu0
  %v10888 = vadd.f32 %v10847, %v10887
  %v10889 = vpop.f32.mrf.mxu0
  %v10890 = vadd.f32 %v10849, %v10889
  %v10891 = vpop.f32.mrf.mxu0
  %v10892 = vpop.f32.mrf.mxu0
  %10893 = vdwg.mxu0
  %10894 = vmatprep.subr.bf16.mxu0 %v8686
  %10895 = vmatpush1.bf16.msra.mxu0 %v8685
  %10896 = vmatprep.subr.bf16.mxu0 %v8678
  %10897 = vmatpush1.bf16.msra.mxu0 %v8677
  %10898 = vmatprep.subr.bf16.mxu0 %v8670
  %10899 = vmatpush1.bf16.msra.mxu0 %v8669
  %10900 = vmatprep.subr.bf16.mxu0 %v8662
  %10901 = vmatpush1.bf16.msra.mxu0 %v8661
  %10902 = vmatprep.subr.bf16.mxu0 %v8654
  %10903 = vmatpush1.bf16.msra.mxu0 %v8653
  %10904 = vmatprep.subr.bf16.mxu0 %v8646
  %10905 = vmatpush1.bf16.msra.mxu0 %v8645
  %10906 = vmatprep.subr.bf16.mxu0 %v8638
  %10907 = vmatpush1.bf16.msra.mxu0 %v8637
  %10908 = vmatprep.subr.bf16.mxu0 %v8630
  %10909 = vmatpush1.bf16.msra.mxu0 %v8629
  %10910 = vmatprep.subr.bf16.mxu0 %v8750
  %10911 = vmatpush2.bf16.msra.mxu0 %v8749
  %10912 = vmatprep.subr.bf16.mxu0 %v8742
  %10913 = vmatpush2.bf16.msra.mxu0 %v8741
  %10914 = vmatprep.subr.bf16.mxu0 %v8734
  %10915 = vmatpush2.bf16.msra.mxu0 %v8733
  %10916 = vmatprep.subr.bf16.mxu0 %v8726
  %10917 = vmatpush2.bf16.msra.mxu0 %v8725
  %10918 = vmatprep.subr.bf16.mxu0 %v8718
  %10919 = vmatpush2.bf16.msra.mxu0 %v8717
  %10920 = vmatprep.subr.bf16.mxu0 %v8710
  %10921 = vmatpush2.bf16.msra.mxu0 %v8709
  %10922 = vmatprep.subr.bf16.mxu0 %v8702
  %10923 = vmatpush2.bf16.msra.mxu0 %v8701
  %10924 = vmatprep.subr.bf16.mxu0 %v8694
  %10925 = vmatpush2.bf16.msra.mxu0 %v8693
  %10926 = vmatprep.mubr.bf16.mxu0 %v3842
  %10927 = vmatmul.mubr.bf16.gmra.mxu0 %v3841
  %v10928 = vpop.f32.mrf.mxu0
  %v10929 = vadd.f32 %v10888, %v10928
  %v10930 = vpop.f32.mrf.mxu0
  %v10931 = vadd.f32 %v10890, %v10930
  %v10932 = vpop.f32.mrf.mxu0
  %v10933 = vpop.f32.mrf.mxu0
  %10934 = vdwg.mxu0
  %10935 = vmatprep.subr.bf16.mxu0 %v8814
  %10936 = vmatpush1.bf16.msra.mxu0 %v8813
  %10937 = vmatprep.subr.bf16.mxu0 %v8806
  %10938 = vmatpush1.bf16.msra.mxu0 %v8805
  %10939 = vmatprep.subr.bf16.mxu0 %v8798
  %10940 = vmatpush1.bf16.msra.mxu0 %v8797
  %10941 = vmatprep.subr.bf16.mxu0 %v8790
  %10942 = vmatpush1.bf16.msra.mxu0 %v8789
  %10943 = vmatprep.subr.bf16.mxu0 %v8782
  %10944 = vmatpush1.bf16.msra.mxu0 %v8781
  %10945 = vmatprep.subr.bf16.mxu0 %v8774
  %10946 = vmatpush1.bf16.msra.mxu0 %v8773
  %10947 = vmatprep.subr.bf16.mxu0 %v8766
  %10948 = vmatpush1.bf16.msra.mxu0 %v8765
  %10949 = vmatprep.subr.bf16.mxu0 %v8758
  %10950 = vmatpush1.bf16.msra.mxu0 %v8757
  %10951 = vmatprep.subr.bf16.mxu0 %v8878
  %10952 = vmatpush2.bf16.msra.mxu0 %v8877
  %10953 = vmatprep.subr.bf16.mxu0 %v8870
  %10954 = vmatpush2.bf16.msra.mxu0 %v8869
  %10955 = vmatprep.subr.bf16.mxu0 %v8862
  %10956 = vmatpush2.bf16.msra.mxu0 %v8861
  %10957 = vmatprep.subr.bf16.mxu0 %v8854
  %10958 = vmatpush2.bf16.msra.mxu0 %v8853
  %10959 = vmatprep.subr.bf16.mxu0 %v8846
  %10960 = vmatpush2.bf16.msra.mxu0 %v8845
  %10961 = vmatprep.subr.bf16.mxu0 %v8838
  %10962 = vmatpush2.bf16.msra.mxu0 %v8837
  %10963 = vmatprep.subr.bf16.mxu0 %v8830
  %10964 = vmatpush2.bf16.msra.mxu0 %v8829
  %10965 = vmatprep.subr.bf16.mxu0 %v8822
  %10966 = vmatpush2.bf16.msra.mxu0 %v8821
  %10967 = vmatprep.mubr.bf16.mxu0 %v3844
  %10968 = vmatmul.mubr.bf16.gmra.mxu0 %v3843
  %v10969 = vpop.f32.mrf.mxu0
  %v10970 = vadd.f32 %v10929, %v10969
  %v10971 = vpop.f32.mrf.mxu0
  %v10972 = vadd.f32 %v10931, %v10971
  %v10973 = vpop.f32.mrf.mxu0
  %v10974 = vpop.f32.mrf.mxu0
  %10975 = vdwg.mxu0
  %10976 = vmatprep.subr.bf16.mxu0 %v8942
  %10977 = vmatpush1.bf16.msra.mxu0 %v8941
  %10978 = vmatprep.subr.bf16.mxu0 %v8934
  %10979 = vmatpush1.bf16.msra.mxu0 %v8933
  %10980 = vmatprep.subr.bf16.mxu0 %v8926
  %10981 = vmatpush1.bf16.msra.mxu0 %v8925
  %10982 = vmatprep.subr.bf16.mxu0 %v8918
  %10983 = vmatpush1.bf16.msra.mxu0 %v8917
  %10984 = vmatprep.subr.bf16.mxu0 %v8910
  %10985 = vmatpush1.bf16.msra.mxu0 %v8909
  %10986 = vmatprep.subr.bf16.mxu0 %v8902
  %10987 = vmatpush1.bf16.msra.mxu0 %v8901
  %10988 = vmatprep.subr.bf16.mxu0 %v8894
  %10989 = vmatpush1.bf16.msra.mxu0 %v8893
  %10990 = vmatprep.subr.bf16.mxu0 %v8886
  %10991 = vmatpush1.bf16.msra.mxu0 %v8885
  %10992 = vmatprep.subr.bf16.mxu0 %v9006
  %10993 = vmatpush2.bf16.msra.mxu0 %v9005
  %10994 = vmatprep.subr.bf16.mxu0 %v8998
  %10995 = vmatpush2.bf16.msra.mxu0 %v8997
  %10996 = vmatprep.subr.bf16.mxu0 %v8990
  %10997 = vmatpush2.bf16.msra.mxu0 %v8989
  %10998 = vmatprep.subr.bf16.mxu0 %v8982
  %10999 = vmatpush2.bf16.msra.mxu0 %v8981
  %11000 = vmatprep.subr.bf16.mxu0 %v8974
  %11001 = vmatpush2.bf16.msra.mxu0 %v8973
  %11002 = vmatprep.subr.bf16.mxu0 %v8966
  %11003 = vmatpush2.bf16.msra.mxu0 %v8965
  %11004 = vmatprep.subr.bf16.mxu0 %v8958
  %11005 = vmatpush2.bf16.msra.mxu0 %v8957
  %11006 = vmatprep.subr.bf16.mxu0 %v8950
  %11007 = vmatpush2.bf16.msra.mxu0 %v8949
  %11008 = vmatprep.mubr.bf16.mxu0 %v3846
  %11009 = vmatmul.mubr.bf16.gmra.mxu0 %v3845
  %v11010 = vpop.f32.mrf.mxu0
  %v11011 = vadd.f32 %v10970, %v11010
  %v11012 = vpop.f32.mrf.mxu0
  %v11013 = vadd.f32 %v10972, %v11012
  %v11014 = vpop.f32.mrf.mxu0
  %v11015 = vpop.f32.mrf.mxu0
  %11016 = vdwg.mxu0
  %11017 = vmatprep.subr.bf16.mxu0 %v8048
  %11018 = vmatpush1.bf16.msra.mxu0 %v8047
  %11019 = vmatprep.subr.bf16.mxu0 %v8040
  %11020 = vmatpush1.bf16.msra.mxu0 %v8039
  %11021 = vmatprep.subr.bf16.mxu0 %v8032
  %11022 = vmatpush1.bf16.msra.mxu0 %v8031
  %11023 = vmatprep.subr.bf16.mxu0 %v8024
  %11024 = vmatpush1.bf16.msra.mxu0 %v8023
  %11025 = vmatprep.subr.bf16.mxu0 %v8016
  %11026 = vmatpush1.bf16.msra.mxu0 %v8015
  %11027 = vmatprep.subr.bf16.mxu0 %v8008
  %11028 = vmatpush1.bf16.msra.mxu0 %v8007
  %11029 = vmatprep.subr.bf16.mxu0 %v8000
  %11030 = vmatpush1.bf16.msra.mxu0 %v7999
  %11031 = vmatprep.subr.bf16.mxu0 %v7992
  %11032 = vmatpush1.bf16.msra.mxu0 %v7991
  %11033 = vmatprep.subr.bf16.mxu0 %v8112
  %11034 = vmatpush2.bf16.msra.mxu0 %v8111
  %11035 = vmatprep.subr.bf16.mxu0 %v8104
  %11036 = vmatpush2.bf16.msra.mxu0 %v8103
  %11037 = vmatprep.subr.bf16.mxu0 %v8096
  %11038 = vmatpush2.bf16.msra.mxu0 %v8095
  %11039 = vmatprep.subr.bf16.mxu0 %v8088
  %11040 = vmatpush2.bf16.msra.mxu0 %v8087
  %11041 = vmatprep.subr.bf16.mxu0 %v8080
  %11042 = vmatpush2.bf16.msra.mxu0 %v8079
  %11043 = vmatprep.subr.bf16.mxu0 %v8072
  %11044 = vmatpush2.bf16.msra.mxu0 %v8071
  %11045 = vmatprep.subr.bf16.mxu0 %v8064
  %11046 = vmatpush2.bf16.msra.mxu0 %v8063
  %11047 = vmatprep.subr.bf16.mxu0 %v8056
  %11048 = vmatpush2.bf16.msra.mxu0 %v8055
  %11049 = vmatprep.mubr.bf16.mxu0 %v3832
  %11050 = vmatmul.mubr.bf16.gmra.mxu0 %v3831
  %v11051 = vpop.f32.mrf.mxu0
  %v11052 = vadd.f32 %v4900, %v11051
  %v11053 = vpop.f32.mrf.mxu0
  %v11054 = vadd.f32 %v4904, %v11053
  %v11055 = vpop.f32.mrf.mxu0
  %v11056 = vpop.f32.mrf.mxu0
  %11057 = vdwg.mxu0
  %11058 = vmatprep.subr.bf16.mxu0 %v8176
  %11059 = vmatpush1.bf16.msra.mxu0 %v8175
  %11060 = vmatprep.subr.bf16.mxu0 %v8168
  %11061 = vmatpush1.bf16.msra.mxu0 %v8167
  %11062 = vmatprep.subr.bf16.mxu0 %v8160
  %11063 = vmatpush1.bf16.msra.mxu0 %v8159
  %11064 = vmatprep.subr.bf16.mxu0 %v8152
  %11065 = vmatpush1.bf16.msra.mxu0 %v8151
  %11066 = vmatprep.subr.bf16.mxu0 %v8144
  %11067 = vmatpush1.bf16.msra.mxu0 %v8143
  %11068 = vmatprep.subr.bf16.mxu0 %v8136
  %11069 = vmatpush1.bf16.msra.mxu0 %v8135
  %11070 = vmatprep.subr.bf16.mxu0 %v8128
  %11071 = vmatpush1.bf16.msra.mxu0 %v8127
  %11072 = vmatprep.subr.bf16.mxu0 %v8120
  %11073 = vmatpush1.bf16.msra.mxu0 %v8119
  %11074 = vmatprep.subr.bf16.mxu0 %v8240
  %11075 = vmatpush2.bf16.msra.mxu0 %v8239
  %11076 = vmatprep.subr.bf16.mxu0 %v8232
  %11077 = vmatpush2.bf16.msra.mxu0 %v8231
  %11078 = vmatprep.subr.bf16.mxu0 %v8224
  %11079 = vmatpush2.bf16.msra.mxu0 %v8223
  %11080 = vmatprep.subr.bf16.mxu0 %v8216
  %11081 = vmatpush2.bf16.msra.mxu0 %v8215
  %11082 = vmatprep.subr.bf16.mxu0 %v8208
  %11083 = vmatpush2.bf16.msra.mxu0 %v8207
  %11084 = vmatprep.subr.bf16.mxu0 %v8200
  %11085 = vmatpush2.bf16.msra.mxu0 %v8199
  %11086 = vmatprep.subr.bf16.mxu0 %v8192
  %11087 = vmatpush2.bf16.msra.mxu0 %v8191
  %11088 = vmatprep.subr.bf16.mxu0 %v8184
  %11089 = vmatpush2.bf16.msra.mxu0 %v8183
  %11090 = vmatprep.mubr.bf16.mxu0 %v3834
  %11091 = vmatmul.mubr.bf16.gmra.mxu0 %v3833
  %v11092 = vpop.f32.mrf.mxu0
  %v11093 = vadd.f32 %v11052, %v11092
  %v11094 = vpop.f32.mrf.mxu0
  %v11095 = vadd.f32 %v11054, %v11094
  %v11096 = vpop.f32.mrf.mxu0
  %v11097 = vpop.f32.mrf.mxu0
  %11098 = vdwg.mxu0
  %11099 = vmatprep.subr.bf16.mxu0 %v8304
  %11100 = vmatpush1.bf16.msra.mxu0 %v8303
  %11101 = vmatprep.subr.bf16.mxu0 %v8296
  %11102 = vmatpush1.bf16.msra.mxu0 %v8295
  %11103 = vmatprep.subr.bf16.mxu0 %v8288
  %11104 = vmatpush1.bf16.msra.mxu0 %v8287
  %11105 = vmatprep.subr.bf16.mxu0 %v8280
  %11106 = vmatpush1.bf16.msra.mxu0 %v8279
  %11107 = vmatprep.subr.bf16.mxu0 %v8272
  %11108 = vmatpush1.bf16.msra.mxu0 %v8271
  %11109 = vmatprep.subr.bf16.mxu0 %v8264
  %11110 = vmatpush1.bf16.msra.mxu0 %v8263
  %11111 = vmatprep.subr.bf16.mxu0 %v8256
  %11112 = vmatpush1.bf16.msra.mxu0 %v8255
  %11113 = vmatprep.subr.bf16.mxu0 %v8248
  %11114 = vmatpush1.bf16.msra.mxu0 %v8247
  %11115 = vmatprep.subr.bf16.mxu0 %v8368
  %11116 = vmatpush2.bf16.msra.mxu0 %v8367
  %11117 = vmatprep.subr.bf16.mxu0 %v8360
  %11118 = vmatpush2.bf16.msra.mxu0 %v8359
  %11119 = vmatprep.subr.bf16.mxu0 %v8352
  %11120 = vmatpush2.bf16.msra.mxu0 %v8351
  %11121 = vmatprep.subr.bf16.mxu0 %v8344
  %11122 = vmatpush2.bf16.msra.mxu0 %v8343
  %11123 = vmatprep.subr.bf16.mxu0 %v8336
  %11124 = vmatpush2.bf16.msra.mxu0 %v8335
  %11125 = vmatprep.subr.bf16.mxu0 %v8328
  %11126 = vmatpush2.bf16.msra.mxu0 %v8327
  %11127 = vmatprep.subr.bf16.mxu0 %v8320
  %11128 = vmatpush2.bf16.msra.mxu0 %v8319
  %11129 = vmatprep.subr.bf16.mxu0 %v8312
  %11130 = vmatpush2.bf16.msra.mxu0 %v8311
  %11131 = vmatprep.mubr.bf16.mxu0 %v3836
  %11132 = vmatmul.mubr.bf16.gmra.mxu0 %v3835
  %v11133 = vpop.f32.mrf.mxu0
  %v11134 = vadd.f32 %v11093, %v11133
  %v11135 = vpop.f32.mrf.mxu0
  %v11136 = vadd.f32 %v11095, %v11135
  %v11137 = vpop.f32.mrf.mxu0
  %v11138 = vpop.f32.mrf.mxu0
  %11139 = vdwg.mxu0
  %11140 = vmatprep.subr.bf16.mxu0 %v8432
  %11141 = vmatpush1.bf16.msra.mxu0 %v8431
  %11142 = vmatprep.subr.bf16.mxu0 %v8424
  %11143 = vmatpush1.bf16.msra.mxu0 %v8423
  %11144 = vmatprep.subr.bf16.mxu0 %v8416
  %11145 = vmatpush1.bf16.msra.mxu0 %v8415
  %11146 = vmatprep.subr.bf16.mxu0 %v8408
  %11147 = vmatpush1.bf16.msra.mxu0 %v8407
  %11148 = vmatprep.subr.bf16.mxu0 %v8400
  %11149 = vmatpush1.bf16.msra.mxu0 %v8399
  %11150 = vmatprep.subr.bf16.mxu0 %v8392
  %11151 = vmatpush1.bf16.msra.mxu0 %v8391
  %11152 = vmatprep.subr.bf16.mxu0 %v8384
  %11153 = vmatpush1.bf16.msra.mxu0 %v8383
  %11154 = vmatprep.subr.bf16.mxu0 %v8376
  %11155 = vmatpush1.bf16.msra.mxu0 %v8375
  %11156 = vmatprep.subr.bf16.mxu0 %v8496
  %11157 = vmatpush2.bf16.msra.mxu0 %v8495
  %11158 = vmatprep.subr.bf16.mxu0 %v8488
  %11159 = vmatpush2.bf16.msra.mxu0 %v8487
  %11160 = vmatprep.subr.bf16.mxu0 %v8480
  %11161 = vmatpush2.bf16.msra.mxu0 %v8479
  %11162 = vmatprep.subr.bf16.mxu0 %v8472
  %11163 = vmatpush2.bf16.msra.mxu0 %v8471
  %11164 = vmatprep.subr.bf16.mxu0 %v8464
  %11165 = vmatpush2.bf16.msra.mxu0 %v8463
  %11166 = vmatprep.subr.bf16.mxu0 %v8456
  %11167 = vmatpush2.bf16.msra.mxu0 %v8455
  %11168 = vmatprep.subr.bf16.mxu0 %v8448
  %11169 = vmatpush2.bf16.msra.mxu0 %v8447
  %11170 = vmatprep.subr.bf16.mxu0 %v8440
  %11171 = vmatpush2.bf16.msra.mxu0 %v8439
  %11172 = vmatprep.mubr.bf16.mxu0 %v3838
  %11173 = vmatmul.mubr.bf16.gmra.mxu0 %v3837
  %v11174 = vpop.f32.mrf.mxu0
  %v11175 = vadd.f32 %v11134, %v11174
  %v11176 = vpop.f32.mrf.mxu0
  %v11177 = vadd.f32 %v11136, %v11176
  %v11178 = vpop.f32.mrf.mxu0
  %v11179 = vpop.f32.mrf.mxu0
  %11180 = vdwg.mxu0
  %11181 = vmatprep.subr.bf16.mxu0 %v8560
  %11182 = vmatpush1.bf16.msra.mxu0 %v8559
  %11183 = vmatprep.subr.bf16.mxu0 %v8552
  %11184 = vmatpush1.bf16.msra.mxu0 %v8551
  %11185 = vmatprep.subr.bf16.mxu0 %v8544
  %11186 = vmatpush1.bf16.msra.mxu0 %v8543
  %11187 = vmatprep.subr.bf16.mxu0 %v8536
  %11188 = vmatpush1.bf16.msra.mxu0 %v8535
  %11189 = vmatprep.subr.bf16.mxu0 %v8528
  %11190 = vmatpush1.bf16.msra.mxu0 %v8527
  %11191 = vmatprep.subr.bf16.mxu0 %v8520
  %11192 = vmatpush1.bf16.msra.mxu0 %v8519
  %11193 = vmatprep.subr.bf16.mxu0 %v8512
  %11194 = vmatpush1.bf16.msra.mxu0 %v8511
  %11195 = vmatprep.subr.bf16.mxu0 %v8504
  %11196 = vmatpush1.bf16.msra.mxu0 %v8503
  %11197 = vmatprep.subr.bf16.mxu0 %v8624
  %11198 = vmatpush2.bf16.msra.mxu0 %v8623
  %11199 = vmatprep.subr.bf16.mxu0 %v8616
  %11200 = vmatpush2.bf16.msra.mxu0 %v8615
  %11201 = vmatprep.subr.bf16.mxu0 %v8608
  %11202 = vmatpush2.bf16.msra.mxu0 %v8607
  %11203 = vmatprep.subr.bf16.mxu0 %v8600
  %11204 = vmatpush2.bf16.msra.mxu0 %v8599
  %11205 = vmatprep.subr.bf16.mxu0 %v8592
  %11206 = vmatpush2.bf16.msra.mxu0 %v8591
  %11207 = vmatprep.subr.bf16.mxu0 %v8584
  %11208 = vmatpush2.bf16.msra.mxu0 %v8583
  %11209 = vmatprep.subr.bf16.mxu0 %v8576
  %11210 = vmatpush2.bf16.msra.mxu0 %v8575
  %11211 = vmatprep.subr.bf16.mxu0 %v8568
  %11212 = vmatpush2.bf16.msra.mxu0 %v8567
  %11213 = vmatprep.mubr.bf16.mxu0 %v3840
  %11214 = vmatmul.mubr.bf16.gmra.mxu0 %v3839
  %v11215 = vpop.f32.mrf.mxu0
  %v11216 = vadd.f32 %v11175, %v11215
  %v11217 = vpop.f32.mrf.mxu0
  %v11218 = vadd.f32 %v11177, %v11217
  %v11219 = vpop.f32.mrf.mxu0
  %v11220 = vpop.f32.mrf.mxu0
  %11221 = vdwg.mxu0
  %11222 = vmatprep.subr.bf16.mxu0 %v8688
  %11223 = vmatpush1.bf16.msra.mxu0 %v8687
  %11224 = vmatprep.subr.bf16.mxu0 %v8680
  %11225 = vmatpush1.bf16.msra.mxu0 %v8679
  %11226 = vmatprep.subr.bf16.mxu0 %v8672
  %11227 = vmatpush1.bf16.msra.mxu0 %v8671
  %11228 = vmatprep.subr.bf16.mxu0 %v8664
  %11229 = vmatpush1.bf16.msra.mxu0 %v8663
  %11230 = vmatprep.subr.bf16.mxu0 %v8656
  %11231 = vmatpush1.bf16.msra.mxu0 %v8655
  %11232 = vmatprep.subr.bf16.mxu0 %v8648
  %11233 = vmatpush1.bf16.msra.mxu0 %v8647
  %11234 = vmatprep.subr.bf16.mxu0 %v8640
  %11235 = vmatpush1.bf16.msra.mxu0 %v8639
  %11236 = vmatprep.subr.bf16.mxu0 %v8632
  %11237 = vmatpush1.bf16.msra.mxu0 %v8631
  %11238 = vmatprep.subr.bf16.mxu0 %v8752
  %11239 = vmatpush2.bf16.msra.mxu0 %v8751
  %11240 = vmatprep.subr.bf16.mxu0 %v8744
  %11241 = vmatpush2.bf16.msra.mxu0 %v8743
  %11242 = vmatprep.subr.bf16.mxu0 %v8736
  %11243 = vmatpush2.bf16.msra.mxu0 %v8735
  %11244 = vmatprep.subr.bf16.mxu0 %v8728
  %11245 = vmatpush2.bf16.msra.mxu0 %v8727
  %11246 = vmatprep.subr.bf16.mxu0 %v8720
  %11247 = vmatpush2.bf16.msra.mxu0 %v8719
  %11248 = vmatprep.subr.bf16.mxu0 %v8712
  %11249 = vmatpush2.bf16.msra.mxu0 %v8711
  %11250 = vmatprep.subr.bf16.mxu0 %v8704
  %11251 = vmatpush2.bf16.msra.mxu0 %v8703
  %11252 = vmatprep.subr.bf16.mxu0 %v8696
  %11253 = vmatpush2.bf16.msra.mxu0 %v8695
  %11254 = vmatprep.mubr.bf16.mxu0 %v3842
  %11255 = vmatmul.mubr.bf16.gmra.mxu0 %v3841
  %v11256 = vpop.f32.mrf.mxu0
  %v11257 = vadd.f32 %v11216, %v11256
  %v11258 = vpop.f32.mrf.mxu0
  %v11259 = vadd.f32 %v11218, %v11258
  %v11260 = vpop.f32.mrf.mxu0
  %v11261 = vpop.f32.mrf.mxu0
  %11262 = vdwg.mxu0
  %11263 = vmatprep.subr.bf16.mxu0 %v8816
  %11264 = vmatpush1.bf16.msra.mxu0 %v8815
  %11265 = vmatprep.subr.bf16.mxu0 %v8808
  %11266 = vmatpush1.bf16.msra.mxu0 %v8807
  %11267 = vmatprep.subr.bf16.mxu0 %v8800
  %11268 = vmatpush1.bf16.msra.mxu0 %v8799
  %11269 = vmatprep.subr.bf16.mxu0 %v8792
  %11270 = vmatpush1.bf16.msra.mxu0 %v8791
  %11271 = vmatprep.subr.bf16.mxu0 %v8784
  %11272 = vmatpush1.bf16.msra.mxu0 %v8783
  %11273 = vmatprep.subr.bf16.mxu0 %v8776
  %11274 = vmatpush1.bf16.msra.mxu0 %v8775
  %11275 = vmatprep.subr.bf16.mxu0 %v8768
  %11276 = vmatpush1.bf16.msra.mxu0 %v8767
  %11277 = vmatprep.subr.bf16.mxu0 %v8760
  %11278 = vmatpush1.bf16.msra.mxu0 %v8759
  %11279 = vmatprep.subr.bf16.mxu0 %v8880
  %11280 = vmatpush2.bf16.msra.mxu0 %v8879
  %11281 = vmatprep.subr.bf16.mxu0 %v8872
  %11282 = vmatpush2.bf16.msra.mxu0 %v8871
  %11283 = vmatprep.subr.bf16.mxu0 %v8864
  %11284 = vmatpush2.bf16.msra.mxu0 %v8863
  %11285 = vmatprep.subr.bf16.mxu0 %v8856
  %11286 = vmatpush2.bf16.msra.mxu0 %v8855
  %11287 = vmatprep.subr.bf16.mxu0 %v8848
  %11288 = vmatpush2.bf16.msra.mxu0 %v8847
  %11289 = vmatprep.subr.bf16.mxu0 %v8840
  %11290 = vmatpush2.bf16.msra.mxu0 %v8839
  %11291 = vmatprep.subr.bf16.mxu0 %v8832
  %11292 = vmatpush2.bf16.msra.mxu0 %v8831
  %11293 = vmatprep.subr.bf16.mxu0 %v8824
  %11294 = vmatpush2.bf16.msra.mxu0 %v8823
  %11295 = vmatprep.mubr.bf16.mxu0 %v3844
  %11296 = vmatmul.mubr.bf16.gmra.mxu0 %v3843
  %v11297 = vpop.f32.mrf.mxu0
  %v11298 = vadd.f32 %v11257, %v11297
  %v11299 = vpop.f32.mrf.mxu0
  %v11300 = vadd.f32 %v11259, %v11299
  %v11301 = vpop.f32.mrf.mxu0
  %v11302 = vpop.f32.mrf.mxu0
  %11303 = vdwg.mxu0
  %11304 = vmatprep.subr.bf16.mxu0 %v8944
  %11305 = vmatpush1.bf16.msra.mxu0 %v8943
  %11306 = vmatprep.subr.bf16.mxu0 %v8936
  %11307 = vmatpush1.bf16.msra.mxu0 %v8935
  %11308 = vmatprep.subr.bf16.mxu0 %v8928
  %11309 = vmatpush1.bf16.msra.mxu0 %v8927
  %11310 = vmatprep.subr.bf16.mxu0 %v8920
  %11311 = vmatpush1.bf16.msra.mxu0 %v8919
  %11312 = vmatprep.subr.bf16.mxu0 %v8912
  %11313 = vmatpush1.bf16.msra.mxu0 %v8911
  %11314 = vmatprep.subr.bf16.mxu0 %v8904
  %11315 = vmatpush1.bf16.msra.mxu0 %v8903
  %11316 = vmatprep.subr.bf16.mxu0 %v8896
  %11317 = vmatpush1.bf16.msra.mxu0 %v8895
  %11318 = vmatprep.subr.bf16.mxu0 %v8888
  %11319 = vmatpush1.bf16.msra.mxu0 %v8887
  %11320 = vmatprep.subr.bf16.mxu0 %v9008
  %11321 = vmatpush2.bf16.msra.mxu0 %v9007
  %11322 = vmatprep.subr.bf16.mxu0 %v9000
  %11323 = vmatpush2.bf16.msra.mxu0 %v8999
  %11324 = vmatprep.subr.bf16.mxu0 %v8992
  %11325 = vmatpush2.bf16.msra.mxu0 %v8991
  %11326 = vmatprep.subr.bf16.mxu0 %v8984
  %11327 = vmatpush2.bf16.msra.mxu0 %v8983
  %11328 = vmatprep.subr.bf16.mxu0 %v8976
  %11329 = vmatpush2.bf16.msra.mxu0 %v8975
  %11330 = vmatprep.subr.bf16.mxu0 %v8968
  %11331 = vmatpush2.bf16.msra.mxu0 %v8967
  %11332 = vmatprep.subr.bf16.mxu0 %v8960
  %11333 = vmatpush2.bf16.msra.mxu0 %v8959
  %11334 = vmatprep.subr.bf16.mxu0 %v8952
  %11335 = vmatpush2.bf16.msra.mxu0 %v8951
  %11336 = vmatprep.mubr.bf16.mxu0 %v3846
  %11337 = vmatmul.mubr.bf16.gmra.mxu0 %v3845
  %v11338 = vpop.f32.mrf.mxu0
  %v11339 = vadd.f32 %v11298, %v11338
  %v11340 = vpop.f32.mrf.mxu0
  %v11341 = vadd.f32 %v11300, %v11340
  %v11342 = vpop.f32.mrf.mxu0
  %v11343 = vpop.f32.mrf.mxu0
  %11344 = vdwg.mxu0
  %v11345 = vmax.f32 %v10355, 0.0
  %v11346 = vmax.f32 %v10357, 0.0
  %v11347 = vmax.f32 %v10683, 0.0
  %v11348 = vmax.f32 %v10685, 0.0
  %v11349 = vmax.f32 %v11011, 0.0
  %v11350 = vmax.f32 %v11013, 0.0
  %v11351 = vmax.f32 %v11339, 0.0
  %v11352 = vmax.f32 %v11341, 0.0
  %v11353 = vpack.c.bf16 %v11345, %v11345
  %v11354 = vpack.c.bf16 %v11346, %v11346
  %v11355 = vpack.c.bf16 %v11347, %v11347
  %v11356 = vpack.c.bf16 %v11348, %v11348
  %v11357 = vpack.c.bf16 %v11349, %v11349
  %v11358 = vpack.c.bf16 %v11350, %v11350
  %v11359 = vpack.c.bf16 %v11351, %v11351
  %v11360 = vpack.c.bf16 %v11352, %v11352
  %v11361 = vld [vmem:[%s10] sm:$0xff]
  %v11362 = vld [vmem:[%s10 + $0x8] sm:$0xff]
  %v11363 = vld [vmem:[%s10 + $0x10] sm:$0xff]
  %v11364 = vld [vmem:[%s10 + $0x18] sm:$0xff]
  %v11365 = vld [vmem:[%s10 + $0x20] sm:$0xff]
  %v11366 = vld [vmem:[%s10 + $0x28] sm:$0xff]
  %v11367 = vld [vmem:[%s10 + $0x30] sm:$0xff]
  %v11368 = vld [vmem:[%s10 + $0x38] sm:$0xff]
  %v11369 = vld [vmem:[%s10 + $0x40] sm:$0xff]
  %v11370 = vld [vmem:[%s10 + $0x48] sm:$0xff]
  %v11371 = vld [vmem:[%s10 + $0x50] sm:$0xff]
  %v11372 = vld [vmem:[%s10 + $0x58] sm:$0xff]
  %v11373 = vld [vmem:[%s10 + $0x60] sm:$0xff]
  %v11374 = vld [vmem:[%s10 + $0x68] sm:$0xff]
  %v11375 = vld [vmem:[%s10 + $0x70] sm:$0xff]
  %v11376 = vld [vmem:[%s10 + $0x78] sm:$0xff]
  %v11377 = vld [vmem:[%s10 + $0x80] sm:$0xff]
  %v11378 = vld [vmem:[%s10 + $0x88] sm:$0xff]
  %v11379 = vld [vmem:[%s10 + $0x90] sm:$0xff]
  %v11380 = vld [vmem:[%s10 + $0x98] sm:$0xff]
  %v11381 = vld [vmem:[%s10 + $0xa0] sm:$0xff]
  %v11382 = vld [vmem:[%s10 + $0xa8] sm:$0xff]
  %v11383 = vld [vmem:[%s10 + $0xb0] sm:$0xff]
  %v11384 = vld [vmem:[%s10 + $0xb8] sm:$0xff]
  %v11385 = vld [vmem:[%s10 + $0xc0] sm:$0xff]
  %v11386 = vld [vmem:[%s10 + $0xc8] sm:$0xff]
  %v11387 = vld [vmem:[%s10 + $0xd0] sm:$0xff]
  %v11388 = vld [vmem:[%s10 + $0xd8] sm:$0xff]
  %v11389 = vld [vmem:[%s10 + $0xe0] sm:$0xff]
  %v11390 = vld [vmem:[%s10 + $0xe8] sm:$0xff]
  %v11391 = vld [vmem:[%s10 + $0xf0] sm:$0xff]
  %v11392 = vld [vmem:[%s10 + $0xf8] sm:$0xff]
  %v11393 = vld [vmem:[%s10 + $0x100] sm:$0xff]
  %v11394 = vld [vmem:[%s10 + $0x108] sm:$0xff]
  %v11395 = vld [vmem:[%s10 + $0x110] sm:$0xff]
  %v11396 = vld [vmem:[%s10 + $0x118] sm:$0xff]
  %v11397 = vld [vmem:[%s10 + $0x120] sm:$0xff]
  %v11398 = vld [vmem:[%s10 + $0x128] sm:$0xff]
  %v11399 = vld [vmem:[%s10 + $0x130] sm:$0xff]
  %v11400 = vld [vmem:[%s10 + $0x138] sm:$0xff]
  %v11401 = vld [vmem:[%s10 + $0x140] sm:$0xff]
  %v11402 = vld [vmem:[%s10 + $0x148] sm:$0xff]
  %v11403 = vld [vmem:[%s10 + $0x150] sm:$0xff]
  %v11404 = vld [vmem:[%s10 + $0x158] sm:$0xff]
  %v11405 = vld [vmem:[%s10 + $0x160] sm:$0xff]
  %v11406 = vld [vmem:[%s10 + $0x168] sm:$0xff]
  %v11407 = vld [vmem:[%s10 + $0x170] sm:$0xff]
  %v11408 = vld [vmem:[%s10 + $0x178] sm:$0xff]
  %v11409 = vld [vmem:[%s10 + $0x180] sm:$0xff]
  %v11410 = vld [vmem:[%s10 + $0x188] sm:$0xff]
  %v11411 = vld [vmem:[%s10 + $0x190] sm:$0xff]
  %v11412 = vld [vmem:[%s10 + $0x198] sm:$0xff]
  %v11413 = vld [vmem:[%s10 + $0x1a0] sm:$0xff]
  %v11414 = vld [vmem:[%s10 + $0x1a8] sm:$0xff]
  %v11415 = vld [vmem:[%s10 + $0x1b0] sm:$0xff]
  %v11416 = vld [vmem:[%s10 + $0x1b8] sm:$0xff]
  %v11417 = vld [vmem:[%s10 + $0x1c0] sm:$0xff]
  %v11418 = vld [vmem:[%s10 + $0x1c8] sm:$0xff]
  %v11419 = vld [vmem:[%s10 + $0x1d0] sm:$0xff]
  %v11420 = vld [vmem:[%s10 + $0x1d8] sm:$0xff]
  %v11421 = vld [vmem:[%s10 + $0x1e0] sm:$0xff]
  %v11422 = vld [vmem:[%s10 + $0x1e8] sm:$0xff]
  %v11423 = vld [vmem:[%s10 + $0x1f0] sm:$0xff]
  %v11424 = vld [vmem:[%s10 + $0x1f8] sm:$0xff]
  %v11425 = vld [vmem:[%s10 + $0x200] sm:$0xff]
  %v11426 = vld [vmem:[%s10 + $0x208] sm:$0xff]
  %v11427 = vld [vmem:[%s10 + $0x210] sm:$0xff]
  %v11428 = vld [vmem:[%s10 + $0x218] sm:$0xff]
  %v11429 = vld [vmem:[%s10 + $0x220] sm:$0xff]
  %v11430 = vld [vmem:[%s10 + $0x228] sm:$0xff]
  %v11431 = vld [vmem:[%s10 + $0x230] sm:$0xff]
  %v11432 = vld [vmem:[%s10 + $0x238] sm:$0xff]
  %v11433 = vld [vmem:[%s10 + $0x240] sm:$0xff]
  %v11434 = vld [vmem:[%s10 + $0x248] sm:$0xff]
  %v11435 = vld [vmem:[%s10 + $0x250] sm:$0xff]
  %v11436 = vld [vmem:[%s10 + $0x258] sm:$0xff]
  %v11437 = vld [vmem:[%s10 + $0x260] sm:$0xff]
  %v11438 = vld [vmem:[%s10 + $0x268] sm:$0xff]
  %v11439 = vld [vmem:[%s10 + $0x270] sm:$0xff]
  %v11440 = vld [vmem:[%s10 + $0x278] sm:$0xff]
  %v11441 = vld [vmem:[%s10 + $0x280] sm:$0xff]
  %v11442 = vld [vmem:[%s10 + $0x288] sm:$0xff]
  %v11443 = vld [vmem:[%s10 + $0x290] sm:$0xff]
  %v11444 = vld [vmem:[%s10 + $0x298] sm:$0xff]
  %v11445 = vld [vmem:[%s10 + $0x2a0] sm:$0xff]
  %v11446 = vld [vmem:[%s10 + $0x2a8] sm:$0xff]
  %v11447 = vld [vmem:[%s10 + $0x2b0] sm:$0xff]
  %v11448 = vld [vmem:[%s10 + $0x2b8] sm:$0xff]
  %v11449 = vld [vmem:[%s10 + $0x2c0] sm:$0xff]
  %v11450 = vld [vmem:[%s10 + $0x2c8] sm:$0xff]
  %v11451 = vld [vmem:[%s10 + $0x2d0] sm:$0xff]
  %v11452 = vld [vmem:[%s10 + $0x2d8] sm:$0xff]
  %v11453 = vld [vmem:[%s10 + $0x2e0] sm:$0xff]
  %v11454 = vld [vmem:[%s10 + $0x2e8] sm:$0xff]
  %v11455 = vld [vmem:[%s10 + $0x2f0] sm:$0xff]
  %v11456 = vld [vmem:[%s10 + $0x2f8] sm:$0xff]
  %v11457 = vld [vmem:[%s10 + $0x300] sm:$0xff]
  %v11458 = vld [vmem:[%s10 + $0x308] sm:$0xff]
  %v11459 = vld [vmem:[%s10 + $0x310] sm:$0xff]
  %v11460 = vld [vmem:[%s10 + $0x318] sm:$0xff]
  %v11461 = vld [vmem:[%s10 + $0x320] sm:$0xff]
  %v11462 = vld [vmem:[%s10 + $0x328] sm:$0xff]
  %v11463 = vld [vmem:[%s10 + $0x330] sm:$0xff]
  %v11464 = vld [vmem:[%s10 + $0x338] sm:$0xff]
  %v11465 = vld [vmem:[%s10 + $0x340] sm:$0xff]
  %v11466 = vld [vmem:[%s10 + $0x348] sm:$0xff]
  %v11467 = vld [vmem:[%s10 + $0x350] sm:$0xff]
  %v11468 = vld [vmem:[%s10 + $0x358] sm:$0xff]
  %v11469 = vld [vmem:[%s10 + $0x360] sm:$0xff]
  %v11470 = vld [vmem:[%s10 + $0x368] sm:$0xff]
  %v11471 = vld [vmem:[%s10 + $0x370] sm:$0xff]
  %v11472 = vld [vmem:[%s10 + $0x378] sm:$0xff]
  %v11473 = vld [vmem:[%s10 + $0x380] sm:$0xff]
  %v11474 = vld [vmem:[%s10 + $0x388] sm:$0xff]
  %v11475 = vld [vmem:[%s10 + $0x390] sm:$0xff]
  %v11476 = vld [vmem:[%s10 + $0x398] sm:$0xff]
  %v11477 = vld [vmem:[%s10 + $0x3a0] sm:$0xff]
  %v11478 = vld [vmem:[%s10 + $0x3a8] sm:$0xff]
  %v11479 = vld [vmem:[%s10 + $0x3b0] sm:$0xff]
  %v11480 = vld [vmem:[%s10 + $0x3b8] sm:$0xff]
  %v11481 = vld [vmem:[%s10 + $0x3c0] sm:$0xff]
  %v11482 = vld [vmem:[%s10 + $0x3c8] sm:$0xff]
  %v11483 = vld [vmem:[%s10 + $0x3d0] sm:$0xff]
  %v11484 = vld [vmem:[%s10 + $0x3d8] sm:$0xff]
  %v11485 = vld [vmem:[%s10 + $0x3e0] sm:$0xff]
  %v11486 = vld [vmem:[%s10 + $0x3e8] sm:$0xff]
  %v11487 = vld [vmem:[%s10 + $0x3f0] sm:$0xff]
  %v11488 = vld [vmem:[%s10 + $0x3f8] sm:$0xff]
  %v11489 = vld [vmem:[%s1] sm:$0x3]
  %v11490 = vpack.c.bf16 %v11489, %v11489
  %v11491 = vld [vmem:[%s11] sm:$0xff]
  %v11492 = vld [vmem:[%s11 + $0x8] sm:$0xff]
  %v11495 = vunpack.c.l.b16 %v11491
  %v11496 = vunpack.c.h.b16 %v11491
  %v11497 = vunpack.c.l.b16 %v11492
  %v11498 = vunpack.c.h.b16 %v11492
  %v11499 = vpack.c.b16 %v11497, %v11495
  %v11500 = vpack.c.b16 %v11498, %v11496
  %vm11501 = vcmask 121856
  %v11503 = vsel %vm11501, %v11490, 0
  %vm11505 = vcmask 1047552
  %v11506 = vsel %vm164, 4294967295, 65535
  %v11507 = vsel %vm11505, %v11506, 0
  %v11509 = vand.u32 %v11499, %v11507
  %v11512 = vand.u32 %v11500, %v11507
  %11514 = vmatprep.subr.bf16.mxu0 0
  %11515 = vmatpush1.bf16.msra.mxu0 0
  %11516 = vmatprep.subr.bf16.mxu0 0
  %11517 = vmatpush1.bf16.msra.mxu0 0
  %11518 = vmatprep.subr.bf16.mxu0 0
  %11519 = vmatpush1.bf16.msra.mxu0 0
  %11520 = vmatprep.subr.bf16.mxu0 0
  %11521 = vmatpush1.bf16.msra.mxu0 0
  %11522 = vmatprep.subr.bf16.mxu0 0
  %11523 = vmatpush1.bf16.msra.mxu0 0
  %11524 = vmatprep.subr.bf16.mxu0 0
  %11525 = vmatpush1.bf16.msra.mxu0 0
  %11526 = vmatprep.subr.bf16.mxu0 0
  %11527 = vmatpush1.bf16.msra.mxu0 0
  %11528 = vmatprep.subr.bf16.mxu0 %v11512
  %11529 = vmatpush1.bf16.msra.mxu0 %v11509
  %11530 = vmatprep.subr.bf16.mxu0 0
  %11531 = vmatpush2.bf16.msra.mxu0 0
  %11532 = vmatprep.subr.bf16.mxu0 0
  %11533 = vmatpush2.bf16.msra.mxu0 0
  %11534 = vmatprep.subr.bf16.mxu0 0
  %11535 = vmatpush2.bf16.msra.mxu0 0
  %11536 = vmatprep.subr.bf16.mxu0 0
  %11537 = vmatpush2.bf16.msra.mxu0 0
  %11538 = vmatprep.subr.bf16.mxu0 0
  %11539 = vmatpush2.bf16.msra.mxu0 0
  %11540 = vmatprep.subr.bf16.mxu0 0
  %11541 = vmatpush2.bf16.msra.mxu0 0
  %11542 = vmatprep.subr.bf16.mxu0 0
  %11543 = vmatpush2.bf16.msra.mxu0 0
  %11544 = vmatprep.subr.bf16.mxu0 0
  %11545 = vmatpush2.bf16.msra.mxu0 0
  %11546 = vmatprep.mubr.bf16.mxu0 0
  %11547 = vmatmul.mubr.bf16.gmra.mxu0 %v11503
  %v11548 = vpop.f32.mrf.mxu0
  %v11549 = vadd.f32 0.0, %v11548
  %v11550 = vpop.f32.mrf.mxu0
  %v11551 = vadd.f32 0.0, %v11550
  %v11552 = vpop.f32.mrf.mxu0
  %v11553 = vpop.f32.mrf.mxu0
  %11554 = vdwg.mxu0
  %v11683 = vunpack.c.l.b16 %v11361
  %v11684 = vunpack.c.h.b16 %v11361
  %v11685 = vunpack.c.l.b16 %v11362
  %v11686 = vunpack.c.h.b16 %v11362
  %v11687 = vunpack.c.l.b16 %v11363
  %v11688 = vunpack.c.h.b16 %v11363
  %v11689 = vunpack.c.l.b16 %v11364
  %v11690 = vunpack.c.h.b16 %v11364
  %v11691 = vunpack.c.l.b16 %v11365
  %v11692 = vunpack.c.h.b16 %v11365
  %v11693 = vunpack.c.l.b16 %v11366
  %v11694 = vunpack.c.h.b16 %v11366
  %v11695 = vunpack.c.l.b16 %v11367
  %v11696 = vunpack.c.h.b16 %v11367
  %v11697 = vunpack.c.l.b16 %v11368
  %v11698 = vunpack.c.h.b16 %v11368
  %v11699 = vunpack.c.l.b16 %v11369
  %v11700 = vunpack.c.h.b16 %v11369
  %v11701 = vunpack.c.l.b16 %v11370
  %v11702 = vunpack.c.h.b16 %v11370
  %v11703 = vunpack.c.l.b16 %v11371
  %v11704 = vunpack.c.h.b16 %v11371
  %v11705 = vunpack.c.l.b16 %v11372
  %v11706 = vunpack.c.h.b16 %v11372
  %v11707 = vunpack.c.l.b16 %v11373
  %v11708 = vunpack.c.h.b16 %v11373
  %v11709 = vunpack.c.l.b16 %v11374
  %v11710 = vunpack.c.h.b16 %v11374
  %v11711 = vunpack.c.l.b16 %v11375
  %v11712 = vunpack.c.h.b16 %v11375
  %v11713 = vunpack.c.l.b16 %v11376
  %v11714 = vunpack.c.h.b16 %v11376
  %v11715 = vunpack.c.l.b16 %v11377
  %v11716 = vunpack.c.h.b16 %v11377
  %v11717 = vunpack.c.l.b16 %v11378
  %v11718 = vunpack.c.h.b16 %v11378
  %v11719 = vunpack.c.l.b16 %v11379
  %v11720 = vunpack.c.h.b16 %v11379
  %v11721 = vunpack.c.l.b16 %v11380
  %v11722 = vunpack.c.h.b16 %v11380
  %v11723 = vunpack.c.l.b16 %v11381
  %v11724 = vunpack.c.h.b16 %v11381
  %v11725 = vunpack.c.l.b16 %v11382
  %v11726 = vunpack.c.h.b16 %v11382
  %v11727 = vunpack.c.l.b16 %v11383
  %v11728 = vunpack.c.h.b16 %v11383
  %v11729 = vunpack.c.l.b16 %v11384
  %v11730 = vunpack.c.h.b16 %v11384
  %v11731 = vunpack.c.l.b16 %v11385
  %v11732 = vunpack.c.h.b16 %v11385
  %v11733 = vunpack.c.l.b16 %v11386
  %v11734 = vunpack.c.h.b16 %v11386
  %v11735 = vunpack.c.l.b16 %v11387
  %v11736 = vunpack.c.h.b16 %v11387
  %v11737 = vunpack.c.l.b16 %v11388
  %v11738 = vunpack.c.h.b16 %v11388
  %v11739 = vunpack.c.l.b16 %v11389
  %v11740 = vunpack.c.h.b16 %v11389
  %v11741 = vunpack.c.l.b16 %v11390
  %v11742 = vunpack.c.h.b16 %v11390
  %v11743 = vunpack.c.l.b16 %v11391
  %v11744 = vunpack.c.h.b16 %v11391
  %v11745 = vunpack.c.l.b16 %v11392
  %v11746 = vunpack.c.h.b16 %v11392
  %v11747 = vunpack.c.l.b16 %v11393
  %v11748 = vunpack.c.h.b16 %v11393
  %v11749 = vunpack.c.l.b16 %v11394
  %v11750 = vunpack.c.h.b16 %v11394
  %v11751 = vunpack.c.l.b16 %v11395
  %v11752 = vunpack.c.h.b16 %v11395
  %v11753 = vunpack.c.l.b16 %v11396
  %v11754 = vunpack.c.h.b16 %v11396
  %v11755 = vunpack.c.l.b16 %v11397
  %v11756 = vunpack.c.h.b16 %v11397
  %v11757 = vunpack.c.l.b16 %v11398
  %v11758 = vunpack.c.h.b16 %v11398
  %v11759 = vunpack.c.l.b16 %v11399
  %v11760 = vunpack.c.h.b16 %v11399
  %v11761 = vunpack.c.l.b16 %v11400
  %v11762 = vunpack.c.h.b16 %v11400
  %v11763 = vunpack.c.l.b16 %v11401
  %v11764 = vunpack.c.h.b16 %v11401
  %v11765 = vunpack.c.l.b16 %v11402
  %v11766 = vunpack.c.h.b16 %v11402
  %v11767 = vunpack.c.l.b16 %v11403
  %v11768 = vunpack.c.h.b16 %v11403
  %v11769 = vunpack.c.l.b16 %v11404
  %v11770 = vunpack.c.h.b16 %v11404
  %v11771 = vunpack.c.l.b16 %v11405
  %v11772 = vunpack.c.h.b16 %v11405
  %v11773 = vunpack.c.l.b16 %v11406
  %v11774 = vunpack.c.h.b16 %v11406
  %v11775 = vunpack.c.l.b16 %v11407
  %v11776 = vunpack.c.h.b16 %v11407
  %v11777 = vunpack.c.l.b16 %v11408
  %v11778 = vunpack.c.h.b16 %v11408
  %v11779 = vunpack.c.l.b16 %v11409
  %v11780 = vunpack.c.h.b16 %v11409
  %v11781 = vunpack.c.l.b16 %v11410
  %v11782 = vunpack.c.h.b16 %v11410
  %v11783 = vunpack.c.l.b16 %v11411
  %v11784 = vunpack.c.h.b16 %v11411
  %v11785 = vunpack.c.l.b16 %v11412
  %v11786 = vunpack.c.h.b16 %v11412
  %v11787 = vunpack.c.l.b16 %v11413
  %v11788 = vunpack.c.h.b16 %v11413
  %v11789 = vunpack.c.l.b16 %v11414
  %v11790 = vunpack.c.h.b16 %v11414
  %v11791 = vunpack.c.l.b16 %v11415
  %v11792 = vunpack.c.h.b16 %v11415
  %v11793 = vunpack.c.l.b16 %v11416
  %v11794 = vunpack.c.h.b16 %v11416
  %v11795 = vunpack.c.l.b16 %v11417
  %v11796 = vunpack.c.h.b16 %v11417
  %v11797 = vunpack.c.l.b16 %v11418
  %v11798 = vunpack.c.h.b16 %v11418
  %v11799 = vunpack.c.l.b16 %v11419
  %v11800 = vunpack.c.h.b16 %v11419
  %v11801 = vunpack.c.l.b16 %v11420
  %v11802 = vunpack.c.h.b16 %v11420
  %v11803 = vunpack.c.l.b16 %v11421
  %v11804 = vunpack.c.h.b16 %v11421
  %v11805 = vunpack.c.l.b16 %v11422
  %v11806 = vunpack.c.h.b16 %v11422
  %v11807 = vunpack.c.l.b16 %v11423
  %v11808 = vunpack.c.h.b16 %v11423
  %v11809 = vunpack.c.l.b16 %v11424
  %v11810 = vunpack.c.h.b16 %v11424
  %v11811 = vunpack.c.l.b16 %v11425
  %v11812 = vunpack.c.h.b16 %v11425
  %v11813 = vunpack.c.l.b16 %v11426
  %v11814 = vunpack.c.h.b16 %v11426
  %v11815 = vunpack.c.l.b16 %v11427
  %v11816 = vunpack.c.h.b16 %v11427
  %v11817 = vunpack.c.l.b16 %v11428
  %v11818 = vunpack.c.h.b16 %v11428
  %v11819 = vunpack.c.l.b16 %v11429
  %v11820 = vunpack.c.h.b16 %v11429
  %v11821 = vunpack.c.l.b16 %v11430
  %v11822 = vunpack.c.h.b16 %v11430
  %v11823 = vunpack.c.l.b16 %v11431
  %v11824 = vunpack.c.h.b16 %v11431
  %v11825 = vunpack.c.l.b16 %v11432
  %v11826 = vunpack.c.h.b16 %v11432
  %v11827 = vunpack.c.l.b16 %v11433
  %v11828 = vunpack.c.h.b16 %v11433
  %v11829 = vunpack.c.l.b16 %v11434
  %v11830 = vunpack.c.h.b16 %v11434
  %v11831 = vunpack.c.l.b16 %v11435
  %v11832 = vunpack.c.h.b16 %v11435
  %v11833 = vunpack.c.l.b16 %v11436
  %v11834 = vunpack.c.h.b16 %v11436
  %v11835 = vunpack.c.l.b16 %v11437
  %v11836 = vunpack.c.h.b16 %v11437
  %v11837 = vunpack.c.l.b16 %v11438
  %v11838 = vunpack.c.h.b16 %v11438
  %v11839 = vunpack.c.l.b16 %v11439
  %v11840 = vunpack.c.h.b16 %v11439
  %v11841 = vunpack.c.l.b16 %v11440
  %v11842 = vunpack.c.h.b16 %v11440
  %v11843 = vunpack.c.l.b16 %v11441
  %v11844 = vunpack.c.h.b16 %v11441
  %v11845 = vunpack.c.l.b16 %v11442
  %v11846 = vunpack.c.h.b16 %v11442
  %v11847 = vunpack.c.l.b16 %v11443
  %v11848 = vunpack.c.h.b16 %v11443
  %v11849 = vunpack.c.l.b16 %v11444
  %v11850 = vunpack.c.h.b16 %v11444
  %v11851 = vunpack.c.l.b16 %v11445
  %v11852 = vunpack.c.h.b16 %v11445
  %v11853 = vunpack.c.l.b16 %v11446
  %v11854 = vunpack.c.h.b16 %v11446
  %v11855 = vunpack.c.l.b16 %v11447
  %v11856 = vunpack.c.h.b16 %v11447
  %v11857 = vunpack.c.l.b16 %v11448
  %v11858 = vunpack.c.h.b16 %v11448
  %v11859 = vunpack.c.l.b16 %v11449
  %v11860 = vunpack.c.h.b16 %v11449
  %v11861 = vunpack.c.l.b16 %v11450
  %v11862 = vunpack.c.h.b16 %v11450
  %v11863 = vunpack.c.l.b16 %v11451
  %v11864 = vunpack.c.h.b16 %v11451
  %v11865 = vunpack.c.l.b16 %v11452
  %v11866 = vunpack.c.h.b16 %v11452
  %v11867 = vunpack.c.l.b16 %v11453
  %v11868 = vunpack.c.h.b16 %v11453
  %v11869 = vunpack.c.l.b16 %v11454
  %v11870 = vunpack.c.h.b16 %v11454
  %v11871 = vunpack.c.l.b16 %v11455
  %v11872 = vunpack.c.h.b16 %v11455
  %v11873 = vunpack.c.l.b16 %v11456
  %v11874 = vunpack.c.h.b16 %v11456
  %v11875 = vunpack.c.l.b16 %v11457
  %v11876 = vunpack.c.h.b16 %v11457
  %v11877 = vunpack.c.l.b16 %v11458
  %v11878 = vunpack.c.h.b16 %v11458
  %v11879 = vunpack.c.l.b16 %v11459
  %v11880 = vunpack.c.h.b16 %v11459
  %v11881 = vunpack.c.l.b16 %v11460
  %v11882 = vunpack.c.h.b16 %v11460
  %v11883 = vunpack.c.l.b16 %v11461
  %v11884 = vunpack.c.h.b16 %v11461
  %v11885 = vunpack.c.l.b16 %v11462
  %v11886 = vunpack.c.h.b16 %v11462
  %v11887 = vunpack.c.l.b16 %v11463
  %v11888 = vunpack.c.h.b16 %v11463
  %v11889 = vunpack.c.l.b16 %v11464
  %v11890 = vunpack.c.h.b16 %v11464
  %v11891 = vunpack.c.l.b16 %v11465
  %v11892 = vunpack.c.h.b16 %v11465
  %v11893 = vunpack.c.l.b16 %v11466
  %v11894 = vunpack.c.h.b16 %v11466
  %v11895 = vunpack.c.l.b16 %v11467
  %v11896 = vunpack.c.h.b16 %v11467
  %v11897 = vunpack.c.l.b16 %v11468
  %v11898 = vunpack.c.h.b16 %v11468
  %v11899 = vunpack.c.l.b16 %v11469
  %v11900 = vunpack.c.h.b16 %v11469
  %v11901 = vunpack.c.l.b16 %v11470
  %v11902 = vunpack.c.h.b16 %v11470
  %v11903 = vunpack.c.l.b16 %v11471
  %v11904 = vunpack.c.h.b16 %v11471
  %v11905 = vunpack.c.l.b16 %v11472
  %v11906 = vunpack.c.h.b16 %v11472
  %v11907 = vunpack.c.l.b16 %v11473
  %v11908 = vunpack.c.h.b16 %v11473
  %v11909 = vunpack.c.l.b16 %v11474
  %v11910 = vunpack.c.h.b16 %v11474
  %v11911 = vunpack.c.l.b16 %v11475
  %v11912 = vunpack.c.h.b16 %v11475
  %v11913 = vunpack.c.l.b16 %v11476
  %v11914 = vunpack.c.h.b16 %v11476
  %v11915 = vunpack.c.l.b16 %v11477
  %v11916 = vunpack.c.h.b16 %v11477
  %v11917 = vunpack.c.l.b16 %v11478
  %v11918 = vunpack.c.h.b16 %v11478
  %v11919 = vunpack.c.l.b16 %v11479
  %v11920 = vunpack.c.h.b16 %v11479
  %v11921 = vunpack.c.l.b16 %v11480
  %v11922 = vunpack.c.h.b16 %v11480
  %v11923 = vunpack.c.l.b16 %v11481
  %v11924 = vunpack.c.h.b16 %v11481
  %v11925 = vunpack.c.l.b16 %v11482
  %v11926 = vunpack.c.h.b16 %v11482
  %v11927 = vunpack.c.l.b16 %v11483
  %v11928 = vunpack.c.h.b16 %v11483
  %v11929 = vunpack.c.l.b16 %v11484
  %v11930 = vunpack.c.h.b16 %v11484
  %v11931 = vunpack.c.l.b16 %v11485
  %v11932 = vunpack.c.h.b16 %v11485
  %v11933 = vunpack.c.l.b16 %v11486
  %v11934 = vunpack.c.h.b16 %v11486
  %v11935 = vunpack.c.l.b16 %v11487
  %v11936 = vunpack.c.h.b16 %v11487
  %v11937 = vunpack.c.l.b16 %v11488
  %v11938 = vunpack.c.h.b16 %v11488
  %v11939 = vpack.c.b16 %v11685, %v11683
  %v11940 = vpack.c.b16 %v11686, %v11684
  %v11941 = vpack.c.b16 %v11689, %v11687
  %v11942 = vpack.c.b16 %v11690, %v11688
  %v11943 = vpack.c.b16 %v11693, %v11691
  %v11944 = vpack.c.b16 %v11694, %v11692
  %v11945 = vpack.c.b16 %v11697, %v11695
  %v11946 = vpack.c.b16 %v11698, %v11696
  %v11947 = vpack.c.b16 %v11701, %v11699
  %v11948 = vpack.c.b16 %v11702, %v11700
  %v11949 = vpack.c.b16 %v11705, %v11703
  %v11950 = vpack.c.b16 %v11706, %v11704
  %v11951 = vpack.c.b16 %v11709, %v11707
  %v11952 = vpack.c.b16 %v11710, %v11708
  %v11953 = vpack.c.b16 %v11713, %v11711
  %v11954 = vpack.c.b16 %v11714, %v11712
  %v11955 = vpack.c.b16 %v11717, %v11715
  %v11956 = vpack.c.b16 %v11718, %v11716
  %v11957 = vpack.c.b16 %v11721, %v11719
  %v11958 = vpack.c.b16 %v11722, %v11720
  %v11959 = vpack.c.b16 %v11725, %v11723
  %v11960 = vpack.c.b16 %v11726, %v11724
  %v11961 = vpack.c.b16 %v11729, %v11727
  %v11962 = vpack.c.b16 %v11730, %v11728
  %v11963 = vpack.c.b16 %v11733, %v11731
  %v11964 = vpack.c.b16 %v11734, %v11732
  %v11965 = vpack.c.b16 %v11737, %v11735
  %v11966 = vpack.c.b16 %v11738, %v11736
  %v11967 = vpack.c.b16 %v11741, %v11739
  %v11968 = vpack.c.b16 %v11742, %v11740
  %v11969 = vpack.c.b16 %v11745, %v11743
  %v11970 = vpack.c.b16 %v11746, %v11744
  %v11971 = vpack.c.b16 %v11749, %v11747
  %v11972 = vpack.c.b16 %v11750, %v11748
  %v11973 = vpack.c.b16 %v11753, %v11751
  %v11974 = vpack.c.b16 %v11754, %v11752
  %v11975 = vpack.c.b16 %v11757, %v11755
  %v11976 = vpack.c.b16 %v11758, %v11756
  %v11977 = vpack.c.b16 %v11761, %v11759
  %v11978 = vpack.c.b16 %v11762, %v11760
  %v11979 = vpack.c.b16 %v11765, %v11763
  %v11980 = vpack.c.b16 %v11766, %v11764
  %v11981 = vpack.c.b16 %v11769, %v11767
  %v11982 = vpack.c.b16 %v11770, %v11768
  %v11983 = vpack.c.b16 %v11773, %v11771
  %v11984 = vpack.c.b16 %v11774, %v11772
  %v11985 = vpack.c.b16 %v11777, %v11775
  %v11986 = vpack.c.b16 %v11778, %v11776
  %v11987 = vpack.c.b16 %v11781, %v11779
  %v11988 = vpack.c.b16 %v11782, %v11780
  %v11989 = vpack.c.b16 %v11785, %v11783
  %v11990 = vpack.c.b16 %v11786, %v11784
  %v11991 = vpack.c.b16 %v11789, %v11787
  %v11992 = vpack.c.b16 %v11790, %v11788
  %v11993 = vpack.c.b16 %v11793, %v11791
  %v11994 = vpack.c.b16 %v11794, %v11792
  %v11995 = vpack.c.b16 %v11797, %v11795
  %v11996 = vpack.c.b16 %v11798, %v11796
  %v11997 = vpack.c.b16 %v11801, %v11799
  %v11998 = vpack.c.b16 %v11802, %v11800
  %v11999 = vpack.c.b16 %v11805, %v11803
  %v12000 = vpack.c.b16 %v11806, %v11804
  %v12001 = vpack.c.b16 %v11809, %v11807
  %v12002 = vpack.c.b16 %v11810, %v11808
  %v12003 = vpack.c.b16 %v11813, %v11811
  %v12004 = vpack.c.b16 %v11814, %v11812
  %v12005 = vpack.c.b16 %v11817, %v11815
  %v12006 = vpack.c.b16 %v11818, %v11816
  %v12007 = vpack.c.b16 %v11821, %v11819
  %v12008 = vpack.c.b16 %v11822, %v11820
  %v12009 = vpack.c.b16 %v11825, %v11823
  %v12010 = vpack.c.b16 %v11826, %v11824
  %v12011 = vpack.c.b16 %v11829, %v11827
  %v12012 = vpack.c.b16 %v11830, %v11828
  %v12013 = vpack.c.b16 %v11833, %v11831
  %v12014 = vpack.c.b16 %v11834, %v11832
  %v12015 = vpack.c.b16 %v11837, %v11835
  %v12016 = vpack.c.b16 %v11838, %v11836
  %v12017 = vpack.c.b16 %v11841, %v11839
  %v12018 = vpack.c.b16 %v11842, %v11840
  %v12019 = vpack.c.b16 %v11845, %v11843
  %v12020 = vpack.c.b16 %v11846, %v11844
  %v12021 = vpack.c.b16 %v11849, %v11847
  %v12022 = vpack.c.b16 %v11850, %v11848
  %v12023 = vpack.c.b16 %v11853, %v11851
  %v12024 = vpack.c.b16 %v11854, %v11852
  %v12025 = vpack.c.b16 %v11857, %v11855
  %v12026 = vpack.c.b16 %v11858, %v11856
  %v12027 = vpack.c.b16 %v11861, %v11859
  %v12028 = vpack.c.b16 %v11862, %v11860
  %v12029 = vpack.c.b16 %v11865, %v11863
  %v12030 = vpack.c.b16 %v11866, %v11864
  %v12031 = vpack.c.b16 %v11869, %v11867
  %v12032 = vpack.c.b16 %v11870, %v11868
  %v12033 = vpack.c.b16 %v11873, %v11871
  %v12034 = vpack.c.b16 %v11874, %v11872
  %v12035 = vpack.c.b16 %v11877, %v11875
  %v12036 = vpack.c.b16 %v11878, %v11876
  %v12037 = vpack.c.b16 %v11881, %v11879
  %v12038 = vpack.c.b16 %v11882, %v11880
  %v12039 = vpack.c.b16 %v11885, %v11883
  %v12040 = vpack.c.b16 %v11886, %v11884
  %v12041 = vpack.c.b16 %v11889, %v11887
  %v12042 = vpack.c.b16 %v11890, %v11888
  %v12043 = vpack.c.b16 %v11893, %v11891
  %v12044 = vpack.c.b16 %v11894, %v11892
  %v12045 = vpack.c.b16 %v11897, %v11895
  %v12046 = vpack.c.b16 %v11898, %v11896
  %v12047 = vpack.c.b16 %v11901, %v11899
  %v12048 = vpack.c.b16 %v11902, %v11900
  %v12049 = vpack.c.b16 %v11905, %v11903
  %v12050 = vpack.c.b16 %v11906, %v11904
  %v12051 = vpack.c.b16 %v11909, %v11907
  %v12052 = vpack.c.b16 %v11910, %v11908
  %v12053 = vpack.c.b16 %v11913, %v11911
  %v12054 = vpack.c.b16 %v11914, %v11912
  %v12055 = vpack.c.b16 %v11917, %v11915
  %v12056 = vpack.c.b16 %v11918, %v11916
  %v12057 = vpack.c.b16 %v11921, %v11919
  %v12058 = vpack.c.b16 %v11922, %v11920
  %v12059 = vpack.c.b16 %v11925, %v11923
  %v12060 = vpack.c.b16 %v11926, %v11924
  %v12061 = vpack.c.b16 %v11929, %v11927
  %v12062 = vpack.c.b16 %v11930, %v11928
  %v12063 = vpack.c.b16 %v11933, %v11931
  %v12064 = vpack.c.b16 %v11934, %v11932
  %v12065 = vpack.c.b16 %v11937, %v11935
  %v12066 = vpack.c.b16 %v11938, %v11936
  %12195 = vmatprep.subr.bf16.mxu0 %v11954
  %12196 = vmatpush1.bf16.msra.mxu0 %v11953
  %12197 = vmatprep.subr.bf16.mxu0 %v11952
  %12198 = vmatpush1.bf16.msra.mxu0 %v11951
  %12199 = vmatprep.subr.bf16.mxu0 %v11950
  %12200 = vmatpush1.bf16.msra.mxu0 %v11949
  %12201 = vmatprep.subr.bf16.mxu0 %v11948
  %12202 = vmatpush1.bf16.msra.mxu0 %v11947
  %12203 = vmatprep.subr.bf16.mxu0 %v11946
  %12204 = vmatpush1.bf16.msra.mxu0 %v11945
  %12205 = vmatprep.subr.bf16.mxu0 %v11944
  %12206 = vmatpush1.bf16.msra.mxu0 %v11943
  %12207 = vmatprep.subr.bf16.mxu0 %v11942
  %12208 = vmatpush1.bf16.msra.mxu0 %v11941
  %12209 = vmatprep.subr.bf16.mxu0 %v11940
  %12210 = vmatpush1.bf16.msra.mxu0 %v11939
  %12211 = vmatprep.subr.bf16.mxu0 %v11970
  %12212 = vmatpush2.bf16.msra.mxu0 %v11969
  %12213 = vmatprep.subr.bf16.mxu0 %v11968
  %12214 = vmatpush2.bf16.msra.mxu0 %v11967
  %12215 = vmatprep.subr.bf16.mxu0 %v11966
  %12216 = vmatpush2.bf16.msra.mxu0 %v11965
  %12217 = vmatprep.subr.bf16.mxu0 %v11964
  %12218 = vmatpush2.bf16.msra.mxu0 %v11963
  %12219 = vmatprep.subr.bf16.mxu0 %v11962
  %12220 = vmatpush2.bf16.msra.mxu0 %v11961
  %12221 = vmatprep.subr.bf16.mxu0 %v11960
  %12222 = vmatpush2.bf16.msra.mxu0 %v11959
  %12223 = vmatprep.subr.bf16.mxu0 %v11958
  %12224 = vmatpush2.bf16.msra.mxu0 %v11957
  %12225 = vmatprep.subr.bf16.mxu0 %v11956
  %12226 = vmatpush2.bf16.msra.mxu0 %v11955
  %12227 = vmatprep.mubr.bf16.mxu0 %v11354
  %12228 = vmatmul.mubr.bf16.gmra.mxu0 %v11353
  %v12229 = vpop.f32.mrf.mxu0
  %v12230 = vadd.f32 %v11549, %v12229
  %v12231 = vpop.f32.mrf.mxu0
  %v12232 = vadd.f32 %v11551, %v12231
  %v12233 = vpop.f32.mrf.mxu0
  %v12234 = vpop.f32.mrf.mxu0
  %12235 = vdwg.mxu0
  %12236 = vmatprep.subr.bf16.mxu0 %v11986
  %12237 = vmatpush1.bf16.msra.mxu0 %v11985
  %12238 = vmatprep.subr.bf16.mxu0 %v11984
  %12239 = vmatpush1.bf16.msra.mxu0 %v11983
  %12240 = vmatprep.subr.bf16.mxu0 %v11982
  %12241 = vmatpush1.bf16.msra.mxu0 %v11981
  %12242 = vmatprep.subr.bf16.mxu0 %v11980
  %12243 = vmatpush1.bf16.msra.mxu0 %v11979
  %12244 = vmatprep.subr.bf16.mxu0 %v11978
  %12245 = vmatpush1.bf16.msra.mxu0 %v11977
  %12246 = vmatprep.subr.bf16.mxu0 %v11976
  %12247 = vmatpush1.bf16.msra.mxu0 %v11975
  %12248 = vmatprep.subr.bf16.mxu0 %v11974
  %12249 = vmatpush1.bf16.msra.mxu0 %v11973
  %12250 = vmatprep.subr.bf16.mxu0 %v11972
  %12251 = vmatpush1.bf16.msra.mxu0 %v11971
  %12252 = vmatprep.subr.bf16.mxu0 %v12002
  %12253 = vmatpush2.bf16.msra.mxu0 %v12001
  %12254 = vmatprep.subr.bf16.mxu0 %v12000
  %12255 = vmatpush2.bf16.msra.mxu0 %v11999
  %12256 = vmatprep.subr.bf16.mxu0 %v11998
  %12257 = vmatpush2.bf16.msra.mxu0 %v11997
  %12258 = vmatprep.subr.bf16.mxu0 %v11996
  %12259 = vmatpush2.bf16.msra.mxu0 %v11995
  %12260 = vmatprep.subr.bf16.mxu0 %v11994
  %12261 = vmatpush2.bf16.msra.mxu0 %v11993
  %12262 = vmatprep.subr.bf16.mxu0 %v11992
  %12263 = vmatpush2.bf16.msra.mxu0 %v11991
  %12264 = vmatprep.subr.bf16.mxu0 %v11990
  %12265 = vmatpush2.bf16.msra.mxu0 %v11989
  %12266 = vmatprep.subr.bf16.mxu0 %v11988
  %12267 = vmatpush2.bf16.msra.mxu0 %v11987
  %12268 = vmatprep.mubr.bf16.mxu0 %v11356
  %12269 = vmatmul.mubr.bf16.gmra.mxu0 %v11355
  %v12270 = vpop.f32.mrf.mxu0
  %v12271 = vadd.f32 %v12230, %v12270
  %v12272 = vpop.f32.mrf.mxu0
  %v12273 = vadd.f32 %v12232, %v12272
  %v12274 = vpop.f32.mrf.mxu0
  %v12275 = vpop.f32.mrf.mxu0
  %12276 = vdwg.mxu0
  %12277 = vmatprep.subr.bf16.mxu0 %v12018
  %12278 = vmatpush1.bf16.msra.mxu0 %v12017
  %12279 = vmatprep.subr.bf16.mxu0 %v12016
  %12280 = vmatpush1.bf16.msra.mxu0 %v12015
  %12281 = vmatprep.subr.bf16.mxu0 %v12014
  %12282 = vmatpush1.bf16.msra.mxu0 %v12013
  %12283 = vmatprep.subr.bf16.mxu0 %v12012
  %12284 = vmatpush1.bf16.msra.mxu0 %v12011
  %12285 = vmatprep.subr.bf16.mxu0 %v12010
  %12286 = vmatpush1.bf16.msra.mxu0 %v12009
  %12287 = vmatprep.subr.bf16.mxu0 %v12008
  %12288 = vmatpush1.bf16.msra.mxu0 %v12007
  %12289 = vmatprep.subr.bf16.mxu0 %v12006
  %12290 = vmatpush1.bf16.msra.mxu0 %v12005
  %12291 = vmatprep.subr.bf16.mxu0 %v12004
  %12292 = vmatpush1.bf16.msra.mxu0 %v12003
  %12293 = vmatprep.subr.bf16.mxu0 %v12034
  %12294 = vmatpush2.bf16.msra.mxu0 %v12033
  %12295 = vmatprep.subr.bf16.mxu0 %v12032
  %12296 = vmatpush2.bf16.msra.mxu0 %v12031
  %12297 = vmatprep.subr.bf16.mxu0 %v12030
  %12298 = vmatpush2.bf16.msra.mxu0 %v12029
  %12299 = vmatprep.subr.bf16.mxu0 %v12028
  %12300 = vmatpush2.bf16.msra.mxu0 %v12027
  %12301 = vmatprep.subr.bf16.mxu0 %v12026
  %12302 = vmatpush2.bf16.msra.mxu0 %v12025
  %12303 = vmatprep.subr.bf16.mxu0 %v12024
  %12304 = vmatpush2.bf16.msra.mxu0 %v12023
  %12305 = vmatprep.subr.bf16.mxu0 %v12022
  %12306 = vmatpush2.bf16.msra.mxu0 %v12021
  %12307 = vmatprep.subr.bf16.mxu0 %v12020
  %12308 = vmatpush2.bf16.msra.mxu0 %v12019
  %12309 = vmatprep.mubr.bf16.mxu0 %v11358
  %12310 = vmatmul.mubr.bf16.gmra.mxu0 %v11357
  %v12311 = vpop.f32.mrf.mxu0
  %v12312 = vadd.f32 %v12271, %v12311
  %v12313 = vpop.f32.mrf.mxu0
  %v12314 = vadd.f32 %v12273, %v12313
  %v12315 = vpop.f32.mrf.mxu0
  %v12316 = vpop.f32.mrf.mxu0
  %12317 = vdwg.mxu0
  %12318 = vmatprep.subr.bf16.mxu0 %v12050
  %12319 = vmatpush1.bf16.msra.mxu0 %v12049
  %12320 = vmatprep.subr.bf16.mxu0 %v12048
  %12321 = vmatpush1.bf16.msra.mxu0 %v12047
  %12322 = vmatprep.subr.bf16.mxu0 %v12046
  %12323 = vmatpush1.bf16.msra.mxu0 %v12045
  %12324 = vmatprep.subr.bf16.mxu0 %v12044
  %12325 = vmatpush1.bf16.msra.mxu0 %v12043
  %12326 = vmatprep.subr.bf16.mxu0 %v12042
  %12327 = vmatpush1.bf16.msra.mxu0 %v12041
  %12328 = vmatprep.subr.bf16.mxu0 %v12040
  %12329 = vmatpush1.bf16.msra.mxu0 %v12039
  %12330 = vmatprep.subr.bf16.mxu0 %v12038
  %12331 = vmatpush1.bf16.msra.mxu0 %v12037
  %12332 = vmatprep.subr.bf16.mxu0 %v12036
  %12333 = vmatpush1.bf16.msra.mxu0 %v12035
  %12334 = vmatprep.subr.bf16.mxu0 %v12066
  %12335 = vmatpush2.bf16.msra.mxu0 %v12065
  %12336 = vmatprep.subr.bf16.mxu0 %v12064
  %12337 = vmatpush2.bf16.msra.mxu0 %v12063
  %12338 = vmatprep.subr.bf16.mxu0 %v12062
  %12339 = vmatpush2.bf16.msra.mxu0 %v12061
  %12340 = vmatprep.subr.bf16.mxu0 %v12060
  %12341 = vmatpush2.bf16.msra.mxu0 %v12059
  %12342 = vmatprep.subr.bf16.mxu0 %v12058
  %12343 = vmatpush2.bf16.msra.mxu0 %v12057
  %12344 = vmatprep.subr.bf16.mxu0 %v12056
  %12345 = vmatpush2.bf16.msra.mxu0 %v12055
  %12346 = vmatprep.subr.bf16.mxu0 %v12054
  %12347 = vmatpush2.bf16.msra.mxu0 %v12053
  %12348 = vmatprep.subr.bf16.mxu0 %v12052
  %12349 = vmatpush2.bf16.msra.mxu0 %v12051
  %12350 = vmatprep.mubr.bf16.mxu0 %v11360
  %12351 = vmatmul.mubr.bf16.gmra.mxu0 %v11359
  %v12352 = vpop.f32.mrf.mxu0
  %v12353 = vadd.f32 %v12312, %v12352
  %v12354 = vpop.f32.mrf.mxu0
  %v12355 = vadd.f32 %v12314, %v12354
  %v12356 = vpop.f32.mrf.mxu0
  %v12357 = vpop.f32.mrf.mxu0
  %12358 = vdwg.mxu0
  %v12359 = vld [vmem:[%s12] sm:$0x3]
  %v12361 = vlaneseq
  %v12362 = vshrl.u32 %v12361, 7
  %v12363 = vsub.s32 0, %v12362
  %v12364 = vrot.slane %v12359, %v12363
  %v12365 = vlaneseq
  %v12366 = vshrl.u32 %v12365, 7
  %v12367 = vsub.s32 1, %v12366
  %v12368 = vrot.slane %v12359, %v12367
  %v12371 = vadd.f32 %v12353, %v12364
  %v12372 = vadd.f32 %v12355, %v12368
  %v12373 = vmax.f32 %v12371, 0.0
  %v12374 = vmax.f32 %v12372, 0.0
  %v12377 = vcombine.low %v12373, %v12374
  %v12379 = vunpack.c.l.s4 1983009808
  %v12380 = vunpack.c.0.s8 %v12379
  %v12381 = vlaneseq
  %v12382 = vshrl.u32 %v12381, 7
  %v12383 = vsub.s32 %v12380, %v12382
  %v12384 = vrot.slane %v12377, %v12383
  %12386 = vst [vmem:[%s13] sm:$0xf] %v12384
  // Predicated region
  $region54: #{encoder_forward.1} parent=0 // pred_check
    _
  $region55: #{encoder_forward.1} parent=0 // pred_check_branch
    %12388 = sbr.rel (0) target = $region57
  $region56: #{encoder_forward.1} parent=0 // pred_region
    _
  $region57: #{encoder_forward.1} parent=0 // pred_fallthru
    _
  // Predicated region
  $region58: #{encoder_forward.1} parent=0 // pred_check
    _
  $region59: #{encoder_forward.1} parent=0 // pred_check_branch
    %12390 = sbr.rel (0) target = $region61
  $region60: #{encoder_forward.1} parent=0 // pred_region
    _
  $region61: #{encoder_forward.1} parent=0 // pred_fallthru
    _

</llo_original>
